<compile_context>
chip_gen: v6e
topology: v6e:2x2x1
jax: 0.10.0
libtpu: 0.0.40
codegen_flags: <defaults>
</compile_context>

<pallas_src>
import functools

import jax
import jax.numpy as jnp
from jax.experimental import pallas as pl
from jax.experimental.pallas import tpu as pltpu

_C1 = 32          # conv1 out channels
_C2 = 64          # conv2 out channels
_HID = 128        # fc1 width
_NPAD = 128       # lane-dense padded logits width


def _fused_cnn_kernel(p_ref, cw1_ref, cb1_ref, cw2_ref, cb2_ref,
                      fw1_ref, fb1_ref, fw2_ref, fb2_ref,
                      o_ref,
                      a1_scr, x2_scr, a2_scr, feat_scr):
    """Full SimpleCNN forward for one 32x32 image (grid=(B,))."""
    f32 = jnp.float32
    bf16 = jnp.bfloat16

    # ---- Conv1 (3x3, pad=1) as an im2col GEMM, row-chunked, + bias + ReLU ----
    # p_ref: (1, 1024, 27) bf16, row = y*32 + x, col = dy*9 + dx*3 + cin
    for r in range(4):                                     # 8 conv rows / chunk
        lhs = p_ref[0, pl.ds(r * 256, 256), :]             # (256, 27) bf16
        acc = jnp.dot(lhs, cw1_ref[...], preferred_element_type=f32)
        acc = jnp.maximum(acc + cb1_ref[...], 0.0)         # (256, 32) f32
        a1_scr[pl.ds(r * 256, 256), :] = acc

    # ---- MaxPool 2x2: (32,32,32) -> (16,16,32) ----
    w0 = a1_scr[pl.ds(0, 512, stride=2), :]                # x even
    w1 = a1_scr[pl.ds(1, 512, stride=2), :]                # x odd
    wp = jnp.maximum(w0, w1)                               # (512, 32), row=y*16+x'
    wp = wp.reshape(32, 16, _C1)                           # (y, x', c)
    wp = wp.reshape(16, 2, 16, _C1)                        # (y', parity, x', c)
    pooled1 = jnp.max(wp, axis=1)                          # (16, 16, 32) f32

    # ---- Zero-padded conv2 input kept in VMEM (no wrapper-side pad) ----
    x2_scr[...] = jnp.zeros_like(x2_scr)
    x2_scr[pl.ds(1, 16), pl.ds(1, 16), :] = pooled1        # interior of (18,18,32)

    # ---- Conv2 (3x3, pad=1) as 9 shifted GEMMs, row-chunked, + bias + ReLU ----
    for r in range(2):                                     # 8 output rows / chunk
        acc = jnp.zeros((128, _C2), f32)
        for dy in range(3):
            for dx in range(3):
                patch = x2_scr[pl.ds(r * 8 + dy, 8), pl.ds(dx, 16), :]   # (8,16,32)
                patch = patch.reshape(128, _C1).astype(bf16)
                acc = acc + jnp.dot(patch, cw2_ref[dy, dx],
                                    preferred_element_type=f32)
        acc = jnp.maximum(acc + cb2_ref[...], 0.0)         # (128, 64)
        a2_scr[pl.ds(r * 128, 128), :] = acc

    # ---- MaxPool 2x2: (16,16,64) -> (8,8,64) ----
    v0 = a2_scr[pl.ds(0, 128, stride=2), :]
    v1 = a2_scr[pl.ds(1, 128, stride=2), :]
    vp = jnp.maximum(v0, v1)                               # (128, 64), row=y*8+x'
    vp = vp.reshape(16, 8, _C2)
    vp = vp.reshape(8, 2, 8, _C2)
    pooled2 = jnp.max(vp, axis=1).reshape(64, _C2)         # (64, 64): [s=y*8+x, c]

    # ---- Flatten (NHWC order; fc1 rows were pre-permuted to match) ----
    for s in range(64):
        feat_scr[:, pl.ds(s * _C2, _C2)] = pooled2[s:s + 1, :]
    feat = feat_scr[...].astype(bf16)                      # (1, 4096) bf16

    # ---- MLP head: Linear(4096,128) -> ReLU -> Linear(128, classes padded) ----
    h = jnp.dot(feat, fw1_ref[...], preferred_element_type=f32) + fb1_ref[...]
    h = jnp.maximum(h, 0.0).astype(bf16)                   # (1, 128)
    out = jnp.dot(h, fw2_ref[...], preferred_element_type=f32) + fb2_ref[...]
    o_ref[0] = out                                         # (1, 128) f32


def init_params(key, num_classes=10):
    """Deterministic synthetic params (PyTorch-style uniform(-1/sqrt(fan_in)))."""
    ks = jax.random.split(key, 8)

    def u(k, shape, fan_in):
        bound = 1.0 / jnp.sqrt(jnp.float32(fan_in))
        return jax.random.uniform(k, shape, jnp.float32, -bound, bound)

    return {
        "cw1": u(ks[0], (3, 3, 3, 32), 3 * 3 * 3),       # HWIO
        "cb1": u(ks[1], (32,), 3 * 3 * 3),
        "cw2": u(ks[2], (3, 3, 32, 64), 3 * 3 * 32),
        "cb2": u(ks[3], (64,), 3 * 3 * 32),
        "fw1": u(ks[4], (64 * 8 * 8, 128), 64 * 8 * 8),  # rows in NCHW-flatten order
        "fb1": u(ks[5], (128,), 64 * 8 * 8),
        "fw2": u(ks[6], (128, num_classes), 128),
        "fb2": u(ks[7], (num_classes,), 128),
    }


def prepare_params(params):
    """One-time host repack: bf16 matmul weights, fc1 rows permuted from the
    PyTorch NCHW-flatten order (c,y,x) to the kernel's NHWC order (y,x,c),
    fc2 padded to a lane-dense 128-wide output."""
    num_classes = params["fw2"].shape[1]
    cw1 = params["cw1"].reshape(27, 32).astype(jnp.bfloat16)        # (dy,dx,cin)->rows
    cb1 = params["cb1"].reshape(1, 32).astype(jnp.float32)
    cw2 = params["cw2"].astype(jnp.bfloat16)                        # (3,3,32,64)
    cb2 = params["cb2"].reshape(1, 64).astype(jnp.float32)
    fw1 = (params["fw1"].reshape(64, 8, 8, _HID)                    # (c, y, x, j)
           .transpose(1, 2, 0, 3)                                   # (y, x, c, j)
           .reshape(64 * 8 * 8, _HID).astype(jnp.bfloat16))
    fb1 = params["fb1"].reshape(1, _HID).astype(jnp.float32)
    fw2 = jnp.zeros((_HID, _NPAD), jnp.float32).at[:, :num_classes].set(params["fw2"])
    fw2 = fw2.astype(jnp.bfloat16)
    fb2 = jnp.zeros((1, _NPAD), jnp.float32).at[0, :num_classes].set(params["fb2"])
    return {"cw1": cw1, "cb1": cb1, "cw2": cw2, "cb2": cb2,
            "fw1": fw1, "fb1": fb1, "fw2": fw2, "fb2": fb2}


@functools.partial(jax.jit, static_argnames=("num_classes",))
def simple_cnn_forward(x_nchw, prep, num_classes=10):
    B = x_nchw.shape[0]
    x = jnp.transpose(x_nchw, (0, 2, 3, 1)).astype(jnp.float32)     # (B,32,32,3)
    xp = jnp.pad(x, ((0, 0), (1, 1), (1, 1), (0, 0)))
    # conv1 im2col patches: (B, 1024, 27), col = dy*9 + dx*3 + cin.
    cols = [xp[:, dy:dy + 32, dx:dx + 32, :] for dy in range(3) for dx in range(3)]
    patches = jnp.concatenate(cols, axis=-1).reshape(B, 1024, 27).astype(jnp.bfloat16)

    out = pl.pallas_call(
        _fused_cnn_kernel,
        out_shape=jax.ShapeDtypeStruct((B, 1, _NPAD), jnp.float32),
        grid=(B,),
        in_specs=[
            pl.BlockSpec((1, 1024, 27), lambda b: (b, 0, 0)),       # patches (per image)
            pl.BlockSpec((27, 32), lambda b: (0, 0)),               # conv1 w (bf16)
            pl.BlockSpec((1, 32), lambda b: (0, 0)),                # conv1 b
            pl.BlockSpec((3, 3, 32, 64), lambda b: (0, 0, 0, 0)),   # conv2 w (bf16)
            pl.BlockSpec((1, 64), lambda b: (0, 0)),                # conv2 b
            pl.BlockSpec((64 * 8 * 8, _HID), lambda b: (0, 0)),     # fc1 w (bf16, permuted)
            pl.BlockSpec((1, _HID), lambda b: (0, 0)),              # fc1 b
            pl.BlockSpec((_HID, _NPAD), lambda b: (0, 0)),          # fc2 w (bf16, padded)
            pl.BlockSpec((1, _NPAD), lambda b: (0, 0)),             # fc2 b (padded)
        ],
        out_specs=pl.BlockSpec((1, 1, _NPAD), lambda b: (b, 0, 0)),
        scratch_shapes=[
            pltpu.VMEM((1024, 32), jnp.float32),    # conv1 activation (row=y*32+x)
            pltpu.VMEM((18, 18, 32), jnp.float32),  # zero-padded conv2 input
            pltpu.VMEM((256, 64), jnp.float32),     # conv2 activation (row=y*16+x)
            pltpu.VMEM((1, 4096), jnp.float32),     # flattened features
        ],
        compiler_params=pltpu.CompilerParams(
            dimension_semantics=("parallel",)),
    )(patches, prep["cw1"], prep["cb1"], prep["cw2"], prep["cb2"],
      prep["fw1"], prep["fb1"], prep["fw2"], prep["fb2"])

    return out.reshape(B, _NPAD)[:, :num_classes]


if __name__ == "__main__":
    key = jax.random.PRNGKey(0)
    pkey, xkey = jax.random.split(key)
    params = init_params(pkey, num_classes=10)
    prep = prepare_params(params)   # one-time host-side repack
    # PyTorch-style NCHW input; 32x32 spatial is implied by Linear(64*8*8, 128).
    x = jax.random.normal(xkey, (2, 3, 32, 32), jnp.float32)
    out = simple_cnn_forward(x, prep, num_classes=10)
    jax.block_until_ready(out)
    assert out.shape == (2, 10) and out.dtype == jnp.float32
    assert bool(jnp.all(jnp.isfinite(out)))
    print("KERNEL_OK")
</pallas_src>

<mosaic_0001>
module attributes {stable_mosaic.version = 11 : i64} {
  func.func @_fused_cnn_kernel(%arg0: i32, %arg1: memref<1x1024x27xbf16, #tpu.memory_space<vmem>>, %arg2: memref<27x32xbf16, #tpu.memory_space<vmem>>, %arg3: memref<1x32xf32, #tpu.memory_space<vmem>>, %arg4: memref<3x3x32x64xbf16, #tpu.memory_space<vmem>>, %arg5: memref<1x64xf32, #tpu.memory_space<vmem>>, %arg6: memref<4096x128xbf16, #tpu.memory_space<vmem>>, %arg7: memref<1x128xf32, #tpu.memory_space<vmem>>, %arg8: memref<128x128xbf16, #tpu.memory_space<vmem>>, %arg9: memref<1x128xf32, #tpu.memory_space<vmem>>, %arg10: memref<1x1x128xf32, #tpu.memory_space<vmem>>, %arg11: memref<1024x32xf32, #tpu.memory_space<vmem>>, %arg12: memref<18x18x32xf32, #tpu.memory_space<vmem>>, %arg13: memref<256x64xf32, #tpu.memory_space<vmem>>, %arg14: memref<1x4096xf32, #tpu.memory_space<vmem>>) attributes {dimension_semantics = [#tpu.dimension_semantics<parallel>], iteration_bounds = array<i64: 2>, scalar_prefetch = 0 : i64, scratch_operands = 4 : i64, tpu.core_type = #tpu.core_type<tc>, window_params = [{transform_indices = @transform_0, window_bounds = array<i64: 1, 1024, 27>}, {pipeline_mode = #tpu.pipeline_mode<synchronous>, transform_indices = @transform_1, window_bounds = array<i64: 27, 32>}, {pipeline_mode = #tpu.pipeline_mode<synchronous>, transform_indices = @transform_2, window_bounds = array<i64: 1, 32>}, {pipeline_mode = #tpu.pipeline_mode<synchronous>, transform_indices = @transform_3, window_bounds = array<i64: 3, 3, 32, 64>}, {pipeline_mode = #tpu.pipeline_mode<synchronous>, transform_indices = @transform_4, window_bounds = array<i64: 1, 64>}, {pipeline_mode = #tpu.pipeline_mode<synchronous>, transform_indices = @transform_5, window_bounds = array<i64: 4096, 128>}, {pipeline_mode = #tpu.pipeline_mode<synchronous>, transform_indices = @transform_6, window_bounds = array<i64: 1, 128>}, {pipeline_mode = #tpu.pipeline_mode<synchronous>, transform_indices = @transform_7, window_bounds = array<i64: 128, 128>}, {pipeline_mode = #tpu.pipeline_mode<synchronous>, transform_indices = @transform_8, window_bounds = array<i64: 1, 128>}, {transform_indices = @transform_9, window_bounds = array<i64: 1, 1, 128>}]} {
    %c0 = arith.constant 0 : index
    %c0_0 = arith.constant 0 : index
    %c0_1 = arith.constant 0 : index
    %0 = vector.load %arg1[%c0, %c0_0, %c0_1] : memref<1x1024x27xbf16, #tpu.memory_space<vmem>>, vector<1x256x27xbf16>
    %1 = vector.shape_cast %0 : vector<1x256x27xbf16> to vector<256x27xbf16>
    %c0_2 = arith.constant 0 : index
    %c0_3 = arith.constant 0 : index
    %2 = vector.load %arg2[%c0_2, %c0_3] : memref<27x32xbf16, #tpu.memory_space<vmem>>, vector<27x32xbf16>
    %cst = arith.constant dense<0.000000e+00> : vector<256x32xf32>
    %3 = tpu.matmul %1, %2, %cst {dimension_numbers = #tpu.dot_dimension_numbers<[1], [0], [0], [1], [0, 0, 1, 1], [], []>} : vector<256x27xbf16>, vector<27x32xbf16>, vector<256x32xf32> -> vector<256x32xf32>
    %c0_4 = arith.constant 0 : index
    %c0_5 = arith.constant 0 : index
    %4 = vector.load %arg3[%c0_4, %c0_5] : memref<1x32xf32, #tpu.memory_space<vmem>>, vector<1x32xf32>
    %5 = vector.broadcast %4 : vector<1x32xf32> to vector<256x32xf32>
    %6 = arith.addf %3, %5 : vector<256x32xf32>
    %cst_6 = arith.constant 0.000000e+00 : f32
    %7 = vector.broadcast %cst_6 : f32 to vector<256x32xf32>
    %8 = arith.maximumf %6, %7 : vector<256x32xf32>
    %c0_7 = arith.constant 0 : index
    %c0_8 = arith.constant 0 : index
    %9 = vector.load %arg11[%c0_7, %c0_8] : memref<1024x32xf32, #tpu.memory_space<vmem>>, vector<256x32xf32>
    tpu.vector_store %arg11[%c0_7, %c0_8], %8 {strides = array<i32>} : memref<1024x32xf32, #tpu.memory_space<vmem>>, vector<256x32xf32>,
    %c0_9 = arith.constant 0 : index
    %c256 = arith.constant 256 : index
    %c0_10 = arith.constant 0 : index
    %10 = vector.load %arg1[%c0_9, %c256, %c0_10] : memref<1x1024x27xbf16, #tpu.memory_space<vmem>>, vector<1x256x27xbf16>
    %11 = vector.shape_cast %10 : vector<1x256x27xbf16> to vector<256x27xbf16>
    %c0_11 = arith.constant 0 : index
    %c0_12 = arith.constant 0 : index
    %12 = vector.load %arg2[%c0_11, %c0_12] : memref<27x32xbf16, #tpu.memory_space<vmem>>, vector<27x32xbf16>
    %cst_13 = arith.constant dense<0.000000e+00> : vector<256x32xf32>
    %13 = tpu.matmul %11, %12, %cst_13 {dimension_numbers = #tpu.dot_dimension_numbers<[1], [0], [0], [1], [0, 0, 1, 1], [], []>} : vector<256x27xbf16>, vector<27x32xbf16>, vector<256x32xf32> -> vector<256x32xf32>
    %c0_14 = arith.constant 0 : index
    %c0_15 = arith.constant 0 : index
    %14 = vector.load %arg3[%c0_14, %c0_15] : memref<1x32xf32, #tpu.memory_space<vmem>>, vector<1x32xf32>
    %15 = vector.broadcast %14 : vector<1x32xf32> to vector<256x32xf32>
    %16 = arith.addf %13, %15 : vector<256x32xf32>
    %cst_16 = arith.constant 0.000000e+00 : f32
    %17 = vector.broadcast %cst_16 : f32 to vector<256x32xf32>
    %18 = arith.maximumf %16, %17 : vector<256x32xf32>
    %c256_17 = arith.constant 256 : index
    %c0_18 = arith.constant 0 : index
    %19 = vector.load %arg11[%c256_17, %c0_18] : memref<1024x32xf32, #tpu.memory_space<vmem>>, vector<256x32xf32>
    tpu.vector_store %arg11[%c256_17, %c0_18], %18 {strides = array<i32>} : memref<1024x32xf32, #tpu.memory_space<vmem>>, vector<256x32xf32>,
    %c0_19 = arith.constant 0 : index
    %c512 = arith.constant 512 : index
    %c0_20 = arith.constant 0 : index
    %20 = vector.load %arg1[%c0_19, %c512, %c0_20] : memref<1x1024x27xbf16, #tpu.memory_space<vmem>>, vector<1x256x27xbf16>
    %21 = vector.shape_cast %20 : vector<1x256x27xbf16> to vector<256x27xbf16>
    %c0_21 = arith.constant 0 : index
    %c0_22 = arith.constant 0 : index
    %22 = vector.load %arg2[%c0_21, %c0_22] : memref<27x32xbf16, #tpu.memory_space<vmem>>, vector<27x32xbf16>
    %cst_23 = arith.constant dense<0.000000e+00> : vector<256x32xf32>
    %23 = tpu.matmul %21, %22, %cst_23 {dimension_numbers = #tpu.dot_dimension_numbers<[1], [0], [0], [1], [0, 0, 1, 1], [], []>} : vector<256x27xbf16>, vector<27x32xbf16>, vector<256x32xf32> -> vector<256x32xf32>
    %c0_24 = arith.constant 0 : index
    %c0_25 = arith.constant 0 : index
    %24 = vector.load %arg3[%c0_24, %c0_25] : memref<1x32xf32, #tpu.memory_space<vmem>>, vector<1x32xf32>
    %25 = vector.broadcast %24 : vector<1x32xf32> to vector<256x32xf32>
    %26 = arith.addf %23, %25 : vector<256x32xf32>
    %cst_26 = arith.constant 0.000000e+00 : f32
    %27 = vector.broadcast %cst_26 : f32 to vector<256x32xf32>
    %28 = arith.maximumf %26, %27 : vector<256x32xf32>
    %c512_27 = arith.constant 512 : index
    %c0_28 = arith.constant 0 : index
    %29 = vector.load %arg11[%c512_27, %c0_28] : memref<1024x32xf32, #tpu.memory_space<vmem>>, vector<256x32xf32>
    tpu.vector_store %arg11[%c512_27, %c0_28], %28 {strides = array<i32>} : memref<1024x32xf32, #tpu.memory_space<vmem>>, vector<256x32xf32>,
    %c0_29 = arith.constant 0 : index
    %c768 = arith.constant 768 : index
    %c0_30 = arith.constant 0 : index
    %30 = vector.load %arg1[%c0_29, %c768, %c0_30] : memref<1x1024x27xbf16, #tpu.memory_space<vmem>>, vector<1x256x27xbf16>
    %31 = vector.shape_cast %30 : vector<1x256x27xbf16> to vector<256x27xbf16>
    %c0_31 = arith.constant 0 : index
    %c0_32 = arith.constant 0 : index
    %32 = vector.load %arg2[%c0_31, %c0_32] : memref<27x32xbf16, #tpu.memory_space<vmem>>, vector<27x32xbf16>
    %cst_33 = arith.constant dense<0.000000e+00> : vector<256x32xf32>
    %33 = tpu.matmul %31, %32, %cst_33 {dimension_numbers = #tpu.dot_dimension_numbers<[1], [0], [0], [1], [0, 0, 1, 1], [], []>} : vector<256x27xbf16>, vector<27x32xbf16>, vector<256x32xf32> -> vector<256x32xf32>
    %c0_34 = arith.constant 0 : index
    %c0_35 = arith.constant 0 : index
    %34 = vector.load %arg3[%c0_34, %c0_35] : memref<1x32xf32, #tpu.memory_space<vmem>>, vector<1x32xf32>
    %35 = vector.broadcast %34 : vector<1x32xf32> to vector<256x32xf32>
    %36 = arith.addf %33, %35 : vector<256x32xf32>
    %cst_36 = arith.constant 0.000000e+00 : f32
    %37 = vector.broadcast %cst_36 : f32 to vector<256x32xf32>
    %38 = arith.maximumf %36, %37 : vector<256x32xf32>
    %c768_37 = arith.constant 768 : index
    %c0_38 = arith.constant 0 : index
    %39 = vector.load %arg11[%c768_37, %c0_38] : memref<1024x32xf32, #tpu.memory_space<vmem>>, vector<256x32xf32>
    tpu.vector_store %arg11[%c768_37, %c0_38], %38 {strides = array<i32>} : memref<1024x32xf32, #tpu.memory_space<vmem>>, vector<256x32xf32>,
    %c0_39 = arith.constant 0 : index
    %c0_40 = arith.constant 0 : index
    %40 = tpu.strided_load %arg11[%c0_39, %c0_40] {strides = array<i32: 2, 1>} : memref<1024x32xf32, #tpu.memory_space<vmem>>, vector<512x32xf32>
    %c1 = arith.constant 1 : index
    %c0_41 = arith.constant 0 : index
    %41 = tpu.strided_load %arg11[%c1, %c0_41] {strides = array<i32: 2, 1>} : memref<1024x32xf32, #tpu.memory_space<vmem>>, vector<512x32xf32>
    %42 = arith.maximumf %40, %41 : vector<512x32xf32>
    %43 = vector.shape_cast %42 : vector<512x32xf32> to vector<32x16x32xf32>
    %44 = vector.shape_cast %43 : vector<32x16x32xf32> to vector<16x2x16x32xf32>
    %cst_42 = arith.constant dense<0xFF800000> : vector<16x16x32xf32>
    %45 = vector.multi_reduction <maximumf>, %44, %cst_42 [1] : vector<16x2x16x32xf32> to vector<16x16x32xf32>
    %cst_43 = arith.constant 0.000000e+00 : f32
    %46 = vector.broadcast %cst_43 : f32 to vector<18x18x32xf32>
    %c0_44 = arith.constant 0 : index
    %c0_45 = arith.constant 0 : index
    %c0_46 = arith.constant 0 : index
    %47 = vector.load %arg12[%c0_44, %c0_45, %c0_46] : memref<18x18x32xf32, #tpu.memory_space<vmem>>, vector<18x18x32xf32>
    tpu.vector_store %arg12[%c0_44, %c0_45, %c0_46], %46 {strides = array<i32>} : memref<18x18x32xf32, #tpu.memory_space<vmem>>, vector<18x18x32xf32>,
    %c1_47 = arith.constant 1 : index
    %c1_48 = arith.constant 1 : index
    %c0_49 = arith.constant 0 : index
    %48 = vector.load %arg12[%c1_47, %c1_48, %c0_49] : memref<18x18x32xf32, #tpu.memory_space<vmem>>, vector<16x16x32xf32>
    tpu.vector_store %arg12[%c1_47, %c1_48, %c0_49], %45 {strides = array<i32>} : memref<18x18x32xf32, #tpu.memory_space<vmem>>, vector<16x16x32xf32>,
    %cst_50 = arith.constant 0.000000e+00 : f32
    %49 = vector.broadcast %cst_50 : f32 to vector<128x64xf32>
    %c0_51 = arith.constant 0 : index
    %c0_52 = arith.constant 0 : index
    %c0_53 = arith.constant 0 : index
    %50 = vector.load %arg12[%c0_51, %c0_52, %c0_53] : memref<18x18x32xf32, #tpu.memory_space<vmem>>, vector<8x16x32xf32>
    %51 = vector.shape_cast %50 : vector<8x16x32xf32> to vector<128x32xf32>
    %52 = arith.truncf %51 : vector<128x32xf32> to vector<128x32xbf16>
    %c0_54 = arith.constant 0 : index
    %c0_55 = arith.constant 0 : index
    %c0_56 = arith.constant 0 : index
    %c0_57 = arith.constant 0 : index
    %53 = vector.load %arg4[%c0_54, %c0_55, %c0_56, %c0_57] : memref<3x3x32x64xbf16, #tpu.memory_space<vmem>>, vector<1x1x32x64xbf16>
    %54 = vector.shape_cast %53 : vector<1x1x32x64xbf16> to vector<32x64xbf16>
    %cst_58 = arith.constant dense<0.000000e+00> : vector<128x64xf32>
    %55 = tpu.matmul %52, %54, %cst_58 {dimension_numbers = #tpu.dot_dimension_numbers<[1], [0], [0], [1], [0, 0, 1, 1], [], []>} : vector<128x32xbf16>, vector<32x64xbf16>, vector<128x64xf32> -> vector<128x64xf32>
    %56 = arith.addf %49, %55 : vector<128x64xf32>
    %c0_59 = arith.constant 0 : index
    %c1_60 = arith.constant 1 : index
    %c0_61 = arith.constant 0 : index
    %57 = vector.load %arg12[%c0_59, %c1_60, %c0_61] : memref<18x18x32xf32, #tpu.memory_space<vmem>>, vector<8x16x32xf32>
    %58 = vector.shape_cast %57 : vector<8x16x32xf32> to vector<128x32xf32>
    %59 = arith.truncf %58 : vector<128x32xf32> to vector<128x32xbf16>
    %c0_62 = arith.constant 0 : index
    %c1_63 = arith.constant 1 : index
    %c0_64 = arith.constant 0 : index
    %c0_65 = arith.constant 0 : index
    %60 = vector.load %arg4[%c0_62, %c1_63, %c0_64, %c0_65] : memref<3x3x32x64xbf16, #tpu.memory_space<vmem>>, vector<1x1x32x64xbf16>
    %61 = vector.shape_cast %60 : vector<1x1x32x64xbf16> to vector<32x64xbf16>
    %cst_66 = arith.constant dense<0.000000e+00> : vector<128x64xf32>
    %62 = tpu.matmul %59, %61, %cst_66 {dimension_numbers = #tpu.dot_dimension_numbers<[1], [0], [0], [1], [0, 0, 1, 1], [], []>} : vector<128x32xbf16>, vector<32x64xbf16>, vector<128x64xf32> -> vector<128x64xf32>
    %63 = arith.addf %56, %62 : vector<128x64xf32>
    %c0_67 = arith.constant 0 : index
    %c2 = arith.constant 2 : index
    %c0_68 = arith.constant 0 : index
    %64 = vector.load %arg12[%c0_67, %c2, %c0_68] : memref<18x18x32xf32, #tpu.memory_space<vmem>>, vector<8x16x32xf32>
    %65 = vector.shape_cast %64 : vector<8x16x32xf32> to vector<128x32xf32>
    %66 = arith.truncf %65 : vector<128x32xf32> to vector<128x32xbf16>
    %c0_69 = arith.constant 0 : index
    %c2_70 = arith.constant 2 : index
    %c0_71 = arith.constant 0 : index
    %c0_72 = arith.constant 0 : index
    %67 = vector.load %arg4[%c0_69, %c2_70, %c0_71, %c0_72] : memref<3x3x32x64xbf16, #tpu.memory_space<vmem>>, vector<1x1x32x64xbf16>
    %68 = vector.shape_cast %67 : vector<1x1x32x64xbf16> to vector<32x64xbf16>
    %cst_73 = arith.constant dense<0.000000e+00> : vector<128x64xf32>
    %69 = tpu.matmul %66, %68, %cst_73 {dimension_numbers = #tpu.dot_dimension_numbers<[1], [0], [0], [1], [0, 0, 1, 1], [], []>} : vector<128x32xbf16>, vector<32x64xbf16>, vector<128x64xf32> -> vector<128x64xf32>
    %70 = arith.addf %63, %69 : vector<128x64xf32>
    %c1_74 = arith.constant 1 : index
    %c0_75 = arith.constant 0 : index
    %c0_76 = arith.constant 0 : index
    %71 = vector.load %arg12[%c1_74, %c0_75, %c0_76] : memref<18x18x32xf32, #tpu.memory_space<vmem>>, vector<8x16x32xf32>
    %72 = vector.shape_cast %71 : vector<8x16x32xf32> to vector<128x32xf32>
    %73 = arith.truncf %72 : vector<128x32xf32> to vector<128x32xbf16>
    %c1_77 = arith.constant 1 : index
    %c0_78 = arith.constant 0 : index
    %c0_79 = arith.constant 0 : index
    %c0_80 = arith.constant 0 : index
    %74 = vector.load %arg4[%c1_77, %c0_78, %c0_79, %c0_80] : memref<3x3x32x64xbf16, #tpu.memory_space<vmem>>, vector<1x1x32x64xbf16>
    %75 = vector.shape_cast %74 : vector<1x1x32x64xbf16> to vector<32x64xbf16>
    %cst_81 = arith.constant dense<0.000000e+00> : vector<128x64xf32>
    %76 = tpu.matmul %73, %75, %cst_81 {dimension_numbers = #tpu.dot_dimension_numbers<[1], [0], [0], [1], [0, 0, 1, 1], [], []>} : vector<128x32xbf16>, vector<32x64xbf16>, vector<128x64xf32> -> vector<128x64xf32>
    %77 = arith.addf %70, %76 : vector<128x64xf32>
    %c1_82 = arith.constant 1 : index
    %c1_83 = arith.constant 1 : index
    %c0_84 = arith.constant 0 : index
    %78 = vector.load %arg12[%c1_82, %c1_83, %c0_84] : memref<18x18x32xf32, #tpu.memory_space<vmem>>, vector<8x16x32xf32>
    %79 = vector.shape_cast %78 : vector<8x16x32xf32> to vector<128x32xf32>
    %80 = arith.truncf %79 : vector<128x32xf32> to vector<128x32xbf16>
    %c1_85 = arith.constant 1 : index
    %c1_86 = arith.constant 1 : index
    %c0_87 = arith.constant 0 : index
    %c0_88 = arith.constant 0 : index
    %81 = vector.load %arg4[%c1_85, %c1_86, %c0_87, %c0_88] : memref<3x3x32x64xbf16, #tpu.memory_space<vmem>>, vector<1x1x32x64xbf16>
    %82 = vector.shape_cast %81 : vector<1x1x32x64xbf16> to vector<32x64xbf16>
    %cst_89 = arith.constant dense<0.000000e+00> : vector<128x64xf32>
    %83 = tpu.matmul %80, %82, %cst_89 {dimension_numbers = #tpu.dot_dimension_numbers<[1], [0], [0], [1], [0, 0, 1, 1], [], []>} : vector<128x32xbf16>, vector<32x64xbf16>, vector<128x64xf32> -> vector<128x64xf32>
    %84 = arith.addf %77, %83 : vector<128x64xf32>
    %c1_90 = arith.constant 1 : index
    %c2_91 = arith.constant 2 : index
    %c0_92 = arith.constant 0 : index
    %85 = vector.load %arg12[%c1_90, %c2_91, %c0_92] : memref<18x18x32xf32, #tpu.memory_space<vmem>>, vector<8x16x32xf32>
    %86 = vector.shape_cast %85 : vector<8x16x32xf32> to vector<128x32xf32>
    %87 = arith.truncf %86 : vector<128x32xf32> to vector<128x32xbf16>
    %c1_93 = arith.constant 1 : index
    %c2_94 = arith.constant 2 : index
    %c0_95 = arith.constant 0 : index
    %c0_96 = arith.constant 0 : index
    %88 = vector.load %arg4[%c1_93, %c2_94, %c0_95, %c0_96] : memref<3x3x32x64xbf16, #tpu.memory_space<vmem>>, vector<1x1x32x64xbf16>
    %89 = vector.shape_cast %88 : vector<1x1x32x64xbf16> to vector<32x64xbf16>
    %cst_97 = arith.constant dense<0.000000e+00> : vector<128x64xf32>
    %90 = tpu.matmul %87, %89, %cst_97 {dimension_numbers = #tpu.dot_dimension_numbers<[1], [0], [0], [1], [0, 0, 1, 1], [], []>} : vector<128x32xbf16>, vector<32x64xbf16>, vector<128x64xf32> -> vector<128x64xf32>
    %91 = arith.addf %84, %90 : vector<128x64xf32>
    %c2_98 = arith.constant 2 : index
    %c0_99 = arith.constant 0 : index
    %c0_100 = arith.constant 0 : index
    %92 = vector.load %arg12[%c2_98, %c0_99, %c0_100] : memref<18x18x32xf32, #tpu.memory_space<vmem>>, vector<8x16x32xf32>
    %93 = vector.shape_cast %92 : vector<8x16x32xf32> to vector<128x32xf32>
    %94 = arith.truncf %93 : vector<128x32xf32> to vector<128x32xbf16>
    %c2_101 = arith.constant 2 : index
    %c0_102 = arith.constant 0 : index
    %c0_103 = arith.constant 0 : index
    %c0_104 = arith.constant 0 : index
    %95 = vector.load %arg4[%c2_101, %c0_102, %c0_103, %c0_104] : memref<3x3x32x64xbf16, #tpu.memory_space<vmem>>, vector<1x1x32x64xbf16>
    %96 = vector.shape_cast %95 : vector<1x1x32x64xbf16> to vector<32x64xbf16>
    %cst_105 = arith.constant dense<0.000000e+00> : vector<128x64xf32>
    %97 = tpu.matmul %94, %96, %cst_105 {dimension_numbers = #tpu.dot_dimension_numbers<[1], [0], [0], [1], [0, 0, 1, 1], [], []>} : vector<128x32xbf16>, vector<32x64xbf16>, vector<128x64xf32> -> vector<128x64xf32>
    %98 = arith.addf %91, %97 : vector<128x64xf32>
    %c2_106 = arith.constant 2 : index
    %c1_107 = arith.constant 1 : index
    %c0_108 = arith.constant 0 : index
    %99 = vector.load %arg12[%c2_106, %c1_107, %c0_108] : memref<18x18x32xf32, #tpu.memory_space<vmem>>, vector<8x16x32xf32>
    %100 = vector.shape_cast %99 : vector<8x16x32xf32> to vector<128x32xf32>
    %101 = arith.truncf %100 : vector<128x32xf32> to vector<128x32xbf16>
    %c2_109 = arith.constant 2 : index
    %c1_110 = arith.constant 1 : index
    %c0_111 = arith.constant 0 : index
    %c0_112 = arith.constant 0 : index
    %102 = vector.load %arg4[%c2_109, %c1_110, %c0_111, %c0_112] : memref<3x3x32x64xbf16, #tpu.memory_space<vmem>>, vector<1x1x32x64xbf16>
    %103 = vector.shape_cast %102 : vector<1x1x32x64xbf16> to vector<32x64xbf16>
    %cst_113 = arith.constant dense<0.000000e+00> : vector<128x64xf32>
    %104 = tpu.matmul %101, %103, %cst_113 {dimension_numbers = #tpu.dot_dimension_numbers<[1], [0], [0], [1], [0, 0, 1, 1], [], []>} : vector<128x32xbf16>, vector<32x64xbf16>, vector<128x64xf32> -> vector<128x64xf32>
    %105 = arith.addf %98, %104 : vector<128x64xf32>
    %c2_114 = arith.constant 2 : index
    %c2_115 = arith.constant 2 : index
    %c0_116 = arith.constant 0 : index
    %106 = vector.load %arg12[%c2_114, %c2_115, %c0_116] : memref<18x18x32xf32, #tpu.memory_space<vmem>>, vector<8x16x32xf32>
    %107 = vector.shape_cast %106 : vector<8x16x32xf32> to vector<128x32xf32>
    %108 = arith.truncf %107 : vector<128x32xf32> to vector<128x32xbf16>
    %c2_117 = arith.constant 2 : index
    %c2_118 = arith.constant 2 : index
    %c0_119 = arith.constant 0 : index
    %c0_120 = arith.constant 0 : index
    %109 = vector.load %arg4[%c2_117, %c2_118, %c0_119, %c0_120] : memref<3x3x32x64xbf16, #tpu.memory_space<vmem>>, vector<1x1x32x64xbf16>
    %110 = vector.shape_cast %109 : vector<1x1x32x64xbf16> to vector<32x64xbf16>
    %cst_121 = arith.constant dense<0.000000e+00> : vector<128x64xf32>
    %111 = tpu.matmul %108, %110, %cst_121 {dimension_numbers = #tpu.dot_dimension_numbers<[1], [0], [0], [1], [0, 0, 1, 1], [], []>} : vector<128x32xbf16>, vector<32x64xbf16>, vector<128x64xf32> -> vector<128x64xf32>
    %112 = arith.addf %105, %111 : vector<128x64xf32>
    %c0_122 = arith.constant 0 : index
    %c0_123 = arith.constant 0 : index
    %113 = vector.load %arg5[%c0_122, %c0_123] : memref<1x64xf32, #tpu.memory_space<vmem>>, vector<1x64xf32>
    %114 = vector.broadcast %113 : vector<1x64xf32> to vector<128x64xf32>
    %115 = arith.addf %112, %114 : vector<128x64xf32>
    %cst_124 = arith.constant 0.000000e+00 : f32
    %116 = vector.broadcast %cst_124 : f32 to vector<128x64xf32>
    %117 = arith.maximumf %115, %116 : vector<128x64xf32>
    %c0_125 = arith.constant 0 : index
    %c0_126 = arith.constant 0 : index
    %118 = vector.load %arg13[%c0_125, %c0_126] : memref<256x64xf32, #tpu.memory_space<vmem>>, vector<128x64xf32>
    tpu.vector_store %arg13[%c0_125, %c0_126], %117 {strides = array<i32>} : memref<256x64xf32, #tpu.memory_space<vmem>>, vector<128x64xf32>,
    %cst_127 = arith.constant 0.000000e+00 : f32
    %119 = vector.broadcast %cst_127 : f32 to vector<128x64xf32>
    %c8 = arith.constant 8 : index
    %c0_128 = arith.constant 0 : index
    %c0_129 = arith.constant 0 : index
    %120 = vector.load %arg12[%c8, %c0_128, %c0_129] : memref<18x18x32xf32, #tpu.memory_space<vmem>>, vector<8x16x32xf32>
    %121 = vector.shape_cast %120 : vector<8x16x32xf32> to vector<128x32xf32>
    %122 = arith.truncf %121 : vector<128x32xf32> to vector<128x32xbf16>
    %c0_130 = arith.constant 0 : index
    %c0_131 = arith.constant 0 : index
    %c0_132 = arith.constant 0 : index
    %c0_133 = arith.constant 0 : index
    %123 = vector.load %arg4[%c0_130, %c0_131, %c0_132, %c0_133] : memref<3x3x32x64xbf16, #tpu.memory_space<vmem>>, vector<1x1x32x64xbf16>
    %124 = vector.shape_cast %123 : vector<1x1x32x64xbf16> to vector<32x64xbf16>
    %cst_134 = arith.constant dense<0.000000e+00> : vector<128x64xf32>
    %125 = tpu.matmul %122, %124, %cst_134 {dimension_numbers = #tpu.dot_dimension_numbers<[1], [0], [0], [1], [0, 0, 1, 1], [], []>} : vector<128x32xbf16>, vector<32x64xbf16>, vector<128x64xf32> -> vector<128x64xf32>
    %126 = arith.addf %119, %125 : vector<128x64xf32>
    %c8_135 = arith.constant 8 : index
    %c1_136 = arith.constant 1 : index
    %c0_137 = arith.constant 0 : index
    %127 = vector.load %arg12[%c8_135, %c1_136, %c0_137] : memref<18x18x32xf32, #tpu.memory_space<vmem>>, vector<8x16x32xf32>
    %128 = vector.shape_cast %127 : vector<8x16x32xf32> to vector<128x32xf32>
    %129 = arith.truncf %128 : vector<128x32xf32> to vector<128x32xbf16>
    %c0_138 = arith.constant 0 : index
    %c1_139 = arith.constant 1 : index
    %c0_140 = arith.constant 0 : index
    %c0_141 = arith.constant 0 : index
    %130 = vector.load %arg4[%c0_138, %c1_139, %c0_140, %c0_141] : memref<3x3x32x64xbf16, #tpu.memory_space<vmem>>, vector<1x1x32x64xbf16>
    %131 = vector.shape_cast %130 : vector<1x1x32x64xbf16> to vector<32x64xbf16>
    %cst_142 = arith.constant dense<0.000000e+00> : vector<128x64xf32>
    %132 = tpu.matmul %129, %131, %cst_142 {dimension_numbers = #tpu.dot_dimension_numbers<[1], [0], [0], [1], [0, 0, 1, 1], [], []>} : vector<128x32xbf16>, vector<32x64xbf16>, vector<128x64xf32> -> vector<128x64xf32>
    %133 = arith.addf %126, %132 : vector<128x64xf32>
    %c8_143 = arith.constant 8 : index
    %c2_144 = arith.constant 2 : index
    %c0_145 = arith.constant 0 : index
    %134 = vector.load %arg12[%c8_143, %c2_144, %c0_145] : memref<18x18x32xf32, #tpu.memory_space<vmem>>, vector<8x16x32xf32>
    %135 = vector.shape_cast %134 : vector<8x16x32xf32> to vector<128x32xf32>
    %136 = arith.truncf %135 : vector<128x32xf32> to vector<128x32xbf16>
    %c0_146 = arith.constant 0 : index
    %c2_147 = arith.constant 2 : index
    %c0_148 = arith.constant 0 : index
    %c0_149 = arith.constant 0 : index
    %137 = vector.load %arg4[%c0_146, %c2_147, %c0_148, %c0_149] : memref<3x3x32x64xbf16, #tpu.memory_space<vmem>>, vector<1x1x32x64xbf16>
    %138 = vector.shape_cast %137 : vector<1x1x32x64xbf16> to vector<32x64xbf16>
    %cst_150 = arith.constant dense<0.000000e+00> : vector<128x64xf32>
    %139 = tpu.matmul %136, %138, %cst_150 {dimension_numbers = #tpu.dot_dimension_numbers<[1], [0], [0], [1], [0, 0, 1, 1], [], []>} : vector<128x32xbf16>, vector<32x64xbf16>, vector<128x64xf32> -> vector<128x64xf32>
    %140 = arith.addf %133, %139 : vector<128x64xf32>
    %c9 = arith.constant 9 : index
    %c0_151 = arith.constant 0 : index
    %c0_152 = arith.constant 0 : index
    %141 = vector.load %arg12[%c9, %c0_151, %c0_152] : memref<18x18x32xf32, #tpu.memory_space<vmem>>, vector<8x16x32xf32>
    %142 = vector.shape_cast %141 : vector<8x16x32xf32> to vector<128x32xf32>
    %143 = arith.truncf %142 : vector<128x32xf32> to vector<128x32xbf16>
    %c1_153 = arith.constant 1 : index
    %c0_154 = arith.constant 0 : index
    %c0_155 = arith.constant 0 : index
    %c0_156 = arith.constant 0 : index
    %144 = vector.load %arg4[%c1_153, %c0_154, %c0_155, %c0_156] : memref<3x3x32x64xbf16, #tpu.memory_space<vmem>>, vector<1x1x32x64xbf16>
    %145 = vector.shape_cast %144 : vector<1x1x32x64xbf16> to vector<32x64xbf16>
    %cst_157 = arith.constant dense<0.000000e+00> : vector<128x64xf32>
    %146 = tpu.matmul %143, %145, %cst_157 {dimension_numbers = #tpu.dot_dimension_numbers<[1], [0], [0], [1], [0, 0, 1, 1], [], []>} : vector<128x32xbf16>, vector<32x64xbf16>, vector<128x64xf32> -> vector<128x64xf32>
    %147 = arith.addf %140, %146 : vector<128x64xf32>
    %c9_158 = arith.constant 9 : index
    %c1_159 = arith.constant 1 : index
    %c0_160 = arith.constant 0 : index
    %148 = vector.load %arg12[%c9_158, %c1_159, %c0_160] : memref<18x18x32xf32, #tpu.memory_space<vmem>>, vector<8x16x32xf32>
    %149 = vector.shape_cast %148 : vector<8x16x32xf32> to vector<128x32xf32>
    %150 = arith.truncf %149 : vector<128x32xf32> to vector<128x32xbf16>
    %c1_161 = arith.constant 1 : index
    %c1_162 = arith.constant 1 : index
    %c0_163 = arith.constant 0 : index
    %c0_164 = arith.constant 0 : index
    %151 = vector.load %arg4[%c1_161, %c1_162, %c0_163, %c0_164] : memref<3x3x32x64xbf16, #tpu.memory_space<vmem>>, vector<1x1x32x64xbf16>
    %152 = vector.shape_cast %151 : vector<1x1x32x64xbf16> to vector<32x64xbf16>
    %cst_165 = arith.constant dense<0.000000e+00> : vector<128x64xf32>
    %153 = tpu.matmul %150, %152, %cst_165 {dimension_numbers = #tpu.dot_dimension_numbers<[1], [0], [0], [1], [0, 0, 1, 1], [], []>} : vector<128x32xbf16>, vector<32x64xbf16>, vector<128x64xf32> -> vector<128x64xf32>
    %154 = arith.addf %147, %153 : vector<128x64xf32>
    %c9_166 = arith.constant 9 : index
    %c2_167 = arith.constant 2 : index
    %c0_168 = arith.constant 0 : index
    %155 = vector.load %arg12[%c9_166, %c2_167, %c0_168] : memref<18x18x32xf32, #tpu.memory_space<vmem>>, vector<8x16x32xf32>
    %156 = vector.shape_cast %155 : vector<8x16x32xf32> to vector<128x32xf32>
    %157 = arith.truncf %156 : vector<128x32xf32> to vector<128x32xbf16>
    %c1_169 = arith.constant 1 : index
    %c2_170 = arith.constant 2 : index
    %c0_171 = arith.constant 0 : index
    %c0_172 = arith.constant 0 : index
    %158 = vector.load %arg4[%c1_169, %c2_170, %c0_171, %c0_172] : memref<3x3x32x64xbf16, #tpu.memory_space<vmem>>, vector<1x1x32x64xbf16>
    %159 = vector.shape_cast %158 : vector<1x1x32x64xbf16> to vector<32x64xbf16>
    %cst_173 = arith.constant dense<0.000000e+00> : vector<128x64xf32>
    %160 = tpu.matmul %157, %159, %cst_173 {dimension_numbers = #tpu.dot_dimension_numbers<[1], [0], [0], [1], [0, 0, 1, 1], [], []>} : vector<128x32xbf16>, vector<32x64xbf16>, vector<128x64xf32> -> vector<128x64xf32>
    %161 = arith.addf %154, %160 : vector<128x64xf32>
    %c10 = arith.constant 10 : index
    %c0_174 = arith.constant 0 : index
    %c0_175 = arith.constant 0 : index
    %162 = vector.load %arg12[%c10, %c0_174, %c0_175] : memref<18x18x32xf32, #tpu.memory_space<vmem>>, vector<8x16x32xf32>
    %163 = vector.shape_cast %162 : vector<8x16x32xf32> to vector<128x32xf32>
    %164 = arith.truncf %163 : vector<128x32xf32> to vector<128x32xbf16>
    %c2_176 = arith.constant 2 : index
    %c0_177 = arith.constant 0 : index
    %c0_178 = arith.constant 0 : index
    %c0_179 = arith.constant 0 : index
    %165 = vector.load %arg4[%c2_176, %c0_177, %c0_178, %c0_179] : memref<3x3x32x64xbf16, #tpu.memory_space<vmem>>, vector<1x1x32x64xbf16>
    %166 = vector.shape_cast %165 : vector<1x1x32x64xbf16> to vector<32x64xbf16>
    %cst_180 = arith.constant dense<0.000000e+00> : vector<128x64xf32>
    %167 = tpu.matmul %164, %166, %cst_180 {dimension_numbers = #tpu.dot_dimension_numbers<[1], [0], [0], [1], [0, 0, 1, 1], [], []>} : vector<128x32xbf16>, vector<32x64xbf16>, vector<128x64xf32> -> vector<128x64xf32>
    %168 = arith.addf %161, %167 : vector<128x64xf32>
    %c10_181 = arith.constant 10 : index
    %c1_182 = arith.constant 1 : index
    %c0_183 = arith.constant 0 : index
    %169 = vector.load %arg12[%c10_181, %c1_182, %c0_183] : memref<18x18x32xf32, #tpu.memory_space<vmem>>, vector<8x16x32xf32>
    %170 = vector.shape_cast %169 : vector<8x16x32xf32> to vector<128x32xf32>
    %171 = arith.truncf %170 : vector<128x32xf32> to vector<128x32xbf16>
    %c2_184 = arith.constant 2 : index
    %c1_185 = arith.constant 1 : index
    %c0_186 = arith.constant 0 : index
    %c0_187 = arith.constant 0 : index
    %172 = vector.load %arg4[%c2_184, %c1_185, %c0_186, %c0_187] : memref<3x3x32x64xbf16, #tpu.memory_space<vmem>>, vector<1x1x32x64xbf16>
    %173 = vector.shape_cast %172 : vector<1x1x32x64xbf16> to vector<32x64xbf16>
    %cst_188 = arith.constant dense<0.000000e+00> : vector<128x64xf32>
    %174 = tpu.matmul %171, %173, %cst_188 {dimension_numbers = #tpu.dot_dimension_numbers<[1], [0], [0], [1], [0, 0, 1, 1], [], []>} : vector<128x32xbf16>, vector<32x64xbf16>, vector<128x64xf32> -> vector<128x64xf32>
    %175 = arith.addf %168, %174 : vector<128x64xf32>
    %c10_189 = arith.constant 10 : index
    %c2_190 = arith.constant 2 : index
    %c0_191 = arith.constant 0 : index
    %176 = vector.load %arg12[%c10_189, %c2_190, %c0_191] : memref<18x18x32xf32, #tpu.memory_space<vmem>>, vector<8x16x32xf32>
    %177 = vector.shape_cast %176 : vector<8x16x32xf32> to vector<128x32xf32>
    %178 = arith.truncf %177 : vector<128x32xf32> to vector<128x32xbf16>
    %c2_192 = arith.constant 2 : index
    %c2_193 = arith.constant 2 : index
    %c0_194 = arith.constant 0 : index
    %c0_195 = arith.constant 0 : index
    %179 = vector.load %arg4[%c2_192, %c2_193, %c0_194, %c0_195] : memref<3x3x32x64xbf16, #tpu.memory_space<vmem>>, vector<1x1x32x64xbf16>
    %180 = vector.shape_cast %179 : vector<1x1x32x64xbf16> to vector<32x64xbf16>
    %cst_196 = arith.constant dense<0.000000e+00> : vector<128x64xf32>
    %181 = tpu.matmul %178, %180, %cst_196 {dimension_numbers = #tpu.dot_dimension_numbers<[1], [0], [0], [1], [0, 0, 1, 1], [], []>} : vector<128x32xbf16>, vector<32x64xbf16>, vector<128x64xf32> -> vector<128x64xf32>
    %182 = arith.addf %175, %181 : vector<128x64xf32>
    %c0_197 = arith.constant 0 : index
    %c0_198 = arith.constant 0 : index
    %183 = vector.load %arg5[%c0_197, %c0_198] : memref<1x64xf32, #tpu.memory_space<vmem>>, vector<1x64xf32>
    %184 = vector.broadcast %183 : vector<1x64xf32> to vector<128x64xf32>
    %185 = arith.addf %182, %184 : vector<128x64xf32>
    %cst_199 = arith.constant 0.000000e+00 : f32
    %186 = vector.broadcast %cst_199 : f32 to vector<128x64xf32>
    %187 = arith.maximumf %185, %186 : vector<128x64xf32>
    %c128 = arith.constant 128 : index
    %c0_200 = arith.constant 0 : index
    %188 = vector.load %arg13[%c128, %c0_200] : memref<256x64xf32, #tpu.memory_space<vmem>>, vector<128x64xf32>
    tpu.vector_store %arg13[%c128, %c0_200], %187 {strides = array<i32>} : memref<256x64xf32, #tpu.memory_space<vmem>>, vector<128x64xf32>,
    %c0_201 = arith.constant 0 : index
    %c0_202 = arith.constant 0 : index
    %189 = tpu.strided_load %arg13[%c0_201, %c0_202] {strides = array<i32: 2, 1>} : memref<256x64xf32, #tpu.memory_space<vmem>>, vector<128x64xf32>
    %c1_203 = arith.constant 1 : index
    %c0_204 = arith.constant 0 : index
    %190 = tpu.strided_load %arg13[%c1_203, %c0_204] {strides = array<i32: 2, 1>} : memref<256x64xf32, #tpu.memory_space<vmem>>, vector<128x64xf32>
    %191 = arith.maximumf %189, %190 : vector<128x64xf32>
    %192 = vector.shape_cast %191 : vector<128x64xf32> to vector<16x8x64xf32>
    %193 = vector.shape_cast %192 : vector<16x8x64xf32> to vector<8x2x8x64xf32>
    %cst_205 = arith.constant dense<0xFF800000> : vector<8x8x64xf32>
    %194 = vector.multi_reduction <maximumf>, %193, %cst_205 [1] : vector<8x2x8x64xf32> to vector<8x8x64xf32>
    %195 = vector.shape_cast %194 : vector<8x8x64xf32> to vector<64x64xf32>
    %196 = vector.extract_strided_slice %195 {offsets = [0, 0], sizes = [1, 64], strides = [1, 1]} : vector<64x64xf32> to vector<1x64xf32>
    %c0_206 = arith.constant 0 : index
    %c0_207 = arith.constant 0 : index
    %197 = vector.load %arg14[%c0_206, %c0_207] : memref<1x4096xf32, #tpu.memory_space<vmem>>, vector<1x64xf32>
    tpu.vector_store %arg14[%c0_206, %c0_207], %196 {strides = array<i32>} : memref<1x4096xf32, #tpu.memory_space<vmem>>, vector<1x64xf32>,
    %198 = vector.extract_strided_slice %195 {offsets = [1, 0], sizes = [1, 64], strides = [1, 1]} : vector<64x64xf32> to vector<1x64xf32>
    %c0_208 = arith.constant 0 : index
    %c64 = arith.constant 64 : index
    %199 = vector.load %arg14[%c0_208, %c64] : memref<1x4096xf32, #tpu.memory_space<vmem>>, vector<1x64xf32>
    tpu.vector_store %arg14[%c0_208, %c64], %198 {strides = array<i32>} : memref<1x4096xf32, #tpu.memory_space<vmem>>, vector<1x64xf32>,
    %200 = vector.extract_strided_slice %195 {offsets = [2, 0], sizes = [1, 64], strides = [1, 1]} : vector<64x64xf32> to vector<1x64xf32>
    %c0_209 = arith.constant 0 : index
    %c128_210 = arith.constant 128 : index
    %201 = vector.load %arg14[%c0_209, %c128_210] : memref<1x4096xf32, #tpu.memory_space<vmem>>, vector<1x64xf32>
    tpu.vector_store %arg14[%c0_209, %c128_210], %200 {strides = array<i32>} : memref<1x4096xf32, #tpu.memory_space<vmem>>, vector<1x64xf32>,
    %202 = vector.extract_strided_slice %195 {offsets = [3, 0], sizes = [1, 64], strides = [1, 1]} : vector<64x64xf32> to vector<1x64xf32>
    %c0_211 = arith.constant 0 : index
    %c192 = arith.constant 192 : index
    %203 = vector.load %arg14[%c0_211, %c192] : memref<1x4096xf32, #tpu.memory_space<vmem>>, vector<1x64xf32>
    tpu.vector_store %arg14[%c0_211, %c192], %202 {strides = array<i32>} : memref<1x4096xf32, #tpu.memory_space<vmem>>, vector<1x64xf32>,
    %204 = vector.extract_strided_slice %195 {offsets = [4, 0], sizes = [1, 64], strides = [1, 1]} : vector<64x64xf32> to vector<1x64xf32>
    %c0_212 = arith.constant 0 : index
    %c256_213 = arith.constant 256 : index
    %205 = vector.load %arg14[%c0_212, %c256_213] : memref<1x4096xf32, #tpu.memory_space<vmem>>, vector<1x64xf32>
    tpu.vector_store %arg14[%c0_212, %c256_213], %204 {strides = array<i32>} : memref<1x4096xf32, #tpu.memory_space<vmem>>, vector<1x64xf32>,
    %206 = vector.extract_strided_slice %195 {offsets = [5, 0], sizes = [1, 64], strides = [1, 1]} : vector<64x64xf32> to vector<1x64xf32>
    %c0_214 = arith.constant 0 : index
    %c320 = arith.constant 320 : index
    %207 = vector.load %arg14[%c0_214, %c320] : memref<1x4096xf32, #tpu.memory_space<vmem>>, vector<1x64xf32>
    tpu.vector_store %arg14[%c0_214, %c320], %206 {strides = array<i32>} : memref<1x4096xf32, #tpu.memory_space<vmem>>, vector<1x64xf32>,
    %208 = vector.extract_strided_slice %195 {offsets = [6, 0], sizes = [1, 64], strides = [1, 1]} : vector<64x64xf32> to vector<1x64xf32>
    %c0_215 = arith.constant 0 : index
    %c384 = arith.constant 384 : index
    %209 = vector.load %arg14[%c0_215, %c384] : memref<1x4096xf32, #tpu.memory_space<vmem>>, vector<1x64xf32>
    tpu.vector_store %arg14[%c0_215, %c384], %208 {strides = array<i32>} : memref<1x4096xf32, #tpu.memory_space<vmem>>, vector<1x64xf32>,
    %210 = vector.extract_strided_slice %195 {offsets = [7, 0], sizes = [1, 64], strides = [1, 1]} : vector<64x64xf32> to vector<1x64xf32>
    %c0_216 = arith.constant 0 : index
    %c448 = arith.constant 448 : index
    %211 = vector.load %arg14[%c0_216, %c448] : memref<1x4096xf32, #tpu.memory_space<vmem>>, vector<1x64xf32>
    tpu.vector_store %arg14[%c0_216, %c448], %210 {strides = array<i32>} : memref<1x4096xf32, #tpu.memory_space<vmem>>, vector<1x64xf32>,
    %212 = vector.extract_strided_slice %195 {offsets = [8, 0], sizes = [1, 64], strides = [1, 1]} : vector<64x64xf32> to vector<1x64xf32>
    %c0_217 = arith.constant 0 : index
    %c512_218 = arith.constant 512 : index
    %213 = vector.load %arg14[%c0_217, %c512_218] : memref<1x4096xf32, #tpu.memory_space<vmem>>, vector<1x64xf32>
    tpu.vector_store %arg14[%c0_217, %c512_218], %212 {strides = array<i32>} : memref<1x4096xf32, #tpu.memory_space<vmem>>, vector<1x64xf32>,
    %214 = vector.extract_strided_slice %195 {offsets = [9, 0], sizes = [1, 64], strides = [1, 1]} : vector<64x64xf32> to vector<1x64xf32>
    %c0_219 = arith.constant 0 : index
    %c576 = arith.constant 576 : index
    %215 = vector.load %arg14[%c0_219, %c576] : memref<1x4096xf32, #tpu.memory_space<vmem>>, vector<1x64xf32>
    tpu.vector_store %arg14[%c0_219, %c576], %214 {strides = array<i32>} : memref<1x4096xf32, #tpu.memory_space<vmem>>, vector<1x64xf32>,
    %216 = vector.extract_strided_slice %195 {offsets = [10, 0], sizes = [1, 64], strides = [1, 1]} : vector<64x64xf32> to vector<1x64xf32>
    %c0_220 = arith.constant 0 : index
    %c640 = arith.constant 640 : index
    %217 = vector.load %arg14[%c0_220, %c640] : memref<1x4096xf32, #tpu.memory_space<vmem>>, vector<1x64xf32>
    tpu.vector_store %arg14[%c0_220, %c640], %216 {strides = array<i32>} : memref<1x4096xf32, #tpu.memory_space<vmem>>, vector<1x64xf32>,
    %218 = vector.extract_strided_slice %195 {offsets = [11, 0], sizes = [1, 64], strides = [1, 1]} : vector<64x64xf32> to vector<1x64xf32>
    %c0_221 = arith.constant 0 : index
    %c704 = arith.constant 704 : index
    %219 = vector.load %arg14[%c0_221, %c704] : memref<1x4096xf32, #tpu.memory_space<vmem>>, vector<1x64xf32>
    tpu.vector_store %arg14[%c0_221, %c704], %218 {strides = array<i32>} : memref<1x4096xf32, #tpu.memory_space<vmem>>, vector<1x64xf32>,
    %220 = vector.extract_strided_slice %195 {offsets = [12, 0], sizes = [1, 64], strides = [1, 1]} : vector<64x64xf32> to vector<1x64xf32>
    %c0_222 = arith.constant 0 : index
    %c768_223 = arith.constant 768 : index
    %221 = vector.load %arg14[%c0_222, %c768_223] : memref<1x4096xf32, #tpu.memory_space<vmem>>, vector<1x64xf32>
    tpu.vector_store %arg14[%c0_222, %c768_223], %220 {strides = array<i32>} : memref<1x4096xf32, #tpu.memory_space<vmem>>, vector<1x64xf32>,
    %222 = vector.extract_strided_slice %195 {offsets = [13, 0], sizes = [1, 64], strides = [1, 1]} : vector<64x64xf32> to vector<1x64xf32>
    %c0_224 = arith.constant 0 : index
    %c832 = arith.constant 832 : index
    %223 = vector.load %arg14[%c0_224, %c832] : memref<1x4096xf32, #tpu.memory_space<vmem>>, vector<1x64xf32>
    tpu.vector_store %arg14[%c0_224, %c832], %222 {strides = array<i32>} : memref<1x4096xf32, #tpu.memory_space<vmem>>, vector<1x64xf32>,
    %224 = vector.extract_strided_slice %195 {offsets = [14, 0], sizes = [1, 64], strides = [1, 1]} : vector<64x64xf32> to vector<1x64xf32>
    %c0_225 = arith.constant 0 : index
    %c896 = arith.constant 896 : index
    %225 = vector.load %arg14[%c0_225, %c896] : memref<1x4096xf32, #tpu.memory_space<vmem>>, vector<1x64xf32>
    tpu.vector_store %arg14[%c0_225, %c896], %224 {strides = array<i32>} : memref<1x4096xf32, #tpu.memory_space<vmem>>, vector<1x64xf32>,
    %226 = vector.extract_strided_slice %195 {offsets = [15, 0], sizes = [1, 64], strides = [1, 1]} : vector<64x64xf32> to vector<1x64xf32>
    %c0_226 = arith.constant 0 : index
    %c960 = arith.constant 960 : index
    %227 = vector.load %arg14[%c0_226, %c960] : memref<1x4096xf32, #tpu.memory_space<vmem>>, vector<1x64xf32>
    tpu.vector_store %arg14[%c0_226, %c960], %226 {strides = array<i32>} : memref<1x4096xf32, #tpu.memory_space<vmem>>, vector<1x64xf32>,
    %228 = vector.extract_strided_slice %195 {offsets = [16, 0], sizes = [1, 64], strides = [1, 1]} : vector<64x64xf32> to vector<1x64xf32>
    %c0_227 = arith.constant 0 : index
    %c1024 = arith.constant 1024 : index
    %229 = vector.load %arg14[%c0_227, %c1024] : memref<1x4096xf32, #tpu.memory_space<vmem>>, vector<1x64xf32>
    tpu.vector_store %arg14[%c0_227, %c1024], %228 {strides = array<i32>} : memref<1x4096xf32, #tpu.memory_space<vmem>>, vector<1x64xf32>,
    %230 = vector.extract_strided_slice %195 {offsets = [17, 0], sizes = [1, 64], strides = [1, 1]} : vector<64x64xf32> to vector<1x64xf32>
    %c0_228 = arith.constant 0 : index
    %c1088 = arith.constant 1088 : index
    %231 = vector.load %arg14[%c0_228, %c1088] : memref<1x4096xf32, #tpu.memory_space<vmem>>, vector<1x64xf32>
    tpu.vector_store %arg14[%c0_228, %c1088], %230 {strides = array<i32>} : memref<1x4096xf32, #tpu.memory_space<vmem>>, vector<1x64xf32>,
    %232 = vector.extract_strided_slice %195 {offsets = [18, 0], sizes = [1, 64], strides = [1, 1]} : vector<64x64xf32> to vector<1x64xf32>
    %c0_229 = arith.constant 0 : index
    %c1152 = arith.constant 1152 : index
    %233 = vector.load %arg14[%c0_229, %c1152] : memref<1x4096xf32, #tpu.memory_space<vmem>>, vector<1x64xf32>
    tpu.vector_store %arg14[%c0_229, %c1152], %232 {strides = array<i32>} : memref<1x4096xf32, #tpu.memory_space<vmem>>, vector<1x64xf32>,
    %234 = vector.extract_strided_slice %195 {offsets = [19, 0], sizes = [1, 64], strides = [1, 1]} : vector<64x64xf32> to vector<1x64xf32>
    %c0_230 = arith.constant 0 : index
    %c1216 = arith.constant 1216 : index
    %235 = vector.load %arg14[%c0_230, %c1216] : memref<1x4096xf32, #tpu.memory_space<vmem>>, vector<1x64xf32>
    tpu.vector_store %arg14[%c0_230, %c1216], %234 {strides = array<i32>} : memref<1x4096xf32, #tpu.memory_space<vmem>>, vector<1x64xf32>,
    %236 = vector.extract_strided_slice %195 {offsets = [20, 0], sizes = [1, 64], strides = [1, 1]} : vector<64x64xf32> to vector<1x64xf32>
    %c0_231 = arith.constant 0 : index
    %c1280 = arith.constant 1280 : index
    %237 = vector.load %arg14[%c0_231, %c1280] : memref<1x4096xf32, #tpu.memory_space<vmem>>, vector<1x64xf32>
    tpu.vector_store %arg14[%c0_231, %c1280], %236 {strides = array<i32>} : memref<1x4096xf32, #tpu.memory_space<vmem>>, vector<1x64xf32>,
    %238 = vector.extract_strided_slice %195 {offsets = [21, 0], sizes = [1, 64], strides = [1, 1]} : vector<64x64xf32> to vector<1x64xf32>
    %c0_232 = arith.constant 0 : index
    %c1344 = arith.constant 1344 : index
    %239 = vector.load %arg14[%c0_232, %c1344] : memref<1x4096xf32, #tpu.memory_space<vmem>>, vector<1x64xf32>
    tpu.vector_store %arg14[%c0_232, %c1344], %238 {strides = array<i32>} : memref<1x4096xf32, #tpu.memory_space<vmem>>, vector<1x64xf32>,
    %240 = vector.extract_strided_slice %195 {offsets = [22, 0], sizes = [1, 64], strides = [1, 1]} : vector<64x64xf32> to vector<1x64xf32>
    %c0_233 = arith.constant 0 : index
    %c1408 = arith.constant 1408 : index
    %241 = vector.load %arg14[%c0_233, %c1408] : memref<1x4096xf32, #tpu.memory_space<vmem>>, vector<1x64xf32>
    tpu.vector_store %arg14[%c0_233, %c1408], %240 {strides = array<i32>} : memref<1x4096xf32, #tpu.memory_space<vmem>>, vector<1x64xf32>,
    %242 = vector.extract_strided_slice %195 {offsets = [23, 0], sizes = [1, 64], strides = [1, 1]} : vector<64x64xf32> to vector<1x64xf32>
    %c0_234 = arith.constant 0 : index
    %c1472 = arith.constant 1472 : index
    %243 = vector.load %arg14[%c0_234, %c1472] : memref<1x4096xf32, #tpu.memory_space<vmem>>, vector<1x64xf32>
    tpu.vector_store %arg14[%c0_234, %c1472], %242 {strides = array<i32>} : memref<1x4096xf32, #tpu.memory_space<vmem>>, vector<1x64xf32>,
    %244 = vector.extract_strided_slice %195 {offsets = [24, 0], sizes = [1, 64], strides = [1, 1]} : vector<64x64xf32> to vector<1x64xf32>
    %c0_235 = arith.constant 0 : index
    %c1536 = arith.constant 1536 : index
    %245 = vector.load %arg14[%c0_235, %c1536] : memref<1x4096xf32, #tpu.memory_space<vmem>>, vector<1x64xf32>
    tpu.vector_store %arg14[%c0_235, %c1536], %244 {strides = array<i32>} : memref<1x4096xf32, #tpu.memory_space<vmem>>, vector<1x64xf32>,
    %246 = vector.extract_strided_slice %195 {offsets = [25, 0], sizes = [1, 64], strides = [1, 1]} : vector<64x64xf32> to vector<1x64xf32>
    %c0_236 = arith.constant 0 : index
    %c1600 = arith.constant 1600 : index
    %247 = vector.load %arg14[%c0_236, %c1600] : memref<1x4096xf32, #tpu.memory_space<vmem>>, vector<1x64xf32>
    tpu.vector_store %arg14[%c0_236, %c1600], %246 {strides = array<i32>} : memref<1x4096xf32, #tpu.memory_space<vmem>>, vector<1x64xf32>,
    %248 = vector.extract_strided_slice %195 {offsets = [26, 0], sizes = [1, 64], strides = [1, 1]} : vector<64x64xf32> to vector<1x64xf32>
    %c0_237 = arith.constant 0 : index
    %c1664 = arith.constant 1664 : index
    %249 = vector.load %arg14[%c0_237, %c1664] : memref<1x4096xf32, #tpu.memory_space<vmem>>, vector<1x64xf32>
    tpu.vector_store %arg14[%c0_237, %c1664], %248 {strides = array<i32>} : memref<1x4096xf32, #tpu.memory_space<vmem>>, vector<1x64xf32>,
    %250 = vector.extract_strided_slice %195 {offsets = [27, 0], sizes = [1, 64], strides = [1, 1]} : vector<64x64xf32> to vector<1x64xf32>
    %c0_238 = arith.constant 0 : index
    %c1728 = arith.constant 1728 : index
    %251 = vector.load %arg14[%c0_238, %c1728] : memref<1x4096xf32, #tpu.memory_space<vmem>>, vector<1x64xf32>
    tpu.vector_store %arg14[%c0_238, %c1728], %250 {strides = array<i32>} : memref<1x4096xf32, #tpu.memory_space<vmem>>, vector<1x64xf32>,
    %252 = vector.extract_strided_slice %195 {offsets = [28, 0], sizes = [1, 64], strides = [1, 1]} : vector<64x64xf32> to vector<1x64xf32>
    %c0_239 = arith.constant 0 : index
    %c1792 = arith.constant 1792 : index
    %253 = vector.load %arg14[%c0_239, %c1792] : memref<1x4096xf32, #tpu.memory_space<vmem>>, vector<1x64xf32>
    tpu.vector_store %arg14[%c0_239, %c1792], %252 {strides = array<i32>} : memref<1x4096xf32, #tpu.memory_space<vmem>>, vector<1x64xf32>,
    %254 = vector.extract_strided_slice %195 {offsets = [29, 0], sizes = [1, 64], strides = [1, 1]} : vector<64x64xf32> to vector<1x64xf32>
    %c0_240 = arith.constant 0 : index
    %c1856 = arith.constant 1856 : index
    %255 = vector.load %arg14[%c0_240, %c1856] : memref<1x4096xf32, #tpu.memory_space<vmem>>, vector<1x64xf32>
    tpu.vector_store %arg14[%c0_240, %c1856], %254 {strides = array<i32>} : memref<1x4096xf32, #tpu.memory_space<vmem>>, vector<1x64xf32>,
    %256 = vector.extract_strided_slice %195 {offsets = [30, 0], sizes = [1, 64], strides = [1, 1]} : vector<64x64xf32> to vector<1x64xf32>
    %c0_241 = arith.constant 0 : index
    %c1920 = arith.constant 1920 : index
    %257 = vector.load %arg14[%c0_241, %c1920] : memref<1x4096xf32, #tpu.memory_space<vmem>>, vector<1x64xf32>
    tpu.vector_store %arg14[%c0_241, %c1920], %256 {strides = array<i32>} : memref<1x4096xf32, #tpu.memory_space<vmem>>, vector<1x64xf32>,
    %258 = vector.extract_strided_slice %195 {offsets = [31, 0], sizes = [1, 64], strides = [1, 1]} : vector<64x64xf32> to vector<1x64xf32>
    %c0_242 = arith.constant 0 : index
    %c1984 = arith.constant 1984 : index
    %259 = vector.load %arg14[%c0_242, %c1984] : memref<1x4096xf32, #tpu.memory_space<vmem>>, vector<1x64xf32>
    tpu.vector_store %arg14[%c0_242, %c1984], %258 {strides = array<i32>} : memref<1x4096xf32, #tpu.memory_space<vmem>>, vector<1x64xf32>,
    %260 = vector.extract_strided_slice %195 {offsets = [32, 0], sizes = [1, 64], strides = [1, 1]} : vector<64x64xf32> to vector<1x64xf32>
    %c0_243 = arith.constant 0 : index
    %c2048 = arith.constant 2048 : index
    %261 = vector.load %arg14[%c0_243, %c2048] : memref<1x4096xf32, #tpu.memory_space<vmem>>, vector<1x64xf32>
    tpu.vector_store %arg14[%c0_243, %c2048], %260 {strides = array<i32>} : memref<1x4096xf32, #tpu.memory_space<vmem>>, vector<1x64xf32>,
    %262 = vector.extract_strided_slice %195 {offsets = [33, 0], sizes = [1, 64], strides = [1, 1]} : vector<64x64xf32> to vector<1x64xf32>
    %c0_244 = arith.constant 0 : index
    %c2112 = arith.constant 2112 : index
    %263 = vector.load %arg14[%c0_244, %c2112] : memref<1x4096xf32, #tpu.memory_space<vmem>>, vector<1x64xf32>
    tpu.vector_store %arg14[%c0_244, %c2112], %262 {strides = array<i32>} : memref<1x4096xf32, #tpu.memory_space<vmem>>, vector<1x64xf32>,
    %264 = vector.extract_strided_slice %195 {offsets = [34, 0], sizes = [1, 64], strides = [1, 1]} : vector<64x64xf32> to vector<1x64xf32>
    %c0_245 = arith.constant 0 : index
    %c2176 = arith.constant 2176 : index
    %265 = vector.load %arg14[%c0_245, %c2176] : memref<1x4096xf32, #tpu.memory_space<vmem>>, vector<1x64xf32>
    tpu.vector_store %arg14[%c0_245, %c2176], %264 {strides = array<i32>} : memref<1x4096xf32, #tpu.memory_space<vmem>>, vector<1x64xf32>,
    %266 = vector.extract_strided_slice %195 {offsets = [35, 0], sizes = [1, 64], strides = [1, 1]} : vector<64x64xf32> to vector<1x64xf32>
    %c0_246 = arith.constant 0 : index
    %c2240 = arith.constant 2240 : index
    %267 = vector.load %arg14[%c0_246, %c2240] : memref<1x4096xf32, #tpu.memory_space<vmem>>, vector<1x64xf32>
    tpu.vector_store %arg14[%c0_246, %c2240], %266 {strides = array<i32>} : memref<1x4096xf32, #tpu.memory_space<vmem>>, vector<1x64xf32>,
    %268 = vector.extract_strided_slice %195 {offsets = [36, 0], sizes = [1, 64], strides = [1, 1]} : vector<64x64xf32> to vector<1x64xf32>
    %c0_247 = arith.constant 0 : index
    %c2304 = arith.constant 2304 : index
    %269 = vector.load %arg14[%c0_247, %c2304] : memref<1x4096xf32, #tpu.memory_space<vmem>>, vector<1x64xf32>
    tpu.vector_store %arg14[%c0_247, %c2304], %268 {strides = array<i32>} : memref<1x4096xf32, #tpu.memory_space<vmem>>, vector<1x64xf32>,
    %270 = vector.extract_strided_slice %195 {offsets = [37, 0], sizes = [1, 64], strides = [1, 1]} : vector<64x64xf32> to vector<1x64xf32>
    %c0_248 = arith.constant 0 : index
    %c2368 = arith.constant 2368 : index
    %271 = vector.load %arg14[%c0_248, %c2368] : memref<1x4096xf32, #tpu.memory_space<vmem>>, vector<1x64xf32>
    tpu.vector_store %arg14[%c0_248, %c2368], %270 {strides = array<i32>} : memref<1x4096xf32, #tpu.memory_space<vmem>>, vector<1x64xf32>,
    %272 = vector.extract_strided_slice %195 {offsets = [38, 0], sizes = [1, 64], strides = [1, 1]} : vector<64x64xf32> to vector<1x64xf32>
    %c0_249 = arith.constant 0 : index
    %c2432 = arith.constant 2432 : index
    %273 = vector.load %arg14[%c0_249, %c2432] : memref<1x4096xf32, #tpu.memory_space<vmem>>, vector<1x64xf32>
    tpu.vector_store %arg14[%c0_249, %c2432], %272 {strides = array<i32>} : memref<1x4096xf32, #tpu.memory_space<vmem>>, vector<1x64xf32>,
    %274 = vector.extract_strided_slice %195 {offsets = [39, 0], sizes = [1, 64], strides = [1, 1]} : vector<64x64xf32> to vector<1x64xf32>
    %c0_250 = arith.constant 0 : index
    %c2496 = arith.constant 2496 : index
    %275 = vector.load %arg14[%c0_250, %c2496] : memref<1x4096xf32, #tpu.memory_space<vmem>>, vector<1x64xf32>
    tpu.vector_store %arg14[%c0_250, %c2496], %274 {strides = array<i32>} : memref<1x4096xf32, #tpu.memory_space<vmem>>, vector<1x64xf32>,
    %276 = vector.extract_strided_slice %195 {offsets = [40, 0], sizes = [1, 64], strides = [1, 1]} : vector<64x64xf32> to vector<1x64xf32>
    %c0_251 = arith.constant 0 : index
    %c2560 = arith.constant 2560 : index
    %277 = vector.load %arg14[%c0_251, %c2560] : memref<1x4096xf32, #tpu.memory_space<vmem>>, vector<1x64xf32>
    tpu.vector_store %arg14[%c0_251, %c2560], %276 {strides = array<i32>} : memref<1x4096xf32, #tpu.memory_space<vmem>>, vector<1x64xf32>,
    %278 = vector.extract_strided_slice %195 {offsets = [41, 0], sizes = [1, 64], strides = [1, 1]} : vector<64x64xf32> to vector<1x64xf32>
    %c0_252 = arith.constant 0 : index
    %c2624 = arith.constant 2624 : index
    %279 = vector.load %arg14[%c0_252, %c2624] : memref<1x4096xf32, #tpu.memory_space<vmem>>, vector<1x64xf32>
    tpu.vector_store %arg14[%c0_252, %c2624], %278 {strides = array<i32>} : memref<1x4096xf32, #tpu.memory_space<vmem>>, vector<1x64xf32>,
    %280 = vector.extract_strided_slice %195 {offsets = [42, 0], sizes = [1, 64], strides = [1, 1]} : vector<64x64xf32> to vector<1x64xf32>
    %c0_253 = arith.constant 0 : index
    %c2688 = arith.constant 2688 : index
    %281 = vector.load %arg14[%c0_253, %c2688] : memref<1x4096xf32, #tpu.memory_space<vmem>>, vector<1x64xf32>
    tpu.vector_store %arg14[%c0_253, %c2688], %280 {strides = array<i32>} : memref<1x4096xf32, #tpu.memory_space<vmem>>, vector<1x64xf32>,
    %282 = vector.extract_strided_slice %195 {offsets = [43, 0], sizes = [1, 64], strides = [1, 1]} : vector<64x64xf32> to vector<1x64xf32>
    %c0_254 = arith.constant 0 : index
    %c2752 = arith.constant 2752 : index
    %283 = vector.load %arg14[%c0_254, %c2752] : memref<1x4096xf32, #tpu.memory_space<vmem>>, vector<1x64xf32>
    tpu.vector_store %arg14[%c0_254, %c2752], %282 {strides = array<i32>} : memref<1x4096xf32, #tpu.memory_space<vmem>>, vector<1x64xf32>,
    %284 = vector.extract_strided_slice %195 {offsets = [44, 0], sizes = [1, 64], strides = [1, 1]} : vector<64x64xf32> to vector<1x64xf32>
    %c0_255 = arith.constant 0 : index
    %c2816 = arith.constant 2816 : index
    %285 = vector.load %arg14[%c0_255, %c2816] : memref<1x4096xf32, #tpu.memory_space<vmem>>, vector<1x64xf32>
    tpu.vector_store %arg14[%c0_255, %c2816], %284 {strides = array<i32>} : memref<1x4096xf32, #tpu.memory_space<vmem>>, vector<1x64xf32>,
    %286 = vector.extract_strided_slice %195 {offsets = [45, 0], sizes = [1, 64], strides = [1, 1]} : vector<64x64xf32> to vector<1x64xf32>
    %c0_256 = arith.constant 0 : index
    %c2880 = arith.constant 2880 : index
    %287 = vector.load %arg14[%c0_256, %c2880] : memref<1x4096xf32, #tpu.memory_space<vmem>>, vector<1x64xf32>
    tpu.vector_store %arg14[%c0_256, %c2880], %286 {strides = array<i32>} : memref<1x4096xf32, #tpu.memory_space<vmem>>, vector<1x64xf32>,
    %288 = vector.extract_strided_slice %195 {offsets = [46, 0], sizes = [1, 64], strides = [1, 1]} : vector<64x64xf32> to vector<1x64xf32>
    %c0_257 = arith.constant 0 : index
    %c2944 = arith.constant 2944 : index
    %289 = vector.load %arg14[%c0_257, %c2944] : memref<1x4096xf32, #tpu.memory_space<vmem>>, vector<1x64xf32>
    tpu.vector_store %arg14[%c0_257, %c2944], %288 {strides = array<i32>} : memref<1x4096xf32, #tpu.memory_space<vmem>>, vector<1x64xf32>,
    %290 = vector.extract_strided_slice %195 {offsets = [47, 0], sizes = [1, 64], strides = [1, 1]} : vector<64x64xf32> to vector<1x64xf32>
    %c0_258 = arith.constant 0 : index
    %c3008 = arith.constant 3008 : index
    %291 = vector.load %arg14[%c0_258, %c3008] : memref<1x4096xf32, #tpu.memory_space<vmem>>, vector<1x64xf32>
    tpu.vector_store %arg14[%c0_258, %c3008], %290 {strides = array<i32>} : memref<1x4096xf32, #tpu.memory_space<vmem>>, vector<1x64xf32>,
    %292 = vector.extract_strided_slice %195 {offsets = [48, 0], sizes = [1, 64], strides = [1, 1]} : vector<64x64xf32> to vector<1x64xf32>
    %c0_259 = arith.constant 0 : index
    %c3072 = arith.constant 3072 : index
    %293 = vector.load %arg14[%c0_259, %c3072] : memref<1x4096xf32, #tpu.memory_space<vmem>>, vector<1x64xf32>
    tpu.vector_store %arg14[%c0_259, %c3072], %292 {strides = array<i32>} : memref<1x4096xf32, #tpu.memory_space<vmem>>, vector<1x64xf32>,
    %294 = vector.extract_strided_slice %195 {offsets = [49, 0], sizes = [1, 64], strides = [1, 1]} : vector<64x64xf32> to vector<1x64xf32>
    %c0_260 = arith.constant 0 : index
    %c3136 = arith.constant 3136 : index
    %295 = vector.load %arg14[%c0_260, %c3136] : memref<1x4096xf32, #tpu.memory_space<vmem>>, vector<1x64xf32>
    tpu.vector_store %arg14[%c0_260, %c3136], %294 {strides = array<i32>} : memref<1x4096xf32, #tpu.memory_space<vmem>>, vector<1x64xf32>,
    %296 = vector.extract_strided_slice %195 {offsets = [50, 0], sizes = [1, 64], strides = [1, 1]} : vector<64x64xf32> to vector<1x64xf32>
    %c0_261 = arith.constant 0 : index
    %c3200 = arith.constant 3200 : index
    %297 = vector.load %arg14[%c0_261, %c3200] : memref<1x4096xf32, #tpu.memory_space<vmem>>, vector<1x64xf32>
    tpu.vector_store %arg14[%c0_261, %c3200], %296 {strides = array<i32>} : memref<1x4096xf32, #tpu.memory_space<vmem>>, vector<1x64xf32>,
    %298 = vector.extract_strided_slice %195 {offsets = [51, 0], sizes = [1, 64], strides = [1, 1]} : vector<64x64xf32> to vector<1x64xf32>
    %c0_262 = arith.constant 0 : index
    %c3264 = arith.constant 3264 : index
    %299 = vector.load %arg14[%c0_262, %c3264] : memref<1x4096xf32, #tpu.memory_space<vmem>>, vector<1x64xf32>
    tpu.vector_store %arg14[%c0_262, %c3264], %298 {strides = array<i32>} : memref<1x4096xf32, #tpu.memory_space<vmem>>, vector<1x64xf32>,
    %300 = vector.extract_strided_slice %195 {offsets = [52, 0], sizes = [1, 64], strides = [1, 1]} : vector<64x64xf32> to vector<1x64xf32>
    %c0_263 = arith.constant 0 : index
    %c3328 = arith.constant 3328 : index
    %301 = vector.load %arg14[%c0_263, %c3328] : memref<1x4096xf32, #tpu.memory_space<vmem>>, vector<1x64xf32>
    tpu.vector_store %arg14[%c0_263, %c3328], %300 {strides = array<i32>} : memref<1x4096xf32, #tpu.memory_space<vmem>>, vector<1x64xf32>,
    %302 = vector.extract_strided_slice %195 {offsets = [53, 0], sizes = [1, 64], strides = [1, 1]} : vector<64x64xf32> to vector<1x64xf32>
    %c0_264 = arith.constant 0 : index
    %c3392 = arith.constant 3392 : index
    %303 = vector.load %arg14[%c0_264, %c3392] : memref<1x4096xf32, #tpu.memory_space<vmem>>, vector<1x64xf32>
    tpu.vector_store %arg14[%c0_264, %c3392], %302 {strides = array<i32>} : memref<1x4096xf32, #tpu.memory_space<vmem>>, vector<1x64xf32>,
    %304 = vector.extract_strided_slice %195 {offsets = [54, 0], sizes = [1, 64], strides = [1, 1]} : vector<64x64xf32> to vector<1x64xf32>
    %c0_265 = arith.constant 0 : index
    %c3456 = arith.constant 3456 : index
    %305 = vector.load %arg14[%c0_265, %c3456] : memref<1x4096xf32, #tpu.memory_space<vmem>>, vector<1x64xf32>
    tpu.vector_store %arg14[%c0_265, %c3456], %304 {strides = array<i32>} : memref<1x4096xf32, #tpu.memory_space<vmem>>, vector<1x64xf32>,
    %306 = vector.extract_strided_slice %195 {offsets = [55, 0], sizes = [1, 64], strides = [1, 1]} : vector<64x64xf32> to vector<1x64xf32>
    %c0_266 = arith.constant 0 : index
    %c3520 = arith.constant 3520 : index
    %307 = vector.load %arg14[%c0_266, %c3520] : memref<1x4096xf32, #tpu.memory_space<vmem>>, vector<1x64xf32>
    tpu.vector_store %arg14[%c0_266, %c3520], %306 {strides = array<i32>} : memref<1x4096xf32, #tpu.memory_space<vmem>>, vector<1x64xf32>,
    %308 = vector.extract_strided_slice %195 {offsets = [56, 0], sizes = [1, 64], strides = [1, 1]} : vector<64x64xf32> to vector<1x64xf32>
    %c0_267 = arith.constant 0 : index
    %c3584 = arith.constant 3584 : index
    %309 = vector.load %arg14[%c0_267, %c3584] : memref<1x4096xf32, #tpu.memory_space<vmem>>, vector<1x64xf32>
    tpu.vector_store %arg14[%c0_267, %c3584], %308 {strides = array<i32>} : memref<1x4096xf32, #tpu.memory_space<vmem>>, vector<1x64xf32>,
    %310 = vector.extract_strided_slice %195 {offsets = [57, 0], sizes = [1, 64], strides = [1, 1]} : vector<64x64xf32> to vector<1x64xf32>
    %c0_268 = arith.constant 0 : index
    %c3648 = arith.constant 3648 : index
    %311 = vector.load %arg14[%c0_268, %c3648] : memref<1x4096xf32, #tpu.memory_space<vmem>>, vector<1x64xf32>
    tpu.vector_store %arg14[%c0_268, %c3648], %310 {strides = array<i32>} : memref<1x4096xf32, #tpu.memory_space<vmem>>, vector<1x64xf32>,
    %312 = vector.extract_strided_slice %195 {offsets = [58, 0], sizes = [1, 64], strides = [1, 1]} : vector<64x64xf32> to vector<1x64xf32>
    %c0_269 = arith.constant 0 : index
    %c3712 = arith.constant 3712 : index
    %313 = vector.load %arg14[%c0_269, %c3712] : memref<1x4096xf32, #tpu.memory_space<vmem>>, vector<1x64xf32>
    tpu.vector_store %arg14[%c0_269, %c3712], %312 {strides = array<i32>} : memref<1x4096xf32, #tpu.memory_space<vmem>>, vector<1x64xf32>,
    %314 = vector.extract_strided_slice %195 {offsets = [59, 0], sizes = [1, 64], strides = [1, 1]} : vector<64x64xf32> to vector<1x64xf32>
    %c0_270 = arith.constant 0 : index
    %c3776 = arith.constant 3776 : index
    %315 = vector.load %arg14[%c0_270, %c3776] : memref<1x4096xf32, #tpu.memory_space<vmem>>, vector<1x64xf32>
    tpu.vector_store %arg14[%c0_270, %c3776], %314 {strides = array<i32>} : memref<1x4096xf32, #tpu.memory_space<vmem>>, vector<1x64xf32>,
    %316 = vector.extract_strided_slice %195 {offsets = [60, 0], sizes = [1, 64], strides = [1, 1]} : vector<64x64xf32> to vector<1x64xf32>
    %c0_271 = arith.constant 0 : index
    %c3840 = arith.constant 3840 : index
    %317 = vector.load %arg14[%c0_271, %c3840] : memref<1x4096xf32, #tpu.memory_space<vmem>>, vector<1x64xf32>
    tpu.vector_store %arg14[%c0_271, %c3840], %316 {strides = array<i32>} : memref<1x4096xf32, #tpu.memory_space<vmem>>, vector<1x64xf32>,
    %318 = vector.extract_strided_slice %195 {offsets = [61, 0], sizes = [1, 64], strides = [1, 1]} : vector<64x64xf32> to vector<1x64xf32>
    %c0_272 = arith.constant 0 : index
    %c3904 = arith.constant 3904 : index
    %319 = vector.load %arg14[%c0_272, %c3904] : memref<1x4096xf32, #tpu.memory_space<vmem>>, vector<1x64xf32>
    tpu.vector_store %arg14[%c0_272, %c3904], %318 {strides = array<i32>} : memref<1x4096xf32, #tpu.memory_space<vmem>>, vector<1x64xf32>,
    %320 = vector.extract_strided_slice %195 {offsets = [62, 0], sizes = [1, 64], strides = [1, 1]} : vector<64x64xf32> to vector<1x64xf32>
    %c0_273 = arith.constant 0 : index
    %c3968 = arith.constant 3968 : index
    %321 = vector.load %arg14[%c0_273, %c3968] : memref<1x4096xf32, #tpu.memory_space<vmem>>, vector<1x64xf32>
    tpu.vector_store %arg14[%c0_273, %c3968], %320 {strides = array<i32>} : memref<1x4096xf32, #tpu.memory_space<vmem>>, vector<1x64xf32>,
    %322 = vector.extract_strided_slice %195 {offsets = [63, 0], sizes = [1, 64], strides = [1, 1]} : vector<64x64xf32> to vector<1x64xf32>
    %c0_274 = arith.constant 0 : index
    %c4032 = arith.constant 4032 : index
    %323 = vector.load %arg14[%c0_274, %c4032] : memref<1x4096xf32, #tpu.memory_space<vmem>>, vector<1x64xf32>
    tpu.vector_store %arg14[%c0_274, %c4032], %322 {strides = array<i32>} : memref<1x4096xf32, #tpu.memory_space<vmem>>, vector<1x64xf32>,
    %c0_275 = arith.constant 0 : index
    %c0_276 = arith.constant 0 : index
    %324 = vector.load %arg14[%c0_275, %c0_276] : memref<1x4096xf32, #tpu.memory_space<vmem>>, vector<1x4096xf32>
    %325 = arith.truncf %324 : vector<1x4096xf32> to vector<1x4096xbf16>
    %c0_277 = arith.constant 0 : index
    %c0_278 = arith.constant 0 : index
    %326 = vector.load %arg6[%c0_277, %c0_278] : memref<4096x128xbf16, #tpu.memory_space<vmem>>, vector<4096x128xbf16>
    %cst_279 = arith.constant dense<0.000000e+00> : vector<1x128xf32>
    %327 = tpu.matmul %325, %326, %cst_279 {dimension_numbers = #tpu.dot_dimension_numbers<[1], [0], [0], [1], [0, 0, 1, 1], [], []>} : vector<1x4096xbf16>, vector<4096x128xbf16>, vector<1x128xf32> -> vector<1x128xf32>
    %c0_280 = arith.constant 0 : index
    %c0_281 = arith.constant 0 : index
    %328 = vector.load %arg7[%c0_280, %c0_281] : memref<1x128xf32, #tpu.memory_space<vmem>>, vector<1x128xf32>
    %329 = arith.addf %327, %328 : vector<1x128xf32>
    %cst_282 = arith.constant 0.000000e+00 : f32
    %330 = vector.broadcast %cst_282 : f32 to vector<1x128xf32>
    %331 = arith.maximumf %329, %330 : vector<1x128xf32>
    %332 = arith.truncf %331 : vector<1x128xf32> to vector<1x128xbf16>
    %c0_283 = arith.constant 0 : index
    %c0_284 = arith.constant 0 : index
    %333 = vector.load %arg8[%c0_283, %c0_284] : memref<128x128xbf16, #tpu.memory_space<vmem>>, vector<128x128xbf16>
    %cst_285 = arith.constant dense<0.000000e+00> : vector<1x128xf32>
    %334 = tpu.matmul %332, %333, %cst_285 {dimension_numbers = #tpu.dot_dimension_numbers<[1], [0], [0], [1], [0, 0, 1, 1], [], []>} : vector<1x128xbf16>, vector<128x128xbf16>, vector<1x128xf32> -> vector<1x128xf32>
    %c0_286 = arith.constant 0 : index
    %c0_287 = arith.constant 0 : index
    %335 = vector.load %arg9[%c0_286, %c0_287] : memref<1x128xf32, #tpu.memory_space<vmem>>, vector<1x128xf32>
    %336 = arith.addf %334, %335 : vector<1x128xf32>
    %c0_288 = arith.constant 0 : index
    %c0_289 = arith.constant 0 : index
    %c0_290 = arith.constant 0 : index
    %337 = vector.load %arg10[%c0_288, %c0_289, %c0_290] : memref<1x1x128xf32, #tpu.memory_space<vmem>>, vector<1x1x128xf32>
    %338 = vector.shape_cast %337 : vector<1x1x128xf32> to vector<1x128xf32>
    %339 = vector.shape_cast %336 : vector<1x128xf32> to vector<1x1x128xf32>
    tpu.vector_store %arg10[%c0_288, %c0_289, %c0_290], %339 {strides = array<i32>} : memref<1x1x128xf32, #tpu.memory_space<vmem>>, vector<1x1x128xf32>,
    return
  }
  func.func @transform_0(%arg0: i32) -> (i32, i32, i32) {
    %c0_i32 = arith.constant 0 : i32
    %c0_i32_0 = arith.constant 0 : i32
    %c0_i32_1 = arith.constant 0 : i32
    return %arg0, %c0_i32, %c0_i32_0 : i32, i32, i32
  }
  func.func @transform_1(%arg0: i32) -> (i32, i32) {
    %c0_i32 = arith.constant 0 : i32
    %c0_i32_0 = arith.constant 0 : i32
    %c0_i32_1 = arith.constant 0 : i32
    return %c0_i32, %c0_i32_0 : i32, i32
  }
  func.func @transform_2(%arg0: i32) -> (i32, i32) {
    %c0_i32 = arith.constant 0 : i32
    %c0_i32_0 = arith.constant 0 : i32
    %c0_i32_1 = arith.constant 0 : i32
    return %c0_i32, %c0_i32_0 : i32, i32
  }
  func.func @transform_3(%arg0: i32) -> (i32, i32, i32, i32) {
    %c0_i32 = arith.constant 0 : i32
    %c0_i32_0 = arith.constant 0 : i32
    %c0_i32_1 = arith.constant 0 : i32
    %c0_i32_2 = arith.constant 0 : i32
    %c0_i32_3 = arith.constant 0 : i32
    return %c0_i32, %c0_i32_0, %c0_i32_1, %c0_i32_2 : i32, i32, i32, i32
  }
  func.func @transform_4(%arg0: i32) -> (i32, i32) {
    %c0_i32 = arith.constant 0 : i32
    %c0_i32_0 = arith.constant 0 : i32
    %c0_i32_1 = arith.constant 0 : i32
    return %c0_i32, %c0_i32_0 : i32, i32
  }
  func.func @transform_5(%arg0: i32) -> (i32, i32) {
    %c0_i32 = arith.constant 0 : i32
    %c0_i32_0 = arith.constant 0 : i32
    %c0_i32_1 = arith.constant 0 : i32
    return %c0_i32, %c0_i32_0 : i32, i32
  }
  func.func @transform_6(%arg0: i32) -> (i32, i32) {
    %c0_i32 = arith.constant 0 : i32
    %c0_i32_0 = arith.constant 0 : i32
    %c0_i32_1 = arith.constant 0 : i32
    return %c0_i32, %c0_i32_0 : i32, i32
  }
  func.func @transform_7(%arg0: i32) -> (i32, i32) {
    %c0_i32 = arith.constant 0 : i32
    %c0_i32_0 = arith.constant 0 : i32
    %c0_i32_1 = arith.constant 0 : i32
    return %c0_i32, %c0_i32_0 : i32, i32
  }
  func.func @transform_8(%arg0: i32) -> (i32, i32) {
    %c0_i32 = arith.constant 0 : i32
    %c0_i32_0 = arith.constant 0 : i32
    %c0_i32_1 = arith.constant 0 : i32
    return %c0_i32, %c0_i32_0 : i32, i32
  }
  func.func @transform_9(%arg0: i32) -> (i32, i32, i32) {
    %c0_i32 = arith.constant 0 : i32
    %c0_i32_0 = arith.constant 0 : i32
    %c0_i32_1 = arith.constant 0 : i32
    return %arg0, %c0_i32, %c0_i32_0 : i32, i32, i32
  }
}

</mosaic_0001>

<llo_original>
// kernel: simple_cnn_forward.1
$region0: #{simple_cnn_forward.1}
  #allocation0 [shape = 'u32[]', space=smem, size = 0x4, offset = 0x4, fixed_abs, tag = 'smem constant byte address 0x4 - core index']
  #allocation1 [shape = 'u32[144,128]{1,0:T(1,128)}', space=vmem, size = 0x12000, scoped, tag = 'internal scratch']
  #allocation2 [shape = 'f32[1024,32]{1,0:T(8,128)}', space=vmem, size = 0x80000, scoped, tag = 'scratch operand']
  #allocation3 [shape = 'f32[18,18,32]{2,1,0:T(8,128)}', space=vmem, size = 0x36000, scoped, tag = 'scratch operand']
  #allocation4 [shape = 'f32[256,64]{1,0:T(8,128)}', space=vmem, size = 0x20000, scoped, tag = 'scratch operand']
  #allocation5 [shape = 'f32[1,4096]{1,0:T(1,128)}', space=vmem, size = 0x4000, scoped, tag = 'scratch operand']
  %s0 = inlined_call_operand.vmem [shape: bf16[2,1024,27], index: 0, kind: input, shape index: {}]
  %s1 = inlined_call_operand.vmem [shape: bf16[27,32], index: 1, kind: input, shape index: {}]
  %s2 = inlined_call_operand.vmem [shape: f32[1,32], index: 2, kind: input, shape index: {}]
  %s3 = inlined_call_operand.vmem [shape: bf16[3,3,32,64], index: 3, kind: input, shape index: {}]
  %s4 = inlined_call_operand.vmem [shape: f32[1,64], index: 4, kind: input, shape index: {}]
  %s5 = inlined_call_operand.vmem [shape: bf16[4096,128], index: 5, kind: input, shape index: {}]
  %s6 = inlined_call_operand.vmem [shape: f32[1,128], index: 6, kind: input, shape index: {}]
  %s7 = inlined_call_operand.vmem [shape: bf16[128,128], index: 7, kind: input, shape index: {}]
  %s8 = inlined_call_operand.vmem [shape: f32[1,128], index: 8, kind: input, shape index: {}]
  %s9 = inlined_call_operand.hbm [shape: f32[2,1,128], index: 9, kind: output, shape index: {}]
  %s10 = sld [smem:[#allocation0]]
  $region69: #{simple_cnn_forward.1} parent=0
    _
  %s12 = ssub.s32 1, %s10
  %s13 = scalar_select 0, %s12, %s10
  $region1: #{simple_cnn_forward.1} parent=0
    #allocation6 [shape = 'u8[1024]{0}', space=vmem, size = 0x400, scoped, tag = 'output window, operand 0']
    #allocation7 [shape = 's32[2]{0}', space=sflag, size = 0x8, scoped, tag = 'scoped memory for simple_cnn_forward.1']
    %14 = vsyncpa [#allocation7], 0
    %s15 = scalar_lea.sflag [#allocation7], 1
    %16 = vsyncpa %s15, 0
    loop: start=0, step=1, limit=4
    $region2: #{simple_cnn_forward.1} parent=1 // loop_pre_header
      _
    $region3: #{simple_cnn_forward.1} parent=1 // loop_header
      %s18 = sphi 0, %s22
      %p19 = scmp.ge.s32.totalorder %s18, 4
      %s28 = sphi 0, %s30
      %s31 = sphi 0, %s28
      %s32 = sphi 0, %s31
      %s48 = sphi 0, %s32
      %s52 = sphi 0, %s52
      %s54 = sphi 0, %s52
      %s55 = sphi 0, %s54
      %s69 = sphi 0, %s55
      %s73 = sphi 0, %s73
      %s75 = sphi 0, %s73
      %s76 = sphi 0, %s75
      %s90 = sphi 0, %s76
      %s94 = sphi 0, %s94
      %s96 = sphi 0, %s94
      %s97 = sphi 0, %s96
      %s111 = sphi 0, %s97
      %s115 = sphi 0, %s115
      %s117 = sphi 0, %s115
      %s118 = sphi 0, %s117
      %s132 = sphi 0, %s118
      %s136 = sphi 0, %s136
      %s138 = sphi 0, %s136
      %s139 = sphi 0, %s138
      %s153 = sphi 0, %s139
      %s157 = sphi 0, %s157
      %s159 = sphi 0, %s157
      %s160 = sphi 0, %s159
      %s174 = sphi 0, %s160
      %s178 = sphi 0, %s178
      %s180 = sphi 0, %s178
      %s181 = sphi 0, %s180
      %s195 = sphi 0, %s181
      %s199 = sphi 0, %s199
      %s201 = sphi 0, %s199
      %s202 = sphi 0, %s201
      %s216 = sphi 0, %s202
      %s222 = sphi 0, %s224
      %s225 = sphi 0, %s222
      %s226 = sphi 0, %s225
      %s242 = sphi 0, %s226
    $region4: #{simple_cnn_forward.1} parent=1 // loop_header_branch
      %21 = sbr.rel (%p19) target = $region8
    $region5: #{simple_cnn_forward.1} parent=1 // loop_body
      %s23 = ssub.s32 %s18, 1
      %s24 = ssub.s32 %s18, 2
      %s25 = sadd.s32 %s18, 1
      %s26 = ssub.s32 %s18, %s25
      %p27 = scmp.eq.s32.totalorder %s26, 0
      %s29 = sadd.s32 %s28, 1
      %s30 = scalar_select %p27, %s28, %s29
      %p33 = pneg %p27
      %p34 = scmp.eq.s32.totalorder %s18, 1
      %p35 = por %p33, %p34
      %p36 = scmp.ne.s32.totalorder %s28, %s31
      %p37 = scmp.eq.s32.totalorder %s18, 0
      %p38 = por %p36, %p37
      %p39 = scmp.ne.s32.totalorder %s28, %s31
      %p40 = scmp.eq.s32.totalorder %s23, 1
      %p41 = por %p39, %p40
      %p42 = scmp.ne.s32.totalorder %s31, %s32
      %p43 = scmp.eq.s32.totalorder %s23, 0
      %p44 = por %p42, %p43
      %p45 = scmp.ne.s32.totalorder %s31, %s32
      %p46 = scmp.eq.s32.totalorder %s24, 1
      %p47 = por %p45, %p46
      %p49 = scmp.ne.s32.totalorder %s32, %s48
      %p50 = scmp.eq.s32.totalorder %s24, 0
      %p51 = por %p49, %p50
      %s53 = sadd.s32 %s52, 1
      %p56 = scmp.eq.s32.totalorder %s18, 1
      %p57 = scmp.ne.s32.totalorder %s52, %s54
      %p58 = scmp.eq.s32.totalorder %s18, 0
      %p59 = por %p57, %p58
      %p60 = scmp.ne.s32.totalorder %s52, %s54
      %p61 = scmp.eq.s32.totalorder %s23, 1
      %p62 = por %p60, %p61
      %p63 = scmp.ne.s32.totalorder %s54, %s55
      %p64 = scmp.eq.s32.totalorder %s23, 0
      %p65 = por %p63, %p64
      %p66 = scmp.ne.s32.totalorder %s54, %s55
      %p67 = scmp.eq.s32.totalorder %s24, 1
      %p68 = por %p66, %p67
      %p70 = scmp.ne.s32.totalorder %s55, %s69
      %p71 = scmp.eq.s32.totalorder %s24, 0
      %p72 = por %p70, %p71
      %s74 = sadd.s32 %s73, 1
      %p77 = scmp.eq.s32.totalorder %s18, 1
      %p78 = scmp.ne.s32.totalorder %s73, %s75
      %p79 = scmp.eq.s32.totalorder %s18, 0
      %p80 = por %p78, %p79
      %p81 = scmp.ne.s32.totalorder %s73, %s75
      %p82 = scmp.eq.s32.totalorder %s23, 1
      %p83 = por %p81, %p82
      %p84 = scmp.ne.s32.totalorder %s75, %s76
      %p85 = scmp.eq.s32.totalorder %s23, 0
      %p86 = por %p84, %p85
      %p87 = scmp.ne.s32.totalorder %s75, %s76
      %p88 = scmp.eq.s32.totalorder %s24, 1
      %p89 = por %p87, %p88
      %p91 = scmp.ne.s32.totalorder %s76, %s90
      %p92 = scmp.eq.s32.totalorder %s24, 0
      %p93 = por %p91, %p92
      %s95 = sadd.s32 %s94, 1
      %p98 = scmp.eq.s32.totalorder %s18, 1
      %p99 = scmp.ne.s32.totalorder %s94, %s96
      %p100 = scmp.eq.s32.totalorder %s18, 0
      %p101 = por %p99, %p100
      %p102 = scmp.ne.s32.totalorder %s94, %s96
      %p103 = scmp.eq.s32.totalorder %s23, 1
      %p104 = por %p102, %p103
      %p105 = scmp.ne.s32.totalorder %s96, %s97
      %p106 = scmp.eq.s32.totalorder %s23, 0
      %p107 = por %p105, %p106
      %p108 = scmp.ne.s32.totalorder %s96, %s97
      %p109 = scmp.eq.s32.totalorder %s24, 1
      %p110 = por %p108, %p109
      %p112 = scmp.ne.s32.totalorder %s97, %s111
      %p113 = scmp.eq.s32.totalorder %s24, 0
      %p114 = por %p112, %p113
      %s116 = sadd.s32 %s115, 1
      %p119 = scmp.eq.s32.totalorder %s18, 1
      %p120 = scmp.ne.s32.totalorder %s115, %s117
      %p121 = scmp.eq.s32.totalorder %s18, 0
      %p122 = por %p120, %p121
      %p123 = scmp.ne.s32.totalorder %s115, %s117
      %p124 = scmp.eq.s32.totalorder %s23, 1
      %p125 = por %p123, %p124
      %p126 = scmp.ne.s32.totalorder %s117, %s118
      %p127 = scmp.eq.s32.totalorder %s23, 0
      %p128 = por %p126, %p127
      %p129 = scmp.ne.s32.totalorder %s117, %s118
      %p130 = scmp.eq.s32.totalorder %s24, 1
      %p131 = por %p129, %p130
      %p133 = scmp.ne.s32.totalorder %s118, %s132
      %p134 = scmp.eq.s32.totalorder %s24, 0
      %p135 = por %p133, %p134
      %s137 = sadd.s32 %s136, 1
      %p140 = scmp.eq.s32.totalorder %s18, 1
      %p141 = scmp.ne.s32.totalorder %s136, %s138
      %p142 = scmp.eq.s32.totalorder %s18, 0
      %p143 = por %p141, %p142
      %p144 = scmp.ne.s32.totalorder %s136, %s138
      %p145 = scmp.eq.s32.totalorder %s23, 1
      %p146 = por %p144, %p145
      %p147 = scmp.ne.s32.totalorder %s138, %s139
      %p148 = scmp.eq.s32.totalorder %s23, 0
      %p149 = por %p147, %p148
      %p150 = scmp.ne.s32.totalorder %s138, %s139
      %p151 = scmp.eq.s32.totalorder %s24, 1
      %p152 = por %p150, %p151
      %p154 = scmp.ne.s32.totalorder %s139, %s153
      %p155 = scmp.eq.s32.totalorder %s24, 0
      %p156 = por %p154, %p155
      %s158 = sadd.s32 %s157, 1
      %p161 = scmp.eq.s32.totalorder %s18, 1
      %p162 = scmp.ne.s32.totalorder %s157, %s159
      %p163 = scmp.eq.s32.totalorder %s18, 0
      %p164 = por %p162, %p163
      %p165 = scmp.ne.s32.totalorder %s157, %s159
      %p166 = scmp.eq.s32.totalorder %s23, 1
      %p167 = por %p165, %p166
      %p168 = scmp.ne.s32.totalorder %s159, %s160
      %p169 = scmp.eq.s32.totalorder %s23, 0
      %p170 = por %p168, %p169
      %p171 = scmp.ne.s32.totalorder %s159, %s160
      %p172 = scmp.eq.s32.totalorder %s24, 1
      %p173 = por %p171, %p172
      %p175 = scmp.ne.s32.totalorder %s160, %s174
      %p176 = scmp.eq.s32.totalorder %s24, 0
      %p177 = por %p175, %p176
      %s179 = sadd.s32 %s178, 1
      %p182 = scmp.eq.s32.totalorder %s18, 1
      %p183 = scmp.ne.s32.totalorder %s178, %s180
      %p184 = scmp.eq.s32.totalorder %s18, 0
      %p185 = por %p183, %p184
      %p186 = scmp.ne.s32.totalorder %s178, %s180
      %p187 = scmp.eq.s32.totalorder %s23, 1
      %p188 = por %p186, %p187
      %p189 = scmp.ne.s32.totalorder %s180, %s181
      %p190 = scmp.eq.s32.totalorder %s23, 0
      %p191 = por %p189, %p190
      %p192 = scmp.ne.s32.totalorder %s180, %s181
      %p193 = scmp.eq.s32.totalorder %s24, 1
      %p194 = por %p192, %p193
      %p196 = scmp.ne.s32.totalorder %s181, %s195
      %p197 = scmp.eq.s32.totalorder %s24, 0
      %p198 = por %p196, %p197
      %s200 = sadd.s32 %s199, 1
      %p203 = scmp.eq.s32.totalorder %s18, 1
      %p204 = scmp.ne.s32.totalorder %s199, %s201
      %p205 = scmp.eq.s32.totalorder %s18, 0
      %p206 = por %p204, %p205
      %p207 = scmp.ne.s32.totalorder %s199, %s201
      %p208 = scmp.eq.s32.totalorder %s23, 1
      %p209 = por %p207, %p208
      %p210 = scmp.ne.s32.totalorder %s201, %s202
      %p211 = scmp.eq.s32.totalorder %s23, 0
      %p212 = por %p210, %p211
      %p213 = scmp.ne.s32.totalorder %s201, %s202
      %p214 = scmp.eq.s32.totalorder %s24, 1
      %p215 = por %p213, %p214
      %p217 = scmp.ne.s32.totalorder %s202, %s216
      %p218 = scmp.eq.s32.totalorder %s24, 0
      %p219 = por %p217, %p218
      %s220 = ssub.s32 %s18, %s25
      %p221 = scmp.eq.s32.totalorder %s220, 0
      %s223 = sadd.s32 %s222, 1
      %s224 = scalar_select %p221, %s222, %s223
      %p227 = pneg %p221
      %p228 = scmp.eq.s32.totalorder %s18, 1
      %p229 = por %p227, %p228
      %p230 = scmp.ne.s32.totalorder %s222, %s225
      %p231 = scmp.eq.s32.totalorder %s18, 0
      %p232 = por %p230, %p231
      %p233 = scmp.ne.s32.totalorder %s222, %s225
      %p234 = scmp.eq.s32.totalorder %s23, 1
      %p235 = por %p233, %p234
      %p236 = scmp.ne.s32.totalorder %s225, %s226
      %p237 = scmp.eq.s32.totalorder %s23, 0
      %p238 = por %p236, %p237
      %p239 = scmp.ne.s32.totalorder %s225, %s226
      %p240 = scmp.eq.s32.totalorder %s24, 1
      %p241 = por %p239, %p240
      %p243 = scmp.ne.s32.totalorder %s226, %s242
      %p244 = scmp.eq.s32.totalorder %s24, 0
      %p245 = por %p243, %p244
      %p246 = scmp.le.s32.totalorder 1, %s18
      %p247 = scmp.lt.s32.totalorder %s18, 3
      %p248 = pnand %p246, %p247
      %p249 = pneg %p248
      // Predicated region
      $region9: #{simple_cnn_forward.1} parent=5 // pred_check
        _
      $region10: #{simple_cnn_forward.1} parent=5 // pred_check_branch
        %251 = sbr.rel (%p248) target = $region12
      $region11: #{simple_cnn_forward.1} parent=5 // pred_region
        %s252 = ssub.s32 %s18, 1
        // Predicated region
        $region13: #{simple_cnn_forward.1} parent=11 // pred_check
          %p253 = pneg %p65
        $region14: #{simple_cnn_forward.1} parent=11 // pred_check_branch
          %255 = sbr.rel (%p253) target = $region16
        $region15: #{simple_cnn_forward.1} parent=11 // pred_region
          _
        $region16: #{simple_cnn_forward.1} parent=11 // pred_fallthru
          _
        // Predicated region
        $region17: #{simple_cnn_forward.1} parent=11 // pred_check
          %p256 = pneg %p86
        $region18: #{simple_cnn_forward.1} parent=11 // pred_check_branch
          %258 = sbr.rel (%p256) target = $region20
        $region19: #{simple_cnn_forward.1} parent=11 // pred_region
          _
        $region20: #{simple_cnn_forward.1} parent=11 // pred_fallthru
          _
        // Predicated region
        $region21: #{simple_cnn_forward.1} parent=11 // pred_check
          %p259 = pneg %p107
        $region22: #{simple_cnn_forward.1} parent=11 // pred_check_branch
          %261 = sbr.rel (%p259) target = $region24
        $region23: #{simple_cnn_forward.1} parent=11 // pred_region
          _
        $region24: #{simple_cnn_forward.1} parent=11 // pred_fallthru
          _
        // Predicated region
        $region25: #{simple_cnn_forward.1} parent=11 // pred_check
          %p262 = pneg %p128
        $region26: #{simple_cnn_forward.1} parent=11 // pred_check_branch
          %264 = sbr.rel (%p262) target = $region28
        $region27: #{simple_cnn_forward.1} parent=11 // pred_region
          _
        $region28: #{simple_cnn_forward.1} parent=11 // pred_fallthru
          _
        // Predicated region
        $region29: #{simple_cnn_forward.1} parent=11 // pred_check
          %p265 = pneg %p149
        $region30: #{simple_cnn_forward.1} parent=11 // pred_check_branch
          %267 = sbr.rel (%p265) target = $region32
        $region31: #{simple_cnn_forward.1} parent=11 // pred_region
          _
        $region32: #{simple_cnn_forward.1} parent=11 // pred_fallthru
          _
        // Predicated region
        $region33: #{simple_cnn_forward.1} parent=11 // pred_check
          %p268 = pneg %p170
        $region34: #{simple_cnn_forward.1} parent=11 // pred_check_branch
          %270 = sbr.rel (%p268) target = $region36
        $region35: #{simple_cnn_forward.1} parent=11 // pred_region
          _
        $region36: #{simple_cnn_forward.1} parent=11 // pred_fallthru
          _
        // Predicated region
        $region37: #{simple_cnn_forward.1} parent=11 // pred_check
          %p271 = pneg %p191
        $region38: #{simple_cnn_forward.1} parent=11 // pred_check_branch
          %273 = sbr.rel (%p271) target = $region40
        $region39: #{simple_cnn_forward.1} parent=11 // pred_region
          _
        $region40: #{simple_cnn_forward.1} parent=11 // pred_fallthru
          _
        // Predicated region
        $region41: #{simple_cnn_forward.1} parent=11 // pred_check
          %p274 = pneg %p212
        $region42: #{simple_cnn_forward.1} parent=11 // pred_check_branch
          %276 = sbr.rel (%p274) target = $region44
        $region43: #{simple_cnn_forward.1} parent=11 // pred_region
          _
        $region44: #{simple_cnn_forward.1} parent=11 // pred_fallthru
          _
      $region12: #{simple_cnn_forward.1} parent=5 // pred_fallthru
        _
      %p277 = scmp.lt.s32.totalorder %s18, 2
      // Predicated region
      $region45: #{simple_cnn_forward.1} parent=5 // pred_check
        %p278 = pneg %p277
      $region46: #{simple_cnn_forward.1} parent=5 // pred_check_branch
        %280 = sbr.rel (%p278) target = $region48
      $region47: #{simple_cnn_forward.1} parent=5 // pred_region
        // Predicated region
        $region49: #{simple_cnn_forward.1} parent=47 // pred_check
          %p281 = pneg %p38
        $region50: #{simple_cnn_forward.1} parent=47 // pred_check_branch
          %283 = sbr.rel (%p281) target = $region52
        $region51: #{simple_cnn_forward.1} parent=47 // pred_region
          %p284 = scmp.lt.s32.totalorder %s18, 1
          %s285 = scalar_select %p284, %s18, 1
          %s286 = smul.addr %s285, 128
          %s287 = smul.addr %s286, 4
          %s288 = scalar_lea.vmem %s0, %s287
        $region52: #{simple_cnn_forward.1} parent=47 // pred_fallthru
          _
      $region48: #{simple_cnn_forward.1} parent=5 // pred_fallthru
        _
      %p289 = scmp.le.s32.totalorder 1, %s18
      %p290 = scmp.lt.s32.totalorder %s18, 3
      %p291 = pnand %p289, %p290
      %p292 = pneg %p291
      // Predicated region
      $region53: #{simple_cnn_forward.1} parent=5 // pred_check
        _
      $region54: #{simple_cnn_forward.1} parent=5 // pred_check_branch
        %294 = sbr.rel (%p291) target = $region56
      $region55: #{simple_cnn_forward.1} parent=5 // pred_region
        %s295 = ssub.s32 %s18, 1
        %p296 = scmp.lt.s32.totalorder %s23, 1
        %s297 = scalar_select %p296, %s23, 1
        %s298 = smul.addr %s297, 128
        %s299 = smul.addr %s298, 4
        %s300 = scalar_lea.vmem %s0, %s299
        %p301 = pneg %p44
        %p302 = pneg %p41
        %p303 = pneg %p65
        %p304 = pneg %p62
        %p305 = pneg %p86
        %p306 = pneg %p83
        %p307 = pneg %p107
        %p308 = pneg %p104
        %p309 = pneg %p128
        %p310 = pneg %p125
        %p311 = pneg %p149
        %p312 = pneg %p146
        %p313 = pneg %p170
        %p314 = pneg %p167
        %p315 = pneg %p191
        %p316 = pneg %p188
        %p317 = pneg %p212
        %p318 = pneg %p209
        %p319 = pneg %p238
        %p320 = pneg %p235
        %s321 = sand.u32 %s225, 1
        %s322 = scalar_lea.sflag [#allocation7], %s321
        %s323 = sand.u32 %s225, 1
        %s324 = scalar_lea.vmem [#allocation6], %s323
        %p325 = scmp.lt.s32.totalorder %s23, 1
        %s326 = scalar_select %p325, %s23, 1
        %s327 = smul.addr %s326, 128
        %s328 = smul.addr %s327, 4
        %s329 = scalar_lea.vmem %s0, %s328
        %v331 = vld [vmem:[%s329] sm:$0xf]
        %v332 = vld [vmem:[%s329 + $0x4] sm:$0xf]
        %v333 = vld [vmem:[%s329 + $0x8] sm:$0xf]
        %v334 = vld [vmem:[%s329 + $0xc] sm:$0xf]
        %v335 = vld [vmem:[%s329 + $0x10] sm:$0xf]
        %v336 = vld [vmem:[%s329 + $0x14] sm:$0xf]
        %v337 = vld [vmem:[%s329 + $0x18] sm:$0xf]
        %v338 = vld [vmem:[%s329 + $0x1c] sm:$0xf]
        %v339 = vld [vmem:[%s329 + $0x20] sm:$0xf]
        %v340 = vld [vmem:[%s329 + $0x24] sm:$0xf]
        %v341 = vld [vmem:[%s329 + $0x28] sm:$0xf]
        %v342 = vld [vmem:[%s329 + $0x2c] sm:$0xf]
        %v343 = vld [vmem:[%s329 + $0x30] sm:$0xf]
        %v344 = vld [vmem:[%s329 + $0x34] sm:$0xf]
        %v345 = vld [vmem:[%s329 + $0x38] sm:$0xf]
        %v346 = vld [vmem:[%s329 + $0x3c] sm:$0xf]
        %v347 = vld [vmem:[%s329 + $0x40] sm:$0xf]
        %v348 = vld [vmem:[%s329 + $0x44] sm:$0xf]
        %v349 = vld [vmem:[%s329 + $0x48] sm:$0xf]
        %v350 = vld [vmem:[%s329 + $0x4c] sm:$0xf]
        %v351 = vld [vmem:[%s329 + $0x50] sm:$0xf]
        %v352 = vld [vmem:[%s329 + $0x54] sm:$0xf]
        %v353 = vld [vmem:[%s329 + $0x58] sm:$0xf]
        %v354 = vld [vmem:[%s329 + $0x5c] sm:$0xf]
        %v355 = vld [vmem:[%s329 + $0x60] sm:$0xf]
        %v356 = vld [vmem:[%s329 + $0x64] sm:$0xf]
        %v357 = vld [vmem:[%s329 + $0x68] sm:$0xf]
        %v358 = vld [vmem:[%s329 + $0x6c] sm:$0xf]
        %v359 = vld [vmem:[%s329 + $0x70] sm:$0xf]
        %v360 = vld [vmem:[%s329 + $0x74] sm:$0xf]
        %v361 = vld [vmem:[%s329 + $0x78] sm:$0xf]
        %v362 = vld [vmem:[%s329 + $0x7c] sm:$0xf]
        %v363 = vld [vmem:[%s1] sm:$0xf]
        %v364 = vld [vmem:[%s1 + $0x4] sm:$0xf]
        %v365 = vld [vmem:[%s1 + $0x8] sm:$0xf]
        %v366 = vld [vmem:[%s1 + $0xc] sm:$0x3]
        %v367 = vld [vmem:[%s2] sm:$0x1]
        %v369 = vlaneseq
        %v370 = vshrl.u32 %v369, 7
        %v371 = vsub.s32 0, %v370
        %v372 = vrot.slane %v367, %v371
        %v406 = vunpack.c.l.b16 %v331
        %v407 = vunpack.c.l.b16 %v332
        %v408 = vunpack.c.l.b16 %v333
        %v409 = vunpack.c.l.b16 %v334
        %v410 = vunpack.c.l.b16 %v335
        %v411 = vunpack.c.l.b16 %v336
        %v412 = vunpack.c.l.b16 %v337
        %v413 = vunpack.c.l.b16 %v338
        %v414 = vunpack.c.l.b16 %v339
        %v415 = vunpack.c.l.b16 %v340
        %v416 = vunpack.c.l.b16 %v341
        %v417 = vunpack.c.l.b16 %v342
        %v418 = vunpack.c.l.b16 %v343
        %v419 = vunpack.c.l.b16 %v344
        %v420 = vunpack.c.l.b16 %v345
        %v421 = vunpack.c.l.b16 %v346
        %v422 = vunpack.c.l.b16 %v347
        %v423 = vunpack.c.l.b16 %v348
        %v424 = vunpack.c.l.b16 %v349
        %v425 = vunpack.c.l.b16 %v350
        %v426 = vunpack.c.l.b16 %v351
        %v427 = vunpack.c.l.b16 %v352
        %v428 = vunpack.c.l.b16 %v353
        %v429 = vunpack.c.l.b16 %v354
        %v430 = vunpack.c.l.b16 %v355
        %v431 = vunpack.c.l.b16 %v356
        %v432 = vunpack.c.l.b16 %v357
        %v433 = vunpack.c.l.b16 %v358
        %v434 = vunpack.c.l.b16 %v359
        %v435 = vunpack.c.l.b16 %v360
        %v436 = vunpack.c.l.b16 %v361
        %v437 = vunpack.c.l.b16 %v362
        %v438 = vpack.c.b16 %v407, %v406
        %v439 = vpack.c.b16 %v409, %v408
        %v440 = vpack.c.b16 %v411, %v410
        %v441 = vpack.c.b16 %v413, %v412
        %v442 = vpack.c.b16 %v415, %v414
        %v443 = vpack.c.b16 %v417, %v416
        %v444 = vpack.c.b16 %v419, %v418
        %v445 = vpack.c.b16 %v421, %v420
        %v446 = vpack.c.b16 %v423, %v422
        %v447 = vpack.c.b16 %v425, %v424
        %v448 = vpack.c.b16 %v427, %v426
        %v449 = vpack.c.b16 %v429, %v428
        %v450 = vpack.c.b16 %v431, %v430
        %v451 = vpack.c.b16 %v433, %v432
        %v452 = vpack.c.b16 %v435, %v434
        %v453 = vpack.c.b16 %v437, %v436
        %v458 = vunpack.c.l.b16 %v363
        %v459 = vunpack.c.l.b16 %v364
        %v460 = vunpack.c.l.b16 %v365
        %v461 = vunpack.c.l.b16 %v366
        %v462 = vpack.c.b16 %v459, %v458
        %v463 = vpack.c.b16 %v461, %v460
        %vm465 = vcmask 220160
        %v467 = vsel %vm465, %v438, 0
        %v470 = vsel %vm465, %v439, 0
        %v473 = vsel %vm465, %v440, 0
        %v476 = vsel %vm465, %v441, 0
        %v479 = vsel %vm465, %v442, 0
        %v482 = vsel %vm465, %v443, 0
        %v485 = vsel %vm465, %v444, 0
        %v488 = vsel %vm465, %v445, 0
        %v491 = vsel %vm465, %v446, 0
        %v494 = vsel %vm465, %v447, 0
        %v497 = vsel %vm465, %v448, 0
        %v500 = vsel %vm465, %v449, 0
        %v503 = vsel %vm465, %v450, 0
        %v506 = vsel %vm465, %v451, 0
        %v509 = vsel %vm465, %v452, 0
        %v512 = vsel %vm465, %v453, 0
        %vm514 = vcmask 1044480
        %vm515 = vcmask 1045504
        %v516 = vsel %vm514, 4294967295, 65535
        %v517 = vsel %vm515, %v516, 0
        %v519 = vand.u32 %v463, %v517
        %521 = vmatprep.subr.bf16.mxu0 0
        %522 = vmatpush1.bf16.msra.mxu0 0
        %523 = vmatprep.subr.bf16.mxu0 0
        %524 = vmatpush1.bf16.msra.mxu0 0
        %525 = vmatprep.subr.bf16.mxu0 0
        %526 = vmatpush1.bf16.msra.mxu0 0
        %527 = vmatprep.subr.bf16.mxu0 0
        %528 = vmatpush1.bf16.msra.mxu0 0
        %529 = vmatprep.subr.bf16.mxu0 0
        %530 = vmatpush1.bf16.msra.mxu0 0
        %531 = vmatprep.subr.bf16.mxu0 0
        %532 = vmatpush1.bf16.msra.mxu0 0
        %533 = vmatprep.subr.bf16.mxu0 0
        %534 = vmatpush1.bf16.msra.mxu0 %v519
        %535 = vmatprep.subr.bf16.mxu0 0
        %536 = vmatpush1.bf16.msra.mxu0 %v462
        %537 = vmatprep.subr.bf16.mxu0 0
        %538 = vmatpush2.bf16.msra.mxu0 0
        %539 = vmatprep.subr.bf16.mxu0 0
        %540 = vmatpush2.bf16.msra.mxu0 0
        %541 = vmatprep.subr.bf16.mxu0 0
        %542 = vmatpush2.bf16.msra.mxu0 0
        %543 = vmatprep.subr.bf16.mxu0 0
        %544 = vmatpush2.bf16.msra.mxu0 0
        %545 = vmatprep.subr.bf16.mxu0 0
        %546 = vmatpush2.bf16.msra.mxu0 0
        %547 = vmatprep.subr.bf16.mxu0 0
        %548 = vmatpush2.bf16.msra.mxu0 0
        %549 = vmatprep.subr.bf16.mxu0 0
        %550 = vmatpush2.bf16.msra.mxu0 0
        %551 = vmatprep.subr.bf16.mxu0 0
        %552 = vmatpush2.bf16.msra.mxu0 0
        %553 = vmatprep.mubr.bf16.mxu0 0
        %554 = vmatmul.mubr.bf16.gmra.mxu0 %v467
        %v555 = vpop.f32.mrf.mxu0
        %v556 = vadd.f32 %v372, %v555
        %v557 = vpop.f32.mrf.mxu0
        %v558 = vpop.f32.mrf.mxu0
        %v559 = vadd.f32 %v372, %v558
        %v560 = vpop.f32.mrf.mxu0
        %561 = vmatprep.mubr.bf16.mxu0 0
        %562 = vmatmul.mubr.bf16.gmra.mxu0 %v470
        %v563 = vpop.f32.mrf.mxu0
        %v564 = vadd.f32 %v372, %v563
        %v565 = vpop.f32.mrf.mxu0
        %v566 = vpop.f32.mrf.mxu0
        %v567 = vadd.f32 %v372, %v566
        %v568 = vpop.f32.mrf.mxu0
        %569 = vmatprep.mubr.bf16.mxu0 0
        %570 = vmatmul.mubr.bf16.gmra.mxu0 %v473
        %v571 = vpop.f32.mrf.mxu0
        %v572 = vadd.f32 %v372, %v571
        %v573 = vpop.f32.mrf.mxu0
        %v574 = vpop.f32.mrf.mxu0
        %v575 = vadd.f32 %v372, %v574
        %v576 = vpop.f32.mrf.mxu0
        %577 = vmatprep.mubr.bf16.mxu0 0
        %578 = vmatmul.mubr.bf16.gmra.mxu0 %v476
        %v579 = vpop.f32.mrf.mxu0
        %v580 = vadd.f32 %v372, %v579
        %v581 = vpop.f32.mrf.mxu0
        %v582 = vpop.f32.mrf.mxu0
        %v583 = vadd.f32 %v372, %v582
        %v584 = vpop.f32.mrf.mxu0
        %585 = vmatprep.mubr.bf16.mxu0 0
        %586 = vmatmul.mubr.bf16.gmra.mxu0 %v479
        %v587 = vpop.f32.mrf.mxu0
        %v588 = vadd.f32 %v372, %v587
        %v589 = vpop.f32.mrf.mxu0
        %v590 = vpop.f32.mrf.mxu0
        %v591 = vadd.f32 %v372, %v590
        %v592 = vpop.f32.mrf.mxu0
        %593 = vmatprep.mubr.bf16.mxu0 0
        %594 = vmatmul.mubr.bf16.gmra.mxu0 %v482
        %v595 = vpop.f32.mrf.mxu0
        %v596 = vadd.f32 %v372, %v595
        %v597 = vpop.f32.mrf.mxu0
        %v598 = vpop.f32.mrf.mxu0
        %v599 = vadd.f32 %v372, %v598
        %v600 = vpop.f32.mrf.mxu0
        %601 = vmatprep.mubr.bf16.mxu0 0
        %602 = vmatmul.mubr.bf16.gmra.mxu0 %v485
        %v603 = vpop.f32.mrf.mxu0
        %v604 = vadd.f32 %v372, %v603
        %v605 = vpop.f32.mrf.mxu0
        %v606 = vpop.f32.mrf.mxu0
        %v607 = vadd.f32 %v372, %v606
        %v608 = vpop.f32.mrf.mxu0
        %609 = vmatprep.mubr.bf16.mxu0 0
        %610 = vmatmul.mubr.bf16.gmra.mxu0 %v488
        %v611 = vpop.f32.mrf.mxu0
        %v612 = vadd.f32 %v372, %v611
        %v613 = vpop.f32.mrf.mxu0
        %v614 = vpop.f32.mrf.mxu0
        %v615 = vadd.f32 %v372, %v614
        %v616 = vpop.f32.mrf.mxu0
        %617 = vmatprep.mubr.bf16.mxu0 0
        %618 = vmatmul.mubr.bf16.gmra.mxu0 %v491
        %v619 = vpop.f32.mrf.mxu0
        %v620 = vadd.f32 %v372, %v619
        %v621 = vpop.f32.mrf.mxu0
        %v622 = vpop.f32.mrf.mxu0
        %v623 = vadd.f32 %v372, %v622
        %v624 = vpop.f32.mrf.mxu0
        %625 = vmatprep.mubr.bf16.mxu0 0
        %626 = vmatmul.mubr.bf16.gmra.mxu0 %v494
        %v627 = vpop.f32.mrf.mxu0
        %v628 = vadd.f32 %v372, %v627
        %v629 = vpop.f32.mrf.mxu0
        %v630 = vpop.f32.mrf.mxu0
        %v631 = vadd.f32 %v372, %v630
        %v632 = vpop.f32.mrf.mxu0
        %633 = vmatprep.mubr.bf16.mxu0 0
        %634 = vmatmul.mubr.bf16.gmra.mxu0 %v497
        %v635 = vpop.f32.mrf.mxu0
        %v636 = vadd.f32 %v372, %v635
        %v637 = vpop.f32.mrf.mxu0
        %v638 = vpop.f32.mrf.mxu0
        %v639 = vadd.f32 %v372, %v638
        %v640 = vpop.f32.mrf.mxu0
        %641 = vmatprep.mubr.bf16.mxu0 0
        %642 = vmatmul.mubr.bf16.gmra.mxu0 %v500
        %v643 = vpop.f32.mrf.mxu0
        %v644 = vadd.f32 %v372, %v643
        %v645 = vpop.f32.mrf.mxu0
        %v646 = vpop.f32.mrf.mxu0
        %v647 = vadd.f32 %v372, %v646
        %v648 = vpop.f32.mrf.mxu0
        %649 = vmatprep.mubr.bf16.mxu0 0
        %650 = vmatmul.mubr.bf16.gmra.mxu0 %v503
        %v651 = vpop.f32.mrf.mxu0
        %v652 = vadd.f32 %v372, %v651
        %v653 = vpop.f32.mrf.mxu0
        %v654 = vpop.f32.mrf.mxu0
        %v655 = vadd.f32 %v372, %v654
        %v656 = vpop.f32.mrf.mxu0
        %657 = vmatprep.mubr.bf16.mxu0 0
        %658 = vmatmul.mubr.bf16.gmra.mxu0 %v506
        %v659 = vpop.f32.mrf.mxu0
        %v660 = vadd.f32 %v372, %v659
        %v661 = vpop.f32.mrf.mxu0
        %v662 = vpop.f32.mrf.mxu0
        %v663 = vadd.f32 %v372, %v662
        %v664 = vpop.f32.mrf.mxu0
        %665 = vmatprep.mubr.bf16.mxu0 0
        %666 = vmatmul.mubr.bf16.gmra.mxu0 %v509
        %v667 = vpop.f32.mrf.mxu0
        %v668 = vadd.f32 %v372, %v667
        %v669 = vpop.f32.mrf.mxu0
        %v670 = vpop.f32.mrf.mxu0
        %v671 = vadd.f32 %v372, %v670
        %v672 = vpop.f32.mrf.mxu0
        %673 = vmatprep.mubr.bf16.mxu0 0
        %674 = vmatmul.mubr.bf16.gmra.mxu0 %v512
        %v675 = vpop.f32.mrf.mxu0
        %v676 = vadd.f32 %v372, %v675
        %v677 = vpop.f32.mrf.mxu0
        %v678 = vpop.f32.mrf.mxu0
        %v679 = vadd.f32 %v372, %v678
        %v680 = vpop.f32.mrf.mxu0
        %681 = vdwg.mxu0
        %v682 = vmax.f32 %v556, 0.0
        %v683 = vmax.f32 %v559, 0.0
        %v684 = vmax.f32 %v564, 0.0
        %v685 = vmax.f32 %v567, 0.0
        %v686 = vmax.f32 %v572, 0.0
        %v687 = vmax.f32 %v575, 0.0
        %v688 = vmax.f32 %v580, 0.0
        %v689 = vmax.f32 %v583, 0.0
        %v690 = vmax.f32 %v588, 0.0
        %v691 = vmax.f32 %v591, 0.0
        %v692 = vmax.f32 %v596, 0.0
        %v693 = vmax.f32 %v599, 0.0
        %v694 = vmax.f32 %v604, 0.0
        %v695 = vmax.f32 %v607, 0.0
        %v696 = vmax.f32 %v612, 0.0
        %v697 = vmax.f32 %v615, 0.0
        %v698 = vmax.f32 %v620, 0.0
        %v699 = vmax.f32 %v623, 0.0
        %v700 = vmax.f32 %v628, 0.0
        %v701 = vmax.f32 %v631, 0.0
        %v702 = vmax.f32 %v636, 0.0
        %v703 = vmax.f32 %v639, 0.0
        %v704 = vmax.f32 %v644, 0.0
        %v705 = vmax.f32 %v647, 0.0
        %v706 = vmax.f32 %v652, 0.0
        %v707 = vmax.f32 %v655, 0.0
        %v708 = vmax.f32 %v660, 0.0
        %v709 = vmax.f32 %v663, 0.0
        %v710 = vmax.f32 %v668, 0.0
        %v711 = vmax.f32 %v671, 0.0
        %v712 = vmax.f32 %v676, 0.0
        %v713 = vmax.f32 %v679, 0.0
        %vm714 = vcmask 261120
        %715 = vst.msk [vmem:[#allocation2] sm:$0xff] %vm714, %v682
        %716 = vst.msk [vmem:[#allocation2 + $0x8] sm:$0xff] %vm714, %v683
        %717 = vst.msk [vmem:[#allocation2 + $0x10] sm:$0xff] %vm714, %v684
        %718 = vst.msk [vmem:[#allocation2 + $0x18] sm:$0xff] %vm714, %v685
        %719 = vst.msk [vmem:[#allocation2 + $0x20] sm:$0xff] %vm714, %v686
        %720 = vst.msk [vmem:[#allocation2 + $0x28] sm:$0xff] %vm714, %v687
        %721 = vst.msk [vmem:[#allocation2 + $0x30] sm:$0xff] %vm714, %v688
        %722 = vst.msk [vmem:[#allocation2 + $0x38] sm:$0xff] %vm714, %v689
        %723 = vst.msk [vmem:[#allocation2 + $0x40] sm:$0xff] %vm714, %v690
        %724 = vst.msk [vmem:[#allocation2 + $0x48] sm:$0xff] %vm714, %v691
        %725 = vst.msk [vmem:[#allocation2 + $0x50] sm:$0xff] %vm714, %v692
        %726 = vst.msk [vmem:[#allocation2 + $0x58] sm:$0xff] %vm714, %v693
        %727 = vst.msk [vmem:[#allocation2 + $0x60] sm:$0xff] %vm714, %v694
        %728 = vst.msk [vmem:[#allocation2 + $0x68] sm:$0xff] %vm714, %v695
        %729 = vst.msk [vmem:[#allocation2 + $0x70] sm:$0xff] %vm714, %v696
        %730 = vst.msk [vmem:[#allocation2 + $0x78] sm:$0xff] %vm714, %v697
        %731 = vst.msk [vmem:[#allocation2 + $0x80] sm:$0xff] %vm714, %v698
        %732 = vst.msk [vmem:[#allocation2 + $0x88] sm:$0xff] %vm714, %v699
        %733 = vst.msk [vmem:[#allocation2 + $0x90] sm:$0xff] %vm714, %v700
        %734 = vst.msk [vmem:[#allocation2 + $0x98] sm:$0xff] %vm714, %v701
        %735 = vst.msk [vmem:[#allocation2 + $0xa0] sm:$0xff] %vm714, %v702
        %736 = vst.msk [vmem:[#allocation2 + $0xa8] sm:$0xff] %vm714, %v703
        %737 = vst.msk [vmem:[#allocation2 + $0xb0] sm:$0xff] %vm714, %v704
        %738 = vst.msk [vmem:[#allocation2 + $0xb8] sm:$0xff] %vm714, %v705
        %739 = vst.msk [vmem:[#allocation2 + $0xc0] sm:$0xff] %vm714, %v706
        %740 = vst.msk [vmem:[#allocation2 + $0xc8] sm:$0xff] %vm714, %v707
        %741 = vst.msk [vmem:[#allocation2 + $0xd0] sm:$0xff] %vm714, %v708
        %742 = vst.msk [vmem:[#allocation2 + $0xd8] sm:$0xff] %vm714, %v709
        %743 = vst.msk [vmem:[#allocation2 + $0xe0] sm:$0xff] %vm714, %v710
        %744 = vst.msk [vmem:[#allocation2 + $0xe8] sm:$0xff] %vm714, %v711
        %745 = vst.msk [vmem:[#allocation2 + $0xf0] sm:$0xff] %vm714, %v712
        %746 = vst.msk [vmem:[#allocation2 + $0xf8] sm:$0xff] %vm714, %v713
        %v747 = vld [vmem:[%s329 + $0x80] sm:$0xf]
        %v748 = vld [vmem:[%s329 + $0x84] sm:$0xf]
        %v749 = vld [vmem:[%s329 + $0x88] sm:$0xf]
        %v750 = vld [vmem:[%s329 + $0x8c] sm:$0xf]
        %v751 = vld [vmem:[%s329 + $0x90] sm:$0xf]
        %v752 = vld [vmem:[%s329 + $0x94] sm:$0xf]
        %v753 = vld [vmem:[%s329 + $0x98] sm:$0xf]
        %v754 = vld [vmem:[%s329 + $0x9c] sm:$0xf]
        %v755 = vld [vmem:[%s329 + $0xa0] sm:$0xf]
        %v756 = vld [vmem:[%s329 + $0xa4] sm:$0xf]
        %v757 = vld [vmem:[%s329 + $0xa8] sm:$0xf]
        %v758 = vld [vmem:[%s329 + $0xac] sm:$0xf]
        %v759 = vld [vmem:[%s329 + $0xb0] sm:$0xf]
        %v760 = vld [vmem:[%s329 + $0xb4] sm:$0xf]
        %v761 = vld [vmem:[%s329 + $0xb8] sm:$0xf]
        %v762 = vld [vmem:[%s329 + $0xbc] sm:$0xf]
        %v763 = vld [vmem:[%s329 + $0xc0] sm:$0xf]
        %v764 = vld [vmem:[%s329 + $0xc4] sm:$0xf]
        %v765 = vld [vmem:[%s329 + $0xc8] sm:$0xf]
        %v766 = vld [vmem:[%s329 + $0xcc] sm:$0xf]
        %v767 = vld [vmem:[%s329 + $0xd0] sm:$0xf]
        %v768 = vld [vmem:[%s329 + $0xd4] sm:$0xf]
        %v769 = vld [vmem:[%s329 + $0xd8] sm:$0xf]
        %v770 = vld [vmem:[%s329 + $0xdc] sm:$0xf]
        %v771 = vld [vmem:[%s329 + $0xe0] sm:$0xf]
        %v772 = vld [vmem:[%s329 + $0xe4] sm:$0xf]
        %v773 = vld [vmem:[%s329 + $0xe8] sm:$0xf]
        %v774 = vld [vmem:[%s329 + $0xec] sm:$0xf]
        %v775 = vld [vmem:[%s329 + $0xf0] sm:$0xf]
        %v776 = vld [vmem:[%s329 + $0xf4] sm:$0xf]
        %v777 = vld [vmem:[%s329 + $0xf8] sm:$0xf]
        %v778 = vld [vmem:[%s329 + $0xfc] sm:$0xf]
        %v779 = vld [vmem:[%s1] sm:$0xf]
        %v780 = vld [vmem:[%s1 + $0x4] sm:$0xf]
        %v781 = vld [vmem:[%s1 + $0x8] sm:$0xf]
        %v782 = vld [vmem:[%s1 + $0xc] sm:$0x3]
        %v783 = vld [vmem:[%s2] sm:$0x1]
        %v785 = vlaneseq
        %v786 = vshrl.u32 %v785, 7
        %v787 = vsub.s32 0, %v786
        %v788 = vrot.slane %v783, %v787
        %v822 = vunpack.c.l.b16 %v747
        %v823 = vunpack.c.l.b16 %v748
        %v824 = vunpack.c.l.b16 %v749
        %v825 = vunpack.c.l.b16 %v750
        %v826 = vunpack.c.l.b16 %v751
        %v827 = vunpack.c.l.b16 %v752
        %v828 = vunpack.c.l.b16 %v753
        %v829 = vunpack.c.l.b16 %v754
        %v830 = vunpack.c.l.b16 %v755
        %v831 = vunpack.c.l.b16 %v756
        %v832 = vunpack.c.l.b16 %v757
        %v833 = vunpack.c.l.b16 %v758
        %v834 = vunpack.c.l.b16 %v759
        %v835 = vunpack.c.l.b16 %v760
        %v836 = vunpack.c.l.b16 %v761
        %v837 = vunpack.c.l.b16 %v762
        %v838 = vunpack.c.l.b16 %v763
        %v839 = vunpack.c.l.b16 %v764
        %v840 = vunpack.c.l.b16 %v765
        %v841 = vunpack.c.l.b16 %v766
        %v842 = vunpack.c.l.b16 %v767
        %v843 = vunpack.c.l.b16 %v768
        %v844 = vunpack.c.l.b16 %v769
        %v845 = vunpack.c.l.b16 %v770
        %v846 = vunpack.c.l.b16 %v771
        %v847 = vunpack.c.l.b16 %v772
        %v848 = vunpack.c.l.b16 %v773
        %v849 = vunpack.c.l.b16 %v774
        %v850 = vunpack.c.l.b16 %v775
        %v851 = vunpack.c.l.b16 %v776
        %v852 = vunpack.c.l.b16 %v777
        %v853 = vunpack.c.l.b16 %v778
        %v854 = vpack.c.b16 %v823, %v822
        %v855 = vpack.c.b16 %v825, %v824
        %v856 = vpack.c.b16 %v827, %v826
        %v857 = vpack.c.b16 %v829, %v828
        %v858 = vpack.c.b16 %v831, %v830
        %v859 = vpack.c.b16 %v833, %v832
        %v860 = vpack.c.b16 %v835, %v834
        %v861 = vpack.c.b16 %v837, %v836
        %v862 = vpack.c.b16 %v839, %v838
        %v863 = vpack.c.b16 %v841, %v840
        %v864 = vpack.c.b16 %v843, %v842
        %v865 = vpack.c.b16 %v845, %v844
        %v866 = vpack.c.b16 %v847, %v846
        %v867 = vpack.c.b16 %v849, %v848
        %v868 = vpack.c.b16 %v851, %v850
        %v869 = vpack.c.b16 %v853, %v852
        %v874 = vunpack.c.l.b16 %v779
        %v875 = vunpack.c.l.b16 %v780
        %v876 = vunpack.c.l.b16 %v781
        %v877 = vunpack.c.l.b16 %v782
        %v878 = vpack.c.b16 %v875, %v874
        %v879 = vpack.c.b16 %v877, %v876
        %v882 = vsel %vm465, %v854, 0
        %v885 = vsel %vm465, %v855, 0
        %v888 = vsel %vm465, %v856, 0
        %v891 = vsel %vm465, %v857, 0
        %v894 = vsel %vm465, %v858, 0
        %v897 = vsel %vm465, %v859, 0
        %v900 = vsel %vm465, %v860, 0
        %v903 = vsel %vm465, %v861, 0
        %v906 = vsel %vm465, %v862, 0
        %v909 = vsel %vm465, %v863, 0
        %v912 = vsel %vm465, %v864, 0
        %v915 = vsel %vm465, %v865, 0
        %v918 = vsel %vm465, %v866, 0
        %v921 = vsel %vm465, %v867, 0
        %v924 = vsel %vm465, %v868, 0
        %v927 = vsel %vm465, %v869, 0
        %v930 = vand.u32 %v879, %v517
        %932 = vmatprep.subr.bf16.mxu0 0
        %933 = vmatpush1.bf16.msra.mxu0 0
        %934 = vmatprep.subr.bf16.mxu0 0
        %935 = vmatpush1.bf16.msra.mxu0 0
        %936 = vmatprep.subr.bf16.mxu0 0
        %937 = vmatpush1.bf16.msra.mxu0 0
        %938 = vmatprep.subr.bf16.mxu0 0
        %939 = vmatpush1.bf16.msra.mxu0 0
        %940 = vmatprep.subr.bf16.mxu0 0
        %941 = vmatpush1.bf16.msra.mxu0 0
        %942 = vmatprep.subr.bf16.mxu0 0
        %943 = vmatpush1.bf16.msra.mxu0 0
        %944 = vmatprep.subr.bf16.mxu0 0
        %945 = vmatpush1.bf16.msra.mxu0 %v930
        %946 = vmatprep.subr.bf16.mxu0 0
        %947 = vmatpush1.bf16.msra.mxu0 %v878
        %948 = vmatprep.subr.bf16.mxu0 0
        %949 = vmatpush2.bf16.msra.mxu0 0
        %950 = vmatprep.subr.bf16.mxu0 0
        %951 = vmatpush2.bf16.msra.mxu0 0
        %952 = vmatprep.subr.bf16.mxu0 0
        %953 = vmatpush2.bf16.msra.mxu0 0
        %954 = vmatprep.subr.bf16.mxu0 0
        %955 = vmatpush2.bf16.msra.mxu0 0
        %956 = vmatprep.subr.bf16.mxu0 0
        %957 = vmatpush2.bf16.msra.mxu0 0
        %958 = vmatprep.subr.bf16.mxu0 0
        %959 = vmatpush2.bf16.msra.mxu0 0
        %960 = vmatprep.subr.bf16.mxu0 0
        %961 = vmatpush2.bf16.msra.mxu0 0
        %962 = vmatprep.subr.bf16.mxu0 0
        %963 = vmatpush2.bf16.msra.mxu0 0
        %964 = vmatprep.mubr.bf16.mxu0 0
        %965 = vmatmul.mubr.bf16.gmra.mxu0 %v882
        %v966 = vpop.f32.mrf.mxu0
        %v967 = vadd.f32 %v788, %v966
        %v968 = vpop.f32.mrf.mxu0
        %v969 = vpop.f32.mrf.mxu0
        %v970 = vadd.f32 %v788, %v969
        %v971 = vpop.f32.mrf.mxu0
        %972 = vmatprep.mubr.bf16.mxu0 0
        %973 = vmatmul.mubr.bf16.gmra.mxu0 %v885
        %v974 = vpop.f32.mrf.mxu0
        %v975 = vadd.f32 %v788, %v974
        %v976 = vpop.f32.mrf.mxu0
        %v977 = vpop.f32.mrf.mxu0
        %v978 = vadd.f32 %v788, %v977
        %v979 = vpop.f32.mrf.mxu0
        %980 = vmatprep.mubr.bf16.mxu0 0
        %981 = vmatmul.mubr.bf16.gmra.mxu0 %v888
        %v982 = vpop.f32.mrf.mxu0
        %v983 = vadd.f32 %v788, %v982
        %v984 = vpop.f32.mrf.mxu0
        %v985 = vpop.f32.mrf.mxu0
        %v986 = vadd.f32 %v788, %v985
        %v987 = vpop.f32.mrf.mxu0
        %988 = vmatprep.mubr.bf16.mxu0 0
        %989 = vmatmul.mubr.bf16.gmra.mxu0 %v891
        %v990 = vpop.f32.mrf.mxu0
        %v991 = vadd.f32 %v788, %v990
        %v992 = vpop.f32.mrf.mxu0
        %v993 = vpop.f32.mrf.mxu0
        %v994 = vadd.f32 %v788, %v993
        %v995 = vpop.f32.mrf.mxu0
        %996 = vmatprep.mubr.bf16.mxu0 0
        %997 = vmatmul.mubr.bf16.gmra.mxu0 %v894
        %v998 = vpop.f32.mrf.mxu0
        %v999 = vadd.f32 %v788, %v998
        %v1000 = vpop.f32.mrf.mxu0
        %v1001 = vpop.f32.mrf.mxu0
        %v1002 = vadd.f32 %v788, %v1001
        %v1003 = vpop.f32.mrf.mxu0
        %1004 = vmatprep.mubr.bf16.mxu0 0
        %1005 = vmatmul.mubr.bf16.gmra.mxu0 %v897
        %v1006 = vpop.f32.mrf.mxu0
        %v1007 = vadd.f32 %v788, %v1006
        %v1008 = vpop.f32.mrf.mxu0
        %v1009 = vpop.f32.mrf.mxu0
        %v1010 = vadd.f32 %v788, %v1009
        %v1011 = vpop.f32.mrf.mxu0
        %1012 = vmatprep.mubr.bf16.mxu0 0
        %1013 = vmatmul.mubr.bf16.gmra.mxu0 %v900
        %v1014 = vpop.f32.mrf.mxu0
        %v1015 = vadd.f32 %v788, %v1014
        %v1016 = vpop.f32.mrf.mxu0
        %v1017 = vpop.f32.mrf.mxu0
        %v1018 = vadd.f32 %v788, %v1017
        %v1019 = vpop.f32.mrf.mxu0
        %1020 = vmatprep.mubr.bf16.mxu0 0
        %1021 = vmatmul.mubr.bf16.gmra.mxu0 %v903
        %v1022 = vpop.f32.mrf.mxu0
        %v1023 = vadd.f32 %v788, %v1022
        %v1024 = vpop.f32.mrf.mxu0
        %v1025 = vpop.f32.mrf.mxu0
        %v1026 = vadd.f32 %v788, %v1025
        %v1027 = vpop.f32.mrf.mxu0
        %1028 = vmatprep.mubr.bf16.mxu0 0
        %1029 = vmatmul.mubr.bf16.gmra.mxu0 %v906
        %v1030 = vpop.f32.mrf.mxu0
        %v1031 = vadd.f32 %v788, %v1030
        %v1032 = vpop.f32.mrf.mxu0
        %v1033 = vpop.f32.mrf.mxu0
        %v1034 = vadd.f32 %v788, %v1033
        %v1035 = vpop.f32.mrf.mxu0
        %1036 = vmatprep.mubr.bf16.mxu0 0
        %1037 = vmatmul.mubr.bf16.gmra.mxu0 %v909
        %v1038 = vpop.f32.mrf.mxu0
        %v1039 = vadd.f32 %v788, %v1038
        %v1040 = vpop.f32.mrf.mxu0
        %v1041 = vpop.f32.mrf.mxu0
        %v1042 = vadd.f32 %v788, %v1041
        %v1043 = vpop.f32.mrf.mxu0
        %1044 = vmatprep.mubr.bf16.mxu0 0
        %1045 = vmatmul.mubr.bf16.gmra.mxu0 %v912
        %v1046 = vpop.f32.mrf.mxu0
        %v1047 = vadd.f32 %v788, %v1046
        %v1048 = vpop.f32.mrf.mxu0
        %v1049 = vpop.f32.mrf.mxu0
        %v1050 = vadd.f32 %v788, %v1049
        %v1051 = vpop.f32.mrf.mxu0
        %1052 = vmatprep.mubr.bf16.mxu0 0
        %1053 = vmatmul.mubr.bf16.gmra.mxu0 %v915
        %v1054 = vpop.f32.mrf.mxu0
        %v1055 = vadd.f32 %v788, %v1054
        %v1056 = vpop.f32.mrf.mxu0
        %v1057 = vpop.f32.mrf.mxu0
        %v1058 = vadd.f32 %v788, %v1057
        %v1059 = vpop.f32.mrf.mxu0
        %1060 = vmatprep.mubr.bf16.mxu0 0
        %1061 = vmatmul.mubr.bf16.gmra.mxu0 %v918
        %v1062 = vpop.f32.mrf.mxu0
        %v1063 = vadd.f32 %v788, %v1062
        %v1064 = vpop.f32.mrf.mxu0
        %v1065 = vpop.f32.mrf.mxu0
        %v1066 = vadd.f32 %v788, %v1065
        %v1067 = vpop.f32.mrf.mxu0
        %1068 = vmatprep.mubr.bf16.mxu0 0
        %1069 = vmatmul.mubr.bf16.gmra.mxu0 %v921
        %v1070 = vpop.f32.mrf.mxu0
        %v1071 = vadd.f32 %v788, %v1070
        %v1072 = vpop.f32.mrf.mxu0
        %v1073 = vpop.f32.mrf.mxu0
        %v1074 = vadd.f32 %v788, %v1073
        %v1075 = vpop.f32.mrf.mxu0
        %1076 = vmatprep.mubr.bf16.mxu0 0
        %1077 = vmatmul.mubr.bf16.gmra.mxu0 %v924
        %v1078 = vpop.f32.mrf.mxu0
        %v1079 = vadd.f32 %v788, %v1078
        %v1080 = vpop.f32.mrf.mxu0
        %v1081 = vpop.f32.mrf.mxu0
        %v1082 = vadd.f32 %v788, %v1081
        %v1083 = vpop.f32.mrf.mxu0
        %1084 = vmatprep.mubr.bf16.mxu0 0
        %1085 = vmatmul.mubr.bf16.gmra.mxu0 %v927
        %v1086 = vpop.f32.mrf.mxu0
        %v1087 = vadd.f32 %v788, %v1086
        %v1088 = vpop.f32.mrf.mxu0
        %v1089 = vpop.f32.mrf.mxu0
        %v1090 = vadd.f32 %v788, %v1089
        %v1091 = vpop.f32.mrf.mxu0
        %1092 = vdwg.mxu0
        %v1093 = vmax.f32 %v967, 0.0
        %v1094 = vmax.f32 %v970, 0.0
        %v1095 = vmax.f32 %v975, 0.0
        %v1096 = vmax.f32 %v978, 0.0
        %v1097 = vmax.f32 %v983, 0.0
        %v1098 = vmax.f32 %v986, 0.0
        %v1099 = vmax.f32 %v991, 0.0
        %v1100 = vmax.f32 %v994, 0.0
        %v1101 = vmax.f32 %v999, 0.0
        %v1102 = vmax.f32 %v1002, 0.0
        %v1103 = vmax.f32 %v1007, 0.0
        %v1104 = vmax.f32 %v1010, 0.0
        %v1105 = vmax.f32 %v1015, 0.0
        %v1106 = vmax.f32 %v1018, 0.0
        %v1107 = vmax.f32 %v1023, 0.0
        %v1108 = vmax.f32 %v1026, 0.0
        %v1109 = vmax.f32 %v1031, 0.0
        %v1110 = vmax.f32 %v1034, 0.0
        %v1111 = vmax.f32 %v1039, 0.0
        %v1112 = vmax.f32 %v1042, 0.0
        %v1113 = vmax.f32 %v1047, 0.0
        %v1114 = vmax.f32 %v1050, 0.0
        %v1115 = vmax.f32 %v1055, 0.0
        %v1116 = vmax.f32 %v1058, 0.0
        %v1117 = vmax.f32 %v1063, 0.0
        %v1118 = vmax.f32 %v1066, 0.0
        %v1119 = vmax.f32 %v1071, 0.0
        %v1120 = vmax.f32 %v1074, 0.0
        %v1121 = vmax.f32 %v1079, 0.0
        %v1122 = vmax.f32 %v1082, 0.0
        %v1123 = vmax.f32 %v1087, 0.0
        %v1124 = vmax.f32 %v1090, 0.0
        %1125 = vst.msk [vmem:[#allocation2 + $0x100] sm:$0xff] %vm714, %v1093
        %1126 = vst.msk [vmem:[#allocation2 + $0x108] sm:$0xff] %vm714, %v1094
        %1127 = vst.msk [vmem:[#allocation2 + $0x110] sm:$0xff] %vm714, %v1095
        %1128 = vst.msk [vmem:[#allocation2 + $0x118] sm:$0xff] %vm714, %v1096
        %1129 = vst.msk [vmem:[#allocation2 + $0x120] sm:$0xff] %vm714, %v1097
        %1130 = vst.msk [vmem:[#allocation2 + $0x128] sm:$0xff] %vm714, %v1098
        %1131 = vst.msk [vmem:[#allocation2 + $0x130] sm:$0xff] %vm714, %v1099
        %1132 = vst.msk [vmem:[#allocation2 + $0x138] sm:$0xff] %vm714, %v1100
        %1133 = vst.msk [vmem:[#allocation2 + $0x140] sm:$0xff] %vm714, %v1101
        %1134 = vst.msk [vmem:[#allocation2 + $0x148] sm:$0xff] %vm714, %v1102
        %1135 = vst.msk [vmem:[#allocation2 + $0x150] sm:$0xff] %vm714, %v1103
        %1136 = vst.msk [vmem:[#allocation2 + $0x158] sm:$0xff] %vm714, %v1104
        %1137 = vst.msk [vmem:[#allocation2 + $0x160] sm:$0xff] %vm714, %v1105
        %1138 = vst.msk [vmem:[#allocation2 + $0x168] sm:$0xff] %vm714, %v1106
        %1139 = vst.msk [vmem:[#allocation2 + $0x170] sm:$0xff] %vm714, %v1107
        %1140 = vst.msk [vmem:[#allocation2 + $0x178] sm:$0xff] %vm714, %v1108
        %1141 = vst.msk [vmem:[#allocation2 + $0x180] sm:$0xff] %vm714, %v1109
        %1142 = vst.msk [vmem:[#allocation2 + $0x188] sm:$0xff] %vm714, %v1110
        %1143 = vst.msk [vmem:[#allocation2 + $0x190] sm:$0xff] %vm714, %v1111
        %1144 = vst.msk [vmem:[#allocation2 + $0x198] sm:$0xff] %vm714, %v1112
        %1145 = vst.msk [vmem:[#allocation2 + $0x1a0] sm:$0xff] %vm714, %v1113
        %1146 = vst.msk [vmem:[#allocation2 + $0x1a8] sm:$0xff] %vm714, %v1114
        %1147 = vst.msk [vmem:[#allocation2 + $0x1b0] sm:$0xff] %vm714, %v1115
        %1148 = vst.msk [vmem:[#allocation2 + $0x1b8] sm:$0xff] %vm714, %v1116
        %1149 = vst.msk [vmem:[#allocation2 + $0x1c0] sm:$0xff] %vm714, %v1117
        %1150 = vst.msk [vmem:[#allocation2 + $0x1c8] sm:$0xff] %vm714, %v1118
        %1151 = vst.msk [vmem:[#allocation2 + $0x1d0] sm:$0xff] %vm714, %v1119
        %1152 = vst.msk [vmem:[#allocation2 + $0x1d8] sm:$0xff] %vm714, %v1120
        %1153 = vst.msk [vmem:[#allocation2 + $0x1e0] sm:$0xff] %vm714, %v1121
        %1154 = vst.msk [vmem:[#allocation2 + $0x1e8] sm:$0xff] %vm714, %v1122
        %1155 = vst.msk [vmem:[#allocation2 + $0x1f0] sm:$0xff] %vm714, %v1123
        %1156 = vst.msk [vmem:[#allocation2 + $0x1f8] sm:$0xff] %vm714, %v1124
        %v1157 = vld [vmem:[%s329 + $0x100] sm:$0xf]
        %v1158 = vld [vmem:[%s329 + $0x104] sm:$0xf]
        %v1159 = vld [vmem:[%s329 + $0x108] sm:$0xf]
        %v1160 = vld [vmem:[%s329 + $0x10c] sm:$0xf]
        %v1161 = vld [vmem:[%s329 + $0x110] sm:$0xf]
        %v1162 = vld [vmem:[%s329 + $0x114] sm:$0xf]
        %v1163 = vld [vmem:[%s329 + $0x118] sm:$0xf]
        %v1164 = vld [vmem:[%s329 + $0x11c] sm:$0xf]
        %v1165 = vld [vmem:[%s329 + $0x120] sm:$0xf]
        %v1166 = vld [vmem:[%s329 + $0x124] sm:$0xf]
        %v1167 = vld [vmem:[%s329 + $0x128] sm:$0xf]
        %v1168 = vld [vmem:[%s329 + $0x12c] sm:$0xf]
        %v1169 = vld [vmem:[%s329 + $0x130] sm:$0xf]
        %v1170 = vld [vmem:[%s329 + $0x134] sm:$0xf]
        %v1171 = vld [vmem:[%s329 + $0x138] sm:$0xf]
        %v1172 = vld [vmem:[%s329 + $0x13c] sm:$0xf]
        %v1173 = vld [vmem:[%s329 + $0x140] sm:$0xf]
        %v1174 = vld [vmem:[%s329 + $0x144] sm:$0xf]
        %v1175 = vld [vmem:[%s329 + $0x148] sm:$0xf]
        %v1176 = vld [vmem:[%s329 + $0x14c] sm:$0xf]
        %v1177 = vld [vmem:[%s329 + $0x150] sm:$0xf]
        %v1178 = vld [vmem:[%s329 + $0x154] sm:$0xf]
        %v1179 = vld [vmem:[%s329 + $0x158] sm:$0xf]
        %v1180 = vld [vmem:[%s329 + $0x15c] sm:$0xf]
        %v1181 = vld [vmem:[%s329 + $0x160] sm:$0xf]
        %v1182 = vld [vmem:[%s329 + $0x164] sm:$0xf]
        %v1183 = vld [vmem:[%s329 + $0x168] sm:$0xf]
        %v1184 = vld [vmem:[%s329 + $0x16c] sm:$0xf]
        %v1185 = vld [vmem:[%s329 + $0x170] sm:$0xf]
        %v1186 = vld [vmem:[%s329 + $0x174] sm:$0xf]
        %v1187 = vld [vmem:[%s329 + $0x178] sm:$0xf]
        %v1188 = vld [vmem:[%s329 + $0x17c] sm:$0xf]
        %v1189 = vld [vmem:[%s1] sm:$0xf]
        %v1190 = vld [vmem:[%s1 + $0x4] sm:$0xf]
        %v1191 = vld [vmem:[%s1 + $0x8] sm:$0xf]
        %v1192 = vld [vmem:[%s1 + $0xc] sm:$0x3]
        %v1193 = vld [vmem:[%s2] sm:$0x1]
        %v1195 = vlaneseq
        %v1196 = vshrl.u32 %v1195, 7
        %v1197 = vsub.s32 0, %v1196
        %v1198 = vrot.slane %v1193, %v1197
        %v1232 = vunpack.c.l.b16 %v1157
        %v1233 = vunpack.c.l.b16 %v1158
        %v1234 = vunpack.c.l.b16 %v1159
        %v1235 = vunpack.c.l.b16 %v1160
        %v1236 = vunpack.c.l.b16 %v1161
        %v1237 = vunpack.c.l.b16 %v1162
        %v1238 = vunpack.c.l.b16 %v1163
        %v1239 = vunpack.c.l.b16 %v1164
        %v1240 = vunpack.c.l.b16 %v1165
        %v1241 = vunpack.c.l.b16 %v1166
        %v1242 = vunpack.c.l.b16 %v1167
        %v1243 = vunpack.c.l.b16 %v1168
        %v1244 = vunpack.c.l.b16 %v1169
        %v1245 = vunpack.c.l.b16 %v1170
        %v1246 = vunpack.c.l.b16 %v1171
        %v1247 = vunpack.c.l.b16 %v1172
        %v1248 = vunpack.c.l.b16 %v1173
        %v1249 = vunpack.c.l.b16 %v1174
        %v1250 = vunpack.c.l.b16 %v1175
        %v1251 = vunpack.c.l.b16 %v1176
        %v1252 = vunpack.c.l.b16 %v1177
        %v1253 = vunpack.c.l.b16 %v1178
        %v1254 = vunpack.c.l.b16 %v1179
        %v1255 = vunpack.c.l.b16 %v1180
        %v1256 = vunpack.c.l.b16 %v1181
        %v1257 = vunpack.c.l.b16 %v1182
        %v1258 = vunpack.c.l.b16 %v1183
        %v1259 = vunpack.c.l.b16 %v1184
        %v1260 = vunpack.c.l.b16 %v1185
        %v1261 = vunpack.c.l.b16 %v1186
        %v1262 = vunpack.c.l.b16 %v1187
        %v1263 = vunpack.c.l.b16 %v1188
        %v1264 = vpack.c.b16 %v1233, %v1232
        %v1265 = vpack.c.b16 %v1235, %v1234
        %v1266 = vpack.c.b16 %v1237, %v1236
        %v1267 = vpack.c.b16 %v1239, %v1238
        %v1268 = vpack.c.b16 %v1241, %v1240
        %v1269 = vpack.c.b16 %v1243, %v1242
        %v1270 = vpack.c.b16 %v1245, %v1244
        %v1271 = vpack.c.b16 %v1247, %v1246
        %v1272 = vpack.c.b16 %v1249, %v1248
        %v1273 = vpack.c.b16 %v1251, %v1250
        %v1274 = vpack.c.b16 %v1253, %v1252
        %v1275 = vpack.c.b16 %v1255, %v1254
        %v1276 = vpack.c.b16 %v1257, %v1256
        %v1277 = vpack.c.b16 %v1259, %v1258
        %v1278 = vpack.c.b16 %v1261, %v1260
        %v1279 = vpack.c.b16 %v1263, %v1262
        %v1284 = vunpack.c.l.b16 %v1189
        %v1285 = vunpack.c.l.b16 %v1190
        %v1286 = vunpack.c.l.b16 %v1191
        %v1287 = vunpack.c.l.b16 %v1192
        %v1288 = vpack.c.b16 %v1285, %v1284
        %v1289 = vpack.c.b16 %v1287, %v1286
        %v1292 = vsel %vm465, %v1264, 0
        %v1295 = vsel %vm465, %v1265, 0
        %v1298 = vsel %vm465, %v1266, 0
        %v1301 = vsel %vm465, %v1267, 0
        %v1304 = vsel %vm465, %v1268, 0
        %v1307 = vsel %vm465, %v1269, 0
        %v1310 = vsel %vm465, %v1270, 0
        %v1313 = vsel %vm465, %v1271, 0
        %v1316 = vsel %vm465, %v1272, 0
        %v1319 = vsel %vm465, %v1273, 0
        %v1322 = vsel %vm465, %v1274, 0
        %v1325 = vsel %vm465, %v1275, 0
        %v1328 = vsel %vm465, %v1276, 0
        %v1331 = vsel %vm465, %v1277, 0
        %v1334 = vsel %vm465, %v1278, 0
        %v1337 = vsel %vm465, %v1279, 0
        %v1340 = vand.u32 %v1289, %v517
        %1342 = vmatprep.subr.bf16.mxu0 0
        %1343 = vmatpush1.bf16.msra.mxu0 0
        %1344 = vmatprep.subr.bf16.mxu0 0
        %1345 = vmatpush1.bf16.msra.mxu0 0
        %1346 = vmatprep.subr.bf16.mxu0 0
        %1347 = vmatpush1.bf16.msra.mxu0 0
        %1348 = vmatprep.subr.bf16.mxu0 0
        %1349 = vmatpush1.bf16.msra.mxu0 0
        %1350 = vmatprep.subr.bf16.mxu0 0
        %1351 = vmatpush1.bf16.msra.mxu0 0
        %1352 = vmatprep.subr.bf16.mxu0 0
        %1353 = vmatpush1.bf16.msra.mxu0 0
        %1354 = vmatprep.subr.bf16.mxu0 0
        %1355 = vmatpush1.bf16.msra.mxu0 %v1340
        %1356 = vmatprep.subr.bf16.mxu0 0
        %1357 = vmatpush1.bf16.msra.mxu0 %v1288
        %1358 = vmatprep.subr.bf16.mxu0 0
        %1359 = vmatpush2.bf16.msra.mxu0 0
        %1360 = vmatprep.subr.bf16.mxu0 0
        %1361 = vmatpush2.bf16.msra.mxu0 0
        %1362 = vmatprep.subr.bf16.mxu0 0
        %1363 = vmatpush2.bf16.msra.mxu0 0
        %1364 = vmatprep.subr.bf16.mxu0 0
        %1365 = vmatpush2.bf16.msra.mxu0 0
        %1366 = vmatprep.subr.bf16.mxu0 0
        %1367 = vmatpush2.bf16.msra.mxu0 0
        %1368 = vmatprep.subr.bf16.mxu0 0
        %1369 = vmatpush2.bf16.msra.mxu0 0
        %1370 = vmatprep.subr.bf16.mxu0 0
        %1371 = vmatpush2.bf16.msra.mxu0 0
        %1372 = vmatprep.subr.bf16.mxu0 0
        %1373 = vmatpush2.bf16.msra.mxu0 0
        %1374 = vmatprep.mubr.bf16.mxu0 0
        %1375 = vmatmul.mubr.bf16.gmra.mxu0 %v1292
        %v1376 = vpop.f32.mrf.mxu0
        %v1377 = vadd.f32 %v1198, %v1376
        %v1378 = vpop.f32.mrf.mxu0
        %v1379 = vpop.f32.mrf.mxu0
        %v1380 = vadd.f32 %v1198, %v1379
        %v1381 = vpop.f32.mrf.mxu0
        %1382 = vmatprep.mubr.bf16.mxu0 0
        %1383 = vmatmul.mubr.bf16.gmra.mxu0 %v1295
        %v1384 = vpop.f32.mrf.mxu0
        %v1385 = vadd.f32 %v1198, %v1384
        %v1386 = vpop.f32.mrf.mxu0
        %v1387 = vpop.f32.mrf.mxu0
        %v1388 = vadd.f32 %v1198, %v1387
        %v1389 = vpop.f32.mrf.mxu0
        %1390 = vmatprep.mubr.bf16.mxu0 0
        %1391 = vmatmul.mubr.bf16.gmra.mxu0 %v1298
        %v1392 = vpop.f32.mrf.mxu0
        %v1393 = vadd.f32 %v1198, %v1392
        %v1394 = vpop.f32.mrf.mxu0
        %v1395 = vpop.f32.mrf.mxu0
        %v1396 = vadd.f32 %v1198, %v1395
        %v1397 = vpop.f32.mrf.mxu0
        %1398 = vmatprep.mubr.bf16.mxu0 0
        %1399 = vmatmul.mubr.bf16.gmra.mxu0 %v1301
        %v1400 = vpop.f32.mrf.mxu0
        %v1401 = vadd.f32 %v1198, %v1400
        %v1402 = vpop.f32.mrf.mxu0
        %v1403 = vpop.f32.mrf.mxu0
        %v1404 = vadd.f32 %v1198, %v1403
        %v1405 = vpop.f32.mrf.mxu0
        %1406 = vmatprep.mubr.bf16.mxu0 0
        %1407 = vmatmul.mubr.bf16.gmra.mxu0 %v1304
        %v1408 = vpop.f32.mrf.mxu0
        %v1409 = vadd.f32 %v1198, %v1408
        %v1410 = vpop.f32.mrf.mxu0
        %v1411 = vpop.f32.mrf.mxu0
        %v1412 = vadd.f32 %v1198, %v1411
        %v1413 = vpop.f32.mrf.mxu0
        %1414 = vmatprep.mubr.bf16.mxu0 0
        %1415 = vmatmul.mubr.bf16.gmra.mxu0 %v1307
        %v1416 = vpop.f32.mrf.mxu0
        %v1417 = vadd.f32 %v1198, %v1416
        %v1418 = vpop.f32.mrf.mxu0
        %v1419 = vpop.f32.mrf.mxu0
        %v1420 = vadd.f32 %v1198, %v1419
        %v1421 = vpop.f32.mrf.mxu0
        %1422 = vmatprep.mubr.bf16.mxu0 0
        %1423 = vmatmul.mubr.bf16.gmra.mxu0 %v1310
        %v1424 = vpop.f32.mrf.mxu0
        %v1425 = vadd.f32 %v1198, %v1424
        %v1426 = vpop.f32.mrf.mxu0
        %v1427 = vpop.f32.mrf.mxu0
        %v1428 = vadd.f32 %v1198, %v1427
        %v1429 = vpop.f32.mrf.mxu0
        %1430 = vmatprep.mubr.bf16.mxu0 0
        %1431 = vmatmul.mubr.bf16.gmra.mxu0 %v1313
        %v1432 = vpop.f32.mrf.mxu0
        %v1433 = vadd.f32 %v1198, %v1432
        %v1434 = vpop.f32.mrf.mxu0
        %v1435 = vpop.f32.mrf.mxu0
        %v1436 = vadd.f32 %v1198, %v1435
        %v1437 = vpop.f32.mrf.mxu0
        %1438 = vmatprep.mubr.bf16.mxu0 0
        %1439 = vmatmul.mubr.bf16.gmra.mxu0 %v1316
        %v1440 = vpop.f32.mrf.mxu0
        %v1441 = vadd.f32 %v1198, %v1440
        %v1442 = vpop.f32.mrf.mxu0
        %v1443 = vpop.f32.mrf.mxu0
        %v1444 = vadd.f32 %v1198, %v1443
        %v1445 = vpop.f32.mrf.mxu0
        %1446 = vmatprep.mubr.bf16.mxu0 0
        %1447 = vmatmul.mubr.bf16.gmra.mxu0 %v1319
        %v1448 = vpop.f32.mrf.mxu0
        %v1449 = vadd.f32 %v1198, %v1448
        %v1450 = vpop.f32.mrf.mxu0
        %v1451 = vpop.f32.mrf.mxu0
        %v1452 = vadd.f32 %v1198, %v1451
        %v1453 = vpop.f32.mrf.mxu0
        %1454 = vmatprep.mubr.bf16.mxu0 0
        %1455 = vmatmul.mubr.bf16.gmra.mxu0 %v1322
        %v1456 = vpop.f32.mrf.mxu0
        %v1457 = vadd.f32 %v1198, %v1456
        %v1458 = vpop.f32.mrf.mxu0
        %v1459 = vpop.f32.mrf.mxu0
        %v1460 = vadd.f32 %v1198, %v1459
        %v1461 = vpop.f32.mrf.mxu0
        %1462 = vmatprep.mubr.bf16.mxu0 0
        %1463 = vmatmul.mubr.bf16.gmra.mxu0 %v1325
        %v1464 = vpop.f32.mrf.mxu0
        %v1465 = vadd.f32 %v1198, %v1464
        %v1466 = vpop.f32.mrf.mxu0
        %v1467 = vpop.f32.mrf.mxu0
        %v1468 = vadd.f32 %v1198, %v1467
        %v1469 = vpop.f32.mrf.mxu0
        %1470 = vmatprep.mubr.bf16.mxu0 0
        %1471 = vmatmul.mubr.bf16.gmra.mxu0 %v1328
        %v1472 = vpop.f32.mrf.mxu0
        %v1473 = vadd.f32 %v1198, %v1472
        %v1474 = vpop.f32.mrf.mxu0
        %v1475 = vpop.f32.mrf.mxu0
        %v1476 = vadd.f32 %v1198, %v1475
        %v1477 = vpop.f32.mrf.mxu0
        %1478 = vmatprep.mubr.bf16.mxu0 0
        %1479 = vmatmul.mubr.bf16.gmra.mxu0 %v1331
        %v1480 = vpop.f32.mrf.mxu0
        %v1481 = vadd.f32 %v1198, %v1480
        %v1482 = vpop.f32.mrf.mxu0
        %v1483 = vpop.f32.mrf.mxu0
        %v1484 = vadd.f32 %v1198, %v1483
        %v1485 = vpop.f32.mrf.mxu0
        %1486 = vmatprep.mubr.bf16.mxu0 0
        %1487 = vmatmul.mubr.bf16.gmra.mxu0 %v1334
        %v1488 = vpop.f32.mrf.mxu0
        %v1489 = vadd.f32 %v1198, %v1488
        %v1490 = vpop.f32.mrf.mxu0
        %v1491 = vpop.f32.mrf.mxu0
        %v1492 = vadd.f32 %v1198, %v1491
        %v1493 = vpop.f32.mrf.mxu0
        %1494 = vmatprep.mubr.bf16.mxu0 0
        %1495 = vmatmul.mubr.bf16.gmra.mxu0 %v1337
        %v1496 = vpop.f32.mrf.mxu0
        %v1497 = vadd.f32 %v1198, %v1496
        %v1498 = vpop.f32.mrf.mxu0
        %v1499 = vpop.f32.mrf.mxu0
        %v1500 = vadd.f32 %v1198, %v1499
        %v1501 = vpop.f32.mrf.mxu0
        %1502 = vdwg.mxu0
        %v1503 = vmax.f32 %v1377, 0.0
        %v1504 = vmax.f32 %v1380, 0.0
        %v1505 = vmax.f32 %v1385, 0.0
        %v1506 = vmax.f32 %v1388, 0.0
        %v1507 = vmax.f32 %v1393, 0.0
        %v1508 = vmax.f32 %v1396, 0.0
        %v1509 = vmax.f32 %v1401, 0.0
        %v1510 = vmax.f32 %v1404, 0.0
        %v1511 = vmax.f32 %v1409, 0.0
        %v1512 = vmax.f32 %v1412, 0.0
        %v1513 = vmax.f32 %v1417, 0.0
        %v1514 = vmax.f32 %v1420, 0.0
        %v1515 = vmax.f32 %v1425, 0.0
        %v1516 = vmax.f32 %v1428, 0.0
        %v1517 = vmax.f32 %v1433, 0.0
        %v1518 = vmax.f32 %v1436, 0.0
        %v1519 = vmax.f32 %v1441, 0.0
        %v1520 = vmax.f32 %v1444, 0.0
        %v1521 = vmax.f32 %v1449, 0.0
        %v1522 = vmax.f32 %v1452, 0.0
        %v1523 = vmax.f32 %v1457, 0.0
        %v1524 = vmax.f32 %v1460, 0.0
        %v1525 = vmax.f32 %v1465, 0.0
        %v1526 = vmax.f32 %v1468, 0.0
        %v1527 = vmax.f32 %v1473, 0.0
        %v1528 = vmax.f32 %v1476, 0.0
        %v1529 = vmax.f32 %v1481, 0.0
        %v1530 = vmax.f32 %v1484, 0.0
        %v1531 = vmax.f32 %v1489, 0.0
        %v1532 = vmax.f32 %v1492, 0.0
        %v1533 = vmax.f32 %v1497, 0.0
        %v1534 = vmax.f32 %v1500, 0.0
        %1535 = vst.msk [vmem:[#allocation2 + $0x200] sm:$0xff] %vm714, %v1503
        %1536 = vst.msk [vmem:[#allocation2 + $0x208] sm:$0xff] %vm714, %v1504
        %1537 = vst.msk [vmem:[#allocation2 + $0x210] sm:$0xff] %vm714, %v1505
        %1538 = vst.msk [vmem:[#allocation2 + $0x218] sm:$0xff] %vm714, %v1506
        %1539 = vst.msk [vmem:[#allocation2 + $0x220] sm:$0xff] %vm714, %v1507
        %1540 = vst.msk [vmem:[#allocation2 + $0x228] sm:$0xff] %vm714, %v1508
        %1541 = vst.msk [vmem:[#allocation2 + $0x230] sm:$0xff] %vm714, %v1509
        %1542 = vst.msk [vmem:[#allocation2 + $0x238] sm:$0xff] %vm714, %v1510
        %1543 = vst.msk [vmem:[#allocation2 + $0x240] sm:$0xff] %vm714, %v1511
        %1544 = vst.msk [vmem:[#allocation2 + $0x248] sm:$0xff] %vm714, %v1512
        %1545 = vst.msk [vmem:[#allocation2 + $0x250] sm:$0xff] %vm714, %v1513
        %1546 = vst.msk [vmem:[#allocation2 + $0x258] sm:$0xff] %vm714, %v1514
        %1547 = vst.msk [vmem:[#allocation2 + $0x260] sm:$0xff] %vm714, %v1515
        %1548 = vst.msk [vmem:[#allocation2 + $0x268] sm:$0xff] %vm714, %v1516
        %1549 = vst.msk [vmem:[#allocation2 + $0x270] sm:$0xff] %vm714, %v1517
        %1550 = vst.msk [vmem:[#allocation2 + $0x278] sm:$0xff] %vm714, %v1518
        %1551 = vst.msk [vmem:[#allocation2 + $0x280] sm:$0xff] %vm714, %v1519
        %1552 = vst.msk [vmem:[#allocation2 + $0x288] sm:$0xff] %vm714, %v1520
        %1553 = vst.msk [vmem:[#allocation2 + $0x290] sm:$0xff] %vm714, %v1521
        %1554 = vst.msk [vmem:[#allocation2 + $0x298] sm:$0xff] %vm714, %v1522
        %1555 = vst.msk [vmem:[#allocation2 + $0x2a0] sm:$0xff] %vm714, %v1523
        %1556 = vst.msk [vmem:[#allocation2 + $0x2a8] sm:$0xff] %vm714, %v1524
        %1557 = vst.msk [vmem:[#allocation2 + $0x2b0] sm:$0xff] %vm714, %v1525
        %1558 = vst.msk [vmem:[#allocation2 + $0x2b8] sm:$0xff] %vm714, %v1526
        %1559 = vst.msk [vmem:[#allocation2 + $0x2c0] sm:$0xff] %vm714, %v1527
        %1560 = vst.msk [vmem:[#allocation2 + $0x2c8] sm:$0xff] %vm714, %v1528
        %1561 = vst.msk [vmem:[#allocation2 + $0x2d0] sm:$0xff] %vm714, %v1529
        %1562 = vst.msk [vmem:[#allocation2 + $0x2d8] sm:$0xff] %vm714, %v1530
        %1563 = vst.msk [vmem:[#allocation2 + $0x2e0] sm:$0xff] %vm714, %v1531
        %1564 = vst.msk [vmem:[#allocation2 + $0x2e8] sm:$0xff] %vm714, %v1532
        %1565 = vst.msk [vmem:[#allocation2 + $0x2f0] sm:$0xff] %vm714, %v1533
        %1566 = vst.msk [vmem:[#allocation2 + $0x2f8] sm:$0xff] %vm714, %v1534
        %v1567 = vld [vmem:[%s329 + $0x180] sm:$0xf]
        %v1568 = vld [vmem:[%s329 + $0x184] sm:$0xf]
        %v1569 = vld [vmem:[%s329 + $0x188] sm:$0xf]
        %v1570 = vld [vmem:[%s329 + $0x18c] sm:$0xf]
        %v1571 = vld [vmem:[%s329 + $0x190] sm:$0xf]
        %v1572 = vld [vmem:[%s329 + $0x194] sm:$0xf]
        %v1573 = vld [vmem:[%s329 + $0x198] sm:$0xf]
        %v1574 = vld [vmem:[%s329 + $0x19c] sm:$0xf]
        %v1575 = vld [vmem:[%s329 + $0x1a0] sm:$0xf]
        %v1576 = vld [vmem:[%s329 + $0x1a4] sm:$0xf]
        %v1577 = vld [vmem:[%s329 + $0x1a8] sm:$0xf]
        %v1578 = vld [vmem:[%s329 + $0x1ac] sm:$0xf]
        %v1579 = vld [vmem:[%s329 + $0x1b0] sm:$0xf]
        %v1580 = vld [vmem:[%s329 + $0x1b4] sm:$0xf]
        %v1581 = vld [vmem:[%s329 + $0x1b8] sm:$0xf]
        %v1582 = vld [vmem:[%s329 + $0x1bc] sm:$0xf]
        %v1583 = vld [vmem:[%s329 + $0x1c0] sm:$0xf]
        %v1584 = vld [vmem:[%s329 + $0x1c4] sm:$0xf]
        %v1585 = vld [vmem:[%s329 + $0x1c8] sm:$0xf]
        %v1586 = vld [vmem:[%s329 + $0x1cc] sm:$0xf]
        %v1587 = vld [vmem:[%s329 + $0x1d0] sm:$0xf]
        %v1588 = vld [vmem:[%s329 + $0x1d4] sm:$0xf]
        %v1589 = vld [vmem:[%s329 + $0x1d8] sm:$0xf]
        %v1590 = vld [vmem:[%s329 + $0x1dc] sm:$0xf]
        %v1591 = vld [vmem:[%s329 + $0x1e0] sm:$0xf]
        %v1592 = vld [vmem:[%s329 + $0x1e4] sm:$0xf]
        %v1593 = vld [vmem:[%s329 + $0x1e8] sm:$0xf]
        %v1594 = vld [vmem:[%s329 + $0x1ec] sm:$0xf]
        %v1595 = vld [vmem:[%s329 + $0x1f0] sm:$0xf]
        %v1596 = vld [vmem:[%s329 + $0x1f4] sm:$0xf]
        %v1597 = vld [vmem:[%s329 + $0x1f8] sm:$0xf]
        %v1598 = vld [vmem:[%s329 + $0x1fc] sm:$0xf]
        %v1599 = vld [vmem:[%s1] sm:$0xf]
        %v1600 = vld [vmem:[%s1 + $0x4] sm:$0xf]
        %v1601 = vld [vmem:[%s1 + $0x8] sm:$0xf]
        %v1602 = vld [vmem:[%s1 + $0xc] sm:$0x3]
        %v1603 = vld [vmem:[%s2] sm:$0x1]
        %v1605 = vlaneseq
        %v1606 = vshrl.u32 %v1605, 7
        %v1607 = vsub.s32 0, %v1606
        %v1608 = vrot.slane %v1603, %v1607
        %v1642 = vunpack.c.l.b16 %v1567
        %v1643 = vunpack.c.l.b16 %v1568
        %v1644 = vunpack.c.l.b16 %v1569
        %v1645 = vunpack.c.l.b16 %v1570
        %v1646 = vunpack.c.l.b16 %v1571
        %v1647 = vunpack.c.l.b16 %v1572
        %v1648 = vunpack.c.l.b16 %v1573
        %v1649 = vunpack.c.l.b16 %v1574
        %v1650 = vunpack.c.l.b16 %v1575
        %v1651 = vunpack.c.l.b16 %v1576
        %v1652 = vunpack.c.l.b16 %v1577
        %v1653 = vunpack.c.l.b16 %v1578
        %v1654 = vunpack.c.l.b16 %v1579
        %v1655 = vunpack.c.l.b16 %v1580
        %v1656 = vunpack.c.l.b16 %v1581
        %v1657 = vunpack.c.l.b16 %v1582
        %v1658 = vunpack.c.l.b16 %v1583
        %v1659 = vunpack.c.l.b16 %v1584
        %v1660 = vunpack.c.l.b16 %v1585
        %v1661 = vunpack.c.l.b16 %v1586
        %v1662 = vunpack.c.l.b16 %v1587
        %v1663 = vunpack.c.l.b16 %v1588
        %v1664 = vunpack.c.l.b16 %v1589
        %v1665 = vunpack.c.l.b16 %v1590
        %v1666 = vunpack.c.l.b16 %v1591
        %v1667 = vunpack.c.l.b16 %v1592
        %v1668 = vunpack.c.l.b16 %v1593
        %v1669 = vunpack.c.l.b16 %v1594
        %v1670 = vunpack.c.l.b16 %v1595
        %v1671 = vunpack.c.l.b16 %v1596
        %v1672 = vunpack.c.l.b16 %v1597
        %v1673 = vunpack.c.l.b16 %v1598
        %v1674 = vpack.c.b16 %v1643, %v1642
        %v1675 = vpack.c.b16 %v1645, %v1644
        %v1676 = vpack.c.b16 %v1647, %v1646
        %v1677 = vpack.c.b16 %v1649, %v1648
        %v1678 = vpack.c.b16 %v1651, %v1650
        %v1679 = vpack.c.b16 %v1653, %v1652
        %v1680 = vpack.c.b16 %v1655, %v1654
        %v1681 = vpack.c.b16 %v1657, %v1656
        %v1682 = vpack.c.b16 %v1659, %v1658
        %v1683 = vpack.c.b16 %v1661, %v1660
        %v1684 = vpack.c.b16 %v1663, %v1662
        %v1685 = vpack.c.b16 %v1665, %v1664
        %v1686 = vpack.c.b16 %v1667, %v1666
        %v1687 = vpack.c.b16 %v1669, %v1668
        %v1688 = vpack.c.b16 %v1671, %v1670
        %v1689 = vpack.c.b16 %v1673, %v1672
        %v1694 = vunpack.c.l.b16 %v1599
        %v1695 = vunpack.c.l.b16 %v1600
        %v1696 = vunpack.c.l.b16 %v1601
        %v1697 = vunpack.c.l.b16 %v1602
        %v1698 = vpack.c.b16 %v1695, %v1694
        %v1699 = vpack.c.b16 %v1697, %v1696
        %v1702 = vsel %vm465, %v1674, 0
        %v1705 = vsel %vm465, %v1675, 0
        %v1708 = vsel %vm465, %v1676, 0
        %v1711 = vsel %vm465, %v1677, 0
        %v1714 = vsel %vm465, %v1678, 0
        %v1717 = vsel %vm465, %v1679, 0
        %v1720 = vsel %vm465, %v1680, 0
        %v1723 = vsel %vm465, %v1681, 0
        %v1726 = vsel %vm465, %v1682, 0
        %v1729 = vsel %vm465, %v1683, 0
        %v1732 = vsel %vm465, %v1684, 0
        %v1735 = vsel %vm465, %v1685, 0
        %v1738 = vsel %vm465, %v1686, 0
        %v1741 = vsel %vm465, %v1687, 0
        %v1744 = vsel %vm465, %v1688, 0
        %v1747 = vsel %vm465, %v1689, 0
        %v1750 = vand.u32 %v1699, %v517
        %1752 = vmatprep.subr.bf16.mxu0 0
        %1753 = vmatpush1.bf16.msra.mxu0 0
        %1754 = vmatprep.subr.bf16.mxu0 0
        %1755 = vmatpush1.bf16.msra.mxu0 0
        %1756 = vmatprep.subr.bf16.mxu0 0
        %1757 = vmatpush1.bf16.msra.mxu0 0
        %1758 = vmatprep.subr.bf16.mxu0 0
        %1759 = vmatpush1.bf16.msra.mxu0 0
        %1760 = vmatprep.subr.bf16.mxu0 0
        %1761 = vmatpush1.bf16.msra.mxu0 0
        %1762 = vmatprep.subr.bf16.mxu0 0
        %1763 = vmatpush1.bf16.msra.mxu0 0
        %1764 = vmatprep.subr.bf16.mxu0 0
        %1765 = vmatpush1.bf16.msra.mxu0 %v1750
        %1766 = vmatprep.subr.bf16.mxu0 0
        %1767 = vmatpush1.bf16.msra.mxu0 %v1698
        %1768 = vmatprep.subr.bf16.mxu0 0
        %1769 = vmatpush2.bf16.msra.mxu0 0
        %1770 = vmatprep.subr.bf16.mxu0 0
        %1771 = vmatpush2.bf16.msra.mxu0 0
        %1772 = vmatprep.subr.bf16.mxu0 0
        %1773 = vmatpush2.bf16.msra.mxu0 0
        %1774 = vmatprep.subr.bf16.mxu0 0
        %1775 = vmatpush2.bf16.msra.mxu0 0
        %1776 = vmatprep.subr.bf16.mxu0 0
        %1777 = vmatpush2.bf16.msra.mxu0 0
        %1778 = vmatprep.subr.bf16.mxu0 0
        %1779 = vmatpush2.bf16.msra.mxu0 0
        %1780 = vmatprep.subr.bf16.mxu0 0
        %1781 = vmatpush2.bf16.msra.mxu0 0
        %1782 = vmatprep.subr.bf16.mxu0 0
        %1783 = vmatpush2.bf16.msra.mxu0 0
        %1784 = vmatprep.mubr.bf16.mxu0 0
        %1785 = vmatmul.mubr.bf16.gmra.mxu0 %v1702
        %v1786 = vpop.f32.mrf.mxu0
        %v1787 = vadd.f32 %v1608, %v1786
        %v1788 = vpop.f32.mrf.mxu0
        %v1789 = vpop.f32.mrf.mxu0
        %v1790 = vadd.f32 %v1608, %v1789
        %v1791 = vpop.f32.mrf.mxu0
        %1792 = vmatprep.mubr.bf16.mxu0 0
        %1793 = vmatmul.mubr.bf16.gmra.mxu0 %v1705
        %v1794 = vpop.f32.mrf.mxu0
        %v1795 = vadd.f32 %v1608, %v1794
        %v1796 = vpop.f32.mrf.mxu0
        %v1797 = vpop.f32.mrf.mxu0
        %v1798 = vadd.f32 %v1608, %v1797
        %v1799 = vpop.f32.mrf.mxu0
        %1800 = vmatprep.mubr.bf16.mxu0 0
        %1801 = vmatmul.mubr.bf16.gmra.mxu0 %v1708
        %v1802 = vpop.f32.mrf.mxu0
        %v1803 = vadd.f32 %v1608, %v1802
        %v1804 = vpop.f32.mrf.mxu0
        %v1805 = vpop.f32.mrf.mxu0
        %v1806 = vadd.f32 %v1608, %v1805
        %v1807 = vpop.f32.mrf.mxu0
        %1808 = vmatprep.mubr.bf16.mxu0 0
        %1809 = vmatmul.mubr.bf16.gmra.mxu0 %v1711
        %v1810 = vpop.f32.mrf.mxu0
        %v1811 = vadd.f32 %v1608, %v1810
        %v1812 = vpop.f32.mrf.mxu0
        %v1813 = vpop.f32.mrf.mxu0
        %v1814 = vadd.f32 %v1608, %v1813
        %v1815 = vpop.f32.mrf.mxu0
        %1816 = vmatprep.mubr.bf16.mxu0 0
        %1817 = vmatmul.mubr.bf16.gmra.mxu0 %v1714
        %v1818 = vpop.f32.mrf.mxu0
        %v1819 = vadd.f32 %v1608, %v1818
        %v1820 = vpop.f32.mrf.mxu0
        %v1821 = vpop.f32.mrf.mxu0
        %v1822 = vadd.f32 %v1608, %v1821
        %v1823 = vpop.f32.mrf.mxu0
        %1824 = vmatprep.mubr.bf16.mxu0 0
        %1825 = vmatmul.mubr.bf16.gmra.mxu0 %v1717
        %v1826 = vpop.f32.mrf.mxu0
        %v1827 = vadd.f32 %v1608, %v1826
        %v1828 = vpop.f32.mrf.mxu0
        %v1829 = vpop.f32.mrf.mxu0
        %v1830 = vadd.f32 %v1608, %v1829
        %v1831 = vpop.f32.mrf.mxu0
        %1832 = vmatprep.mubr.bf16.mxu0 0
        %1833 = vmatmul.mubr.bf16.gmra.mxu0 %v1720
        %v1834 = vpop.f32.mrf.mxu0
        %v1835 = vadd.f32 %v1608, %v1834
        %v1836 = vpop.f32.mrf.mxu0
        %v1837 = vpop.f32.mrf.mxu0
        %v1838 = vadd.f32 %v1608, %v1837
        %v1839 = vpop.f32.mrf.mxu0
        %1840 = vmatprep.mubr.bf16.mxu0 0
        %1841 = vmatmul.mubr.bf16.gmra.mxu0 %v1723
        %v1842 = vpop.f32.mrf.mxu0
        %v1843 = vadd.f32 %v1608, %v1842
        %v1844 = vpop.f32.mrf.mxu0
        %v1845 = vpop.f32.mrf.mxu0
        %v1846 = vadd.f32 %v1608, %v1845
        %v1847 = vpop.f32.mrf.mxu0
        %1848 = vmatprep.mubr.bf16.mxu0 0
        %1849 = vmatmul.mubr.bf16.gmra.mxu0 %v1726
        %v1850 = vpop.f32.mrf.mxu0
        %v1851 = vadd.f32 %v1608, %v1850
        %v1852 = vpop.f32.mrf.mxu0
        %v1853 = vpop.f32.mrf.mxu0
        %v1854 = vadd.f32 %v1608, %v1853
        %v1855 = vpop.f32.mrf.mxu0
        %1856 = vmatprep.mubr.bf16.mxu0 0
        %1857 = vmatmul.mubr.bf16.gmra.mxu0 %v1729
        %v1858 = vpop.f32.mrf.mxu0
        %v1859 = vadd.f32 %v1608, %v1858
        %v1860 = vpop.f32.mrf.mxu0
        %v1861 = vpop.f32.mrf.mxu0
        %v1862 = vadd.f32 %v1608, %v1861
        %v1863 = vpop.f32.mrf.mxu0
        %1864 = vmatprep.mubr.bf16.mxu0 0
        %1865 = vmatmul.mubr.bf16.gmra.mxu0 %v1732
        %v1866 = vpop.f32.mrf.mxu0
        %v1867 = vadd.f32 %v1608, %v1866
        %v1868 = vpop.f32.mrf.mxu0
        %v1869 = vpop.f32.mrf.mxu0
        %v1870 = vadd.f32 %v1608, %v1869
        %v1871 = vpop.f32.mrf.mxu0
        %1872 = vmatprep.mubr.bf16.mxu0 0
        %1873 = vmatmul.mubr.bf16.gmra.mxu0 %v1735
        %v1874 = vpop.f32.mrf.mxu0
        %v1875 = vadd.f32 %v1608, %v1874
        %v1876 = vpop.f32.mrf.mxu0
        %v1877 = vpop.f32.mrf.mxu0
        %v1878 = vadd.f32 %v1608, %v1877
        %v1879 = vpop.f32.mrf.mxu0
        %1880 = vmatprep.mubr.bf16.mxu0 0
        %1881 = vmatmul.mubr.bf16.gmra.mxu0 %v1738
        %v1882 = vpop.f32.mrf.mxu0
        %v1883 = vadd.f32 %v1608, %v1882
        %v1884 = vpop.f32.mrf.mxu0
        %v1885 = vpop.f32.mrf.mxu0
        %v1886 = vadd.f32 %v1608, %v1885
        %v1887 = vpop.f32.mrf.mxu0
        %1888 = vmatprep.mubr.bf16.mxu0 0
        %1889 = vmatmul.mubr.bf16.gmra.mxu0 %v1741
        %v1890 = vpop.f32.mrf.mxu0
        %v1891 = vadd.f32 %v1608, %v1890
        %v1892 = vpop.f32.mrf.mxu0
        %v1893 = vpop.f32.mrf.mxu0
        %v1894 = vadd.f32 %v1608, %v1893
        %v1895 = vpop.f32.mrf.mxu0
        %1896 = vmatprep.mubr.bf16.mxu0 0
        %1897 = vmatmul.mubr.bf16.gmra.mxu0 %v1744
        %v1898 = vpop.f32.mrf.mxu0
        %v1899 = vadd.f32 %v1608, %v1898
        %v1900 = vpop.f32.mrf.mxu0
        %v1901 = vpop.f32.mrf.mxu0
        %v1902 = vadd.f32 %v1608, %v1901
        %v1903 = vpop.f32.mrf.mxu0
        %1904 = vmatprep.mubr.bf16.mxu0 0
        %1905 = vmatmul.mubr.bf16.gmra.mxu0 %v1747
        %v1906 = vpop.f32.mrf.mxu0
        %v1907 = vadd.f32 %v1608, %v1906
        %v1908 = vpop.f32.mrf.mxu0
        %v1909 = vpop.f32.mrf.mxu0
        %v1910 = vadd.f32 %v1608, %v1909
        %v1911 = vpop.f32.mrf.mxu0
        %1912 = vdwg.mxu0
        %v1913 = vmax.f32 %v1787, 0.0
        %v1914 = vmax.f32 %v1790, 0.0
        %v1915 = vmax.f32 %v1795, 0.0
        %v1916 = vmax.f32 %v1798, 0.0
        %v1917 = vmax.f32 %v1803, 0.0
        %v1918 = vmax.f32 %v1806, 0.0
        %v1919 = vmax.f32 %v1811, 0.0
        %v1920 = vmax.f32 %v1814, 0.0
        %v1921 = vmax.f32 %v1819, 0.0
        %v1922 = vmax.f32 %v1822, 0.0
        %v1923 = vmax.f32 %v1827, 0.0
        %v1924 = vmax.f32 %v1830, 0.0
        %v1925 = vmax.f32 %v1835, 0.0
        %v1926 = vmax.f32 %v1838, 0.0
        %v1927 = vmax.f32 %v1843, 0.0
        %v1928 = vmax.f32 %v1846, 0.0
        %v1929 = vmax.f32 %v1851, 0.0
        %v1930 = vmax.f32 %v1854, 0.0
        %v1931 = vmax.f32 %v1859, 0.0
        %v1932 = vmax.f32 %v1862, 0.0
        %v1933 = vmax.f32 %v1867, 0.0
        %v1934 = vmax.f32 %v1870, 0.0
        %v1935 = vmax.f32 %v1875, 0.0
        %v1936 = vmax.f32 %v1878, 0.0
        %v1937 = vmax.f32 %v1883, 0.0
        %v1938 = vmax.f32 %v1886, 0.0
        %v1939 = vmax.f32 %v1891, 0.0
        %v1940 = vmax.f32 %v1894, 0.0
        %v1941 = vmax.f32 %v1899, 0.0
        %v1942 = vmax.f32 %v1902, 0.0
        %v1943 = vmax.f32 %v1907, 0.0
        %v1944 = vmax.f32 %v1910, 0.0
        %1945 = vst.msk [vmem:[#allocation2 + $0x300] sm:$0xff] %vm714, %v1913
        %1946 = vst.msk [vmem:[#allocation2 + $0x308] sm:$0xff] %vm714, %v1914
        %1947 = vst.msk [vmem:[#allocation2 + $0x310] sm:$0xff] %vm714, %v1915
        %1948 = vst.msk [vmem:[#allocation2 + $0x318] sm:$0xff] %vm714, %v1916
        %1949 = vst.msk [vmem:[#allocation2 + $0x320] sm:$0xff] %vm714, %v1917
        %1950 = vst.msk [vmem:[#allocation2 + $0x328] sm:$0xff] %vm714, %v1918
        %1951 = vst.msk [vmem:[#allocation2 + $0x330] sm:$0xff] %vm714, %v1919
        %1952 = vst.msk [vmem:[#allocation2 + $0x338] sm:$0xff] %vm714, %v1920
        %1953 = vst.msk [vmem:[#allocation2 + $0x340] sm:$0xff] %vm714, %v1921
        %1954 = vst.msk [vmem:[#allocation2 + $0x348] sm:$0xff] %vm714, %v1922
        %1955 = vst.msk [vmem:[#allocation2 + $0x350] sm:$0xff] %vm714, %v1923
        %1956 = vst.msk [vmem:[#allocation2 + $0x358] sm:$0xff] %vm714, %v1924
        %1957 = vst.msk [vmem:[#allocation2 + $0x360] sm:$0xff] %vm714, %v1925
        %1958 = vst.msk [vmem:[#allocation2 + $0x368] sm:$0xff] %vm714, %v1926
        %1959 = vst.msk [vmem:[#allocation2 + $0x370] sm:$0xff] %vm714, %v1927
        %1960 = vst.msk [vmem:[#allocation2 + $0x378] sm:$0xff] %vm714, %v1928
        %1961 = vst.msk [vmem:[#allocation2 + $0x380] sm:$0xff] %vm714, %v1929
        %1962 = vst.msk [vmem:[#allocation2 + $0x388] sm:$0xff] %vm714, %v1930
        %1963 = vst.msk [vmem:[#allocation2 + $0x390] sm:$0xff] %vm714, %v1931
        %1964 = vst.msk [vmem:[#allocation2 + $0x398] sm:$0xff] %vm714, %v1932
        %1965 = vst.msk [vmem:[#allocation2 + $0x3a0] sm:$0xff] %vm714, %v1933
        %1966 = vst.msk [vmem:[#allocation2 + $0x3a8] sm:$0xff] %vm714, %v1934
        %1967 = vst.msk [vmem:[#allocation2 + $0x3b0] sm:$0xff] %vm714, %v1935
        %1968 = vst.msk [vmem:[#allocation2 + $0x3b8] sm:$0xff] %vm714, %v1936
        %1969 = vst.msk [vmem:[#allocation2 + $0x3c0] sm:$0xff] %vm714, %v1937
        %1970 = vst.msk [vmem:[#allocation2 + $0x3c8] sm:$0xff] %vm714, %v1938
        %1971 = vst.msk [vmem:[#allocation2 + $0x3d0] sm:$0xff] %vm714, %v1939
        %1972 = vst.msk [vmem:[#allocation2 + $0x3d8] sm:$0xff] %vm714, %v1940
        %1973 = vst.msk [vmem:[#allocation2 + $0x3e0] sm:$0xff] %vm714, %v1941
        %1974 = vst.msk [vmem:[#allocation2 + $0x3e8] sm:$0xff] %vm714, %v1942
        %1975 = vst.msk [vmem:[#allocation2 + $0x3f0] sm:$0xff] %vm714, %v1943
        %1976 = vst.msk [vmem:[#allocation2 + $0x3f8] sm:$0xff] %vm714, %v1944
        %v1977 = vld [vmem:[#allocation2] ss:$2 sm:$0xff]
        %s1978 = scalar_lea.vmem [#allocation2], 16
        %v1979 = vld [vmem:[%s1978] ss:$2 sm:$0xff]
        %s1980 = scalar_lea.vmem [#allocation2], 32
        %v1981 = vld [vmem:[%s1980] ss:$2 sm:$0xff]
        %s1982 = scalar_lea.vmem [#allocation2], 48
        %v1983 = vld [vmem:[%s1982] ss:$2 sm:$0xff]
        %s1984 = scalar_lea.vmem [#allocation2], 64
        %v1985 = vld [vmem:[%s1984] ss:$2 sm:$0xff]
        %s1986 = scalar_lea.vmem [#allocation2], 80
        %v1987 = vld [vmem:[%s1986] ss:$2 sm:$0xff]
        %s1988 = scalar_lea.vmem [#allocation2], 96
        %v1989 = vld [vmem:[%s1988] ss:$2 sm:$0xff]
        %s1990 = scalar_lea.vmem [#allocation2], 112
        %v1991 = vld [vmem:[%s1990] ss:$2 sm:$0xff]
        %s1992 = scalar_lea.vmem [#allocation2], 128
        %v1993 = vld [vmem:[%s1992] ss:$2 sm:$0xff]
        %s1994 = scalar_lea.vmem [#allocation2], 144
        %v1995 = vld [vmem:[%s1994] ss:$2 sm:$0xff]
        %s1996 = scalar_lea.vmem [#allocation2], 160
        %v1997 = vld [vmem:[%s1996] ss:$2 sm:$0xff]
        %s1998 = scalar_lea.vmem [#allocation2], 176
        %v1999 = vld [vmem:[%s1998] ss:$2 sm:$0xff]
        %s2000 = scalar_lea.vmem [#allocation2], 192
        %v2001 = vld [vmem:[%s2000] ss:$2 sm:$0xff]
        %s2002 = scalar_lea.vmem [#allocation2], 208
        %v2003 = vld [vmem:[%s2002] ss:$2 sm:$0xff]
        %s2004 = scalar_lea.vmem [#allocation2], 224
        %v2005 = vld [vmem:[%s2004] ss:$2 sm:$0xff]
        %s2006 = scalar_lea.vmem [#allocation2], 240
        %v2007 = vld [vmem:[%s2006] ss:$2 sm:$0xff]
        %s2008 = scalar_lea.vmem [#allocation2], 256
        %v2009 = vld [vmem:[%s2008] ss:$2 sm:$0xff]
        %s2010 = scalar_lea.vmem [#allocation2], 272
        %v2011 = vld [vmem:[%s2010] ss:$2 sm:$0xff]
        %s2012 = scalar_lea.vmem [#allocation2], 288
        %v2013 = vld [vmem:[%s2012] ss:$2 sm:$0xff]
        %s2014 = scalar_lea.vmem [#allocation2], 304
        %v2015 = vld [vmem:[%s2014] ss:$2 sm:$0xff]
        %s2016 = scalar_lea.vmem [#allocation2], 320
        %v2017 = vld [vmem:[%s2016] ss:$2 sm:$0xff]
        %s2018 = scalar_lea.vmem [#allocation2], 336
        %v2019 = vld [vmem:[%s2018] ss:$2 sm:$0xff]
        %s2020 = scalar_lea.vmem [#allocation2], 352
        %v2021 = vld [vmem:[%s2020] ss:$2 sm:$0xff]
        %s2022 = scalar_lea.vmem [#allocation2], 368
        %v2023 = vld [vmem:[%s2022] ss:$2 sm:$0xff]
        %s2024 = scalar_lea.vmem [#allocation2], 384
        %v2025 = vld [vmem:[%s2024] ss:$2 sm:$0xff]
        %s2026 = scalar_lea.vmem [#allocation2], 400
        %v2027 = vld [vmem:[%s2026] ss:$2 sm:$0xff]
        %s2028 = scalar_lea.vmem [#allocation2], 416
        %v2029 = vld [vmem:[%s2028] ss:$2 sm:$0xff]
        %s2030 = scalar_lea.vmem [#allocation2], 432
        %v2031 = vld [vmem:[%s2030] ss:$2 sm:$0xff]
        %s2032 = scalar_lea.vmem [#allocation2], 448
        %v2033 = vld [vmem:[%s2032] ss:$2 sm:$0xff]
        %s2034 = scalar_lea.vmem [#allocation2], 464
        %v2035 = vld [vmem:[%s2034] ss:$2 sm:$0xff]
        %s2036 = scalar_lea.vmem [#allocation2], 480
        %v2037 = vld [vmem:[%s2036] ss:$2 sm:$0xff]
        %s2038 = scalar_lea.vmem [#allocation2], 496
        %v2039 = vld [vmem:[%s2038] ss:$2 sm:$0xff]
        %s2040 = scalar_lea.vmem [#allocation2], 512
        %v2041 = vld [vmem:[%s2040] ss:$2 sm:$0xff]
        %s2042 = scalar_lea.vmem [#allocation2], 528
        %v2043 = vld [vmem:[%s2042] ss:$2 sm:$0xff]
        %s2044 = scalar_lea.vmem [#allocation2], 544
        %v2045 = vld [vmem:[%s2044] ss:$2 sm:$0xff]
        %s2046 = scalar_lea.vmem [#allocation2], 560
        %v2047 = vld [vmem:[%s2046] ss:$2 sm:$0xff]
        %s2048 = scalar_lea.vmem [#allocation2], 576
        %v2049 = vld [vmem:[%s2048] ss:$2 sm:$0xff]
        %s2050 = scalar_lea.vmem [#allocation2], 592
        %v2051 = vld [vmem:[%s2050] ss:$2 sm:$0xff]
        %s2052 = scalar_lea.vmem [#allocation2], 608
        %v2053 = vld [vmem:[%s2052] ss:$2 sm:$0xff]
        %s2054 = scalar_lea.vmem [#allocation2], 624
        %v2055 = vld [vmem:[%s2054] ss:$2 sm:$0xff]
        %s2056 = scalar_lea.vmem [#allocation2], 640
        %v2057 = vld [vmem:[%s2056] ss:$2 sm:$0xff]
        %s2058 = scalar_lea.vmem [#allocation2], 656
        %v2059 = vld [vmem:[%s2058] ss:$2 sm:$0xff]
        %s2060 = scalar_lea.vmem [#allocation2], 672
        %v2061 = vld [vmem:[%s2060] ss:$2 sm:$0xff]
        %s2062 = scalar_lea.vmem [#allocation2], 688
        %v2063 = vld [vmem:[%s2062] ss:$2 sm:$0xff]
        %s2064 = scalar_lea.vmem [#allocation2], 704
        %v2065 = vld [vmem:[%s2064] ss:$2 sm:$0xff]
        %s2066 = scalar_lea.vmem [#allocation2], 720
        %v2067 = vld [vmem:[%s2066] ss:$2 sm:$0xff]
        %s2068 = scalar_lea.vmem [#allocation2], 736
        %v2069 = vld [vmem:[%s2068] ss:$2 sm:$0xff]
        %s2070 = scalar_lea.vmem [#allocation2], 752
        %v2071 = vld [vmem:[%s2070] ss:$2 sm:$0xff]
        %s2072 = scalar_lea.vmem [#allocation2], 768
        %v2073 = vld [vmem:[%s2072] ss:$2 sm:$0xff]
        %s2074 = scalar_lea.vmem [#allocation2], 784
        %v2075 = vld [vmem:[%s2074] ss:$2 sm:$0xff]
        %s2076 = scalar_lea.vmem [#allocation2], 800
        %v2077 = vld [vmem:[%s2076] ss:$2 sm:$0xff]
        %s2078 = scalar_lea.vmem [#allocation2], 816
        %v2079 = vld [vmem:[%s2078] ss:$2 sm:$0xff]
        %s2080 = scalar_lea.vmem [#allocation2], 832
        %v2081 = vld [vmem:[%s2080] ss:$2 sm:$0xff]
        %s2082 = scalar_lea.vmem [#allocation2], 848
        %v2083 = vld [vmem:[%s2082] ss:$2 sm:$0xff]
        %s2084 = scalar_lea.vmem [#allocation2], 864
        %v2085 = vld [vmem:[%s2084] ss:$2 sm:$0xff]
        %s2086 = scalar_lea.vmem [#allocation2], 880
        %v2087 = vld [vmem:[%s2086] ss:$2 sm:$0xff]
        %s2088 = scalar_lea.vmem [#allocation2], 896
        %v2089 = vld [vmem:[%s2088] ss:$2 sm:$0xff]
        %s2090 = scalar_lea.vmem [#allocation2], 912
        %v2091 = vld [vmem:[%s2090] ss:$2 sm:$0xff]
        %s2092 = scalar_lea.vmem [#allocation2], 928
        %v2093 = vld [vmem:[%s2092] ss:$2 sm:$0xff]
        %s2094 = scalar_lea.vmem [#allocation2], 944
        %v2095 = vld [vmem:[%s2094] ss:$2 sm:$0xff]
        %s2096 = scalar_lea.vmem [#allocation2], 960
        %v2097 = vld [vmem:[%s2096] ss:$2 sm:$0xff]
        %s2098 = scalar_lea.vmem [#allocation2], 976
        %v2099 = vld [vmem:[%s2098] ss:$2 sm:$0xff]
        %s2100 = scalar_lea.vmem [#allocation2], 992
        %v2101 = vld [vmem:[%s2100] ss:$2 sm:$0xff]
        %s2102 = scalar_lea.vmem [#allocation2], 1008
        %v2103 = vld [vmem:[%s2102] ss:$2 sm:$0xff]
        %s2104 = scalar_lea.vmem [#allocation2], 1
        %v2105 = vld [vmem:[%s2104] ss:$2 sm:$0xff]
        %s2106 = scalar_lea.vmem [#allocation2], 17
        %v2107 = vld [vmem:[%s2106] ss:$2 sm:$0xff]
        %s2108 = scalar_lea.vmem [#allocation2], 33
        %v2109 = vld [vmem:[%s2108] ss:$2 sm:$0xff]
        %s2110 = scalar_lea.vmem [#allocation2], 49
        %v2111 = vld [vmem:[%s2110] ss:$2 sm:$0xff]
        %s2112 = scalar_lea.vmem [#allocation2], 65
        %v2113 = vld [vmem:[%s2112] ss:$2 sm:$0xff]
        %s2114 = scalar_lea.vmem [#allocation2], 81
        %v2115 = vld [vmem:[%s2114] ss:$2 sm:$0xff]
        %s2116 = scalar_lea.vmem [#allocation2], 97
        %v2117 = vld [vmem:[%s2116] ss:$2 sm:$0xff]
        %s2118 = scalar_lea.vmem [#allocation2], 113
        %v2119 = vld [vmem:[%s2118] ss:$2 sm:$0xff]
        %s2120 = scalar_lea.vmem [#allocation2], 129
        %v2121 = vld [vmem:[%s2120] ss:$2 sm:$0xff]
        %s2122 = scalar_lea.vmem [#allocation2], 145
        %v2123 = vld [vmem:[%s2122] ss:$2 sm:$0xff]
        %s2124 = scalar_lea.vmem [#allocation2], 161
        %v2125 = vld [vmem:[%s2124] ss:$2 sm:$0xff]
        %s2126 = scalar_lea.vmem [#allocation2], 177
        %v2127 = vld [vmem:[%s2126] ss:$2 sm:$0xff]
        %s2128 = scalar_lea.vmem [#allocation2], 193
        %v2129 = vld [vmem:[%s2128] ss:$2 sm:$0xff]
        %s2130 = scalar_lea.vmem [#allocation2], 209
        %v2131 = vld [vmem:[%s2130] ss:$2 sm:$0xff]
        %s2132 = scalar_lea.vmem [#allocation2], 225
        %v2133 = vld [vmem:[%s2132] ss:$2 sm:$0xff]
        %s2134 = scalar_lea.vmem [#allocation2], 241
        %v2135 = vld [vmem:[%s2134] ss:$2 sm:$0xff]
        %s2136 = scalar_lea.vmem [#allocation2], 257
        %v2137 = vld [vmem:[%s2136] ss:$2 sm:$0xff]
        %s2138 = scalar_lea.vmem [#allocation2], 273
        %v2139 = vld [vmem:[%s2138] ss:$2 sm:$0xff]
        %s2140 = scalar_lea.vmem [#allocation2], 289
        %v2141 = vld [vmem:[%s2140] ss:$2 sm:$0xff]
        %s2142 = scalar_lea.vmem [#allocation2], 305
        %v2143 = vld [vmem:[%s2142] ss:$2 sm:$0xff]
        %s2144 = scalar_lea.vmem [#allocation2], 321
        %v2145 = vld [vmem:[%s2144] ss:$2 sm:$0xff]
        %s2146 = scalar_lea.vmem [#allocation2], 337
        %v2147 = vld [vmem:[%s2146] ss:$2 sm:$0xff]
        %s2148 = scalar_lea.vmem [#allocation2], 353
        %v2149 = vld [vmem:[%s2148] ss:$2 sm:$0xff]
        %s2150 = scalar_lea.vmem [#allocation2], 369
        %v2151 = vld [vmem:[%s2150] ss:$2 sm:$0xff]
        %s2152 = scalar_lea.vmem [#allocation2], 385
        %v2153 = vld [vmem:[%s2152] ss:$2 sm:$0xff]
        %s2154 = scalar_lea.vmem [#allocation2], 401
        %v2155 = vld [vmem:[%s2154] ss:$2 sm:$0xff]
        %s2156 = scalar_lea.vmem [#allocation2], 417
        %v2157 = vld [vmem:[%s2156] ss:$2 sm:$0xff]
        %s2158 = scalar_lea.vmem [#allocation2], 433
        %v2159 = vld [vmem:[%s2158] ss:$2 sm:$0xff]
        %s2160 = scalar_lea.vmem [#allocation2], 449
        %v2161 = vld [vmem:[%s2160] ss:$2 sm:$0xff]
        %s2162 = scalar_lea.vmem [#allocation2], 465
        %v2163 = vld [vmem:[%s2162] ss:$2 sm:$0xff]
        %s2164 = scalar_lea.vmem [#allocation2], 481
        %v2165 = vld [vmem:[%s2164] ss:$2 sm:$0xff]
        %s2166 = scalar_lea.vmem [#allocation2], 497
        %v2167 = vld [vmem:[%s2166] ss:$2 sm:$0xff]
        %s2168 = scalar_lea.vmem [#allocation2], 513
        %v2169 = vld [vmem:[%s2168] ss:$2 sm:$0xff]
        %s2170 = scalar_lea.vmem [#allocation2], 529
        %v2171 = vld [vmem:[%s2170] ss:$2 sm:$0xff]
        %s2172 = scalar_lea.vmem [#allocation2], 545
        %v2173 = vld [vmem:[%s2172] ss:$2 sm:$0xff]
        %s2174 = scalar_lea.vmem [#allocation2], 561
        %v2175 = vld [vmem:[%s2174] ss:$2 sm:$0xff]
        %s2176 = scalar_lea.vmem [#allocation2], 577
        %v2177 = vld [vmem:[%s2176] ss:$2 sm:$0xff]
        %s2178 = scalar_lea.vmem [#allocation2], 593
        %v2179 = vld [vmem:[%s2178] ss:$2 sm:$0xff]
        %s2180 = scalar_lea.vmem [#allocation2], 609
        %v2181 = vld [vmem:[%s2180] ss:$2 sm:$0xff]
        %s2182 = scalar_lea.vmem [#allocation2], 625
        %v2183 = vld [vmem:[%s2182] ss:$2 sm:$0xff]
        %s2184 = scalar_lea.vmem [#allocation2], 641
        %v2185 = vld [vmem:[%s2184] ss:$2 sm:$0xff]
        %s2186 = scalar_lea.vmem [#allocation2], 657
        %v2187 = vld [vmem:[%s2186] ss:$2 sm:$0xff]
        %s2188 = scalar_lea.vmem [#allocation2], 673
        %v2189 = vld [vmem:[%s2188] ss:$2 sm:$0xff]
        %s2190 = scalar_lea.vmem [#allocation2], 689
        %v2191 = vld [vmem:[%s2190] ss:$2 sm:$0xff]
        %s2192 = scalar_lea.vmem [#allocation2], 705
        %v2193 = vld [vmem:[%s2192] ss:$2 sm:$0xff]
        %s2194 = scalar_lea.vmem [#allocation2], 721
        %v2195 = vld [vmem:[%s2194] ss:$2 sm:$0xff]
        %s2196 = scalar_lea.vmem [#allocation2], 737
        %v2197 = vld [vmem:[%s2196] ss:$2 sm:$0xff]
        %s2198 = scalar_lea.vmem [#allocation2], 753
        %v2199 = vld [vmem:[%s2198] ss:$2 sm:$0xff]
        %s2200 = scalar_lea.vmem [#allocation2], 769
        %v2201 = vld [vmem:[%s2200] ss:$2 sm:$0xff]
        %s2202 = scalar_lea.vmem [#allocation2], 785
        %v2203 = vld [vmem:[%s2202] ss:$2 sm:$0xff]
        %s2204 = scalar_lea.vmem [#allocation2], 801
        %v2205 = vld [vmem:[%s2204] ss:$2 sm:$0xff]
        %s2206 = scalar_lea.vmem [#allocation2], 817
        %v2207 = vld [vmem:[%s2206] ss:$2 sm:$0xff]
        %s2208 = scalar_lea.vmem [#allocation2], 833
        %v2209 = vld [vmem:[%s2208] ss:$2 sm:$0xff]
        %s2210 = scalar_lea.vmem [#allocation2], 849
        %v2211 = vld [vmem:[%s2210] ss:$2 sm:$0xff]
        %s2212 = scalar_lea.vmem [#allocation2], 865
        %v2213 = vld [vmem:[%s2212] ss:$2 sm:$0xff]
        %s2214 = scalar_lea.vmem [#allocation2], 881
        %v2215 = vld [vmem:[%s2214] ss:$2 sm:$0xff]
        %s2216 = scalar_lea.vmem [#allocation2], 897
        %v2217 = vld [vmem:[%s2216] ss:$2 sm:$0xff]
        %s2218 = scalar_lea.vmem [#allocation2], 913
        %v2219 = vld [vmem:[%s2218] ss:$2 sm:$0xff]
        %s2220 = scalar_lea.vmem [#allocation2], 929
        %v2221 = vld [vmem:[%s2220] ss:$2 sm:$0xff]
        %s2222 = scalar_lea.vmem [#allocation2], 945
        %v2223 = vld [vmem:[%s2222] ss:$2 sm:$0xff]
        %s2224 = scalar_lea.vmem [#allocation2], 961
        %v2225 = vld [vmem:[%s2224] ss:$2 sm:$0xff]
        %s2226 = scalar_lea.vmem [#allocation2], 977
        %v2227 = vld [vmem:[%s2226] ss:$2 sm:$0xff]
        %s2228 = scalar_lea.vmem [#allocation2], 993
        %v2229 = vld [vmem:[%s2228] ss:$2 sm:$0xff]
        %s2230 = scalar_lea.vmem [#allocation2], 1009
        %v2231 = vld [vmem:[%s2230] ss:$2 sm:$0xff]
        %v2232 = vmax.f32 %v1977, %v2105
        %v2233 = vmax.f32 %v1979, %v2107
        %v2234 = vmax.f32 %v1981, %v2109
        %v2235 = vmax.f32 %v1983, %v2111
        %v2236 = vmax.f32 %v1985, %v2113
        %v2237 = vmax.f32 %v1987, %v2115
        %v2238 = vmax.f32 %v1989, %v2117
        %v2239 = vmax.f32 %v1991, %v2119
        %v2240 = vmax.f32 %v1993, %v2121
        %v2241 = vmax.f32 %v1995, %v2123
        %v2242 = vmax.f32 %v1997, %v2125
        %v2243 = vmax.f32 %v1999, %v2127
        %v2244 = vmax.f32 %v2001, %v2129
        %v2245 = vmax.f32 %v2003, %v2131
        %v2246 = vmax.f32 %v2005, %v2133
        %v2247 = vmax.f32 %v2007, %v2135
        %v2248 = vmax.f32 %v2009, %v2137
        %v2249 = vmax.f32 %v2011, %v2139
        %v2250 = vmax.f32 %v2013, %v2141
        %v2251 = vmax.f32 %v2015, %v2143
        %v2252 = vmax.f32 %v2017, %v2145
        %v2253 = vmax.f32 %v2019, %v2147
        %v2254 = vmax.f32 %v2021, %v2149
        %v2255 = vmax.f32 %v2023, %v2151
        %v2256 = vmax.f32 %v2025, %v2153
        %v2257 = vmax.f32 %v2027, %v2155
        %v2258 = vmax.f32 %v2029, %v2157
        %v2259 = vmax.f32 %v2031, %v2159
        %v2260 = vmax.f32 %v2033, %v2161
        %v2261 = vmax.f32 %v2035, %v2163
        %v2262 = vmax.f32 %v2037, %v2165
        %v2263 = vmax.f32 %v2039, %v2167
        %v2264 = vmax.f32 %v2041, %v2169
        %v2265 = vmax.f32 %v2043, %v2171
        %v2266 = vmax.f32 %v2045, %v2173
        %v2267 = vmax.f32 %v2047, %v2175
        %v2268 = vmax.f32 %v2049, %v2177
        %v2269 = vmax.f32 %v2051, %v2179
        %v2270 = vmax.f32 %v2053, %v2181
        %v2271 = vmax.f32 %v2055, %v2183
        %v2272 = vmax.f32 %v2057, %v2185
        %v2273 = vmax.f32 %v2059, %v2187
        %v2274 = vmax.f32 %v2061, %v2189
        %v2275 = vmax.f32 %v2063, %v2191
        %v2276 = vmax.f32 %v2065, %v2193
        %v2277 = vmax.f32 %v2067, %v2195
        %v2278 = vmax.f32 %v2069, %v2197
        %v2279 = vmax.f32 %v2071, %v2199
        %v2280 = vmax.f32 %v2073, %v2201
        %v2281 = vmax.f32 %v2075, %v2203
        %v2282 = vmax.f32 %v2077, %v2205
        %v2283 = vmax.f32 %v2079, %v2207
        %v2284 = vmax.f32 %v2081, %v2209
        %v2285 = vmax.f32 %v2083, %v2211
        %v2286 = vmax.f32 %v2085, %v2213
        %v2287 = vmax.f32 %v2087, %v2215
        %v2288 = vmax.f32 %v2089, %v2217
        %v2289 = vmax.f32 %v2091, %v2219
        %v2290 = vmax.f32 %v2093, %v2221
        %v2291 = vmax.f32 %v2095, %v2223
        %v2292 = vmax.f32 %v2097, %v2225
        %v2293 = vmax.f32 %v2099, %v2227
        %v2294 = vmax.f32 %v2101, %v2229
        %v2295 = vmax.f32 %v2103, %v2231
        %v2296 = vsel %vm714, %v2232, -inf
        %v2297 = vsel %vm714, %v2234, -inf
        %v2298 = vmax.f32 %v2296, %v2297
        %v2299 = vsel %vm714, %v2233, -inf
        %v2300 = vsel %vm714, %v2235, -inf
        %v2301 = vmax.f32 %v2299, %v2300
        %v2302 = vsel %vm714, %v2236, -inf
        %v2303 = vsel %vm714, %v2238, -inf
        %v2304 = vmax.f32 %v2302, %v2303
        %v2305 = vsel %vm714, %v2237, -inf
        %v2306 = vsel %vm714, %v2239, -inf
        %v2307 = vmax.f32 %v2305, %v2306
        %v2308 = vsel %vm714, %v2240, -inf
        %v2309 = vsel %vm714, %v2242, -inf
        %v2310 = vmax.f32 %v2308, %v2309
        %v2311 = vsel %vm714, %v2241, -inf
        %v2312 = vsel %vm714, %v2243, -inf
        %v2313 = vmax.f32 %v2311, %v2312
        %v2314 = vsel %vm714, %v2244, -inf
        %v2315 = vsel %vm714, %v2246, -inf
        %v2316 = vmax.f32 %v2314, %v2315
        %v2317 = vsel %vm714, %v2245, -inf
        %v2318 = vsel %vm714, %v2247, -inf
        %v2319 = vmax.f32 %v2317, %v2318
        %v2320 = vsel %vm714, %v2248, -inf
        %v2321 = vsel %vm714, %v2250, -inf
        %v2322 = vmax.f32 %v2320, %v2321
        %v2323 = vsel %vm714, %v2249, -inf
        %v2324 = vsel %vm714, %v2251, -inf
        %v2325 = vmax.f32 %v2323, %v2324
        %v2326 = vsel %vm714, %v2252, -inf
        %v2327 = vsel %vm714, %v2254, -inf
        %v2328 = vmax.f32 %v2326, %v2327
        %v2329 = vsel %vm714, %v2253, -inf
        %v2330 = vsel %vm714, %v2255, -inf
        %v2331 = vmax.f32 %v2329, %v2330
        %v2332 = vsel %vm714, %v2256, -inf
        %v2333 = vsel %vm714, %v2258, -inf
        %v2334 = vmax.f32 %v2332, %v2333
        %v2335 = vsel %vm714, %v2257, -inf
        %v2336 = vsel %vm714, %v2259, -inf
        %v2337 = vmax.f32 %v2335, %v2336
        %v2338 = vsel %vm714, %v2260, -inf
        %v2339 = vsel %vm714, %v2262, -inf
        %v2340 = vmax.f32 %v2338, %v2339
        %v2341 = vsel %vm714, %v2261, -inf
        %v2342 = vsel %vm714, %v2263, -inf
        %v2343 = vmax.f32 %v2341, %v2342
        %v2344 = vsel %vm714, %v2264, -inf
        %v2345 = vsel %vm714, %v2266, -inf
        %v2346 = vmax.f32 %v2344, %v2345
        %v2347 = vsel %vm714, %v2265, -inf
        %v2348 = vsel %vm714, %v2267, -inf
        %v2349 = vmax.f32 %v2347, %v2348
        %v2350 = vsel %vm714, %v2268, -inf
        %v2351 = vsel %vm714, %v2270, -inf
        %v2352 = vmax.f32 %v2350, %v2351
        %v2353 = vsel %vm714, %v2269, -inf
        %v2354 = vsel %vm714, %v2271, -inf
        %v2355 = vmax.f32 %v2353, %v2354
        %v2356 = vsel %vm714, %v2272, -inf
        %v2357 = vsel %vm714, %v2274, -inf
        %v2358 = vmax.f32 %v2356, %v2357
        %v2359 = vsel %vm714, %v2273, -inf
        %v2360 = vsel %vm714, %v2275, -inf
        %v2361 = vmax.f32 %v2359, %v2360
        %v2362 = vsel %vm714, %v2276, -inf
        %v2363 = vsel %vm714, %v2278, -inf
        %v2364 = vmax.f32 %v2362, %v2363
        %v2365 = vsel %vm714, %v2277, -inf
        %v2366 = vsel %vm714, %v2279, -inf
        %v2367 = vmax.f32 %v2365, %v2366
        %v2368 = vsel %vm714, %v2280, -inf
        %v2369 = vsel %vm714, %v2282, -inf
        %v2370 = vmax.f32 %v2368, %v2369
        %v2371 = vsel %vm714, %v2281, -inf
        %v2372 = vsel %vm714, %v2283, -inf
        %v2373 = vmax.f32 %v2371, %v2372
        %v2374 = vsel %vm714, %v2284, -inf
        %v2375 = vsel %vm714, %v2286, -inf
        %v2376 = vmax.f32 %v2374, %v2375
        %v2377 = vsel %vm714, %v2285, -inf
        %v2378 = vsel %vm714, %v2287, -inf
        %v2379 = vmax.f32 %v2377, %v2378
        %v2380 = vsel %vm714, %v2288, -inf
        %v2381 = vsel %vm714, %v2290, -inf
        %v2382 = vmax.f32 %v2380, %v2381
        %v2383 = vsel %vm714, %v2289, -inf
        %v2384 = vsel %vm714, %v2291, -inf
        %v2385 = vmax.f32 %v2383, %v2384
        %v2386 = vsel %vm714, %v2292, -inf
        %v2387 = vsel %vm714, %v2294, -inf
        %v2388 = vmax.f32 %v2386, %v2387
        %v2389 = vsel %vm714, %v2293, -inf
        %v2390 = vsel %vm714, %v2295, -inf
        %v2391 = vmax.f32 %v2389, %v2390
        %2392 = vst.msk [vmem:[#allocation3] sm:$0xff] %vm714, 0.0
        %2393 = vst.msk [vmem:[#allocation3 + $0x8] sm:$0xff] %vm714, 0.0
        %vm2394 = vcmask 254976
        %2395 = vst.msk [vmem:[#allocation3 + $0x10] sm:$0x3] %vm2394, 0.0
        %2396 = vst.msk [vmem:[#allocation3 + $0x18] sm:$0xff] %vm714, 0.0
        %2397 = vst.msk [vmem:[#allocation3 + $0x20] sm:$0xff] %vm714, 0.0
        %2398 = vst.msk [vmem:[#allocation3 + $0x28] sm:$0x3] %vm2394, 0.0
        %2399 = vst.msk [vmem:[#allocation3 + $0x30] sm:$0xff] %vm714, 0.0
        %2400 = vst.msk [vmem:[#allocation3 + $0x38] sm:$0xff] %vm714, 0.0
        %2401 = vst.msk [vmem:[#allocation3 + $0x40] sm:$0x3] %vm2394, 0.0
        %2402 = vst.msk [vmem:[#allocation3 + $0x48] sm:$0xff] %vm714, 0.0
        %2403 = vst.msk [vmem:[#allocation3 + $0x50] sm:$0xff] %vm714, 0.0
        %2404 = vst.msk [vmem:[#allocation3 + $0x58] sm:$0x3] %vm2394, 0.0
        %2405 = vst.msk [vmem:[#allocation3 + $0x60] sm:$0xff] %vm714, 0.0
        %2406 = vst.msk [vmem:[#allocation3 + $0x68] sm:$0xff] %vm714, 0.0
        %2407 = vst.msk [vmem:[#allocation3 + $0x70] sm:$0x3] %vm2394, 0.0
        %2408 = vst.msk [vmem:[#allocation3 + $0x78] sm:$0xff] %vm714, 0.0
        %2409 = vst.msk [vmem:[#allocation3 + $0x80] sm:$0xff] %vm714, 0.0
        %2410 = vst.msk [vmem:[#allocation3 + $0x88] sm:$0x3] %vm2394, 0.0
        %2411 = vst.msk [vmem:[#allocation3 + $0x90] sm:$0xff] %vm714, 0.0
        %2412 = vst.msk [vmem:[#allocation3 + $0x98] sm:$0xff] %vm714, 0.0
        %2413 = vst.msk [vmem:[#allocation3 + $0xa0] sm:$0x3] %vm2394, 0.0
        %2414 = vst.msk [vmem:[#allocation3 + $0xa8] sm:$0xff] %vm714, 0.0
        %2415 = vst.msk [vmem:[#allocation3 + $0xb0] sm:$0xff] %vm714, 0.0
        %2416 = vst.msk [vmem:[#allocation3 + $0xb8] sm:$0x3] %vm2394, 0.0
        %2417 = vst.msk [vmem:[#allocation3 + $0xc0] sm:$0xff] %vm714, 0.0
        %2418 = vst.msk [vmem:[#allocation3 + $0xc8] sm:$0xff] %vm714, 0.0
        %2419 = vst.msk [vmem:[#allocation3 + $0xd0] sm:$0x3] %vm2394, 0.0
        %2420 = vst.msk [vmem:[#allocation3 + $0xd8] sm:$0xff] %vm714, 0.0
        %2421 = vst.msk [vmem:[#allocation3 + $0xe0] sm:$0xff] %vm714, 0.0
        %2422 = vst.msk [vmem:[#allocation3 + $0xe8] sm:$0x3] %vm2394, 0.0
        %2423 = vst.msk [vmem:[#allocation3 + $0xf0] sm:$0xff] %vm714, 0.0
        %2424 = vst.msk [vmem:[#allocation3 + $0xf8] sm:$0xff] %vm714, 0.0
        %2425 = vst.msk [vmem:[#allocation3 + $0x100] sm:$0x3] %vm2394, 0.0
        %2426 = vst.msk [vmem:[#allocation3 + $0x108] sm:$0xff] %vm714, 0.0
        %2427 = vst.msk [vmem:[#allocation3 + $0x110] sm:$0xff] %vm714, 0.0
        %2428 = vst.msk [vmem:[#allocation3 + $0x118] sm:$0x3] %vm2394, 0.0
        %2429 = vst.msk [vmem:[#allocation3 + $0x120] sm:$0xff] %vm714, 0.0
        %2430 = vst.msk [vmem:[#allocation3 + $0x128] sm:$0xff] %vm714, 0.0
        %2431 = vst.msk [vmem:[#allocation3 + $0x130] sm:$0x3] %vm2394, 0.0
        %2432 = vst.msk [vmem:[#allocation3 + $0x138] sm:$0xff] %vm714, 0.0
        %2433 = vst.msk [vmem:[#allocation3 + $0x140] sm:$0xff] %vm714, 0.0
        %2434 = vst.msk [vmem:[#allocation3 + $0x148] sm:$0x3] %vm2394, 0.0
        %2435 = vst.msk [vmem:[#allocation3 + $0x150] sm:$0xff] %vm714, 0.0
        %2436 = vst.msk [vmem:[#allocation3 + $0x158] sm:$0xff] %vm714, 0.0
        %2437 = vst.msk [vmem:[#allocation3 + $0x160] sm:$0x3] %vm2394, 0.0
        %2438 = vst.msk [vmem:[#allocation3 + $0x168] sm:$0xff] %vm714, 0.0
        %2439 = vst.msk [vmem:[#allocation3 + $0x170] sm:$0xff] %vm714, 0.0
        %2440 = vst.msk [vmem:[#allocation3 + $0x178] sm:$0x3] %vm2394, 0.0
        %2441 = vst.msk [vmem:[#allocation3 + $0x180] sm:$0xff] %vm714, 0.0
        %2442 = vst.msk [vmem:[#allocation3 + $0x188] sm:$0xff] %vm714, 0.0
        %2443 = vst.msk [vmem:[#allocation3 + $0x190] sm:$0x3] %vm2394, 0.0
        %2444 = vst.msk [vmem:[#allocation3 + $0x198] sm:$0xff] %vm714, 0.0
        %2445 = vst.msk [vmem:[#allocation3 + $0x1a0] sm:$0xff] %vm714, 0.0
        %2446 = vst.msk [vmem:[#allocation3 + $0x1a8] sm:$0x3] %vm2394, 0.0
        %s2447 = scalar_lea.vmem [#allocation3], 24
        %2448 = vst.msk [vmem:[%s2447 + $0x1] sm:$0xff] %vm714, %v2298
        %2449 = vst.msk [vmem:[%s2447 + $0x9] sm:$0xff] %vm714, %v2301
        %2450 = vst.msk [vmem:[%s2447 + $0x19] sm:$0xff] %vm714, %v2304
        %2451 = vst.msk [vmem:[%s2447 + $0x21] sm:$0xff] %vm714, %v2307
        %2452 = vst.msk [vmem:[%s2447 + $0x31] sm:$0xff] %vm714, %v2310
        %2453 = vst.msk [vmem:[%s2447 + $0x39] sm:$0xff] %vm714, %v2313
        %2454 = vst.msk [vmem:[%s2447 + $0x49] sm:$0xff] %vm714, %v2316
        %2455 = vst.msk [vmem:[%s2447 + $0x51] sm:$0xff] %vm714, %v2319
        %2456 = vst.msk [vmem:[%s2447 + $0x61] sm:$0xff] %vm714, %v2322
        %2457 = vst.msk [vmem:[%s2447 + $0x69] sm:$0xff] %vm714, %v2325
        %2458 = vst.msk [vmem:[%s2447 + $0x79] sm:$0xff] %vm714, %v2328
        %2459 = vst.msk [vmem:[%s2447 + $0x81] sm:$0xff] %vm714, %v2331
        %2460 = vst.msk [vmem:[%s2447 + $0x91] sm:$0xff] %vm714, %v2334
        %2461 = vst.msk [vmem:[%s2447 + $0x99] sm:$0xff] %vm714, %v2337
        %2462 = vst.msk [vmem:[%s2447 + $0xa9] sm:$0xff] %vm714, %v2340
        %2463 = vst.msk [vmem:[%s2447 + $0xb1] sm:$0xff] %vm714, %v2343
        %2464 = vst.msk [vmem:[%s2447 + $0xc1] sm:$0xff] %vm714, %v2346
        %2465 = vst.msk [vmem:[%s2447 + $0xc9] sm:$0xff] %vm714, %v2349
        %2466 = vst.msk [vmem:[%s2447 + $0xd9] sm:$0xff] %vm714, %v2352
        %2467 = vst.msk [vmem:[%s2447 + $0xe1] sm:$0xff] %vm714, %v2355
        %2468 = vst.msk [vmem:[%s2447 + $0xf1] sm:$0xff] %vm714, %v2358
        %2469 = vst.msk [vmem:[%s2447 + $0xf9] sm:$0xff] %vm714, %v2361
        %2470 = vst.msk [vmem:[%s2447 + $0x109] sm:$0xff] %vm714, %v2364
        %2471 = vst.msk [vmem:[%s2447 + $0x111] sm:$0xff] %vm714, %v2367
        %2472 = vst.msk [vmem:[%s2447 + $0x121] sm:$0xff] %vm714, %v2370
        %2473 = vst.msk [vmem:[%s2447 + $0x129] sm:$0xff] %vm714, %v2373
        %2474 = vst.msk [vmem:[%s2447 + $0x139] sm:$0xff] %vm714, %v2376
        %2475 = vst.msk [vmem:[%s2447 + $0x141] sm:$0xff] %vm714, %v2379
        %2476 = vst.msk [vmem:[%s2447 + $0x151] sm:$0xff] %vm714, %v2382
        %2477 = vst.msk [vmem:[%s2447 + $0x159] sm:$0xff] %vm714, %v2385
        %2478 = vst.msk [vmem:[%s2447 + $0x169] sm:$0xff] %vm714, %v2388
        %2479 = vst.msk [vmem:[%s2447 + $0x171] sm:$0xff] %vm714, %v2391
        %v2480 = vld [vmem:[#allocation3] sm:$0xff]
        %v2481 = vld [vmem:[#allocation3 + $0x8] sm:$0xff]
        %v2482 = vld [vmem:[#allocation3 + $0x18] sm:$0xff]
        %v2483 = vld [vmem:[#allocation3 + $0x20] sm:$0xff]
        %v2484 = vld [vmem:[#allocation3 + $0x30] sm:$0xff]
        %v2485 = vld [vmem:[#allocation3 + $0x38] sm:$0xff]
        %v2486 = vld [vmem:[#allocation3 + $0x48] sm:$0xff]
        %v2487 = vld [vmem:[#allocation3 + $0x50] sm:$0xff]
        %v2488 = vld [vmem:[#allocation3 + $0x60] sm:$0xff]
        %v2489 = vld [vmem:[#allocation3 + $0x68] sm:$0xff]
        %v2490 = vld [vmem:[#allocation3 + $0x78] sm:$0xff]
        %v2491 = vld [vmem:[#allocation3 + $0x80] sm:$0xff]
        %v2492 = vld [vmem:[#allocation3 + $0x90] sm:$0xff]
        %v2493 = vld [vmem:[#allocation3 + $0x98] sm:$0xff]
        %v2494 = vld [vmem:[#allocation3 + $0xa8] sm:$0xff]
        %v2495 = vld [vmem:[#allocation3 + $0xb0] sm:$0xff]
        %v2496 = vpack.c.bf16 %v2481, %v2480
        %v2497 = vpack.c.bf16 %v2483, %v2482
        %v2498 = vpack.c.bf16 %v2485, %v2484
        %v2499 = vpack.c.bf16 %v2487, %v2486
        %v2500 = vpack.c.bf16 %v2489, %v2488
        %v2501 = vpack.c.bf16 %v2491, %v2490
        %v2502 = vpack.c.bf16 %v2493, %v2492
        %v2503 = vpack.c.bf16 %v2495, %v2494
        %v2504 = vld [vmem:[%s3] sm:$0xf]
        %v2505 = vld [vmem:[%s3 + $0x4] sm:$0xf]
        %v2506 = vld [vmem:[%s3 + $0x8] sm:$0xf]
        %v2507 = vld [vmem:[%s3 + $0xc] sm:$0xf]
        %v2508 = vld [vmem:[#allocation3 + $0x1] sm:$0xff]
        %v2509 = vld [vmem:[#allocation3 + $0x9] sm:$0xff]
        %v2510 = vld [vmem:[#allocation3 + $0x19] sm:$0xff]
        %v2511 = vld [vmem:[#allocation3 + $0x21] sm:$0xff]
        %v2512 = vld [vmem:[#allocation3 + $0x31] sm:$0xff]
        %v2513 = vld [vmem:[#allocation3 + $0x39] sm:$0xff]
        %v2514 = vld [vmem:[#allocation3 + $0x49] sm:$0xff]
        %v2515 = vld [vmem:[#allocation3 + $0x51] sm:$0xff]
        %v2516 = vld [vmem:[#allocation3 + $0x61] sm:$0xff]
        %v2517 = vld [vmem:[#allocation3 + $0x69] sm:$0xff]
        %v2518 = vld [vmem:[#allocation3 + $0x79] sm:$0xff]
        %v2519 = vld [vmem:[#allocation3 + $0x81] sm:$0xff]
        %v2520 = vld [vmem:[#allocation3 + $0x91] sm:$0xff]
        %v2521 = vld [vmem:[#allocation3 + $0x99] sm:$0xff]
        %v2522 = vld [vmem:[#allocation3 + $0xa9] sm:$0xff]
        %v2523 = vld [vmem:[#allocation3 + $0xb1] sm:$0xff]
        %v2524 = vpack.c.bf16 %v2509, %v2508
        %v2525 = vpack.c.bf16 %v2511, %v2510
        %v2526 = vpack.c.bf16 %v2513, %v2512
        %v2527 = vpack.c.bf16 %v2515, %v2514
        %v2528 = vpack.c.bf16 %v2517, %v2516
        %v2529 = vpack.c.bf16 %v2519, %v2518
        %v2530 = vpack.c.bf16 %v2521, %v2520
        %v2531 = vpack.c.bf16 %v2523, %v2522
        %s2532 = scalar_lea.vmem %s3, 16
        %v2533 = vld [vmem:[%s2532] sm:$0xf]
        %v2534 = vld [vmem:[%s2532 + $0x4] sm:$0xf]
        %v2535 = vld [vmem:[%s2532 + $0x8] sm:$0xf]
        %v2536 = vld [vmem:[%s2532 + $0xc] sm:$0xf]
        %v2541 = vunpack.c.l.b16 %v2533
        %v2542 = vunpack.c.l.b16 %v2534
        %v2543 = vunpack.c.l.b16 %v2535
        %v2544 = vunpack.c.l.b16 %v2536
        %v2545 = vpack.c.b16 %v2542, %v2541
        %v2546 = vpack.c.b16 %v2544, %v2543
        %v2550 = vsel %vm714, %v2524, 0
        %v2553 = vsel %vm714, %v2525, 0
        %v2556 = vsel %vm714, %v2526, 0
        %v2559 = vsel %vm714, %v2527, 0
        %v2562 = vsel %vm714, %v2528, 0
        %v2565 = vsel %vm714, %v2529, 0
        %v2568 = vsel %vm714, %v2530, 0
        %v2571 = vsel %vm714, %v2531, 0
        %2573 = vmatprep.subr.bf16.mxu0 0
        %2574 = vmatpush1.bf16.msra.mxu0 0
        %2575 = vmatprep.subr.bf16.mxu0 0
        %2576 = vmatpush1.bf16.msra.mxu0 0
        %2577 = vmatprep.subr.bf16.mxu0 0
        %2578 = vmatpush1.bf16.msra.mxu0 0
        %2579 = vmatprep.subr.bf16.mxu0 0
        %2580 = vmatpush1.bf16.msra.mxu0 0
        %2581 = vmatprep.subr.bf16.mxu0 0
        %2582 = vmatpush1.bf16.msra.mxu0 0
        %2583 = vmatprep.subr.bf16.mxu0 0
        %2584 = vmatpush1.bf16.msra.mxu0 0
        %2585 = vmatprep.subr.bf16.mxu0 0
        %2586 = vmatpush1.bf16.msra.mxu0 %v2546
        %2587 = vmatprep.subr.bf16.mxu0 0
        %2588 = vmatpush1.bf16.msra.mxu0 %v2545
        %2589 = vmatprep.subr.bf16.mxu0 0
        %2590 = vmatpush2.bf16.msra.mxu0 0
        %2591 = vmatprep.subr.bf16.mxu0 0
        %2592 = vmatpush2.bf16.msra.mxu0 0
        %2593 = vmatprep.subr.bf16.mxu0 0
        %2594 = vmatpush2.bf16.msra.mxu0 0
        %2595 = vmatprep.subr.bf16.mxu0 0
        %2596 = vmatpush2.bf16.msra.mxu0 0
        %2597 = vmatprep.subr.bf16.mxu0 0
        %2598 = vmatpush2.bf16.msra.mxu0 0
        %2599 = vmatprep.subr.bf16.mxu0 0
        %2600 = vmatpush2.bf16.msra.mxu0 0
        %2601 = vmatprep.subr.bf16.mxu0 0
        %2602 = vmatpush2.bf16.msra.mxu0 0
        %2603 = vmatprep.subr.bf16.mxu0 0
        %2604 = vmatpush2.bf16.msra.mxu0 0
        %2605 = vmatprep.mubr.bf16.mxu0 0
        %2606 = vmatmul.mubr.bf16.gmra.mxu0 %v2550
        %v2607 = vpop.f32.mrf.mxu0
        %v2608 = vadd.f32 0.0, %v2607
        %v2609 = vpop.f32.mrf.mxu0
        %v2610 = vpop.f32.mrf.mxu0
        %v2611 = vadd.f32 0.0, %v2610
        %v2612 = vpop.f32.mrf.mxu0
        %2613 = vmatprep.mubr.bf16.mxu0 0
        %2614 = vmatmul.mubr.bf16.gmra.mxu0 %v2553
        %v2615 = vpop.f32.mrf.mxu0
        %v2616 = vadd.f32 0.0, %v2615
        %v2617 = vpop.f32.mrf.mxu0
        %v2618 = vpop.f32.mrf.mxu0
        %v2619 = vadd.f32 0.0, %v2618
        %v2620 = vpop.f32.mrf.mxu0
        %2621 = vmatprep.mubr.bf16.mxu0 0
        %2622 = vmatmul.mubr.bf16.gmra.mxu0 %v2556
        %v2623 = vpop.f32.mrf.mxu0
        %v2624 = vadd.f32 0.0, %v2623
        %v2625 = vpop.f32.mrf.mxu0
        %v2626 = vpop.f32.mrf.mxu0
        %v2627 = vadd.f32 0.0, %v2626
        %v2628 = vpop.f32.mrf.mxu0
        %2629 = vmatprep.mubr.bf16.mxu0 0
        %2630 = vmatmul.mubr.bf16.gmra.mxu0 %v2559
        %v2631 = vpop.f32.mrf.mxu0
        %v2632 = vadd.f32 0.0, %v2631
        %v2633 = vpop.f32.mrf.mxu0
        %v2634 = vpop.f32.mrf.mxu0
        %v2635 = vadd.f32 0.0, %v2634
        %v2636 = vpop.f32.mrf.mxu0
        %2637 = vmatprep.mubr.bf16.mxu0 0
        %2638 = vmatmul.mubr.bf16.gmra.mxu0 %v2562
        %v2639 = vpop.f32.mrf.mxu0
        %v2640 = vadd.f32 0.0, %v2639
        %v2641 = vpop.f32.mrf.mxu0
        %v2642 = vpop.f32.mrf.mxu0
        %v2643 = vadd.f32 0.0, %v2642
        %v2644 = vpop.f32.mrf.mxu0
        %2645 = vmatprep.mubr.bf16.mxu0 0
        %2646 = vmatmul.mubr.bf16.gmra.mxu0 %v2565
        %v2647 = vpop.f32.mrf.mxu0
        %v2648 = vadd.f32 0.0, %v2647
        %v2649 = vpop.f32.mrf.mxu0
        %v2650 = vpop.f32.mrf.mxu0
        %v2651 = vadd.f32 0.0, %v2650
        %v2652 = vpop.f32.mrf.mxu0
        %2653 = vmatprep.mubr.bf16.mxu0 0
        %2654 = vmatmul.mubr.bf16.gmra.mxu0 %v2568
        %v2655 = vpop.f32.mrf.mxu0
        %v2656 = vadd.f32 0.0, %v2655
        %v2657 = vpop.f32.mrf.mxu0
        %v2658 = vpop.f32.mrf.mxu0
        %v2659 = vadd.f32 0.0, %v2658
        %v2660 = vpop.f32.mrf.mxu0
        %2661 = vmatprep.mubr.bf16.mxu0 0
        %2662 = vmatmul.mubr.bf16.gmra.mxu0 %v2571
        %v2663 = vpop.f32.mrf.mxu0
        %v2664 = vadd.f32 0.0, %v2663
        %v2665 = vpop.f32.mrf.mxu0
        %v2666 = vpop.f32.mrf.mxu0
        %v2667 = vadd.f32 0.0, %v2666
        %v2668 = vpop.f32.mrf.mxu0
        %2669 = vdwg.mxu0
        %v2674 = vunpack.c.l.b16 %v2504
        %v2675 = vunpack.c.l.b16 %v2505
        %v2676 = vunpack.c.l.b16 %v2506
        %v2677 = vunpack.c.l.b16 %v2507
        %v2678 = vpack.c.b16 %v2675, %v2674
        %v2679 = vpack.c.b16 %v2677, %v2676
        %v2683 = vsel %vm714, %v2496, 0
        %v2686 = vsel %vm714, %v2497, 0
        %v2689 = vsel %vm714, %v2498, 0
        %v2692 = vsel %vm714, %v2499, 0
        %v2695 = vsel %vm714, %v2500, 0
        %v2698 = vsel %vm714, %v2501, 0
        %v2701 = vsel %vm714, %v2502, 0
        %v2704 = vsel %vm714, %v2503, 0
        %2706 = vmatprep.subr.bf16.mxu0 0
        %2707 = vmatpush1.bf16.msra.mxu0 0
        %2708 = vmatprep.subr.bf16.mxu0 0
        %2709 = vmatpush1.bf16.msra.mxu0 0
        %2710 = vmatprep.subr.bf16.mxu0 0
        %2711 = vmatpush1.bf16.msra.mxu0 0
        %2712 = vmatprep.subr.bf16.mxu0 0
        %2713 = vmatpush1.bf16.msra.mxu0 0
        %2714 = vmatprep.subr.bf16.mxu0 0
        %2715 = vmatpush1.bf16.msra.mxu0 0
        %2716 = vmatprep.subr.bf16.mxu0 0
        %2717 = vmatpush1.bf16.msra.mxu0 0
        %2718 = vmatprep.subr.bf16.mxu0 0
        %2719 = vmatpush1.bf16.msra.mxu0 %v2679
        %2720 = vmatprep.subr.bf16.mxu0 0
        %2721 = vmatpush1.bf16.msra.mxu0 %v2678
        %2722 = vmatprep.subr.bf16.mxu0 0
        %2723 = vmatpush2.bf16.msra.mxu0 0
        %2724 = vmatprep.subr.bf16.mxu0 0
        %2725 = vmatpush2.bf16.msra.mxu0 0
        %2726 = vmatprep.subr.bf16.mxu0 0
        %2727 = vmatpush2.bf16.msra.mxu0 0
        %2728 = vmatprep.subr.bf16.mxu0 0
        %2729 = vmatpush2.bf16.msra.mxu0 0
        %2730 = vmatprep.subr.bf16.mxu0 0
        %2731 = vmatpush2.bf16.msra.mxu0 0
        %2732 = vmatprep.subr.bf16.mxu0 0
        %2733 = vmatpush2.bf16.msra.mxu0 0
        %2734 = vmatprep.subr.bf16.mxu0 0
        %2735 = vmatpush2.bf16.msra.mxu0 0
        %2736 = vmatprep.subr.bf16.mxu0 0
        %2737 = vmatpush2.bf16.msra.mxu0 0
        %2738 = vmatprep.mubr.bf16.mxu0 0
        %2739 = vmatmul.mubr.bf16.gmra.mxu0 %v2683
        %v2740 = vpop.f32.mrf.mxu0
        %v2741 = vadd.f32 %v2608, %v2740
        %v2742 = vpop.f32.mrf.mxu0
        %v2743 = vpop.f32.mrf.mxu0
        %v2744 = vadd.f32 %v2611, %v2743
        %v2745 = vpop.f32.mrf.mxu0
        %2746 = vmatprep.mubr.bf16.mxu0 0
        %2747 = vmatmul.mubr.bf16.gmra.mxu0 %v2686
        %v2748 = vpop.f32.mrf.mxu0
        %v2749 = vadd.f32 %v2616, %v2748
        %v2750 = vpop.f32.mrf.mxu0
        %v2751 = vpop.f32.mrf.mxu0
        %v2752 = vadd.f32 %v2619, %v2751
        %v2753 = vpop.f32.mrf.mxu0
        %2754 = vmatprep.mubr.bf16.mxu0 0
        %2755 = vmatmul.mubr.bf16.gmra.mxu0 %v2689
        %v2756 = vpop.f32.mrf.mxu0
        %v2757 = vadd.f32 %v2624, %v2756
        %v2758 = vpop.f32.mrf.mxu0
        %v2759 = vpop.f32.mrf.mxu0
        %v2760 = vadd.f32 %v2627, %v2759
        %v2761 = vpop.f32.mrf.mxu0
        %2762 = vmatprep.mubr.bf16.mxu0 0
        %2763 = vmatmul.mubr.bf16.gmra.mxu0 %v2692
        %v2764 = vpop.f32.mrf.mxu0
        %v2765 = vadd.f32 %v2632, %v2764
        %v2766 = vpop.f32.mrf.mxu0
        %v2767 = vpop.f32.mrf.mxu0
        %v2768 = vadd.f32 %v2635, %v2767
        %v2769 = vpop.f32.mrf.mxu0
        %2770 = vmatprep.mubr.bf16.mxu0 0
        %2771 = vmatmul.mubr.bf16.gmra.mxu0 %v2695
        %v2772 = vpop.f32.mrf.mxu0
        %v2773 = vadd.f32 %v2640, %v2772
        %v2774 = vpop.f32.mrf.mxu0
        %v2775 = vpop.f32.mrf.mxu0
        %v2776 = vadd.f32 %v2643, %v2775
        %v2777 = vpop.f32.mrf.mxu0
        %2778 = vmatprep.mubr.bf16.mxu0 0
        %2779 = vmatmul.mubr.bf16.gmra.mxu0 %v2698
        %v2780 = vpop.f32.mrf.mxu0
        %v2781 = vadd.f32 %v2648, %v2780
        %v2782 = vpop.f32.mrf.mxu0
        %v2783 = vpop.f32.mrf.mxu0
        %v2784 = vadd.f32 %v2651, %v2783
        %v2785 = vpop.f32.mrf.mxu0
        %2786 = vmatprep.mubr.bf16.mxu0 0
        %2787 = vmatmul.mubr.bf16.gmra.mxu0 %v2701
        %v2788 = vpop.f32.mrf.mxu0
        %v2789 = vadd.f32 %v2656, %v2788
        %v2790 = vpop.f32.mrf.mxu0
        %v2791 = vpop.f32.mrf.mxu0
        %v2792 = vadd.f32 %v2659, %v2791
        %v2793 = vpop.f32.mrf.mxu0
        %2794 = vmatprep.mubr.bf16.mxu0 0
        %2795 = vmatmul.mubr.bf16.gmra.mxu0 %v2704
        %v2796 = vpop.f32.mrf.mxu0
        %v2797 = vadd.f32 %v2664, %v2796
        %v2798 = vpop.f32.mrf.mxu0
        %v2799 = vpop.f32.mrf.mxu0
        %v2800 = vadd.f32 %v2667, %v2799
        %v2801 = vpop.f32.mrf.mxu0
        %2802 = vdwg.mxu0
        %v2803 = vld [vmem:[#allocation3 + $0x2] sm:$0xff]
        %v2804 = vld [vmem:[#allocation3 + $0xa] sm:$0xff]
        %v2805 = vld [vmem:[#allocation3 + $0x1a] sm:$0xff]
        %v2806 = vld [vmem:[#allocation3 + $0x22] sm:$0xff]
        %v2807 = vld [vmem:[#allocation3 + $0x32] sm:$0xff]
        %v2808 = vld [vmem:[#allocation3 + $0x3a] sm:$0xff]
        %v2809 = vld [vmem:[#allocation3 + $0x4a] sm:$0xff]
        %v2810 = vld [vmem:[#allocation3 + $0x52] sm:$0xff]
        %v2811 = vld [vmem:[#allocation3 + $0x62] sm:$0xff]
        %v2812 = vld [vmem:[#allocation3 + $0x6a] sm:$0xff]
        %v2813 = vld [vmem:[#allocation3 + $0x7a] sm:$0xff]
        %v2814 = vld [vmem:[#allocation3 + $0x82] sm:$0xff]
        %v2815 = vld [vmem:[#allocation3 + $0x92] sm:$0xff]
        %v2816 = vld [vmem:[#allocation3 + $0x9a] sm:$0xff]
        %v2817 = vld [vmem:[#allocation3 + $0xaa] sm:$0xff]
        %v2818 = vld [vmem:[#allocation3 + $0xb2] sm:$0xff]
        %v2819 = vpack.c.bf16 %v2804, %v2803
        %v2820 = vpack.c.bf16 %v2806, %v2805
        %v2821 = vpack.c.bf16 %v2808, %v2807
        %v2822 = vpack.c.bf16 %v2810, %v2809
        %v2823 = vpack.c.bf16 %v2812, %v2811
        %v2824 = vpack.c.bf16 %v2814, %v2813
        %v2825 = vpack.c.bf16 %v2816, %v2815
        %v2826 = vpack.c.bf16 %v2818, %v2817
        %s2827 = scalar_lea.vmem %s3, 32
        %v2828 = vld [vmem:[%s2827] sm:$0xf]
        %v2829 = vld [vmem:[%s2827 + $0x4] sm:$0xf]
        %v2830 = vld [vmem:[%s2827 + $0x8] sm:$0xf]
        %v2831 = vld [vmem:[%s2827 + $0xc] sm:$0xf]
        %v2836 = vunpack.c.l.b16 %v2828
        %v2837 = vunpack.c.l.b16 %v2829
        %v2838 = vunpack.c.l.b16 %v2830
        %v2839 = vunpack.c.l.b16 %v2831
        %v2840 = vpack.c.b16 %v2837, %v2836
        %v2841 = vpack.c.b16 %v2839, %v2838
        %v2845 = vsel %vm714, %v2819, 0
        %v2848 = vsel %vm714, %v2820, 0
        %v2851 = vsel %vm714, %v2821, 0
        %v2854 = vsel %vm714, %v2822, 0
        %v2857 = vsel %vm714, %v2823, 0
        %v2860 = vsel %vm714, %v2824, 0
        %v2863 = vsel %vm714, %v2825, 0
        %v2866 = vsel %vm714, %v2826, 0
        %2868 = vmatprep.subr.bf16.mxu0 0
        %2869 = vmatpush1.bf16.msra.mxu0 0
        %2870 = vmatprep.subr.bf16.mxu0 0
        %2871 = vmatpush1.bf16.msra.mxu0 0
        %2872 = vmatprep.subr.bf16.mxu0 0
        %2873 = vmatpush1.bf16.msra.mxu0 0
        %2874 = vmatprep.subr.bf16.mxu0 0
        %2875 = vmatpush1.bf16.msra.mxu0 0
        %2876 = vmatprep.subr.bf16.mxu0 0
        %2877 = vmatpush1.bf16.msra.mxu0 0
        %2878 = vmatprep.subr.bf16.mxu0 0
        %2879 = vmatpush1.bf16.msra.mxu0 0
        %2880 = vmatprep.subr.bf16.mxu0 0
        %2881 = vmatpush1.bf16.msra.mxu0 %v2841
        %2882 = vmatprep.subr.bf16.mxu0 0
        %2883 = vmatpush1.bf16.msra.mxu0 %v2840
        %2884 = vmatprep.subr.bf16.mxu0 0
        %2885 = vmatpush2.bf16.msra.mxu0 0
        %2886 = vmatprep.subr.bf16.mxu0 0
        %2887 = vmatpush2.bf16.msra.mxu0 0
        %2888 = vmatprep.subr.bf16.mxu0 0
        %2889 = vmatpush2.bf16.msra.mxu0 0
        %2890 = vmatprep.subr.bf16.mxu0 0
        %2891 = vmatpush2.bf16.msra.mxu0 0
        %2892 = vmatprep.subr.bf16.mxu0 0
        %2893 = vmatpush2.bf16.msra.mxu0 0
        %2894 = vmatprep.subr.bf16.mxu0 0
        %2895 = vmatpush2.bf16.msra.mxu0 0
        %2896 = vmatprep.subr.bf16.mxu0 0
        %2897 = vmatpush2.bf16.msra.mxu0 0
        %2898 = vmatprep.subr.bf16.mxu0 0
        %2899 = vmatpush2.bf16.msra.mxu0 0
        %2900 = vmatprep.mubr.bf16.mxu0 0
        %2901 = vmatmul.mubr.bf16.gmra.mxu0 %v2845
        %v2902 = vpop.f32.mrf.mxu0
        %v2903 = vadd.f32 0.0, %v2902
        %v2904 = vpop.f32.mrf.mxu0
        %v2905 = vpop.f32.mrf.mxu0
        %v2906 = vadd.f32 0.0, %v2905
        %v2907 = vpop.f32.mrf.mxu0
        %2908 = vmatprep.mubr.bf16.mxu0 0
        %2909 = vmatmul.mubr.bf16.gmra.mxu0 %v2848
        %v2910 = vpop.f32.mrf.mxu0
        %v2911 = vadd.f32 0.0, %v2910
        %v2912 = vpop.f32.mrf.mxu0
        %v2913 = vpop.f32.mrf.mxu0
        %v2914 = vadd.f32 0.0, %v2913
        %v2915 = vpop.f32.mrf.mxu0
        %2916 = vmatprep.mubr.bf16.mxu0 0
        %2917 = vmatmul.mubr.bf16.gmra.mxu0 %v2851
        %v2918 = vpop.f32.mrf.mxu0
        %v2919 = vadd.f32 0.0, %v2918
        %v2920 = vpop.f32.mrf.mxu0
        %v2921 = vpop.f32.mrf.mxu0
        %v2922 = vadd.f32 0.0, %v2921
        %v2923 = vpop.f32.mrf.mxu0
        %2924 = vmatprep.mubr.bf16.mxu0 0
        %2925 = vmatmul.mubr.bf16.gmra.mxu0 %v2854
        %v2926 = vpop.f32.mrf.mxu0
        %v2927 = vadd.f32 0.0, %v2926
        %v2928 = vpop.f32.mrf.mxu0
        %v2929 = vpop.f32.mrf.mxu0
        %v2930 = vadd.f32 0.0, %v2929
        %v2931 = vpop.f32.mrf.mxu0
        %2932 = vmatprep.mubr.bf16.mxu0 0
        %2933 = vmatmul.mubr.bf16.gmra.mxu0 %v2857
        %v2934 = vpop.f32.mrf.mxu0
        %v2935 = vadd.f32 0.0, %v2934
        %v2936 = vpop.f32.mrf.mxu0
        %v2937 = vpop.f32.mrf.mxu0
        %v2938 = vadd.f32 0.0, %v2937
        %v2939 = vpop.f32.mrf.mxu0
        %2940 = vmatprep.mubr.bf16.mxu0 0
        %2941 = vmatmul.mubr.bf16.gmra.mxu0 %v2860
        %v2942 = vpop.f32.mrf.mxu0
        %v2943 = vadd.f32 0.0, %v2942
        %v2944 = vpop.f32.mrf.mxu0
        %v2945 = vpop.f32.mrf.mxu0
        %v2946 = vadd.f32 0.0, %v2945
        %v2947 = vpop.f32.mrf.mxu0
        %2948 = vmatprep.mubr.bf16.mxu0 0
        %2949 = vmatmul.mubr.bf16.gmra.mxu0 %v2863
        %v2950 = vpop.f32.mrf.mxu0
        %v2951 = vadd.f32 0.0, %v2950
        %v2952 = vpop.f32.mrf.mxu0
        %v2953 = vpop.f32.mrf.mxu0
        %v2954 = vadd.f32 0.0, %v2953
        %v2955 = vpop.f32.mrf.mxu0
        %2956 = vmatprep.mubr.bf16.mxu0 0
        %2957 = vmatmul.mubr.bf16.gmra.mxu0 %v2866
        %v2958 = vpop.f32.mrf.mxu0
        %v2959 = vadd.f32 0.0, %v2958
        %v2960 = vpop.f32.mrf.mxu0
        %v2961 = vpop.f32.mrf.mxu0
        %v2962 = vadd.f32 0.0, %v2961
        %v2963 = vpop.f32.mrf.mxu0
        %2964 = vdwg.mxu0
        %v2965 = vadd.f32 %v2741, %v2903
        %v2966 = vadd.f32 %v2744, %v2906
        %v2967 = vadd.f32 %v2749, %v2911
        %v2968 = vadd.f32 %v2752, %v2914
        %v2969 = vadd.f32 %v2757, %v2919
        %v2970 = vadd.f32 %v2760, %v2922
        %v2971 = vadd.f32 %v2765, %v2927
        %v2972 = vadd.f32 %v2768, %v2930
        %v2973 = vadd.f32 %v2773, %v2935
        %v2974 = vadd.f32 %v2776, %v2938
        %v2975 = vadd.f32 %v2781, %v2943
        %v2976 = vadd.f32 %v2784, %v2946
        %v2977 = vadd.f32 %v2789, %v2951
        %v2978 = vadd.f32 %v2792, %v2954
        %v2979 = vadd.f32 %v2797, %v2959
        %v2980 = vadd.f32 %v2800, %v2962
        %v2981 = vld [vmem:[%s2447] sm:$0xff]
        %v2982 = vld [vmem:[%s2447 + $0x8] sm:$0xff]
        %v2983 = vld [vmem:[%s2447 + $0x18] sm:$0xff]
        %v2984 = vld [vmem:[%s2447 + $0x20] sm:$0xff]
        %v2985 = vld [vmem:[%s2447 + $0x30] sm:$0xff]
        %v2986 = vld [vmem:[%s2447 + $0x38] sm:$0xff]
        %v2987 = vld [vmem:[%s2447 + $0x48] sm:$0xff]
        %v2988 = vld [vmem:[%s2447 + $0x50] sm:$0xff]
        %v2989 = vld [vmem:[%s2447 + $0x60] sm:$0xff]
        %v2990 = vld [vmem:[%s2447 + $0x68] sm:$0xff]
        %v2991 = vld [vmem:[%s2447 + $0x78] sm:$0xff]
        %v2992 = vld [vmem:[%s2447 + $0x80] sm:$0xff]
        %v2993 = vld [vmem:[%s2447 + $0x90] sm:$0xff]
        %v2994 = vld [vmem:[%s2447 + $0x98] sm:$0xff]
        %v2995 = vld [vmem:[%s2447 + $0xa8] sm:$0xff]
        %v2996 = vld [vmem:[%s2447 + $0xb0] sm:$0xff]
        %v2997 = vpack.c.bf16 %v2982, %v2981
        %v2998 = vpack.c.bf16 %v2984, %v2983
        %v2999 = vpack.c.bf16 %v2986, %v2985
        %v3000 = vpack.c.bf16 %v2988, %v2987
        %v3001 = vpack.c.bf16 %v2990, %v2989
        %v3002 = vpack.c.bf16 %v2992, %v2991
        %v3003 = vpack.c.bf16 %v2994, %v2993
        %v3004 = vpack.c.bf16 %v2996, %v2995
        %s3005 = scalar_lea.vmem %s3, 48
        %v3006 = vld [vmem:[%s3005] sm:$0xf]
        %v3007 = vld [vmem:[%s3005 + $0x4] sm:$0xf]
        %v3008 = vld [vmem:[%s3005 + $0x8] sm:$0xf]
        %v3009 = vld [vmem:[%s3005 + $0xc] sm:$0xf]
        %v3014 = vunpack.c.l.b16 %v3006
        %v3015 = vunpack.c.l.b16 %v3007
        %v3016 = vunpack.c.l.b16 %v3008
        %v3017 = vunpack.c.l.b16 %v3009
        %v3018 = vpack.c.b16 %v3015, %v3014
        %v3019 = vpack.c.b16 %v3017, %v3016
        %v3023 = vsel %vm714, %v2997, 0
        %v3026 = vsel %vm714, %v2998, 0
        %v3029 = vsel %vm714, %v2999, 0
        %v3032 = vsel %vm714, %v3000, 0
        %v3035 = vsel %vm714, %v3001, 0
        %v3038 = vsel %vm714, %v3002, 0
        %v3041 = vsel %vm714, %v3003, 0
        %v3044 = vsel %vm714, %v3004, 0
        %3046 = vmatprep.subr.bf16.mxu0 0
        %3047 = vmatpush1.bf16.msra.mxu0 0
        %3048 = vmatprep.subr.bf16.mxu0 0
        %3049 = vmatpush1.bf16.msra.mxu0 0
        %3050 = vmatprep.subr.bf16.mxu0 0
        %3051 = vmatpush1.bf16.msra.mxu0 0
        %3052 = vmatprep.subr.bf16.mxu0 0
        %3053 = vmatpush1.bf16.msra.mxu0 0
        %3054 = vmatprep.subr.bf16.mxu0 0
        %3055 = vmatpush1.bf16.msra.mxu0 0
        %3056 = vmatprep.subr.bf16.mxu0 0
        %3057 = vmatpush1.bf16.msra.mxu0 0
        %3058 = vmatprep.subr.bf16.mxu0 0
        %3059 = vmatpush1.bf16.msra.mxu0 %v3019
        %3060 = vmatprep.subr.bf16.mxu0 0
        %3061 = vmatpush1.bf16.msra.mxu0 %v3018
        %3062 = vmatprep.subr.bf16.mxu0 0
        %3063 = vmatpush2.bf16.msra.mxu0 0
        %3064 = vmatprep.subr.bf16.mxu0 0
        %3065 = vmatpush2.bf16.msra.mxu0 0
        %3066 = vmatprep.subr.bf16.mxu0 0
        %3067 = vmatpush2.bf16.msra.mxu0 0
        %3068 = vmatprep.subr.bf16.mxu0 0
        %3069 = vmatpush2.bf16.msra.mxu0 0
        %3070 = vmatprep.subr.bf16.mxu0 0
        %3071 = vmatpush2.bf16.msra.mxu0 0
        %3072 = vmatprep.subr.bf16.mxu0 0
        %3073 = vmatpush2.bf16.msra.mxu0 0
        %3074 = vmatprep.subr.bf16.mxu0 0
        %3075 = vmatpush2.bf16.msra.mxu0 0
        %3076 = vmatprep.subr.bf16.mxu0 0
        %3077 = vmatpush2.bf16.msra.mxu0 0
        %3078 = vmatprep.mubr.bf16.mxu0 0
        %3079 = vmatmul.mubr.bf16.gmra.mxu0 %v3023
        %v3080 = vpop.f32.mrf.mxu0
        %v3081 = vadd.f32 0.0, %v3080
        %v3082 = vpop.f32.mrf.mxu0
        %v3083 = vpop.f32.mrf.mxu0
        %v3084 = vadd.f32 0.0, %v3083
        %v3085 = vpop.f32.mrf.mxu0
        %3086 = vmatprep.mubr.bf16.mxu0 0
        %3087 = vmatmul.mubr.bf16.gmra.mxu0 %v3026
        %v3088 = vpop.f32.mrf.mxu0
        %v3089 = vadd.f32 0.0, %v3088
        %v3090 = vpop.f32.mrf.mxu0
        %v3091 = vpop.f32.mrf.mxu0
        %v3092 = vadd.f32 0.0, %v3091
        %v3093 = vpop.f32.mrf.mxu0
        %3094 = vmatprep.mubr.bf16.mxu0 0
        %3095 = vmatmul.mubr.bf16.gmra.mxu0 %v3029
        %v3096 = vpop.f32.mrf.mxu0
        %v3097 = vadd.f32 0.0, %v3096
        %v3098 = vpop.f32.mrf.mxu0
        %v3099 = vpop.f32.mrf.mxu0
        %v3100 = vadd.f32 0.0, %v3099
        %v3101 = vpop.f32.mrf.mxu0
        %3102 = vmatprep.mubr.bf16.mxu0 0
        %3103 = vmatmul.mubr.bf16.gmra.mxu0 %v3032
        %v3104 = vpop.f32.mrf.mxu0
        %v3105 = vadd.f32 0.0, %v3104
        %v3106 = vpop.f32.mrf.mxu0
        %v3107 = vpop.f32.mrf.mxu0
        %v3108 = vadd.f32 0.0, %v3107
        %v3109 = vpop.f32.mrf.mxu0
        %3110 = vmatprep.mubr.bf16.mxu0 0
        %3111 = vmatmul.mubr.bf16.gmra.mxu0 %v3035
        %v3112 = vpop.f32.mrf.mxu0
        %v3113 = vadd.f32 0.0, %v3112
        %v3114 = vpop.f32.mrf.mxu0
        %v3115 = vpop.f32.mrf.mxu0
        %v3116 = vadd.f32 0.0, %v3115
        %v3117 = vpop.f32.mrf.mxu0
        %3118 = vmatprep.mubr.bf16.mxu0 0
        %3119 = vmatmul.mubr.bf16.gmra.mxu0 %v3038
        %v3120 = vpop.f32.mrf.mxu0
        %v3121 = vadd.f32 0.0, %v3120
        %v3122 = vpop.f32.mrf.mxu0
        %v3123 = vpop.f32.mrf.mxu0
        %v3124 = vadd.f32 0.0, %v3123
        %v3125 = vpop.f32.mrf.mxu0
        %3126 = vmatprep.mubr.bf16.mxu0 0
        %3127 = vmatmul.mubr.bf16.gmra.mxu0 %v3041
        %v3128 = vpop.f32.mrf.mxu0
        %v3129 = vadd.f32 0.0, %v3128
        %v3130 = vpop.f32.mrf.mxu0
        %v3131 = vpop.f32.mrf.mxu0
        %v3132 = vadd.f32 0.0, %v3131
        %v3133 = vpop.f32.mrf.mxu0
        %3134 = vmatprep.mubr.bf16.mxu0 0
        %3135 = vmatmul.mubr.bf16.gmra.mxu0 %v3044
        %v3136 = vpop.f32.mrf.mxu0
        %v3137 = vadd.f32 0.0, %v3136
        %v3138 = vpop.f32.mrf.mxu0
        %v3139 = vpop.f32.mrf.mxu0
        %v3140 = vadd.f32 0.0, %v3139
        %v3141 = vpop.f32.mrf.mxu0
        %3142 = vdwg.mxu0
        %v3143 = vadd.f32 %v2965, %v3081
        %v3144 = vadd.f32 %v2966, %v3084
        %v3145 = vadd.f32 %v2967, %v3089
        %v3146 = vadd.f32 %v2968, %v3092
        %v3147 = vadd.f32 %v2969, %v3097
        %v3148 = vadd.f32 %v2970, %v3100
        %v3149 = vadd.f32 %v2971, %v3105
        %v3150 = vadd.f32 %v2972, %v3108
        %v3151 = vadd.f32 %v2973, %v3113
        %v3152 = vadd.f32 %v2974, %v3116
        %v3153 = vadd.f32 %v2975, %v3121
        %v3154 = vadd.f32 %v2976, %v3124
        %v3155 = vadd.f32 %v2977, %v3129
        %v3156 = vadd.f32 %v2978, %v3132
        %v3157 = vadd.f32 %v2979, %v3137
        %v3158 = vadd.f32 %v2980, %v3140
        %v3159 = vld [vmem:[%s2447 + $0x1] sm:$0xff]
        %v3160 = vld [vmem:[%s2447 + $0x9] sm:$0xff]
        %v3161 = vld [vmem:[%s2447 + $0x19] sm:$0xff]
        %v3162 = vld [vmem:[%s2447 + $0x21] sm:$0xff]
        %v3163 = vld [vmem:[%s2447 + $0x31] sm:$0xff]
        %v3164 = vld [vmem:[%s2447 + $0x39] sm:$0xff]
        %v3165 = vld [vmem:[%s2447 + $0x49] sm:$0xff]
        %v3166 = vld [vmem:[%s2447 + $0x51] sm:$0xff]
        %v3167 = vld [vmem:[%s2447 + $0x61] sm:$0xff]
        %v3168 = vld [vmem:[%s2447 + $0x69] sm:$0xff]
        %v3169 = vld [vmem:[%s2447 + $0x79] sm:$0xff]
        %v3170 = vld [vmem:[%s2447 + $0x81] sm:$0xff]
        %v3171 = vld [vmem:[%s2447 + $0x91] sm:$0xff]
        %v3172 = vld [vmem:[%s2447 + $0x99] sm:$0xff]
        %v3173 = vld [vmem:[%s2447 + $0xa9] sm:$0xff]
        %v3174 = vld [vmem:[%s2447 + $0xb1] sm:$0xff]
        %v3175 = vpack.c.bf16 %v3160, %v3159
        %v3176 = vpack.c.bf16 %v3162, %v3161
        %v3177 = vpack.c.bf16 %v3164, %v3163
        %v3178 = vpack.c.bf16 %v3166, %v3165
        %v3179 = vpack.c.bf16 %v3168, %v3167
        %v3180 = vpack.c.bf16 %v3170, %v3169
        %v3181 = vpack.c.bf16 %v3172, %v3171
        %v3182 = vpack.c.bf16 %v3174, %v3173
        %s3183 = scalar_lea.vmem %s3, 64
        %v3184 = vld [vmem:[%s3183] sm:$0xf]
        %v3185 = vld [vmem:[%s3183 + $0x4] sm:$0xf]
        %v3186 = vld [vmem:[%s3183 + $0x8] sm:$0xf]
        %v3187 = vld [vmem:[%s3183 + $0xc] sm:$0xf]
        %v3192 = vunpack.c.l.b16 %v3184
        %v3193 = vunpack.c.l.b16 %v3185
        %v3194 = vunpack.c.l.b16 %v3186
        %v3195 = vunpack.c.l.b16 %v3187
        %v3196 = vpack.c.b16 %v3193, %v3192
        %v3197 = vpack.c.b16 %v3195, %v3194
        %v3201 = vsel %vm714, %v3175, 0
        %v3204 = vsel %vm714, %v3176, 0
        %v3207 = vsel %vm714, %v3177, 0
        %v3210 = vsel %vm714, %v3178, 0
        %v3213 = vsel %vm714, %v3179, 0
        %v3216 = vsel %vm714, %v3180, 0
        %v3219 = vsel %vm714, %v3181, 0
        %v3222 = vsel %vm714, %v3182, 0
        %3224 = vmatprep.subr.bf16.mxu0 0
        %3225 = vmatpush1.bf16.msra.mxu0 0
        %3226 = vmatprep.subr.bf16.mxu0 0
        %3227 = vmatpush1.bf16.msra.mxu0 0
        %3228 = vmatprep.subr.bf16.mxu0 0
        %3229 = vmatpush1.bf16.msra.mxu0 0
        %3230 = vmatprep.subr.bf16.mxu0 0
        %3231 = vmatpush1.bf16.msra.mxu0 0
        %3232 = vmatprep.subr.bf16.mxu0 0
        %3233 = vmatpush1.bf16.msra.mxu0 0
        %3234 = vmatprep.subr.bf16.mxu0 0
        %3235 = vmatpush1.bf16.msra.mxu0 0
        %3236 = vmatprep.subr.bf16.mxu0 0
        %3237 = vmatpush1.bf16.msra.mxu0 %v3197
        %3238 = vmatprep.subr.bf16.mxu0 0
        %3239 = vmatpush1.bf16.msra.mxu0 %v3196
        %3240 = vmatprep.subr.bf16.mxu0 0
        %3241 = vmatpush2.bf16.msra.mxu0 0
        %3242 = vmatprep.subr.bf16.mxu0 0
        %3243 = vmatpush2.bf16.msra.mxu0 0
        %3244 = vmatprep.subr.bf16.mxu0 0
        %3245 = vmatpush2.bf16.msra.mxu0 0
        %3246 = vmatprep.subr.bf16.mxu0 0
        %3247 = vmatpush2.bf16.msra.mxu0 0
        %3248 = vmatprep.subr.bf16.mxu0 0
        %3249 = vmatpush2.bf16.msra.mxu0 0
        %3250 = vmatprep.subr.bf16.mxu0 0
        %3251 = vmatpush2.bf16.msra.mxu0 0
        %3252 = vmatprep.subr.bf16.mxu0 0
        %3253 = vmatpush2.bf16.msra.mxu0 0
        %3254 = vmatprep.subr.bf16.mxu0 0
        %3255 = vmatpush2.bf16.msra.mxu0 0
        %3256 = vmatprep.mubr.bf16.mxu0 0
        %3257 = vmatmul.mubr.bf16.gmra.mxu0 %v3201
        %v3258 = vpop.f32.mrf.mxu0
        %v3259 = vadd.f32 0.0, %v3258
        %v3260 = vpop.f32.mrf.mxu0
        %v3261 = vpop.f32.mrf.mxu0
        %v3262 = vadd.f32 0.0, %v3261
        %v3263 = vpop.f32.mrf.mxu0
        %3264 = vmatprep.mubr.bf16.mxu0 0
        %3265 = vmatmul.mubr.bf16.gmra.mxu0 %v3204
        %v3266 = vpop.f32.mrf.mxu0
        %v3267 = vadd.f32 0.0, %v3266
        %v3268 = vpop.f32.mrf.mxu0
        %v3269 = vpop.f32.mrf.mxu0
        %v3270 = vadd.f32 0.0, %v3269
        %v3271 = vpop.f32.mrf.mxu0
        %3272 = vmatprep.mubr.bf16.mxu0 0
        %3273 = vmatmul.mubr.bf16.gmra.mxu0 %v3207
        %v3274 = vpop.f32.mrf.mxu0
        %v3275 = vadd.f32 0.0, %v3274
        %v3276 = vpop.f32.mrf.mxu0
        %v3277 = vpop.f32.mrf.mxu0
        %v3278 = vadd.f32 0.0, %v3277
        %v3279 = vpop.f32.mrf.mxu0
        %3280 = vmatprep.mubr.bf16.mxu0 0
        %3281 = vmatmul.mubr.bf16.gmra.mxu0 %v3210
        %v3282 = vpop.f32.mrf.mxu0
        %v3283 = vadd.f32 0.0, %v3282
        %v3284 = vpop.f32.mrf.mxu0
        %v3285 = vpop.f32.mrf.mxu0
        %v3286 = vadd.f32 0.0, %v3285
        %v3287 = vpop.f32.mrf.mxu0
        %3288 = vmatprep.mubr.bf16.mxu0 0
        %3289 = vmatmul.mubr.bf16.gmra.mxu0 %v3213
        %v3290 = vpop.f32.mrf.mxu0
        %v3291 = vadd.f32 0.0, %v3290
        %v3292 = vpop.f32.mrf.mxu0
        %v3293 = vpop.f32.mrf.mxu0
        %v3294 = vadd.f32 0.0, %v3293
        %v3295 = vpop.f32.mrf.mxu0
        %3296 = vmatprep.mubr.bf16.mxu0 0
        %3297 = vmatmul.mubr.bf16.gmra.mxu0 %v3216
        %v3298 = vpop.f32.mrf.mxu0
        %v3299 = vadd.f32 0.0, %v3298
        %v3300 = vpop.f32.mrf.mxu0
        %v3301 = vpop.f32.mrf.mxu0
        %v3302 = vadd.f32 0.0, %v3301
        %v3303 = vpop.f32.mrf.mxu0
        %3304 = vmatprep.mubr.bf16.mxu0 0
        %3305 = vmatmul.mubr.bf16.gmra.mxu0 %v3219
        %v3306 = vpop.f32.mrf.mxu0
        %v3307 = vadd.f32 0.0, %v3306
        %v3308 = vpop.f32.mrf.mxu0
        %v3309 = vpop.f32.mrf.mxu0
        %v3310 = vadd.f32 0.0, %v3309
        %v3311 = vpop.f32.mrf.mxu0
        %3312 = vmatprep.mubr.bf16.mxu0 0
        %3313 = vmatmul.mubr.bf16.gmra.mxu0 %v3222
        %v3314 = vpop.f32.mrf.mxu0
        %v3315 = vadd.f32 0.0, %v3314
        %v3316 = vpop.f32.mrf.mxu0
        %v3317 = vpop.f32.mrf.mxu0
        %v3318 = vadd.f32 0.0, %v3317
        %v3319 = vpop.f32.mrf.mxu0
        %3320 = vdwg.mxu0
        %v3321 = vadd.f32 %v3143, %v3259
        %v3322 = vadd.f32 %v3144, %v3262
        %v3323 = vadd.f32 %v3145, %v3267
        %v3324 = vadd.f32 %v3146, %v3270
        %v3325 = vadd.f32 %v3147, %v3275
        %v3326 = vadd.f32 %v3148, %v3278
        %v3327 = vadd.f32 %v3149, %v3283
        %v3328 = vadd.f32 %v3150, %v3286
        %v3329 = vadd.f32 %v3151, %v3291
        %v3330 = vadd.f32 %v3152, %v3294
        %v3331 = vadd.f32 %v3153, %v3299
        %v3332 = vadd.f32 %v3154, %v3302
        %v3333 = vadd.f32 %v3155, %v3307
        %v3334 = vadd.f32 %v3156, %v3310
        %v3335 = vadd.f32 %v3157, %v3315
        %v3336 = vadd.f32 %v3158, %v3318
        %v3337 = vld [vmem:[%s2447 + $0x2] sm:$0xff]
        %v3338 = vld [vmem:[%s2447 + $0xa] sm:$0xff]
        %v3339 = vld [vmem:[%s2447 + $0x1a] sm:$0xff]
        %v3340 = vld [vmem:[%s2447 + $0x22] sm:$0xff]
        %v3341 = vld [vmem:[%s2447 + $0x32] sm:$0xff]
        %v3342 = vld [vmem:[%s2447 + $0x3a] sm:$0xff]
        %v3343 = vld [vmem:[%s2447 + $0x4a] sm:$0xff]
        %v3344 = vld [vmem:[%s2447 + $0x52] sm:$0xff]
        %v3345 = vld [vmem:[%s2447 + $0x62] sm:$0xff]
        %v3346 = vld [vmem:[%s2447 + $0x6a] sm:$0xff]
        %v3347 = vld [vmem:[%s2447 + $0x7a] sm:$0xff]
        %v3348 = vld [vmem:[%s2447 + $0x82] sm:$0xff]
        %v3349 = vld [vmem:[%s2447 + $0x92] sm:$0xff]
        %v3350 = vld [vmem:[%s2447 + $0x9a] sm:$0xff]
        %v3351 = vld [vmem:[%s2447 + $0xaa] sm:$0xff]
        %v3352 = vld [vmem:[%s2447 + $0xb2] sm:$0xff]
        %v3353 = vpack.c.bf16 %v3338, %v3337
        %v3354 = vpack.c.bf16 %v3340, %v3339
        %v3355 = vpack.c.bf16 %v3342, %v3341
        %v3356 = vpack.c.bf16 %v3344, %v3343
        %v3357 = vpack.c.bf16 %v3346, %v3345
        %v3358 = vpack.c.bf16 %v3348, %v3347
        %v3359 = vpack.c.bf16 %v3350, %v3349
        %v3360 = vpack.c.bf16 %v3352, %v3351
        %s3361 = scalar_lea.vmem %s3, 80
        %v3362 = vld [vmem:[%s3361] sm:$0xf]
        %v3363 = vld [vmem:[%s3361 + $0x4] sm:$0xf]
        %v3364 = vld [vmem:[%s3361 + $0x8] sm:$0xf]
        %v3365 = vld [vmem:[%s3361 + $0xc] sm:$0xf]
        %v3370 = vunpack.c.l.b16 %v3362
        %v3371 = vunpack.c.l.b16 %v3363
        %v3372 = vunpack.c.l.b16 %v3364
        %v3373 = vunpack.c.l.b16 %v3365
        %v3374 = vpack.c.b16 %v3371, %v3370
        %v3375 = vpack.c.b16 %v3373, %v3372
        %v3379 = vsel %vm714, %v3353, 0
        %v3382 = vsel %vm714, %v3354, 0
        %v3385 = vsel %vm714, %v3355, 0
        %v3388 = vsel %vm714, %v3356, 0
        %v3391 = vsel %vm714, %v3357, 0
        %v3394 = vsel %vm714, %v3358, 0
        %v3397 = vsel %vm714, %v3359, 0
        %v3400 = vsel %vm714, %v3360, 0
        %3402 = vmatprep.subr.bf16.mxu0 0
        %3403 = vmatpush1.bf16.msra.mxu0 0
        %3404 = vmatprep.subr.bf16.mxu0 0
        %3405 = vmatpush1.bf16.msra.mxu0 0
        %3406 = vmatprep.subr.bf16.mxu0 0
        %3407 = vmatpush1.bf16.msra.mxu0 0
        %3408 = vmatprep.subr.bf16.mxu0 0
        %3409 = vmatpush1.bf16.msra.mxu0 0
        %3410 = vmatprep.subr.bf16.mxu0 0
        %3411 = vmatpush1.bf16.msra.mxu0 0
        %3412 = vmatprep.subr.bf16.mxu0 0
        %3413 = vmatpush1.bf16.msra.mxu0 0
        %3414 = vmatprep.subr.bf16.mxu0 0
        %3415 = vmatpush1.bf16.msra.mxu0 %v3375
        %3416 = vmatprep.subr.bf16.mxu0 0
        %3417 = vmatpush1.bf16.msra.mxu0 %v3374
        %3418 = vmatprep.subr.bf16.mxu0 0
        %3419 = vmatpush2.bf16.msra.mxu0 0
        %3420 = vmatprep.subr.bf16.mxu0 0
        %3421 = vmatpush2.bf16.msra.mxu0 0
        %3422 = vmatprep.subr.bf16.mxu0 0
        %3423 = vmatpush2.bf16.msra.mxu0 0
        %3424 = vmatprep.subr.bf16.mxu0 0
        %3425 = vmatpush2.bf16.msra.mxu0 0
        %3426 = vmatprep.subr.bf16.mxu0 0
        %3427 = vmatpush2.bf16.msra.mxu0 0
        %3428 = vmatprep.subr.bf16.mxu0 0
        %3429 = vmatpush2.bf16.msra.mxu0 0
        %3430 = vmatprep.subr.bf16.mxu0 0
        %3431 = vmatpush2.bf16.msra.mxu0 0
        %3432 = vmatprep.subr.bf16.mxu0 0
        %3433 = vmatpush2.bf16.msra.mxu0 0
        %3434 = vmatprep.mubr.bf16.mxu0 0
        %3435 = vmatmul.mubr.bf16.gmra.mxu0 %v3379
        %v3436 = vpop.f32.mrf.mxu0
        %v3437 = vadd.f32 0.0, %v3436
        %v3438 = vpop.f32.mrf.mxu0
        %v3439 = vpop.f32.mrf.mxu0
        %v3440 = vadd.f32 0.0, %v3439
        %v3441 = vpop.f32.mrf.mxu0
        %3442 = vmatprep.mubr.bf16.mxu0 0
        %3443 = vmatmul.mubr.bf16.gmra.mxu0 %v3382
        %v3444 = vpop.f32.mrf.mxu0
        %v3445 = vadd.f32 0.0, %v3444
        %v3446 = vpop.f32.mrf.mxu0
        %v3447 = vpop.f32.mrf.mxu0
        %v3448 = vadd.f32 0.0, %v3447
        %v3449 = vpop.f32.mrf.mxu0
        %3450 = vmatprep.mubr.bf16.mxu0 0
        %3451 = vmatmul.mubr.bf16.gmra.mxu0 %v3385
        %v3452 = vpop.f32.mrf.mxu0
        %v3453 = vadd.f32 0.0, %v3452
        %v3454 = vpop.f32.mrf.mxu0
        %v3455 = vpop.f32.mrf.mxu0
        %v3456 = vadd.f32 0.0, %v3455
        %v3457 = vpop.f32.mrf.mxu0
        %3458 = vmatprep.mubr.bf16.mxu0 0
        %3459 = vmatmul.mubr.bf16.gmra.mxu0 %v3388
        %v3460 = vpop.f32.mrf.mxu0
        %v3461 = vadd.f32 0.0, %v3460
        %v3462 = vpop.f32.mrf.mxu0
        %v3463 = vpop.f32.mrf.mxu0
        %v3464 = vadd.f32 0.0, %v3463
        %v3465 = vpop.f32.mrf.mxu0
        %3466 = vmatprep.mubr.bf16.mxu0 0
        %3467 = vmatmul.mubr.bf16.gmra.mxu0 %v3391
        %v3468 = vpop.f32.mrf.mxu0
        %v3469 = vadd.f32 0.0, %v3468
        %v3470 = vpop.f32.mrf.mxu0
        %v3471 = vpop.f32.mrf.mxu0
        %v3472 = vadd.f32 0.0, %v3471
        %v3473 = vpop.f32.mrf.mxu0
        %3474 = vmatprep.mubr.bf16.mxu0 0
        %3475 = vmatmul.mubr.bf16.gmra.mxu0 %v3394
        %v3476 = vpop.f32.mrf.mxu0
        %v3477 = vadd.f32 0.0, %v3476
        %v3478 = vpop.f32.mrf.mxu0
        %v3479 = vpop.f32.mrf.mxu0
        %v3480 = vadd.f32 0.0, %v3479
        %v3481 = vpop.f32.mrf.mxu0
        %3482 = vmatprep.mubr.bf16.mxu0 0
        %3483 = vmatmul.mubr.bf16.gmra.mxu0 %v3397
        %v3484 = vpop.f32.mrf.mxu0
        %v3485 = vadd.f32 0.0, %v3484
        %v3486 = vpop.f32.mrf.mxu0
        %v3487 = vpop.f32.mrf.mxu0
        %v3488 = vadd.f32 0.0, %v3487
        %v3489 = vpop.f32.mrf.mxu0
        %3490 = vmatprep.mubr.bf16.mxu0 0
        %3491 = vmatmul.mubr.bf16.gmra.mxu0 %v3400
        %v3492 = vpop.f32.mrf.mxu0
        %v3493 = vadd.f32 0.0, %v3492
        %v3494 = vpop.f32.mrf.mxu0
        %v3495 = vpop.f32.mrf.mxu0
        %v3496 = vadd.f32 0.0, %v3495
        %v3497 = vpop.f32.mrf.mxu0
        %3498 = vdwg.mxu0
        %v3499 = vadd.f32 %v3321, %v3437
        %v3500 = vadd.f32 %v3322, %v3440
        %v3501 = vadd.f32 %v3323, %v3445
        %v3502 = vadd.f32 %v3324, %v3448
        %v3503 = vadd.f32 %v3325, %v3453
        %v3504 = vadd.f32 %v3326, %v3456
        %v3505 = vadd.f32 %v3327, %v3461
        %v3506 = vadd.f32 %v3328, %v3464
        %v3507 = vadd.f32 %v3329, %v3469
        %v3508 = vadd.f32 %v3330, %v3472
        %v3509 = vadd.f32 %v3331, %v3477
        %v3510 = vadd.f32 %v3332, %v3480
        %v3511 = vadd.f32 %v3333, %v3485
        %v3512 = vadd.f32 %v3334, %v3488
        %v3513 = vadd.f32 %v3335, %v3493
        %v3514 = vadd.f32 %v3336, %v3496
        %s3515 = scalar_lea.vmem [#allocation3], 48
        %v3516 = vld [vmem:[%s3515] sm:$0xff]
        %v3517 = vld [vmem:[%s3515 + $0x8] sm:$0xff]
        %v3518 = vld [vmem:[%s3515 + $0x18] sm:$0xff]
        %v3519 = vld [vmem:[%s3515 + $0x20] sm:$0xff]
        %v3520 = vld [vmem:[%s3515 + $0x30] sm:$0xff]
        %v3521 = vld [vmem:[%s3515 + $0x38] sm:$0xff]
        %v3522 = vld [vmem:[%s3515 + $0x48] sm:$0xff]
        %v3523 = vld [vmem:[%s3515 + $0x50] sm:$0xff]
        %v3524 = vld [vmem:[%s3515 + $0x60] sm:$0xff]
        %v3525 = vld [vmem:[%s3515 + $0x68] sm:$0xff]
        %v3526 = vld [vmem:[%s3515 + $0x78] sm:$0xff]
        %v3527 = vld [vmem:[%s3515 + $0x80] sm:$0xff]
        %v3528 = vld [vmem:[%s3515 + $0x90] sm:$0xff]
        %v3529 = vld [vmem:[%s3515 + $0x98] sm:$0xff]
        %v3530 = vld [vmem:[%s3515 + $0xa8] sm:$0xff]
        %v3531 = vld [vmem:[%s3515 + $0xb0] sm:$0xff]
        %v3532 = vpack.c.bf16 %v3517, %v3516
        %v3533 = vpack.c.bf16 %v3519, %v3518
        %v3534 = vpack.c.bf16 %v3521, %v3520
        %v3535 = vpack.c.bf16 %v3523, %v3522
        %v3536 = vpack.c.bf16 %v3525, %v3524
        %v3537 = vpack.c.bf16 %v3527, %v3526
        %v3538 = vpack.c.bf16 %v3529, %v3528
        %v3539 = vpack.c.bf16 %v3531, %v3530
        %s3540 = scalar_lea.vmem %s3, 96
        %v3541 = vld [vmem:[%s3540] sm:$0xf]
        %v3542 = vld [vmem:[%s3540 + $0x4] sm:$0xf]
        %v3543 = vld [vmem:[%s3540 + $0x8] sm:$0xf]
        %v3544 = vld [vmem:[%s3540 + $0xc] sm:$0xf]
        %v3549 = vunpack.c.l.b16 %v3541
        %v3550 = vunpack.c.l.b16 %v3542
        %v3551 = vunpack.c.l.b16 %v3543
        %v3552 = vunpack.c.l.b16 %v3544
        %v3553 = vpack.c.b16 %v3550, %v3549
        %v3554 = vpack.c.b16 %v3552, %v3551
        %v3558 = vsel %vm714, %v3532, 0
        %v3561 = vsel %vm714, %v3533, 0
        %v3564 = vsel %vm714, %v3534, 0
        %v3567 = vsel %vm714, %v3535, 0
        %v3570 = vsel %vm714, %v3536, 0
        %v3573 = vsel %vm714, %v3537, 0
        %v3576 = vsel %vm714, %v3538, 0
        %v3579 = vsel %vm714, %v3539, 0
        %3581 = vmatprep.subr.bf16.mxu0 0
        %3582 = vmatpush1.bf16.msra.mxu0 0
        %3583 = vmatprep.subr.bf16.mxu0 0
        %3584 = vmatpush1.bf16.msra.mxu0 0
        %3585 = vmatprep.subr.bf16.mxu0 0
        %3586 = vmatpush1.bf16.msra.mxu0 0
        %3587 = vmatprep.subr.bf16.mxu0 0
        %3588 = vmatpush1.bf16.msra.mxu0 0
        %3589 = vmatprep.subr.bf16.mxu0 0
        %3590 = vmatpush1.bf16.msra.mxu0 0
        %3591 = vmatprep.subr.bf16.mxu0 0
        %3592 = vmatpush1.bf16.msra.mxu0 0
        %3593 = vmatprep.subr.bf16.mxu0 0
        %3594 = vmatpush1.bf16.msra.mxu0 %v3554
        %3595 = vmatprep.subr.bf16.mxu0 0
        %3596 = vmatpush1.bf16.msra.mxu0 %v3553
        %3597 = vmatprep.subr.bf16.mxu0 0
        %3598 = vmatpush2.bf16.msra.mxu0 0
        %3599 = vmatprep.subr.bf16.mxu0 0
        %3600 = vmatpush2.bf16.msra.mxu0 0
        %3601 = vmatprep.subr.bf16.mxu0 0
        %3602 = vmatpush2.bf16.msra.mxu0 0
        %3603 = vmatprep.subr.bf16.mxu0 0
        %3604 = vmatpush2.bf16.msra.mxu0 0
        %3605 = vmatprep.subr.bf16.mxu0 0
        %3606 = vmatpush2.bf16.msra.mxu0 0
        %3607 = vmatprep.subr.bf16.mxu0 0
        %3608 = vmatpush2.bf16.msra.mxu0 0
        %3609 = vmatprep.subr.bf16.mxu0 0
        %3610 = vmatpush2.bf16.msra.mxu0 0
        %3611 = vmatprep.subr.bf16.mxu0 0
        %3612 = vmatpush2.bf16.msra.mxu0 0
        %3613 = vmatprep.mubr.bf16.mxu0 0
        %3614 = vmatmul.mubr.bf16.gmra.mxu0 %v3558
        %v3615 = vpop.f32.mrf.mxu0
        %v3616 = vadd.f32 0.0, %v3615
        %v3617 = vpop.f32.mrf.mxu0
        %v3618 = vpop.f32.mrf.mxu0
        %v3619 = vadd.f32 0.0, %v3618
        %v3620 = vpop.f32.mrf.mxu0
        %3621 = vmatprep.mubr.bf16.mxu0 0
        %3622 = vmatmul.mubr.bf16.gmra.mxu0 %v3561
        %v3623 = vpop.f32.mrf.mxu0
        %v3624 = vadd.f32 0.0, %v3623
        %v3625 = vpop.f32.mrf.mxu0
        %v3626 = vpop.f32.mrf.mxu0
        %v3627 = vadd.f32 0.0, %v3626
        %v3628 = vpop.f32.mrf.mxu0
        %3629 = vmatprep.mubr.bf16.mxu0 0
        %3630 = vmatmul.mubr.bf16.gmra.mxu0 %v3564
        %v3631 = vpop.f32.mrf.mxu0
        %v3632 = vadd.f32 0.0, %v3631
        %v3633 = vpop.f32.mrf.mxu0
        %v3634 = vpop.f32.mrf.mxu0
        %v3635 = vadd.f32 0.0, %v3634
        %v3636 = vpop.f32.mrf.mxu0
        %3637 = vmatprep.mubr.bf16.mxu0 0
        %3638 = vmatmul.mubr.bf16.gmra.mxu0 %v3567
        %v3639 = vpop.f32.mrf.mxu0
        %v3640 = vadd.f32 0.0, %v3639
        %v3641 = vpop.f32.mrf.mxu0
        %v3642 = vpop.f32.mrf.mxu0
        %v3643 = vadd.f32 0.0, %v3642
        %v3644 = vpop.f32.mrf.mxu0
        %3645 = vmatprep.mubr.bf16.mxu0 0
        %3646 = vmatmul.mubr.bf16.gmra.mxu0 %v3570
        %v3647 = vpop.f32.mrf.mxu0
        %v3648 = vadd.f32 0.0, %v3647
        %v3649 = vpop.f32.mrf.mxu0
        %v3650 = vpop.f32.mrf.mxu0
        %v3651 = vadd.f32 0.0, %v3650
        %v3652 = vpop.f32.mrf.mxu0
        %3653 = vmatprep.mubr.bf16.mxu0 0
        %3654 = vmatmul.mubr.bf16.gmra.mxu0 %v3573
        %v3655 = vpop.f32.mrf.mxu0
        %v3656 = vadd.f32 0.0, %v3655
        %v3657 = vpop.f32.mrf.mxu0
        %v3658 = vpop.f32.mrf.mxu0
        %v3659 = vadd.f32 0.0, %v3658
        %v3660 = vpop.f32.mrf.mxu0
        %3661 = vmatprep.mubr.bf16.mxu0 0
        %3662 = vmatmul.mubr.bf16.gmra.mxu0 %v3576
        %v3663 = vpop.f32.mrf.mxu0
        %v3664 = vadd.f32 0.0, %v3663
        %v3665 = vpop.f32.mrf.mxu0
        %v3666 = vpop.f32.mrf.mxu0
        %v3667 = vadd.f32 0.0, %v3666
        %v3668 = vpop.f32.mrf.mxu0
        %3669 = vmatprep.mubr.bf16.mxu0 0
        %3670 = vmatmul.mubr.bf16.gmra.mxu0 %v3579
        %v3671 = vpop.f32.mrf.mxu0
        %v3672 = vadd.f32 0.0, %v3671
        %v3673 = vpop.f32.mrf.mxu0
        %v3674 = vpop.f32.mrf.mxu0
        %v3675 = vadd.f32 0.0, %v3674
        %v3676 = vpop.f32.mrf.mxu0
        %3677 = vdwg.mxu0
        %v3678 = vadd.f32 %v3499, %v3616
        %v3679 = vadd.f32 %v3500, %v3619
        %v3680 = vadd.f32 %v3501, %v3624
        %v3681 = vadd.f32 %v3502, %v3627
        %v3682 = vadd.f32 %v3503, %v3632
        %v3683 = vadd.f32 %v3504, %v3635
        %v3684 = vadd.f32 %v3505, %v3640
        %v3685 = vadd.f32 %v3506, %v3643
        %v3686 = vadd.f32 %v3507, %v3648
        %v3687 = vadd.f32 %v3508, %v3651
        %v3688 = vadd.f32 %v3509, %v3656
        %v3689 = vadd.f32 %v3510, %v3659
        %v3690 = vadd.f32 %v3511, %v3664
        %v3691 = vadd.f32 %v3512, %v3667
        %v3692 = vadd.f32 %v3513, %v3672
        %v3693 = vadd.f32 %v3514, %v3675
        %v3694 = vld [vmem:[%s3515 + $0x1] sm:$0xff]
        %v3695 = vld [vmem:[%s3515 + $0x9] sm:$0xff]
        %v3696 = vld [vmem:[%s3515 + $0x19] sm:$0xff]
        %v3697 = vld [vmem:[%s3515 + $0x21] sm:$0xff]
        %v3698 = vld [vmem:[%s3515 + $0x31] sm:$0xff]
        %v3699 = vld [vmem:[%s3515 + $0x39] sm:$0xff]
        %v3700 = vld [vmem:[%s3515 + $0x49] sm:$0xff]
        %v3701 = vld [vmem:[%s3515 + $0x51] sm:$0xff]
        %v3702 = vld [vmem:[%s3515 + $0x61] sm:$0xff]
        %v3703 = vld [vmem:[%s3515 + $0x69] sm:$0xff]
        %v3704 = vld [vmem:[%s3515 + $0x79] sm:$0xff]
        %v3705 = vld [vmem:[%s3515 + $0x81] sm:$0xff]
        %v3706 = vld [vmem:[%s3515 + $0x91] sm:$0xff]
        %v3707 = vld [vmem:[%s3515 + $0x99] sm:$0xff]
        %v3708 = vld [vmem:[%s3515 + $0xa9] sm:$0xff]
        %v3709 = vld [vmem:[%s3515 + $0xb1] sm:$0xff]
        %v3710 = vpack.c.bf16 %v3695, %v3694
        %v3711 = vpack.c.bf16 %v3697, %v3696
        %v3712 = vpack.c.bf16 %v3699, %v3698
        %v3713 = vpack.c.bf16 %v3701, %v3700
        %v3714 = vpack.c.bf16 %v3703, %v3702
        %v3715 = vpack.c.bf16 %v3705, %v3704
        %v3716 = vpack.c.bf16 %v3707, %v3706
        %v3717 = vpack.c.bf16 %v3709, %v3708
        %s3718 = scalar_lea.vmem %s3, 112
        %v3719 = vld [vmem:[%s3718] sm:$0xf]
        %v3720 = vld [vmem:[%s3718 + $0x4] sm:$0xf]
        %v3721 = vld [vmem:[%s3718 + $0x8] sm:$0xf]
        %v3722 = vld [vmem:[%s3718 + $0xc] sm:$0xf]
        %v3727 = vunpack.c.l.b16 %v3719
        %v3728 = vunpack.c.l.b16 %v3720
        %v3729 = vunpack.c.l.b16 %v3721
        %v3730 = vunpack.c.l.b16 %v3722
        %v3731 = vpack.c.b16 %v3728, %v3727
        %v3732 = vpack.c.b16 %v3730, %v3729
        %v3736 = vsel %vm714, %v3710, 0
        %v3739 = vsel %vm714, %v3711, 0
        %v3742 = vsel %vm714, %v3712, 0
        %v3745 = vsel %vm714, %v3713, 0
        %v3748 = vsel %vm714, %v3714, 0
        %v3751 = vsel %vm714, %v3715, 0
        %v3754 = vsel %vm714, %v3716, 0
        %v3757 = vsel %vm714, %v3717, 0
        %3759 = vmatprep.subr.bf16.mxu0 0
        %3760 = vmatpush1.bf16.msra.mxu0 0
        %3761 = vmatprep.subr.bf16.mxu0 0
        %3762 = vmatpush1.bf16.msra.mxu0 0
        %3763 = vmatprep.subr.bf16.mxu0 0
        %3764 = vmatpush1.bf16.msra.mxu0 0
        %3765 = vmatprep.subr.bf16.mxu0 0
        %3766 = vmatpush1.bf16.msra.mxu0 0
        %3767 = vmatprep.subr.bf16.mxu0 0
        %3768 = vmatpush1.bf16.msra.mxu0 0
        %3769 = vmatprep.subr.bf16.mxu0 0
        %3770 = vmatpush1.bf16.msra.mxu0 0
        %3771 = vmatprep.subr.bf16.mxu0 0
        %3772 = vmatpush1.bf16.msra.mxu0 %v3732
        %3773 = vmatprep.subr.bf16.mxu0 0
        %3774 = vmatpush1.bf16.msra.mxu0 %v3731
        %3775 = vmatprep.subr.bf16.mxu0 0
        %3776 = vmatpush2.bf16.msra.mxu0 0
        %3777 = vmatprep.subr.bf16.mxu0 0
        %3778 = vmatpush2.bf16.msra.mxu0 0
        %3779 = vmatprep.subr.bf16.mxu0 0
        %3780 = vmatpush2.bf16.msra.mxu0 0
        %3781 = vmatprep.subr.bf16.mxu0 0
        %3782 = vmatpush2.bf16.msra.mxu0 0
        %3783 = vmatprep.subr.bf16.mxu0 0
        %3784 = vmatpush2.bf16.msra.mxu0 0
        %3785 = vmatprep.subr.bf16.mxu0 0
        %3786 = vmatpush2.bf16.msra.mxu0 0
        %3787 = vmatprep.subr.bf16.mxu0 0
        %3788 = vmatpush2.bf16.msra.mxu0 0
        %3789 = vmatprep.subr.bf16.mxu0 0
        %3790 = vmatpush2.bf16.msra.mxu0 0
        %3791 = vmatprep.mubr.bf16.mxu0 0
        %3792 = vmatmul.mubr.bf16.gmra.mxu0 %v3736
        %v3793 = vpop.f32.mrf.mxu0
        %v3794 = vadd.f32 0.0, %v3793
        %v3795 = vpop.f32.mrf.mxu0
        %v3796 = vpop.f32.mrf.mxu0
        %v3797 = vadd.f32 0.0, %v3796
        %v3798 = vpop.f32.mrf.mxu0
        %3799 = vmatprep.mubr.bf16.mxu0 0
        %3800 = vmatmul.mubr.bf16.gmra.mxu0 %v3739
        %v3801 = vpop.f32.mrf.mxu0
        %v3802 = vadd.f32 0.0, %v3801
        %v3803 = vpop.f32.mrf.mxu0
        %v3804 = vpop.f32.mrf.mxu0
        %v3805 = vadd.f32 0.0, %v3804
        %v3806 = vpop.f32.mrf.mxu0
        %3807 = vmatprep.mubr.bf16.mxu0 0
        %3808 = vmatmul.mubr.bf16.gmra.mxu0 %v3742
        %v3809 = vpop.f32.mrf.mxu0
        %v3810 = vadd.f32 0.0, %v3809
        %v3811 = vpop.f32.mrf.mxu0
        %v3812 = vpop.f32.mrf.mxu0
        %v3813 = vadd.f32 0.0, %v3812
        %v3814 = vpop.f32.mrf.mxu0
        %3815 = vmatprep.mubr.bf16.mxu0 0
        %3816 = vmatmul.mubr.bf16.gmra.mxu0 %v3745
        %v3817 = vpop.f32.mrf.mxu0
        %v3818 = vadd.f32 0.0, %v3817
        %v3819 = vpop.f32.mrf.mxu0
        %v3820 = vpop.f32.mrf.mxu0
        %v3821 = vadd.f32 0.0, %v3820
        %v3822 = vpop.f32.mrf.mxu0
        %3823 = vmatprep.mubr.bf16.mxu0 0
        %3824 = vmatmul.mubr.bf16.gmra.mxu0 %v3748
        %v3825 = vpop.f32.mrf.mxu0
        %v3826 = vadd.f32 0.0, %v3825
        %v3827 = vpop.f32.mrf.mxu0
        %v3828 = vpop.f32.mrf.mxu0
        %v3829 = vadd.f32 0.0, %v3828
        %v3830 = vpop.f32.mrf.mxu0
        %3831 = vmatprep.mubr.bf16.mxu0 0
        %3832 = vmatmul.mubr.bf16.gmra.mxu0 %v3751
        %v3833 = vpop.f32.mrf.mxu0
        %v3834 = vadd.f32 0.0, %v3833
        %v3835 = vpop.f32.mrf.mxu0
        %v3836 = vpop.f32.mrf.mxu0
        %v3837 = vadd.f32 0.0, %v3836
        %v3838 = vpop.f32.mrf.mxu0
        %3839 = vmatprep.mubr.bf16.mxu0 0
        %3840 = vmatmul.mubr.bf16.gmra.mxu0 %v3754
        %v3841 = vpop.f32.mrf.mxu0
        %v3842 = vadd.f32 0.0, %v3841
        %v3843 = vpop.f32.mrf.mxu0
        %v3844 = vpop.f32.mrf.mxu0
        %v3845 = vadd.f32 0.0, %v3844
        %v3846 = vpop.f32.mrf.mxu0
        %3847 = vmatprep.mubr.bf16.mxu0 0
        %3848 = vmatmul.mubr.bf16.gmra.mxu0 %v3757
        %v3849 = vpop.f32.mrf.mxu0
        %v3850 = vadd.f32 0.0, %v3849
        %v3851 = vpop.f32.mrf.mxu0
        %v3852 = vpop.f32.mrf.mxu0
        %v3853 = vadd.f32 0.0, %v3852
        %v3854 = vpop.f32.mrf.mxu0
        %3855 = vdwg.mxu0
        %v3856 = vadd.f32 %v3678, %v3794
        %v3857 = vadd.f32 %v3679, %v3797
        %v3858 = vadd.f32 %v3680, %v3802
        %v3859 = vadd.f32 %v3681, %v3805
        %v3860 = vadd.f32 %v3682, %v3810
        %v3861 = vadd.f32 %v3683, %v3813
        %v3862 = vadd.f32 %v3684, %v3818
        %v3863 = vadd.f32 %v3685, %v3821
        %v3864 = vadd.f32 %v3686, %v3826
        %v3865 = vadd.f32 %v3687, %v3829
        %v3866 = vadd.f32 %v3688, %v3834
        %v3867 = vadd.f32 %v3689, %v3837
        %v3868 = vadd.f32 %v3690, %v3842
        %v3869 = vadd.f32 %v3691, %v3845
        %v3870 = vadd.f32 %v3692, %v3850
        %v3871 = vadd.f32 %v3693, %v3853
        %v3872 = vld [vmem:[%s3515 + $0x2] sm:$0xff]
        %v3873 = vld [vmem:[%s3515 + $0xa] sm:$0xff]
        %v3874 = vld [vmem:[%s3515 + $0x1a] sm:$0xff]
        %v3875 = vld [vmem:[%s3515 + $0x22] sm:$0xff]
        %v3876 = vld [vmem:[%s3515 + $0x32] sm:$0xff]
        %v3877 = vld [vmem:[%s3515 + $0x3a] sm:$0xff]
        %v3878 = vld [vmem:[%s3515 + $0x4a] sm:$0xff]
        %v3879 = vld [vmem:[%s3515 + $0x52] sm:$0xff]
        %v3880 = vld [vmem:[%s3515 + $0x62] sm:$0xff]
        %v3881 = vld [vmem:[%s3515 + $0x6a] sm:$0xff]
        %v3882 = vld [vmem:[%s3515 + $0x7a] sm:$0xff]
        %v3883 = vld [vmem:[%s3515 + $0x82] sm:$0xff]
        %v3884 = vld [vmem:[%s3515 + $0x92] sm:$0xff]
        %v3885 = vld [vmem:[%s3515 + $0x9a] sm:$0xff]
        %v3886 = vld [vmem:[%s3515 + $0xaa] sm:$0xff]
        %v3887 = vld [vmem:[%s3515 + $0xb2] sm:$0xff]
        %v3888 = vpack.c.bf16 %v3873, %v3872
        %v3889 = vpack.c.bf16 %v3875, %v3874
        %v3890 = vpack.c.bf16 %v3877, %v3876
        %v3891 = vpack.c.bf16 %v3879, %v3878
        %v3892 = vpack.c.bf16 %v3881, %v3880
        %v3893 = vpack.c.bf16 %v3883, %v3882
        %v3894 = vpack.c.bf16 %v3885, %v3884
        %v3895 = vpack.c.bf16 %v3887, %v3886
        %s3896 = scalar_lea.vmem %s3, 128
        %v3897 = vld [vmem:[%s3896] sm:$0xf]
        %v3898 = vld [vmem:[%s3896 + $0x4] sm:$0xf]
        %v3899 = vld [vmem:[%s3896 + $0x8] sm:$0xf]
        %v3900 = vld [vmem:[%s3896 + $0xc] sm:$0xf]
        %v3905 = vunpack.c.l.b16 %v3897
        %v3906 = vunpack.c.l.b16 %v3898
        %v3907 = vunpack.c.l.b16 %v3899
        %v3908 = vunpack.c.l.b16 %v3900
        %v3909 = vpack.c.b16 %v3906, %v3905
        %v3910 = vpack.c.b16 %v3908, %v3907
        %v3914 = vsel %vm714, %v3888, 0
        %v3917 = vsel %vm714, %v3889, 0
        %v3920 = vsel %vm714, %v3890, 0
        %v3923 = vsel %vm714, %v3891, 0
        %v3926 = vsel %vm714, %v3892, 0
        %v3929 = vsel %vm714, %v3893, 0
        %v3932 = vsel %vm714, %v3894, 0
        %v3935 = vsel %vm714, %v3895, 0
        %3937 = vmatprep.subr.bf16.mxu0 0
        %3938 = vmatpush1.bf16.msra.mxu0 0
        %3939 = vmatprep.subr.bf16.mxu0 0
        %3940 = vmatpush1.bf16.msra.mxu0 0
        %3941 = vmatprep.subr.bf16.mxu0 0
        %3942 = vmatpush1.bf16.msra.mxu0 0
        %3943 = vmatprep.subr.bf16.mxu0 0
        %3944 = vmatpush1.bf16.msra.mxu0 0
        %3945 = vmatprep.subr.bf16.mxu0 0
        %3946 = vmatpush1.bf16.msra.mxu0 0
        %3947 = vmatprep.subr.bf16.mxu0 0
        %3948 = vmatpush1.bf16.msra.mxu0 0
        %3949 = vmatprep.subr.bf16.mxu0 0
        %3950 = vmatpush1.bf16.msra.mxu0 %v3910
        %3951 = vmatprep.subr.bf16.mxu0 0
        %3952 = vmatpush1.bf16.msra.mxu0 %v3909
        %3953 = vmatprep.subr.bf16.mxu0 0
        %3954 = vmatpush2.bf16.msra.mxu0 0
        %3955 = vmatprep.subr.bf16.mxu0 0
        %3956 = vmatpush2.bf16.msra.mxu0 0
        %3957 = vmatprep.subr.bf16.mxu0 0
        %3958 = vmatpush2.bf16.msra.mxu0 0
        %3959 = vmatprep.subr.bf16.mxu0 0
        %3960 = vmatpush2.bf16.msra.mxu0 0
        %3961 = vmatprep.subr.bf16.mxu0 0
        %3962 = vmatpush2.bf16.msra.mxu0 0
        %3963 = vmatprep.subr.bf16.mxu0 0
        %3964 = vmatpush2.bf16.msra.mxu0 0
        %3965 = vmatprep.subr.bf16.mxu0 0
        %3966 = vmatpush2.bf16.msra.mxu0 0
        %3967 = vmatprep.subr.bf16.mxu0 0
        %3968 = vmatpush2.bf16.msra.mxu0 0
        %3969 = vmatprep.mubr.bf16.mxu0 0
        %3970 = vmatmul.mubr.bf16.gmra.mxu0 %v3914
        %v3971 = vpop.f32.mrf.mxu0
        %v3972 = vadd.f32 0.0, %v3971
        %v3973 = vpop.f32.mrf.mxu0
        %v3974 = vpop.f32.mrf.mxu0
        %v3975 = vadd.f32 0.0, %v3974
        %v3976 = vpop.f32.mrf.mxu0
        %3977 = vmatprep.mubr.bf16.mxu0 0
        %3978 = vmatmul.mubr.bf16.gmra.mxu0 %v3917
        %v3979 = vpop.f32.mrf.mxu0
        %v3980 = vadd.f32 0.0, %v3979
        %v3981 = vpop.f32.mrf.mxu0
        %v3982 = vpop.f32.mrf.mxu0
        %v3983 = vadd.f32 0.0, %v3982
        %v3984 = vpop.f32.mrf.mxu0
        %3985 = vmatprep.mubr.bf16.mxu0 0
        %3986 = vmatmul.mubr.bf16.gmra.mxu0 %v3920
        %v3987 = vpop.f32.mrf.mxu0
        %v3988 = vadd.f32 0.0, %v3987
        %v3989 = vpop.f32.mrf.mxu0
        %v3990 = vpop.f32.mrf.mxu0
        %v3991 = vadd.f32 0.0, %v3990
        %v3992 = vpop.f32.mrf.mxu0
        %3993 = vmatprep.mubr.bf16.mxu0 0
        %3994 = vmatmul.mubr.bf16.gmra.mxu0 %v3923
        %v3995 = vpop.f32.mrf.mxu0
        %v3996 = vadd.f32 0.0, %v3995
        %v3997 = vpop.f32.mrf.mxu0
        %v3998 = vpop.f32.mrf.mxu0
        %v3999 = vadd.f32 0.0, %v3998
        %v4000 = vpop.f32.mrf.mxu0
        %4001 = vmatprep.mubr.bf16.mxu0 0
        %4002 = vmatmul.mubr.bf16.gmra.mxu0 %v3926
        %v4003 = vpop.f32.mrf.mxu0
        %v4004 = vadd.f32 0.0, %v4003
        %v4005 = vpop.f32.mrf.mxu0
        %v4006 = vpop.f32.mrf.mxu0
        %v4007 = vadd.f32 0.0, %v4006
        %v4008 = vpop.f32.mrf.mxu0
        %4009 = vmatprep.mubr.bf16.mxu0 0
        %4010 = vmatmul.mubr.bf16.gmra.mxu0 %v3929
        %v4011 = vpop.f32.mrf.mxu0
        %v4012 = vadd.f32 0.0, %v4011
        %v4013 = vpop.f32.mrf.mxu0
        %v4014 = vpop.f32.mrf.mxu0
        %v4015 = vadd.f32 0.0, %v4014
        %v4016 = vpop.f32.mrf.mxu0
        %4017 = vmatprep.mubr.bf16.mxu0 0
        %4018 = vmatmul.mubr.bf16.gmra.mxu0 %v3932
        %v4019 = vpop.f32.mrf.mxu0
        %v4020 = vadd.f32 0.0, %v4019
        %v4021 = vpop.f32.mrf.mxu0
        %v4022 = vpop.f32.mrf.mxu0
        %v4023 = vadd.f32 0.0, %v4022
        %v4024 = vpop.f32.mrf.mxu0
        %4025 = vmatprep.mubr.bf16.mxu0 0
        %4026 = vmatmul.mubr.bf16.gmra.mxu0 %v3935
        %v4027 = vpop.f32.mrf.mxu0
        %v4028 = vadd.f32 0.0, %v4027
        %v4029 = vpop.f32.mrf.mxu0
        %v4030 = vpop.f32.mrf.mxu0
        %v4031 = vadd.f32 0.0, %v4030
        %v4032 = vpop.f32.mrf.mxu0
        %4033 = vdwg.mxu0
        %v4034 = vadd.f32 %v3856, %v3972
        %v4035 = vadd.f32 %v3857, %v3975
        %v4036 = vadd.f32 %v3858, %v3980
        %v4037 = vadd.f32 %v3859, %v3983
        %v4038 = vadd.f32 %v3860, %v3988
        %v4039 = vadd.f32 %v3861, %v3991
        %v4040 = vadd.f32 %v3862, %v3996
        %v4041 = vadd.f32 %v3863, %v3999
        %v4042 = vadd.f32 %v3864, %v4004
        %v4043 = vadd.f32 %v3865, %v4007
        %v4044 = vadd.f32 %v3866, %v4012
        %v4045 = vadd.f32 %v3867, %v4015
        %v4046 = vadd.f32 %v3868, %v4020
        %v4047 = vadd.f32 %v3869, %v4023
        %v4048 = vadd.f32 %v3870, %v4028
        %v4049 = vadd.f32 %v3871, %v4031
        %v4050 = vld [vmem:[%s4] sm:$0x1]
        %v4052 = vlaneseq
        %v4053 = vshrl.u32 %v4052, 7
        %v4054 = vsub.s32 0, %v4053
        %v4055 = vrot.slane %v4050, %v4054
        %v4057 = vadd.f32 %v4034, %v4055
        %v4058 = vadd.f32 %v4035, %v4055
        %v4059 = vadd.f32 %v4036, %v4055
        %v4060 = vadd.f32 %v4037, %v4055
        %v4061 = vadd.f32 %v4038, %v4055
        %v4062 = vadd.f32 %v4039, %v4055
        %v4063 = vadd.f32 %v4040, %v4055
        %v4064 = vadd.f32 %v4041, %v4055
        %v4065 = vadd.f32 %v4042, %v4055
        %v4066 = vadd.f32 %v4043, %v4055
        %v4067 = vadd.f32 %v4044, %v4055
        %v4068 = vadd.f32 %v4045, %v4055
        %v4069 = vadd.f32 %v4046, %v4055
        %v4070 = vadd.f32 %v4047, %v4055
        %v4071 = vadd.f32 %v4048, %v4055
        %v4072 = vadd.f32 %v4049, %v4055
        %v4073 = vmax.f32 %v4057, 0.0
        %v4074 = vmax.f32 %v4058, 0.0
        %v4075 = vmax.f32 %v4059, 0.0
        %v4076 = vmax.f32 %v4060, 0.0
        %v4077 = vmax.f32 %v4061, 0.0
        %v4078 = vmax.f32 %v4062, 0.0
        %v4079 = vmax.f32 %v4063, 0.0
        %v4080 = vmax.f32 %v4064, 0.0
        %v4081 = vmax.f32 %v4065, 0.0
        %v4082 = vmax.f32 %v4066, 0.0
        %v4083 = vmax.f32 %v4067, 0.0
        %v4084 = vmax.f32 %v4068, 0.0
        %v4085 = vmax.f32 %v4069, 0.0
        %v4086 = vmax.f32 %v4070, 0.0
        %v4087 = vmax.f32 %v4071, 0.0
        %v4088 = vmax.f32 %v4072, 0.0
        %vm4089 = vcmask 523264
        %4090 = vst.msk [vmem:[#allocation4] sm:$0xff] %vm4089, %v4073
        %4091 = vst.msk [vmem:[#allocation4 + $0x8] sm:$0xff] %vm4089, %v4074
        %4092 = vst.msk [vmem:[#allocation4 + $0x10] sm:$0xff] %vm4089, %v4075
        %4093 = vst.msk [vmem:[#allocation4 + $0x18] sm:$0xff] %vm4089, %v4076
        %4094 = vst.msk [vmem:[#allocation4 + $0x20] sm:$0xff] %vm4089, %v4077
        %4095 = vst.msk [vmem:[#allocation4 + $0x28] sm:$0xff] %vm4089, %v4078
        %4096 = vst.msk [vmem:[#allocation4 + $0x30] sm:$0xff] %vm4089, %v4079
        %4097 = vst.msk [vmem:[#allocation4 + $0x38] sm:$0xff] %vm4089, %v4080
        %4098 = vst.msk [vmem:[#allocation4 + $0x40] sm:$0xff] %vm4089, %v4081
        %4099 = vst.msk [vmem:[#allocation4 + $0x48] sm:$0xff] %vm4089, %v4082
        %4100 = vst.msk [vmem:[#allocation4 + $0x50] sm:$0xff] %vm4089, %v4083
        %4101 = vst.msk [vmem:[#allocation4 + $0x58] sm:$0xff] %vm4089, %v4084
        %4102 = vst.msk [vmem:[#allocation4 + $0x60] sm:$0xff] %vm4089, %v4085
        %4103 = vst.msk [vmem:[#allocation4 + $0x68] sm:$0xff] %vm4089, %v4086
        %4104 = vst.msk [vmem:[#allocation4 + $0x70] sm:$0xff] %vm4089, %v4087
        %4105 = vst.msk [vmem:[#allocation4 + $0x78] sm:$0xff] %vm4089, %v4088
        %s4106 = scalar_lea.vmem [#allocation3], 192
        %v4107 = vld [vmem:[%s4106] sm:$0xff]
        %v4108 = vld [vmem:[%s4106 + $0x8] sm:$0xff]
        %v4109 = vld [vmem:[%s4106 + $0x18] sm:$0xff]
        %v4110 = vld [vmem:[%s4106 + $0x20] sm:$0xff]
        %v4111 = vld [vmem:[%s4106 + $0x30] sm:$0xff]
        %v4112 = vld [vmem:[%s4106 + $0x38] sm:$0xff]
        %v4113 = vld [vmem:[%s4106 + $0x48] sm:$0xff]
        %v4114 = vld [vmem:[%s4106 + $0x50] sm:$0xff]
        %v4115 = vld [vmem:[%s4106 + $0x60] sm:$0xff]
        %v4116 = vld [vmem:[%s4106 + $0x68] sm:$0xff]
        %v4117 = vld [vmem:[%s4106 + $0x78] sm:$0xff]
        %v4118 = vld [vmem:[%s4106 + $0x80] sm:$0xff]
        %v4119 = vld [vmem:[%s4106 + $0x90] sm:$0xff]
        %v4120 = vld [vmem:[%s4106 + $0x98] sm:$0xff]
        %v4121 = vld [vmem:[%s4106 + $0xa8] sm:$0xff]
        %v4122 = vld [vmem:[%s4106 + $0xb0] sm:$0xff]
        %v4123 = vpack.c.bf16 %v4108, %v4107
        %v4124 = vpack.c.bf16 %v4110, %v4109
        %v4125 = vpack.c.bf16 %v4112, %v4111
        %v4126 = vpack.c.bf16 %v4114, %v4113
        %v4127 = vpack.c.bf16 %v4116, %v4115
        %v4128 = vpack.c.bf16 %v4118, %v4117
        %v4129 = vpack.c.bf16 %v4120, %v4119
        %v4130 = vpack.c.bf16 %v4122, %v4121
        %v4131 = vld [vmem:[%s3] sm:$0xf]
        %v4132 = vld [vmem:[%s3 + $0x4] sm:$0xf]
        %v4133 = vld [vmem:[%s3 + $0x8] sm:$0xf]
        %v4134 = vld [vmem:[%s3 + $0xc] sm:$0xf]
        %v4135 = vld [vmem:[%s4106 + $0x1] sm:$0xff]
        %v4136 = vld [vmem:[%s4106 + $0x9] sm:$0xff]
        %v4137 = vld [vmem:[%s4106 + $0x19] sm:$0xff]
        %v4138 = vld [vmem:[%s4106 + $0x21] sm:$0xff]
        %v4139 = vld [vmem:[%s4106 + $0x31] sm:$0xff]
        %v4140 = vld [vmem:[%s4106 + $0x39] sm:$0xff]
        %v4141 = vld [vmem:[%s4106 + $0x49] sm:$0xff]
        %v4142 = vld [vmem:[%s4106 + $0x51] sm:$0xff]
        %v4143 = vld [vmem:[%s4106 + $0x61] sm:$0xff]
        %v4144 = vld [vmem:[%s4106 + $0x69] sm:$0xff]
        %v4145 = vld [vmem:[%s4106 + $0x79] sm:$0xff]
        %v4146 = vld [vmem:[%s4106 + $0x81] sm:$0xff]
        %v4147 = vld [vmem:[%s4106 + $0x91] sm:$0xff]
        %v4148 = vld [vmem:[%s4106 + $0x99] sm:$0xff]
        %v4149 = vld [vmem:[%s4106 + $0xa9] sm:$0xff]
        %v4150 = vld [vmem:[%s4106 + $0xb1] sm:$0xff]
        %v4151 = vpack.c.bf16 %v4136, %v4135
        %v4152 = vpack.c.bf16 %v4138, %v4137
        %v4153 = vpack.c.bf16 %v4140, %v4139
        %v4154 = vpack.c.bf16 %v4142, %v4141
        %v4155 = vpack.c.bf16 %v4144, %v4143
        %v4156 = vpack.c.bf16 %v4146, %v4145
        %v4157 = vpack.c.bf16 %v4148, %v4147
        %v4158 = vpack.c.bf16 %v4150, %v4149
        %v4159 = vld [vmem:[%s2532] sm:$0xf]
        %v4160 = vld [vmem:[%s2532 + $0x4] sm:$0xf]
        %v4161 = vld [vmem:[%s2532 + $0x8] sm:$0xf]
        %v4162 = vld [vmem:[%s2532 + $0xc] sm:$0xf]
        %v4167 = vunpack.c.l.b16 %v4159
        %v4168 = vunpack.c.l.b16 %v4160
        %v4169 = vunpack.c.l.b16 %v4161
        %v4170 = vunpack.c.l.b16 %v4162
        %v4171 = vpack.c.b16 %v4168, %v4167
        %v4172 = vpack.c.b16 %v4170, %v4169
        %v4176 = vsel %vm714, %v4151, 0
        %v4179 = vsel %vm714, %v4152, 0
        %v4182 = vsel %vm714, %v4153, 0
        %v4185 = vsel %vm714, %v4154, 0
        %v4188 = vsel %vm714, %v4155, 0
        %v4191 = vsel %vm714, %v4156, 0
        %v4194 = vsel %vm714, %v4157, 0
        %v4197 = vsel %vm714, %v4158, 0
        %4199 = vmatprep.subr.bf16.mxu0 0
        %4200 = vmatpush1.bf16.msra.mxu0 0
        %4201 = vmatprep.subr.bf16.mxu0 0
        %4202 = vmatpush1.bf16.msra.mxu0 0
        %4203 = vmatprep.subr.bf16.mxu0 0
        %4204 = vmatpush1.bf16.msra.mxu0 0
        %4205 = vmatprep.subr.bf16.mxu0 0
        %4206 = vmatpush1.bf16.msra.mxu0 0
        %4207 = vmatprep.subr.bf16.mxu0 0
        %4208 = vmatpush1.bf16.msra.mxu0 0
        %4209 = vmatprep.subr.bf16.mxu0 0
        %4210 = vmatpush1.bf16.msra.mxu0 0
        %4211 = vmatprep.subr.bf16.mxu0 0
        %4212 = vmatpush1.bf16.msra.mxu0 %v4172
        %4213 = vmatprep.subr.bf16.mxu0 0
        %4214 = vmatpush1.bf16.msra.mxu0 %v4171
        %4215 = vmatprep.subr.bf16.mxu0 0
        %4216 = vmatpush2.bf16.msra.mxu0 0
        %4217 = vmatprep.subr.bf16.mxu0 0
        %4218 = vmatpush2.bf16.msra.mxu0 0
        %4219 = vmatprep.subr.bf16.mxu0 0
        %4220 = vmatpush2.bf16.msra.mxu0 0
        %4221 = vmatprep.subr.bf16.mxu0 0
        %4222 = vmatpush2.bf16.msra.mxu0 0
        %4223 = vmatprep.subr.bf16.mxu0 0
        %4224 = vmatpush2.bf16.msra.mxu0 0
        %4225 = vmatprep.subr.bf16.mxu0 0
        %4226 = vmatpush2.bf16.msra.mxu0 0
        %4227 = vmatprep.subr.bf16.mxu0 0
        %4228 = vmatpush2.bf16.msra.mxu0 0
        %4229 = vmatprep.subr.bf16.mxu0 0
        %4230 = vmatpush2.bf16.msra.mxu0 0
        %4231 = vmatprep.mubr.bf16.mxu0 0
        %4232 = vmatmul.mubr.bf16.gmra.mxu0 %v4176
        %v4233 = vpop.f32.mrf.mxu0
        %v4234 = vadd.f32 0.0, %v4233
        %v4235 = vpop.f32.mrf.mxu0
        %v4236 = vpop.f32.mrf.mxu0
        %v4237 = vadd.f32 0.0, %v4236
        %v4238 = vpop.f32.mrf.mxu0
        %4239 = vmatprep.mubr.bf16.mxu0 0
        %4240 = vmatmul.mubr.bf16.gmra.mxu0 %v4179
        %v4241 = vpop.f32.mrf.mxu0
        %v4242 = vadd.f32 0.0, %v4241
        %v4243 = vpop.f32.mrf.mxu0
        %v4244 = vpop.f32.mrf.mxu0
        %v4245 = vadd.f32 0.0, %v4244
        %v4246 = vpop.f32.mrf.mxu0
        %4247 = vmatprep.mubr.bf16.mxu0 0
        %4248 = vmatmul.mubr.bf16.gmra.mxu0 %v4182
        %v4249 = vpop.f32.mrf.mxu0
        %v4250 = vadd.f32 0.0, %v4249
        %v4251 = vpop.f32.mrf.mxu0
        %v4252 = vpop.f32.mrf.mxu0
        %v4253 = vadd.f32 0.0, %v4252
        %v4254 = vpop.f32.mrf.mxu0
        %4255 = vmatprep.mubr.bf16.mxu0 0
        %4256 = vmatmul.mubr.bf16.gmra.mxu0 %v4185
        %v4257 = vpop.f32.mrf.mxu0
        %v4258 = vadd.f32 0.0, %v4257
        %v4259 = vpop.f32.mrf.mxu0
        %v4260 = vpop.f32.mrf.mxu0
        %v4261 = vadd.f32 0.0, %v4260
        %v4262 = vpop.f32.mrf.mxu0
        %4263 = vmatprep.mubr.bf16.mxu0 0
        %4264 = vmatmul.mubr.bf16.gmra.mxu0 %v4188
        %v4265 = vpop.f32.mrf.mxu0
        %v4266 = vadd.f32 0.0, %v4265
        %v4267 = vpop.f32.mrf.mxu0
        %v4268 = vpop.f32.mrf.mxu0
        %v4269 = vadd.f32 0.0, %v4268
        %v4270 = vpop.f32.mrf.mxu0
        %4271 = vmatprep.mubr.bf16.mxu0 0
        %4272 = vmatmul.mubr.bf16.gmra.mxu0 %v4191
        %v4273 = vpop.f32.mrf.mxu0
        %v4274 = vadd.f32 0.0, %v4273
        %v4275 = vpop.f32.mrf.mxu0
        %v4276 = vpop.f32.mrf.mxu0
        %v4277 = vadd.f32 0.0, %v4276
        %v4278 = vpop.f32.mrf.mxu0
        %4279 = vmatprep.mubr.bf16.mxu0 0
        %4280 = vmatmul.mubr.bf16.gmra.mxu0 %v4194
        %v4281 = vpop.f32.mrf.mxu0
        %v4282 = vadd.f32 0.0, %v4281
        %v4283 = vpop.f32.mrf.mxu0
        %v4284 = vpop.f32.mrf.mxu0
        %v4285 = vadd.f32 0.0, %v4284
        %v4286 = vpop.f32.mrf.mxu0
        %4287 = vmatprep.mubr.bf16.mxu0 0
        %4288 = vmatmul.mubr.bf16.gmra.mxu0 %v4197
        %v4289 = vpop.f32.mrf.mxu0
        %v4290 = vadd.f32 0.0, %v4289
        %v4291 = vpop.f32.mrf.mxu0
        %v4292 = vpop.f32.mrf.mxu0
        %v4293 = vadd.f32 0.0, %v4292
        %v4294 = vpop.f32.mrf.mxu0
        %4295 = vdwg.mxu0
        %v4300 = vunpack.c.l.b16 %v4131
        %v4301 = vunpack.c.l.b16 %v4132
        %v4302 = vunpack.c.l.b16 %v4133
        %v4303 = vunpack.c.l.b16 %v4134
        %v4304 = vpack.c.b16 %v4301, %v4300
        %v4305 = vpack.c.b16 %v4303, %v4302
        %v4309 = vsel %vm714, %v4123, 0
        %v4312 = vsel %vm714, %v4124, 0
        %v4315 = vsel %vm714, %v4125, 0
        %v4318 = vsel %vm714, %v4126, 0
        %v4321 = vsel %vm714, %v4127, 0
        %v4324 = vsel %vm714, %v4128, 0
        %v4327 = vsel %vm714, %v4129, 0
        %v4330 = vsel %vm714, %v4130, 0
        %4332 = vmatprep.subr.bf16.mxu0 0
        %4333 = vmatpush1.bf16.msra.mxu0 0
        %4334 = vmatprep.subr.bf16.mxu0 0
        %4335 = vmatpush1.bf16.msra.mxu0 0
        %4336 = vmatprep.subr.bf16.mxu0 0
        %4337 = vmatpush1.bf16.msra.mxu0 0
        %4338 = vmatprep.subr.bf16.mxu0 0
        %4339 = vmatpush1.bf16.msra.mxu0 0
        %4340 = vmatprep.subr.bf16.mxu0 0
        %4341 = vmatpush1.bf16.msra.mxu0 0
        %4342 = vmatprep.subr.bf16.mxu0 0
        %4343 = vmatpush1.bf16.msra.mxu0 0
        %4344 = vmatprep.subr.bf16.mxu0 0
        %4345 = vmatpush1.bf16.msra.mxu0 %v4305
        %4346 = vmatprep.subr.bf16.mxu0 0
        %4347 = vmatpush1.bf16.msra.mxu0 %v4304
        %4348 = vmatprep.subr.bf16.mxu0 0
        %4349 = vmatpush2.bf16.msra.mxu0 0
        %4350 = vmatprep.subr.bf16.mxu0 0
        %4351 = vmatpush2.bf16.msra.mxu0 0
        %4352 = vmatprep.subr.bf16.mxu0 0
        %4353 = vmatpush2.bf16.msra.mxu0 0
        %4354 = vmatprep.subr.bf16.mxu0 0
        %4355 = vmatpush2.bf16.msra.mxu0 0
        %4356 = vmatprep.subr.bf16.mxu0 0
        %4357 = vmatpush2.bf16.msra.mxu0 0
        %4358 = vmatprep.subr.bf16.mxu0 0
        %4359 = vmatpush2.bf16.msra.mxu0 0
        %4360 = vmatprep.subr.bf16.mxu0 0
        %4361 = vmatpush2.bf16.msra.mxu0 0
        %4362 = vmatprep.subr.bf16.mxu0 0
        %4363 = vmatpush2.bf16.msra.mxu0 0
        %4364 = vmatprep.mubr.bf16.mxu0 0
        %4365 = vmatmul.mubr.bf16.gmra.mxu0 %v4309
        %v4366 = vpop.f32.mrf.mxu0
        %v4367 = vadd.f32 %v4234, %v4366
        %v4368 = vpop.f32.mrf.mxu0
        %v4369 = vpop.f32.mrf.mxu0
        %v4370 = vadd.f32 %v4237, %v4369
        %v4371 = vpop.f32.mrf.mxu0
        %4372 = vmatprep.mubr.bf16.mxu0 0
        %4373 = vmatmul.mubr.bf16.gmra.mxu0 %v4312
        %v4374 = vpop.f32.mrf.mxu0
        %v4375 = vadd.f32 %v4242, %v4374
        %v4376 = vpop.f32.mrf.mxu0
        %v4377 = vpop.f32.mrf.mxu0
        %v4378 = vadd.f32 %v4245, %v4377
        %v4379 = vpop.f32.mrf.mxu0
        %4380 = vmatprep.mubr.bf16.mxu0 0
        %4381 = vmatmul.mubr.bf16.gmra.mxu0 %v4315
        %v4382 = vpop.f32.mrf.mxu0
        %v4383 = vadd.f32 %v4250, %v4382
        %v4384 = vpop.f32.mrf.mxu0
        %v4385 = vpop.f32.mrf.mxu0
        %v4386 = vadd.f32 %v4253, %v4385
        %v4387 = vpop.f32.mrf.mxu0
        %4388 = vmatprep.mubr.bf16.mxu0 0
        %4389 = vmatmul.mubr.bf16.gmra.mxu0 %v4318
        %v4390 = vpop.f32.mrf.mxu0
        %v4391 = vadd.f32 %v4258, %v4390
        %v4392 = vpop.f32.mrf.mxu0
        %v4393 = vpop.f32.mrf.mxu0
        %v4394 = vadd.f32 %v4261, %v4393
        %v4395 = vpop.f32.mrf.mxu0
        %4396 = vmatprep.mubr.bf16.mxu0 0
        %4397 = vmatmul.mubr.bf16.gmra.mxu0 %v4321
        %v4398 = vpop.f32.mrf.mxu0
        %v4399 = vadd.f32 %v4266, %v4398
        %v4400 = vpop.f32.mrf.mxu0
        %v4401 = vpop.f32.mrf.mxu0
        %v4402 = vadd.f32 %v4269, %v4401
        %v4403 = vpop.f32.mrf.mxu0
        %4404 = vmatprep.mubr.bf16.mxu0 0
        %4405 = vmatmul.mubr.bf16.gmra.mxu0 %v4324
        %v4406 = vpop.f32.mrf.mxu0
        %v4407 = vadd.f32 %v4274, %v4406
        %v4408 = vpop.f32.mrf.mxu0
        %v4409 = vpop.f32.mrf.mxu0
        %v4410 = vadd.f32 %v4277, %v4409
        %v4411 = vpop.f32.mrf.mxu0
        %4412 = vmatprep.mubr.bf16.mxu0 0
        %4413 = vmatmul.mubr.bf16.gmra.mxu0 %v4327
        %v4414 = vpop.f32.mrf.mxu0
        %v4415 = vadd.f32 %v4282, %v4414
        %v4416 = vpop.f32.mrf.mxu0
        %v4417 = vpop.f32.mrf.mxu0
        %v4418 = vadd.f32 %v4285, %v4417
        %v4419 = vpop.f32.mrf.mxu0
        %4420 = vmatprep.mubr.bf16.mxu0 0
        %4421 = vmatmul.mubr.bf16.gmra.mxu0 %v4330
        %v4422 = vpop.f32.mrf.mxu0
        %v4423 = vadd.f32 %v4290, %v4422
        %v4424 = vpop.f32.mrf.mxu0
        %v4425 = vpop.f32.mrf.mxu0
        %v4426 = vadd.f32 %v4293, %v4425
        %v4427 = vpop.f32.mrf.mxu0
        %4428 = vdwg.mxu0
        %v4429 = vld [vmem:[%s4106 + $0x2] sm:$0xff]
        %v4430 = vld [vmem:[%s4106 + $0xa] sm:$0xff]
        %v4431 = vld [vmem:[%s4106 + $0x1a] sm:$0xff]
        %v4432 = vld [vmem:[%s4106 + $0x22] sm:$0xff]
        %v4433 = vld [vmem:[%s4106 + $0x32] sm:$0xff]
        %v4434 = vld [vmem:[%s4106 + $0x3a] sm:$0xff]
        %v4435 = vld [vmem:[%s4106 + $0x4a] sm:$0xff]
        %v4436 = vld [vmem:[%s4106 + $0x52] sm:$0xff]
        %v4437 = vld [vmem:[%s4106 + $0x62] sm:$0xff]
        %v4438 = vld [vmem:[%s4106 + $0x6a] sm:$0xff]
        %v4439 = vld [vmem:[%s4106 + $0x7a] sm:$0xff]
        %v4440 = vld [vmem:[%s4106 + $0x82] sm:$0xff]
        %v4441 = vld [vmem:[%s4106 + $0x92] sm:$0xff]
        %v4442 = vld [vmem:[%s4106 + $0x9a] sm:$0xff]
        %v4443 = vld [vmem:[%s4106 + $0xaa] sm:$0xff]
        %v4444 = vld [vmem:[%s4106 + $0xb2] sm:$0xff]
        %v4445 = vpack.c.bf16 %v4430, %v4429
        %v4446 = vpack.c.bf16 %v4432, %v4431
        %v4447 = vpack.c.bf16 %v4434, %v4433
        %v4448 = vpack.c.bf16 %v4436, %v4435
        %v4449 = vpack.c.bf16 %v4438, %v4437
        %v4450 = vpack.c.bf16 %v4440, %v4439
        %v4451 = vpack.c.bf16 %v4442, %v4441
        %v4452 = vpack.c.bf16 %v4444, %v4443
        %v4453 = vld [vmem:[%s2827] sm:$0xf]
        %v4454 = vld [vmem:[%s2827 + $0x4] sm:$0xf]
        %v4455 = vld [vmem:[%s2827 + $0x8] sm:$0xf]
        %v4456 = vld [vmem:[%s2827 + $0xc] sm:$0xf]
        %v4461 = vunpack.c.l.b16 %v4453
        %v4462 = vunpack.c.l.b16 %v4454
        %v4463 = vunpack.c.l.b16 %v4455
        %v4464 = vunpack.c.l.b16 %v4456
        %v4465 = vpack.c.b16 %v4462, %v4461
        %v4466 = vpack.c.b16 %v4464, %v4463
        %v4470 = vsel %vm714, %v4445, 0
        %v4473 = vsel %vm714, %v4446, 0
        %v4476 = vsel %vm714, %v4447, 0
        %v4479 = vsel %vm714, %v4448, 0
        %v4482 = vsel %vm714, %v4449, 0
        %v4485 = vsel %vm714, %v4450, 0
        %v4488 = vsel %vm714, %v4451, 0
        %v4491 = vsel %vm714, %v4452, 0
        %4493 = vmatprep.subr.bf16.mxu0 0
        %4494 = vmatpush1.bf16.msra.mxu0 0
        %4495 = vmatprep.subr.bf16.mxu0 0
        %4496 = vmatpush1.bf16.msra.mxu0 0
        %4497 = vmatprep.subr.bf16.mxu0 0
        %4498 = vmatpush1.bf16.msra.mxu0 0
        %4499 = vmatprep.subr.bf16.mxu0 0
        %4500 = vmatpush1.bf16.msra.mxu0 0
        %4501 = vmatprep.subr.bf16.mxu0 0
        %4502 = vmatpush1.bf16.msra.mxu0 0
        %4503 = vmatprep.subr.bf16.mxu0 0
        %4504 = vmatpush1.bf16.msra.mxu0 0
        %4505 = vmatprep.subr.bf16.mxu0 0
        %4506 = vmatpush1.bf16.msra.mxu0 %v4466
        %4507 = vmatprep.subr.bf16.mxu0 0
        %4508 = vmatpush1.bf16.msra.mxu0 %v4465
        %4509 = vmatprep.subr.bf16.mxu0 0
        %4510 = vmatpush2.bf16.msra.mxu0 0
        %4511 = vmatprep.subr.bf16.mxu0 0
        %4512 = vmatpush2.bf16.msra.mxu0 0
        %4513 = vmatprep.subr.bf16.mxu0 0
        %4514 = vmatpush2.bf16.msra.mxu0 0
        %4515 = vmatprep.subr.bf16.mxu0 0
        %4516 = vmatpush2.bf16.msra.mxu0 0
        %4517 = vmatprep.subr.bf16.mxu0 0
        %4518 = vmatpush2.bf16.msra.mxu0 0
        %4519 = vmatprep.subr.bf16.mxu0 0
        %4520 = vmatpush2.bf16.msra.mxu0 0
        %4521 = vmatprep.subr.bf16.mxu0 0
        %4522 = vmatpush2.bf16.msra.mxu0 0
        %4523 = vmatprep.subr.bf16.mxu0 0
        %4524 = vmatpush2.bf16.msra.mxu0 0
        %4525 = vmatprep.mubr.bf16.mxu0 0
        %4526 = vmatmul.mubr.bf16.gmra.mxu0 %v4470
        %v4527 = vpop.f32.mrf.mxu0
        %v4528 = vadd.f32 0.0, %v4527
        %v4529 = vpop.f32.mrf.mxu0
        %v4530 = vpop.f32.mrf.mxu0
        %v4531 = vadd.f32 0.0, %v4530
        %v4532 = vpop.f32.mrf.mxu0
        %4533 = vmatprep.mubr.bf16.mxu0 0
        %4534 = vmatmul.mubr.bf16.gmra.mxu0 %v4473
        %v4535 = vpop.f32.mrf.mxu0
        %v4536 = vadd.f32 0.0, %v4535
        %v4537 = vpop.f32.mrf.mxu0
        %v4538 = vpop.f32.mrf.mxu0
        %v4539 = vadd.f32 0.0, %v4538
        %v4540 = vpop.f32.mrf.mxu0
        %4541 = vmatprep.mubr.bf16.mxu0 0
        %4542 = vmatmul.mubr.bf16.gmra.mxu0 %v4476
        %v4543 = vpop.f32.mrf.mxu0
        %v4544 = vadd.f32 0.0, %v4543
        %v4545 = vpop.f32.mrf.mxu0
        %v4546 = vpop.f32.mrf.mxu0
        %v4547 = vadd.f32 0.0, %v4546
        %v4548 = vpop.f32.mrf.mxu0
        %4549 = vmatprep.mubr.bf16.mxu0 0
        %4550 = vmatmul.mubr.bf16.gmra.mxu0 %v4479
        %v4551 = vpop.f32.mrf.mxu0
        %v4552 = vadd.f32 0.0, %v4551
        %v4553 = vpop.f32.mrf.mxu0
        %v4554 = vpop.f32.mrf.mxu0
        %v4555 = vadd.f32 0.0, %v4554
        %v4556 = vpop.f32.mrf.mxu0
        %4557 = vmatprep.mubr.bf16.mxu0 0
        %4558 = vmatmul.mubr.bf16.gmra.mxu0 %v4482
        %v4559 = vpop.f32.mrf.mxu0
        %v4560 = vadd.f32 0.0, %v4559
        %v4561 = vpop.f32.mrf.mxu0
        %v4562 = vpop.f32.mrf.mxu0
        %v4563 = vadd.f32 0.0, %v4562
        %v4564 = vpop.f32.mrf.mxu0
        %4565 = vmatprep.mubr.bf16.mxu0 0
        %4566 = vmatmul.mubr.bf16.gmra.mxu0 %v4485
        %v4567 = vpop.f32.mrf.mxu0
        %v4568 = vadd.f32 0.0, %v4567
        %v4569 = vpop.f32.mrf.mxu0
        %v4570 = vpop.f32.mrf.mxu0
        %v4571 = vadd.f32 0.0, %v4570
        %v4572 = vpop.f32.mrf.mxu0
        %4573 = vmatprep.mubr.bf16.mxu0 0
        %4574 = vmatmul.mubr.bf16.gmra.mxu0 %v4488
        %v4575 = vpop.f32.mrf.mxu0
        %v4576 = vadd.f32 0.0, %v4575
        %v4577 = vpop.f32.mrf.mxu0
        %v4578 = vpop.f32.mrf.mxu0
        %v4579 = vadd.f32 0.0, %v4578
        %v4580 = vpop.f32.mrf.mxu0
        %4581 = vmatprep.mubr.bf16.mxu0 0
        %4582 = vmatmul.mubr.bf16.gmra.mxu0 %v4491
        %v4583 = vpop.f32.mrf.mxu0
        %v4584 = vadd.f32 0.0, %v4583
        %v4585 = vpop.f32.mrf.mxu0
        %v4586 = vpop.f32.mrf.mxu0
        %v4587 = vadd.f32 0.0, %v4586
        %v4588 = vpop.f32.mrf.mxu0
        %4589 = vdwg.mxu0
        %v4590 = vadd.f32 %v4367, %v4528
        %v4591 = vadd.f32 %v4370, %v4531
        %v4592 = vadd.f32 %v4375, %v4536
        %v4593 = vadd.f32 %v4378, %v4539
        %v4594 = vadd.f32 %v4383, %v4544
        %v4595 = vadd.f32 %v4386, %v4547
        %v4596 = vadd.f32 %v4391, %v4552
        %v4597 = vadd.f32 %v4394, %v4555
        %v4598 = vadd.f32 %v4399, %v4560
        %v4599 = vadd.f32 %v4402, %v4563
        %v4600 = vadd.f32 %v4407, %v4568
        %v4601 = vadd.f32 %v4410, %v4571
        %v4602 = vadd.f32 %v4415, %v4576
        %v4603 = vadd.f32 %v4418, %v4579
        %v4604 = vadd.f32 %v4423, %v4584
        %v4605 = vadd.f32 %v4426, %v4587
        %s4606 = scalar_lea.vmem [#allocation3], 216
        %v4607 = vld [vmem:[%s4606] sm:$0xff]
        %v4608 = vld [vmem:[%s4606 + $0x8] sm:$0xff]
        %v4609 = vld [vmem:[%s4606 + $0x18] sm:$0xff]
        %v4610 = vld [vmem:[%s4606 + $0x20] sm:$0xff]
        %v4611 = vld [vmem:[%s4606 + $0x30] sm:$0xff]
        %v4612 = vld [vmem:[%s4606 + $0x38] sm:$0xff]
        %v4613 = vld [vmem:[%s4606 + $0x48] sm:$0xff]
        %v4614 = vld [vmem:[%s4606 + $0x50] sm:$0xff]
        %v4615 = vld [vmem:[%s4606 + $0x60] sm:$0xff]
        %v4616 = vld [vmem:[%s4606 + $0x68] sm:$0xff]
        %v4617 = vld [vmem:[%s4606 + $0x78] sm:$0xff]
        %v4618 = vld [vmem:[%s4606 + $0x80] sm:$0xff]
        %v4619 = vld [vmem:[%s4606 + $0x90] sm:$0xff]
        %v4620 = vld [vmem:[%s4606 + $0x98] sm:$0xff]
        %v4621 = vld [vmem:[%s4606 + $0xa8] sm:$0xff]
        %v4622 = vld [vmem:[%s4606 + $0xb0] sm:$0xff]
        %v4623 = vpack.c.bf16 %v4608, %v4607
        %v4624 = vpack.c.bf16 %v4610, %v4609
        %v4625 = vpack.c.bf16 %v4612, %v4611
        %v4626 = vpack.c.bf16 %v4614, %v4613
        %v4627 = vpack.c.bf16 %v4616, %v4615
        %v4628 = vpack.c.bf16 %v4618, %v4617
        %v4629 = vpack.c.bf16 %v4620, %v4619
        %v4630 = vpack.c.bf16 %v4622, %v4621
        %v4631 = vld [vmem:[%s3005] sm:$0xf]
        %v4632 = vld [vmem:[%s3005 + $0x4] sm:$0xf]
        %v4633 = vld [vmem:[%s3005 + $0x8] sm:$0xf]
        %v4634 = vld [vmem:[%s3005 + $0xc] sm:$0xf]
        %v4639 = vunpack.c.l.b16 %v4631
        %v4640 = vunpack.c.l.b16 %v4632
        %v4641 = vunpack.c.l.b16 %v4633
        %v4642 = vunpack.c.l.b16 %v4634
        %v4643 = vpack.c.b16 %v4640, %v4639
        %v4644 = vpack.c.b16 %v4642, %v4641
        %v4648 = vsel %vm714, %v4623, 0
        %v4651 = vsel %vm714, %v4624, 0
        %v4654 = vsel %vm714, %v4625, 0
        %v4657 = vsel %vm714, %v4626, 0
        %v4660 = vsel %vm714, %v4627, 0
        %v4663 = vsel %vm714, %v4628, 0
        %v4666 = vsel %vm714, %v4629, 0
        %v4669 = vsel %vm714, %v4630, 0
        %4671 = vmatprep.subr.bf16.mxu0 0
        %4672 = vmatpush1.bf16.msra.mxu0 0
        %4673 = vmatprep.subr.bf16.mxu0 0
        %4674 = vmatpush1.bf16.msra.mxu0 0
        %4675 = vmatprep.subr.bf16.mxu0 0
        %4676 = vmatpush1.bf16.msra.mxu0 0
        %4677 = vmatprep.subr.bf16.mxu0 0
        %4678 = vmatpush1.bf16.msra.mxu0 0
        %4679 = vmatprep.subr.bf16.mxu0 0
        %4680 = vmatpush1.bf16.msra.mxu0 0
        %4681 = vmatprep.subr.bf16.mxu0 0
        %4682 = vmatpush1.bf16.msra.mxu0 0
        %4683 = vmatprep.subr.bf16.mxu0 0
        %4684 = vmatpush1.bf16.msra.mxu0 %v4644
        %4685 = vmatprep.subr.bf16.mxu0 0
        %4686 = vmatpush1.bf16.msra.mxu0 %v4643
        %4687 = vmatprep.subr.bf16.mxu0 0
        %4688 = vmatpush2.bf16.msra.mxu0 0
        %4689 = vmatprep.subr.bf16.mxu0 0
        %4690 = vmatpush2.bf16.msra.mxu0 0
        %4691 = vmatprep.subr.bf16.mxu0 0
        %4692 = vmatpush2.bf16.msra.mxu0 0
        %4693 = vmatprep.subr.bf16.mxu0 0
        %4694 = vmatpush2.bf16.msra.mxu0 0
        %4695 = vmatprep.subr.bf16.mxu0 0
        %4696 = vmatpush2.bf16.msra.mxu0 0
        %4697 = vmatprep.subr.bf16.mxu0 0
        %4698 = vmatpush2.bf16.msra.mxu0 0
        %4699 = vmatprep.subr.bf16.mxu0 0
        %4700 = vmatpush2.bf16.msra.mxu0 0
        %4701 = vmatprep.subr.bf16.mxu0 0
        %4702 = vmatpush2.bf16.msra.mxu0 0
        %4703 = vmatprep.mubr.bf16.mxu0 0
        %4704 = vmatmul.mubr.bf16.gmra.mxu0 %v4648
        %v4705 = vpop.f32.mrf.mxu0
        %v4706 = vadd.f32 0.0, %v4705
        %v4707 = vpop.f32.mrf.mxu0
        %v4708 = vpop.f32.mrf.mxu0
        %v4709 = vadd.f32 0.0, %v4708
        %v4710 = vpop.f32.mrf.mxu0
        %4711 = vmatprep.mubr.bf16.mxu0 0
        %4712 = vmatmul.mubr.bf16.gmra.mxu0 %v4651
        %v4713 = vpop.f32.mrf.mxu0
        %v4714 = vadd.f32 0.0, %v4713
        %v4715 = vpop.f32.mrf.mxu0
        %v4716 = vpop.f32.mrf.mxu0
        %v4717 = vadd.f32 0.0, %v4716
        %v4718 = vpop.f32.mrf.mxu0
        %4719 = vmatprep.mubr.bf16.mxu0 0
        %4720 = vmatmul.mubr.bf16.gmra.mxu0 %v4654
        %v4721 = vpop.f32.mrf.mxu0
        %v4722 = vadd.f32 0.0, %v4721
        %v4723 = vpop.f32.mrf.mxu0
        %v4724 = vpop.f32.mrf.mxu0
        %v4725 = vadd.f32 0.0, %v4724
        %v4726 = vpop.f32.mrf.mxu0
        %4727 = vmatprep.mubr.bf16.mxu0 0
        %4728 = vmatmul.mubr.bf16.gmra.mxu0 %v4657
        %v4729 = vpop.f32.mrf.mxu0
        %v4730 = vadd.f32 0.0, %v4729
        %v4731 = vpop.f32.mrf.mxu0
        %v4732 = vpop.f32.mrf.mxu0
        %v4733 = vadd.f32 0.0, %v4732
        %v4734 = vpop.f32.mrf.mxu0
        %4735 = vmatprep.mubr.bf16.mxu0 0
        %4736 = vmatmul.mubr.bf16.gmra.mxu0 %v4660
        %v4737 = vpop.f32.mrf.mxu0
        %v4738 = vadd.f32 0.0, %v4737
        %v4739 = vpop.f32.mrf.mxu0
        %v4740 = vpop.f32.mrf.mxu0
        %v4741 = vadd.f32 0.0, %v4740
        %v4742 = vpop.f32.mrf.mxu0
        %4743 = vmatprep.mubr.bf16.mxu0 0
        %4744 = vmatmul.mubr.bf16.gmra.mxu0 %v4663
        %v4745 = vpop.f32.mrf.mxu0
        %v4746 = vadd.f32 0.0, %v4745
        %v4747 = vpop.f32.mrf.mxu0
        %v4748 = vpop.f32.mrf.mxu0
        %v4749 = vadd.f32 0.0, %v4748
        %v4750 = vpop.f32.mrf.mxu0
        %4751 = vmatprep.mubr.bf16.mxu0 0
        %4752 = vmatmul.mubr.bf16.gmra.mxu0 %v4666
        %v4753 = vpop.f32.mrf.mxu0
        %v4754 = vadd.f32 0.0, %v4753
        %v4755 = vpop.f32.mrf.mxu0
        %v4756 = vpop.f32.mrf.mxu0
        %v4757 = vadd.f32 0.0, %v4756
        %v4758 = vpop.f32.mrf.mxu0
        %4759 = vmatprep.mubr.bf16.mxu0 0
        %4760 = vmatmul.mubr.bf16.gmra.mxu0 %v4669
        %v4761 = vpop.f32.mrf.mxu0
        %v4762 = vadd.f32 0.0, %v4761
        %v4763 = vpop.f32.mrf.mxu0
        %v4764 = vpop.f32.mrf.mxu0
        %v4765 = vadd.f32 0.0, %v4764
        %v4766 = vpop.f32.mrf.mxu0
        %4767 = vdwg.mxu0
        %v4768 = vadd.f32 %v4590, %v4706
        %v4769 = vadd.f32 %v4591, %v4709
        %v4770 = vadd.f32 %v4592, %v4714
        %v4771 = vadd.f32 %v4593, %v4717
        %v4772 = vadd.f32 %v4594, %v4722
        %v4773 = vadd.f32 %v4595, %v4725
        %v4774 = vadd.f32 %v4596, %v4730
        %v4775 = vadd.f32 %v4597, %v4733
        %v4776 = vadd.f32 %v4598, %v4738
        %v4777 = vadd.f32 %v4599, %v4741
        %v4778 = vadd.f32 %v4600, %v4746
        %v4779 = vadd.f32 %v4601, %v4749
        %v4780 = vadd.f32 %v4602, %v4754
        %v4781 = vadd.f32 %v4603, %v4757
        %v4782 = vadd.f32 %v4604, %v4762
        %v4783 = vadd.f32 %v4605, %v4765
        %v4784 = vld [vmem:[%s4606 + $0x1] sm:$0xff]
        %v4785 = vld [vmem:[%s4606 + $0x9] sm:$0xff]
        %v4786 = vld [vmem:[%s4606 + $0x19] sm:$0xff]
        %v4787 = vld [vmem:[%s4606 + $0x21] sm:$0xff]
        %v4788 = vld [vmem:[%s4606 + $0x31] sm:$0xff]
        %v4789 = vld [vmem:[%s4606 + $0x39] sm:$0xff]
        %v4790 = vld [vmem:[%s4606 + $0x49] sm:$0xff]
        %v4791 = vld [vmem:[%s4606 + $0x51] sm:$0xff]
        %v4792 = vld [vmem:[%s4606 + $0x61] sm:$0xff]
        %v4793 = vld [vmem:[%s4606 + $0x69] sm:$0xff]
        %v4794 = vld [vmem:[%s4606 + $0x79] sm:$0xff]
        %v4795 = vld [vmem:[%s4606 + $0x81] sm:$0xff]
        %v4796 = vld [vmem:[%s4606 + $0x91] sm:$0xff]
        %v4797 = vld [vmem:[%s4606 + $0x99] sm:$0xff]
        %v4798 = vld [vmem:[%s4606 + $0xa9] sm:$0xff]
        %v4799 = vld [vmem:[%s4606 + $0xb1] sm:$0xff]
        %v4800 = vpack.c.bf16 %v4785, %v4784
        %v4801 = vpack.c.bf16 %v4787, %v4786
        %v4802 = vpack.c.bf16 %v4789, %v4788
        %v4803 = vpack.c.bf16 %v4791, %v4790
        %v4804 = vpack.c.bf16 %v4793, %v4792
        %v4805 = vpack.c.bf16 %v4795, %v4794
        %v4806 = vpack.c.bf16 %v4797, %v4796
        %v4807 = vpack.c.bf16 %v4799, %v4798
        %v4808 = vld [vmem:[%s3183] sm:$0xf]
        %v4809 = vld [vmem:[%s3183 + $0x4] sm:$0xf]
        %v4810 = vld [vmem:[%s3183 + $0x8] sm:$0xf]
        %v4811 = vld [vmem:[%s3183 + $0xc] sm:$0xf]
        %v4816 = vunpack.c.l.b16 %v4808
        %v4817 = vunpack.c.l.b16 %v4809
        %v4818 = vunpack.c.l.b16 %v4810
        %v4819 = vunpack.c.l.b16 %v4811
        %v4820 = vpack.c.b16 %v4817, %v4816
        %v4821 = vpack.c.b16 %v4819, %v4818
        %v4825 = vsel %vm714, %v4800, 0
        %v4828 = vsel %vm714, %v4801, 0
        %v4831 = vsel %vm714, %v4802, 0
        %v4834 = vsel %vm714, %v4803, 0
        %v4837 = vsel %vm714, %v4804, 0
        %v4840 = vsel %vm714, %v4805, 0
        %v4843 = vsel %vm714, %v4806, 0
        %v4846 = vsel %vm714, %v4807, 0
        %4848 = vmatprep.subr.bf16.mxu0 0
        %4849 = vmatpush1.bf16.msra.mxu0 0
        %4850 = vmatprep.subr.bf16.mxu0 0
        %4851 = vmatpush1.bf16.msra.mxu0 0
        %4852 = vmatprep.subr.bf16.mxu0 0
        %4853 = vmatpush1.bf16.msra.mxu0 0
        %4854 = vmatprep.subr.bf16.mxu0 0
        %4855 = vmatpush1.bf16.msra.mxu0 0
        %4856 = vmatprep.subr.bf16.mxu0 0
        %4857 = vmatpush1.bf16.msra.mxu0 0
        %4858 = vmatprep.subr.bf16.mxu0 0
        %4859 = vmatpush1.bf16.msra.mxu0 0
        %4860 = vmatprep.subr.bf16.mxu0 0
        %4861 = vmatpush1.bf16.msra.mxu0 %v4821
        %4862 = vmatprep.subr.bf16.mxu0 0
        %4863 = vmatpush1.bf16.msra.mxu0 %v4820
        %4864 = vmatprep.subr.bf16.mxu0 0
        %4865 = vmatpush2.bf16.msra.mxu0 0
        %4866 = vmatprep.subr.bf16.mxu0 0
        %4867 = vmatpush2.bf16.msra.mxu0 0
        %4868 = vmatprep.subr.bf16.mxu0 0
        %4869 = vmatpush2.bf16.msra.mxu0 0
        %4870 = vmatprep.subr.bf16.mxu0 0
        %4871 = vmatpush2.bf16.msra.mxu0 0
        %4872 = vmatprep.subr.bf16.mxu0 0
        %4873 = vmatpush2.bf16.msra.mxu0 0
        %4874 = vmatprep.subr.bf16.mxu0 0
        %4875 = vmatpush2.bf16.msra.mxu0 0
        %4876 = vmatprep.subr.bf16.mxu0 0
        %4877 = vmatpush2.bf16.msra.mxu0 0
        %4878 = vmatprep.subr.bf16.mxu0 0
        %4879 = vmatpush2.bf16.msra.mxu0 0
        %4880 = vmatprep.mubr.bf16.mxu0 0
        %4881 = vmatmul.mubr.bf16.gmra.mxu0 %v4825
        %v4882 = vpop.f32.mrf.mxu0
        %v4883 = vadd.f32 0.0, %v4882
        %v4884 = vpop.f32.mrf.mxu0
        %v4885 = vpop.f32.mrf.mxu0
        %v4886 = vadd.f32 0.0, %v4885
        %v4887 = vpop.f32.mrf.mxu0
        %4888 = vmatprep.mubr.bf16.mxu0 0
        %4889 = vmatmul.mubr.bf16.gmra.mxu0 %v4828
        %v4890 = vpop.f32.mrf.mxu0
        %v4891 = vadd.f32 0.0, %v4890
        %v4892 = vpop.f32.mrf.mxu0
        %v4893 = vpop.f32.mrf.mxu0
        %v4894 = vadd.f32 0.0, %v4893
        %v4895 = vpop.f32.mrf.mxu0
        %4896 = vmatprep.mubr.bf16.mxu0 0
        %4897 = vmatmul.mubr.bf16.gmra.mxu0 %v4831
        %v4898 = vpop.f32.mrf.mxu0
        %v4899 = vadd.f32 0.0, %v4898
        %v4900 = vpop.f32.mrf.mxu0
        %v4901 = vpop.f32.mrf.mxu0
        %v4902 = vadd.f32 0.0, %v4901
        %v4903 = vpop.f32.mrf.mxu0
        %4904 = vmatprep.mubr.bf16.mxu0 0
        %4905 = vmatmul.mubr.bf16.gmra.mxu0 %v4834
        %v4906 = vpop.f32.mrf.mxu0
        %v4907 = vadd.f32 0.0, %v4906
        %v4908 = vpop.f32.mrf.mxu0
        %v4909 = vpop.f32.mrf.mxu0
        %v4910 = vadd.f32 0.0, %v4909
        %v4911 = vpop.f32.mrf.mxu0
        %4912 = vmatprep.mubr.bf16.mxu0 0
        %4913 = vmatmul.mubr.bf16.gmra.mxu0 %v4837
        %v4914 = vpop.f32.mrf.mxu0
        %v4915 = vadd.f32 0.0, %v4914
        %v4916 = vpop.f32.mrf.mxu0
        %v4917 = vpop.f32.mrf.mxu0
        %v4918 = vadd.f32 0.0, %v4917
        %v4919 = vpop.f32.mrf.mxu0
        %4920 = vmatprep.mubr.bf16.mxu0 0
        %4921 = vmatmul.mubr.bf16.gmra.mxu0 %v4840
        %v4922 = vpop.f32.mrf.mxu0
        %v4923 = vadd.f32 0.0, %v4922
        %v4924 = vpop.f32.mrf.mxu0
        %v4925 = vpop.f32.mrf.mxu0
        %v4926 = vadd.f32 0.0, %v4925
        %v4927 = vpop.f32.mrf.mxu0
        %4928 = vmatprep.mubr.bf16.mxu0 0
        %4929 = vmatmul.mubr.bf16.gmra.mxu0 %v4843
        %v4930 = vpop.f32.mrf.mxu0
        %v4931 = vadd.f32 0.0, %v4930
        %v4932 = vpop.f32.mrf.mxu0
        %v4933 = vpop.f32.mrf.mxu0
        %v4934 = vadd.f32 0.0, %v4933
        %v4935 = vpop.f32.mrf.mxu0
        %4936 = vmatprep.mubr.bf16.mxu0 0
        %4937 = vmatmul.mubr.bf16.gmra.mxu0 %v4846
        %v4938 = vpop.f32.mrf.mxu0
        %v4939 = vadd.f32 0.0, %v4938
        %v4940 = vpop.f32.mrf.mxu0
        %v4941 = vpop.f32.mrf.mxu0
        %v4942 = vadd.f32 0.0, %v4941
        %v4943 = vpop.f32.mrf.mxu0
        %4944 = vdwg.mxu0
        %v4945 = vadd.f32 %v4768, %v4883
        %v4946 = vadd.f32 %v4769, %v4886
        %v4947 = vadd.f32 %v4770, %v4891
        %v4948 = vadd.f32 %v4771, %v4894
        %v4949 = vadd.f32 %v4772, %v4899
        %v4950 = vadd.f32 %v4773, %v4902
        %v4951 = vadd.f32 %v4774, %v4907
        %v4952 = vadd.f32 %v4775, %v4910
        %v4953 = vadd.f32 %v4776, %v4915
        %v4954 = vadd.f32 %v4777, %v4918
        %v4955 = vadd.f32 %v4778, %v4923
        %v4956 = vadd.f32 %v4779, %v4926
        %v4957 = vadd.f32 %v4780, %v4931
        %v4958 = vadd.f32 %v4781, %v4934
        %v4959 = vadd.f32 %v4782, %v4939
        %v4960 = vadd.f32 %v4783, %v4942
        %v4961 = vld [vmem:[%s4606 + $0x2] sm:$0xff]
        %v4962 = vld [vmem:[%s4606 + $0xa] sm:$0xff]
        %v4963 = vld [vmem:[%s4606 + $0x1a] sm:$0xff]
        %v4964 = vld [vmem:[%s4606 + $0x22] sm:$0xff]
        %v4965 = vld [vmem:[%s4606 + $0x32] sm:$0xff]
        %v4966 = vld [vmem:[%s4606 + $0x3a] sm:$0xff]
        %v4967 = vld [vmem:[%s4606 + $0x4a] sm:$0xff]
        %v4968 = vld [vmem:[%s4606 + $0x52] sm:$0xff]
        %v4969 = vld [vmem:[%s4606 + $0x62] sm:$0xff]
        %v4970 = vld [vmem:[%s4606 + $0x6a] sm:$0xff]
        %v4971 = vld [vmem:[%s4606 + $0x7a] sm:$0xff]
        %v4972 = vld [vmem:[%s4606 + $0x82] sm:$0xff]
        %v4973 = vld [vmem:[%s4606 + $0x92] sm:$0xff]
        %v4974 = vld [vmem:[%s4606 + $0x9a] sm:$0xff]
        %v4975 = vld [vmem:[%s4606 + $0xaa] sm:$0xff]
        %v4976 = vld [vmem:[%s4606 + $0xb2] sm:$0xff]
        %v4977 = vpack.c.bf16 %v4962, %v4961
        %v4978 = vpack.c.bf16 %v4964, %v4963
        %v4979 = vpack.c.bf16 %v4966, %v4965
        %v4980 = vpack.c.bf16 %v4968, %v4967
        %v4981 = vpack.c.bf16 %v4970, %v4969
        %v4982 = vpack.c.bf16 %v4972, %v4971
        %v4983 = vpack.c.bf16 %v4974, %v4973
        %v4984 = vpack.c.bf16 %v4976, %v4975
        %v4985 = vld [vmem:[%s3361] sm:$0xf]
        %v4986 = vld [vmem:[%s3361 + $0x4] sm:$0xf]
        %v4987 = vld [vmem:[%s3361 + $0x8] sm:$0xf]
        %v4988 = vld [vmem:[%s3361 + $0xc] sm:$0xf]
        %v4993 = vunpack.c.l.b16 %v4985
        %v4994 = vunpack.c.l.b16 %v4986
        %v4995 = vunpack.c.l.b16 %v4987
        %v4996 = vunpack.c.l.b16 %v4988
        %v4997 = vpack.c.b16 %v4994, %v4993
        %v4998 = vpack.c.b16 %v4996, %v4995
        %v5002 = vsel %vm714, %v4977, 0
        %v5005 = vsel %vm714, %v4978, 0
        %v5008 = vsel %vm714, %v4979, 0
        %v5011 = vsel %vm714, %v4980, 0
        %v5014 = vsel %vm714, %v4981, 0
        %v5017 = vsel %vm714, %v4982, 0
        %v5020 = vsel %vm714, %v4983, 0
        %v5023 = vsel %vm714, %v4984, 0
        %5025 = vmatprep.subr.bf16.mxu0 0
        %5026 = vmatpush1.bf16.msra.mxu0 0
        %5027 = vmatprep.subr.bf16.mxu0 0
        %5028 = vmatpush1.bf16.msra.mxu0 0
        %5029 = vmatprep.subr.bf16.mxu0 0
        %5030 = vmatpush1.bf16.msra.mxu0 0
        %5031 = vmatprep.subr.bf16.mxu0 0
        %5032 = vmatpush1.bf16.msra.mxu0 0
        %5033 = vmatprep.subr.bf16.mxu0 0
        %5034 = vmatpush1.bf16.msra.mxu0 0
        %5035 = vmatprep.subr.bf16.mxu0 0
        %5036 = vmatpush1.bf16.msra.mxu0 0
        %5037 = vmatprep.subr.bf16.mxu0 0
        %5038 = vmatpush1.bf16.msra.mxu0 %v4998
        %5039 = vmatprep.subr.bf16.mxu0 0
        %5040 = vmatpush1.bf16.msra.mxu0 %v4997
        %5041 = vmatprep.subr.bf16.mxu0 0
        %5042 = vmatpush2.bf16.msra.mxu0 0
        %5043 = vmatprep.subr.bf16.mxu0 0
        %5044 = vmatpush2.bf16.msra.mxu0 0
        %5045 = vmatprep.subr.bf16.mxu0 0
        %5046 = vmatpush2.bf16.msra.mxu0 0
        %5047 = vmatprep.subr.bf16.mxu0 0
        %5048 = vmatpush2.bf16.msra.mxu0 0
        %5049 = vmatprep.subr.bf16.mxu0 0
        %5050 = vmatpush2.bf16.msra.mxu0 0
        %5051 = vmatprep.subr.bf16.mxu0 0
        %5052 = vmatpush2.bf16.msra.mxu0 0
        %5053 = vmatprep.subr.bf16.mxu0 0
        %5054 = vmatpush2.bf16.msra.mxu0 0
        %5055 = vmatprep.subr.bf16.mxu0 0
        %5056 = vmatpush2.bf16.msra.mxu0 0
        %5057 = vmatprep.mubr.bf16.mxu0 0
        %5058 = vmatmul.mubr.bf16.gmra.mxu0 %v5002
        %v5059 = vpop.f32.mrf.mxu0
        %v5060 = vadd.f32 0.0, %v5059
        %v5061 = vpop.f32.mrf.mxu0
        %v5062 = vpop.f32.mrf.mxu0
        %v5063 = vadd.f32 0.0, %v5062
        %v5064 = vpop.f32.mrf.mxu0
        %5065 = vmatprep.mubr.bf16.mxu0 0
        %5066 = vmatmul.mubr.bf16.gmra.mxu0 %v5005
        %v5067 = vpop.f32.mrf.mxu0
        %v5068 = vadd.f32 0.0, %v5067
        %v5069 = vpop.f32.mrf.mxu0
        %v5070 = vpop.f32.mrf.mxu0
        %v5071 = vadd.f32 0.0, %v5070
        %v5072 = vpop.f32.mrf.mxu0
        %5073 = vmatprep.mubr.bf16.mxu0 0
        %5074 = vmatmul.mubr.bf16.gmra.mxu0 %v5008
        %v5075 = vpop.f32.mrf.mxu0
        %v5076 = vadd.f32 0.0, %v5075
        %v5077 = vpop.f32.mrf.mxu0
        %v5078 = vpop.f32.mrf.mxu0
        %v5079 = vadd.f32 0.0, %v5078
        %v5080 = vpop.f32.mrf.mxu0
        %5081 = vmatprep.mubr.bf16.mxu0 0
        %5082 = vmatmul.mubr.bf16.gmra.mxu0 %v5011
        %v5083 = vpop.f32.mrf.mxu0
        %v5084 = vadd.f32 0.0, %v5083
        %v5085 = vpop.f32.mrf.mxu0
        %v5086 = vpop.f32.mrf.mxu0
        %v5087 = vadd.f32 0.0, %v5086
        %v5088 = vpop.f32.mrf.mxu0
        %5089 = vmatprep.mubr.bf16.mxu0 0
        %5090 = vmatmul.mubr.bf16.gmra.mxu0 %v5014
        %v5091 = vpop.f32.mrf.mxu0
        %v5092 = vadd.f32 0.0, %v5091
        %v5093 = vpop.f32.mrf.mxu0
        %v5094 = vpop.f32.mrf.mxu0
        %v5095 = vadd.f32 0.0, %v5094
        %v5096 = vpop.f32.mrf.mxu0
        %5097 = vmatprep.mubr.bf16.mxu0 0
        %5098 = vmatmul.mubr.bf16.gmra.mxu0 %v5017
        %v5099 = vpop.f32.mrf.mxu0
        %v5100 = vadd.f32 0.0, %v5099
        %v5101 = vpop.f32.mrf.mxu0
        %v5102 = vpop.f32.mrf.mxu0
        %v5103 = vadd.f32 0.0, %v5102
        %v5104 = vpop.f32.mrf.mxu0
        %5105 = vmatprep.mubr.bf16.mxu0 0
        %5106 = vmatmul.mubr.bf16.gmra.mxu0 %v5020
        %v5107 = vpop.f32.mrf.mxu0
        %v5108 = vadd.f32 0.0, %v5107
        %v5109 = vpop.f32.mrf.mxu0
        %v5110 = vpop.f32.mrf.mxu0
        %v5111 = vadd.f32 0.0, %v5110
        %v5112 = vpop.f32.mrf.mxu0
        %5113 = vmatprep.mubr.bf16.mxu0 0
        %5114 = vmatmul.mubr.bf16.gmra.mxu0 %v5023
        %v5115 = vpop.f32.mrf.mxu0
        %v5116 = vadd.f32 0.0, %v5115
        %v5117 = vpop.f32.mrf.mxu0
        %v5118 = vpop.f32.mrf.mxu0
        %v5119 = vadd.f32 0.0, %v5118
        %v5120 = vpop.f32.mrf.mxu0
        %5121 = vdwg.mxu0
        %v5122 = vadd.f32 %v4945, %v5060
        %v5123 = vadd.f32 %v4946, %v5063
        %v5124 = vadd.f32 %v4947, %v5068
        %v5125 = vadd.f32 %v4948, %v5071
        %v5126 = vadd.f32 %v4949, %v5076
        %v5127 = vadd.f32 %v4950, %v5079
        %v5128 = vadd.f32 %v4951, %v5084
        %v5129 = vadd.f32 %v4952, %v5087
        %v5130 = vadd.f32 %v4953, %v5092
        %v5131 = vadd.f32 %v4954, %v5095
        %v5132 = vadd.f32 %v4955, %v5100
        %v5133 = vadd.f32 %v4956, %v5103
        %v5134 = vadd.f32 %v4957, %v5108
        %v5135 = vadd.f32 %v4958, %v5111
        %v5136 = vadd.f32 %v4959, %v5116
        %v5137 = vadd.f32 %v4960, %v5119
        %s5138 = scalar_lea.vmem [#allocation3], 240
        %v5139 = vld [vmem:[%s5138] sm:$0xff]
        %v5140 = vld [vmem:[%s5138 + $0x8] sm:$0xff]
        %v5141 = vld [vmem:[%s5138 + $0x18] sm:$0xff]
        %v5142 = vld [vmem:[%s5138 + $0x20] sm:$0xff]
        %v5143 = vld [vmem:[%s5138 + $0x30] sm:$0xff]
        %v5144 = vld [vmem:[%s5138 + $0x38] sm:$0xff]
        %v5145 = vld [vmem:[%s5138 + $0x48] sm:$0xff]
        %v5146 = vld [vmem:[%s5138 + $0x50] sm:$0xff]
        %v5147 = vld [vmem:[%s5138 + $0x60] sm:$0xff]
        %v5148 = vld [vmem:[%s5138 + $0x68] sm:$0xff]
        %v5149 = vld [vmem:[%s5138 + $0x78] sm:$0xff]
        %v5150 = vld [vmem:[%s5138 + $0x80] sm:$0xff]
        %v5151 = vld [vmem:[%s5138 + $0x90] sm:$0xff]
        %v5152 = vld [vmem:[%s5138 + $0x98] sm:$0xff]
        %v5153 = vld [vmem:[%s5138 + $0xa8] sm:$0xff]
        %v5154 = vld [vmem:[%s5138 + $0xb0] sm:$0xff]
        %v5155 = vpack.c.bf16 %v5140, %v5139
        %v5156 = vpack.c.bf16 %v5142, %v5141
        %v5157 = vpack.c.bf16 %v5144, %v5143
        %v5158 = vpack.c.bf16 %v5146, %v5145
        %v5159 = vpack.c.bf16 %v5148, %v5147
        %v5160 = vpack.c.bf16 %v5150, %v5149
        %v5161 = vpack.c.bf16 %v5152, %v5151
        %v5162 = vpack.c.bf16 %v5154, %v5153
        %v5163 = vld [vmem:[%s3540] sm:$0xf]
        %v5164 = vld [vmem:[%s3540 + $0x4] sm:$0xf]
        %v5165 = vld [vmem:[%s3540 + $0x8] sm:$0xf]
        %v5166 = vld [vmem:[%s3540 + $0xc] sm:$0xf]
        %v5171 = vunpack.c.l.b16 %v5163
        %v5172 = vunpack.c.l.b16 %v5164
        %v5173 = vunpack.c.l.b16 %v5165
        %v5174 = vunpack.c.l.b16 %v5166
        %v5175 = vpack.c.b16 %v5172, %v5171
        %v5176 = vpack.c.b16 %v5174, %v5173
        %v5180 = vsel %vm714, %v5155, 0
        %v5183 = vsel %vm714, %v5156, 0
        %v5186 = vsel %vm714, %v5157, 0
        %v5189 = vsel %vm714, %v5158, 0
        %v5192 = vsel %vm714, %v5159, 0
        %v5195 = vsel %vm714, %v5160, 0
        %v5198 = vsel %vm714, %v5161, 0
        %v5201 = vsel %vm714, %v5162, 0
        %5203 = vmatprep.subr.bf16.mxu0 0
        %5204 = vmatpush1.bf16.msra.mxu0 0
        %5205 = vmatprep.subr.bf16.mxu0 0
        %5206 = vmatpush1.bf16.msra.mxu0 0
        %5207 = vmatprep.subr.bf16.mxu0 0
        %5208 = vmatpush1.bf16.msra.mxu0 0
        %5209 = vmatprep.subr.bf16.mxu0 0
        %5210 = vmatpush1.bf16.msra.mxu0 0
        %5211 = vmatprep.subr.bf16.mxu0 0
        %5212 = vmatpush1.bf16.msra.mxu0 0
        %5213 = vmatprep.subr.bf16.mxu0 0
        %5214 = vmatpush1.bf16.msra.mxu0 0
        %5215 = vmatprep.subr.bf16.mxu0 0
        %5216 = vmatpush1.bf16.msra.mxu0 %v5176
        %5217 = vmatprep.subr.bf16.mxu0 0
        %5218 = vmatpush1.bf16.msra.mxu0 %v5175
        %5219 = vmatprep.subr.bf16.mxu0 0
        %5220 = vmatpush2.bf16.msra.mxu0 0
        %5221 = vmatprep.subr.bf16.mxu0 0
        %5222 = vmatpush2.bf16.msra.mxu0 0
        %5223 = vmatprep.subr.bf16.mxu0 0
        %5224 = vmatpush2.bf16.msra.mxu0 0
        %5225 = vmatprep.subr.bf16.mxu0 0
        %5226 = vmatpush2.bf16.msra.mxu0 0
        %5227 = vmatprep.subr.bf16.mxu0 0
        %5228 = vmatpush2.bf16.msra.mxu0 0
        %5229 = vmatprep.subr.bf16.mxu0 0
        %5230 = vmatpush2.bf16.msra.mxu0 0
        %5231 = vmatprep.subr.bf16.mxu0 0
        %5232 = vmatpush2.bf16.msra.mxu0 0
        %5233 = vmatprep.subr.bf16.mxu0 0
        %5234 = vmatpush2.bf16.msra.mxu0 0
        %5235 = vmatprep.mubr.bf16.mxu0 0
        %5236 = vmatmul.mubr.bf16.gmra.mxu0 %v5180
        %v5237 = vpop.f32.mrf.mxu0
        %v5238 = vadd.f32 0.0, %v5237
        %v5239 = vpop.f32.mrf.mxu0
        %v5240 = vpop.f32.mrf.mxu0
        %v5241 = vadd.f32 0.0, %v5240
        %v5242 = vpop.f32.mrf.mxu0
        %5243 = vmatprep.mubr.bf16.mxu0 0
        %5244 = vmatmul.mubr.bf16.gmra.mxu0 %v5183
        %v5245 = vpop.f32.mrf.mxu0
        %v5246 = vadd.f32 0.0, %v5245
        %v5247 = vpop.f32.mrf.mxu0
        %v5248 = vpop.f32.mrf.mxu0
        %v5249 = vadd.f32 0.0, %v5248
        %v5250 = vpop.f32.mrf.mxu0
        %5251 = vmatprep.mubr.bf16.mxu0 0
        %5252 = vmatmul.mubr.bf16.gmra.mxu0 %v5186
        %v5253 = vpop.f32.mrf.mxu0
        %v5254 = vadd.f32 0.0, %v5253
        %v5255 = vpop.f32.mrf.mxu0
        %v5256 = vpop.f32.mrf.mxu0
        %v5257 = vadd.f32 0.0, %v5256
        %v5258 = vpop.f32.mrf.mxu0
        %5259 = vmatprep.mubr.bf16.mxu0 0
        %5260 = vmatmul.mubr.bf16.gmra.mxu0 %v5189
        %v5261 = vpop.f32.mrf.mxu0
        %v5262 = vadd.f32 0.0, %v5261
        %v5263 = vpop.f32.mrf.mxu0
        %v5264 = vpop.f32.mrf.mxu0
        %v5265 = vadd.f32 0.0, %v5264
        %v5266 = vpop.f32.mrf.mxu0
        %5267 = vmatprep.mubr.bf16.mxu0 0
        %5268 = vmatmul.mubr.bf16.gmra.mxu0 %v5192
        %v5269 = vpop.f32.mrf.mxu0
        %v5270 = vadd.f32 0.0, %v5269
        %v5271 = vpop.f32.mrf.mxu0
        %v5272 = vpop.f32.mrf.mxu0
        %v5273 = vadd.f32 0.0, %v5272
        %v5274 = vpop.f32.mrf.mxu0
        %5275 = vmatprep.mubr.bf16.mxu0 0
        %5276 = vmatmul.mubr.bf16.gmra.mxu0 %v5195
        %v5277 = vpop.f32.mrf.mxu0
        %v5278 = vadd.f32 0.0, %v5277
        %v5279 = vpop.f32.mrf.mxu0
        %v5280 = vpop.f32.mrf.mxu0
        %v5281 = vadd.f32 0.0, %v5280
        %v5282 = vpop.f32.mrf.mxu0
        %5283 = vmatprep.mubr.bf16.mxu0 0
        %5284 = vmatmul.mubr.bf16.gmra.mxu0 %v5198
        %v5285 = vpop.f32.mrf.mxu0
        %v5286 = vadd.f32 0.0, %v5285
        %v5287 = vpop.f32.mrf.mxu0
        %v5288 = vpop.f32.mrf.mxu0
        %v5289 = vadd.f32 0.0, %v5288
        %v5290 = vpop.f32.mrf.mxu0
        %5291 = vmatprep.mubr.bf16.mxu0 0
        %5292 = vmatmul.mubr.bf16.gmra.mxu0 %v5201
        %v5293 = vpop.f32.mrf.mxu0
        %v5294 = vadd.f32 0.0, %v5293
        %v5295 = vpop.f32.mrf.mxu0
        %v5296 = vpop.f32.mrf.mxu0
        %v5297 = vadd.f32 0.0, %v5296
        %v5298 = vpop.f32.mrf.mxu0
        %5299 = vdwg.mxu0
        %v5300 = vadd.f32 %v5122, %v5238
        %v5301 = vadd.f32 %v5123, %v5241
        %v5302 = vadd.f32 %v5124, %v5246
        %v5303 = vadd.f32 %v5125, %v5249
        %v5304 = vadd.f32 %v5126, %v5254
        %v5305 = vadd.f32 %v5127, %v5257
        %v5306 = vadd.f32 %v5128, %v5262
        %v5307 = vadd.f32 %v5129, %v5265
        %v5308 = vadd.f32 %v5130, %v5270
        %v5309 = vadd.f32 %v5131, %v5273
        %v5310 = vadd.f32 %v5132, %v5278
        %v5311 = vadd.f32 %v5133, %v5281
        %v5312 = vadd.f32 %v5134, %v5286
        %v5313 = vadd.f32 %v5135, %v5289
        %v5314 = vadd.f32 %v5136, %v5294
        %v5315 = vadd.f32 %v5137, %v5297
        %v5316 = vld [vmem:[%s5138 + $0x1] sm:$0xff]
        %v5317 = vld [vmem:[%s5138 + $0x9] sm:$0xff]
        %v5318 = vld [vmem:[%s5138 + $0x19] sm:$0xff]
        %v5319 = vld [vmem:[%s5138 + $0x21] sm:$0xff]
        %v5320 = vld [vmem:[%s5138 + $0x31] sm:$0xff]
        %v5321 = vld [vmem:[%s5138 + $0x39] sm:$0xff]
        %v5322 = vld [vmem:[%s5138 + $0x49] sm:$0xff]
        %v5323 = vld [vmem:[%s5138 + $0x51] sm:$0xff]
        %v5324 = vld [vmem:[%s5138 + $0x61] sm:$0xff]
        %v5325 = vld [vmem:[%s5138 + $0x69] sm:$0xff]
        %v5326 = vld [vmem:[%s5138 + $0x79] sm:$0xff]
        %v5327 = vld [vmem:[%s5138 + $0x81] sm:$0xff]
        %v5328 = vld [vmem:[%s5138 + $0x91] sm:$0xff]
        %v5329 = vld [vmem:[%s5138 + $0x99] sm:$0xff]
        %v5330 = vld [vmem:[%s5138 + $0xa9] sm:$0xff]
        %v5331 = vld [vmem:[%s5138 + $0xb1] sm:$0xff]
        %v5332 = vpack.c.bf16 %v5317, %v5316
        %v5333 = vpack.c.bf16 %v5319, %v5318
        %v5334 = vpack.c.bf16 %v5321, %v5320
        %v5335 = vpack.c.bf16 %v5323, %v5322
        %v5336 = vpack.c.bf16 %v5325, %v5324
        %v5337 = vpack.c.bf16 %v5327, %v5326
        %v5338 = vpack.c.bf16 %v5329, %v5328
        %v5339 = vpack.c.bf16 %v5331, %v5330
        %v5340 = vld [vmem:[%s3718] sm:$0xf]
        %v5341 = vld [vmem:[%s3718 + $0x4] sm:$0xf]
        %v5342 = vld [vmem:[%s3718 + $0x8] sm:$0xf]
        %v5343 = vld [vmem:[%s3718 + $0xc] sm:$0xf]
        %v5348 = vunpack.c.l.b16 %v5340
        %v5349 = vunpack.c.l.b16 %v5341
        %v5350 = vunpack.c.l.b16 %v5342
        %v5351 = vunpack.c.l.b16 %v5343
        %v5352 = vpack.c.b16 %v5349, %v5348
        %v5353 = vpack.c.b16 %v5351, %v5350
        %v5357 = vsel %vm714, %v5332, 0
        %v5360 = vsel %vm714, %v5333, 0
        %v5363 = vsel %vm714, %v5334, 0
        %v5366 = vsel %vm714, %v5335, 0
        %v5369 = vsel %vm714, %v5336, 0
        %v5372 = vsel %vm714, %v5337, 0
        %v5375 = vsel %vm714, %v5338, 0
        %v5378 = vsel %vm714, %v5339, 0
        %5380 = vmatprep.subr.bf16.mxu0 0
        %5381 = vmatpush1.bf16.msra.mxu0 0
        %5382 = vmatprep.subr.bf16.mxu0 0
        %5383 = vmatpush1.bf16.msra.mxu0 0
        %5384 = vmatprep.subr.bf16.mxu0 0
        %5385 = vmatpush1.bf16.msra.mxu0 0
        %5386 = vmatprep.subr.bf16.mxu0 0
        %5387 = vmatpush1.bf16.msra.mxu0 0
        %5388 = vmatprep.subr.bf16.mxu0 0
        %5389 = vmatpush1.bf16.msra.mxu0 0
        %5390 = vmatprep.subr.bf16.mxu0 0
        %5391 = vmatpush1.bf16.msra.mxu0 0
        %5392 = vmatprep.subr.bf16.mxu0 0
        %5393 = vmatpush1.bf16.msra.mxu0 %v5353
        %5394 = vmatprep.subr.bf16.mxu0 0
        %5395 = vmatpush1.bf16.msra.mxu0 %v5352
        %5396 = vmatprep.subr.bf16.mxu0 0
        %5397 = vmatpush2.bf16.msra.mxu0 0
        %5398 = vmatprep.subr.bf16.mxu0 0
        %5399 = vmatpush2.bf16.msra.mxu0 0
        %5400 = vmatprep.subr.bf16.mxu0 0
        %5401 = vmatpush2.bf16.msra.mxu0 0
        %5402 = vmatprep.subr.bf16.mxu0 0
        %5403 = vmatpush2.bf16.msra.mxu0 0
        %5404 = vmatprep.subr.bf16.mxu0 0
        %5405 = vmatpush2.bf16.msra.mxu0 0
        %5406 = vmatprep.subr.bf16.mxu0 0
        %5407 = vmatpush2.bf16.msra.mxu0 0
        %5408 = vmatprep.subr.bf16.mxu0 0
        %5409 = vmatpush2.bf16.msra.mxu0 0
        %5410 = vmatprep.subr.bf16.mxu0 0
        %5411 = vmatpush2.bf16.msra.mxu0 0
        %5412 = vmatprep.mubr.bf16.mxu0 0
        %5413 = vmatmul.mubr.bf16.gmra.mxu0 %v5357
        %v5414 = vpop.f32.mrf.mxu0
        %v5415 = vadd.f32 0.0, %v5414
        %v5416 = vpop.f32.mrf.mxu0
        %v5417 = vpop.f32.mrf.mxu0
        %v5418 = vadd.f32 0.0, %v5417
        %v5419 = vpop.f32.mrf.mxu0
        %5420 = vmatprep.mubr.bf16.mxu0 0
        %5421 = vmatmul.mubr.bf16.gmra.mxu0 %v5360
        %v5422 = vpop.f32.mrf.mxu0
        %v5423 = vadd.f32 0.0, %v5422
        %v5424 = vpop.f32.mrf.mxu0
        %v5425 = vpop.f32.mrf.mxu0
        %v5426 = vadd.f32 0.0, %v5425
        %v5427 = vpop.f32.mrf.mxu0
        %5428 = vmatprep.mubr.bf16.mxu0 0
        %5429 = vmatmul.mubr.bf16.gmra.mxu0 %v5363
        %v5430 = vpop.f32.mrf.mxu0
        %v5431 = vadd.f32 0.0, %v5430
        %v5432 = vpop.f32.mrf.mxu0
        %v5433 = vpop.f32.mrf.mxu0
        %v5434 = vadd.f32 0.0, %v5433
        %v5435 = vpop.f32.mrf.mxu0
        %5436 = vmatprep.mubr.bf16.mxu0 0
        %5437 = vmatmul.mubr.bf16.gmra.mxu0 %v5366
        %v5438 = vpop.f32.mrf.mxu0
        %v5439 = vadd.f32 0.0, %v5438
        %v5440 = vpop.f32.mrf.mxu0
        %v5441 = vpop.f32.mrf.mxu0
        %v5442 = vadd.f32 0.0, %v5441
        %v5443 = vpop.f32.mrf.mxu0
        %5444 = vmatprep.mubr.bf16.mxu0 0
        %5445 = vmatmul.mubr.bf16.gmra.mxu0 %v5369
        %v5446 = vpop.f32.mrf.mxu0
        %v5447 = vadd.f32 0.0, %v5446
        %v5448 = vpop.f32.mrf.mxu0
        %v5449 = vpop.f32.mrf.mxu0
        %v5450 = vadd.f32 0.0, %v5449
        %v5451 = vpop.f32.mrf.mxu0
        %5452 = vmatprep.mubr.bf16.mxu0 0
        %5453 = vmatmul.mubr.bf16.gmra.mxu0 %v5372
        %v5454 = vpop.f32.mrf.mxu0
        %v5455 = vadd.f32 0.0, %v5454
        %v5456 = vpop.f32.mrf.mxu0
        %v5457 = vpop.f32.mrf.mxu0
        %v5458 = vadd.f32 0.0, %v5457
        %v5459 = vpop.f32.mrf.mxu0
        %5460 = vmatprep.mubr.bf16.mxu0 0
        %5461 = vmatmul.mubr.bf16.gmra.mxu0 %v5375
        %v5462 = vpop.f32.mrf.mxu0
        %v5463 = vadd.f32 0.0, %v5462
        %v5464 = vpop.f32.mrf.mxu0
        %v5465 = vpop.f32.mrf.mxu0
        %v5466 = vadd.f32 0.0, %v5465
        %v5467 = vpop.f32.mrf.mxu0
        %5468 = vmatprep.mubr.bf16.mxu0 0
        %5469 = vmatmul.mubr.bf16.gmra.mxu0 %v5378
        %v5470 = vpop.f32.mrf.mxu0
        %v5471 = vadd.f32 0.0, %v5470
        %v5472 = vpop.f32.mrf.mxu0
        %v5473 = vpop.f32.mrf.mxu0
        %v5474 = vadd.f32 0.0, %v5473
        %v5475 = vpop.f32.mrf.mxu0
        %5476 = vdwg.mxu0
        %v5477 = vadd.f32 %v5300, %v5415
        %v5478 = vadd.f32 %v5301, %v5418
        %v5479 = vadd.f32 %v5302, %v5423
        %v5480 = vadd.f32 %v5303, %v5426
        %v5481 = vadd.f32 %v5304, %v5431
        %v5482 = vadd.f32 %v5305, %v5434
        %v5483 = vadd.f32 %v5306, %v5439
        %v5484 = vadd.f32 %v5307, %v5442
        %v5485 = vadd.f32 %v5308, %v5447
        %v5486 = vadd.f32 %v5309, %v5450
        %v5487 = vadd.f32 %v5310, %v5455
        %v5488 = vadd.f32 %v5311, %v5458
        %v5489 = vadd.f32 %v5312, %v5463
        %v5490 = vadd.f32 %v5313, %v5466
        %v5491 = vadd.f32 %v5314, %v5471
        %v5492 = vadd.f32 %v5315, %v5474
        %v5493 = vld [vmem:[%s5138 + $0x2] sm:$0xff]
        %v5494 = vld [vmem:[%s5138 + $0xa] sm:$0xff]
        %v5495 = vld [vmem:[%s5138 + $0x1a] sm:$0xff]
        %v5496 = vld [vmem:[%s5138 + $0x22] sm:$0xff]
        %v5497 = vld [vmem:[%s5138 + $0x32] sm:$0xff]
        %v5498 = vld [vmem:[%s5138 + $0x3a] sm:$0xff]
        %v5499 = vld [vmem:[%s5138 + $0x4a] sm:$0xff]
        %v5500 = vld [vmem:[%s5138 + $0x52] sm:$0xff]
        %v5501 = vld [vmem:[%s5138 + $0x62] sm:$0xff]
        %v5502 = vld [vmem:[%s5138 + $0x6a] sm:$0xff]
        %v5503 = vld [vmem:[%s5138 + $0x7a] sm:$0xff]
        %v5504 = vld [vmem:[%s5138 + $0x82] sm:$0xff]
        %v5505 = vld [vmem:[%s5138 + $0x92] sm:$0xff]
        %v5506 = vld [vmem:[%s5138 + $0x9a] sm:$0xff]
        %v5507 = vld [vmem:[%s5138 + $0xaa] sm:$0xff]
        %v5508 = vld [vmem:[%s5138 + $0xb2] sm:$0xff]
        %v5509 = vpack.c.bf16 %v5494, %v5493
        %v5510 = vpack.c.bf16 %v5496, %v5495
        %v5511 = vpack.c.bf16 %v5498, %v5497
        %v5512 = vpack.c.bf16 %v5500, %v5499
        %v5513 = vpack.c.bf16 %v5502, %v5501
        %v5514 = vpack.c.bf16 %v5504, %v5503
        %v5515 = vpack.c.bf16 %v5506, %v5505
        %v5516 = vpack.c.bf16 %v5508, %v5507
        %v5517 = vld [vmem:[%s3896] sm:$0xf]
        %v5518 = vld [vmem:[%s3896 + $0x4] sm:$0xf]
        %v5519 = vld [vmem:[%s3896 + $0x8] sm:$0xf]
        %v5520 = vld [vmem:[%s3896 + $0xc] sm:$0xf]
        %v5525 = vunpack.c.l.b16 %v5517
        %v5526 = vunpack.c.l.b16 %v5518
        %v5527 = vunpack.c.l.b16 %v5519
        %v5528 = vunpack.c.l.b16 %v5520
        %v5529 = vpack.c.b16 %v5526, %v5525
        %v5530 = vpack.c.b16 %v5528, %v5527
        %v5534 = vsel %vm714, %v5509, 0
        %v5537 = vsel %vm714, %v5510, 0
        %v5540 = vsel %vm714, %v5511, 0
        %v5543 = vsel %vm714, %v5512, 0
        %v5546 = vsel %vm714, %v5513, 0
        %v5549 = vsel %vm714, %v5514, 0
        %v5552 = vsel %vm714, %v5515, 0
        %v5555 = vsel %vm714, %v5516, 0
        %5557 = vmatprep.subr.bf16.mxu0 0
        %5558 = vmatpush1.bf16.msra.mxu0 0
        %5559 = vmatprep.subr.bf16.mxu0 0
        %5560 = vmatpush1.bf16.msra.mxu0 0
        %5561 = vmatprep.subr.bf16.mxu0 0
        %5562 = vmatpush1.bf16.msra.mxu0 0
        %5563 = vmatprep.subr.bf16.mxu0 0
        %5564 = vmatpush1.bf16.msra.mxu0 0
        %5565 = vmatprep.subr.bf16.mxu0 0
        %5566 = vmatpush1.bf16.msra.mxu0 0
        %5567 = vmatprep.subr.bf16.mxu0 0
        %5568 = vmatpush1.bf16.msra.mxu0 0
        %5569 = vmatprep.subr.bf16.mxu0 0
        %5570 = vmatpush1.bf16.msra.mxu0 %v5530
        %5571 = vmatprep.subr.bf16.mxu0 0
        %5572 = vmatpush1.bf16.msra.mxu0 %v5529
        %5573 = vmatprep.subr.bf16.mxu0 0
        %5574 = vmatpush2.bf16.msra.mxu0 0
        %5575 = vmatprep.subr.bf16.mxu0 0
        %5576 = vmatpush2.bf16.msra.mxu0 0
        %5577 = vmatprep.subr.bf16.mxu0 0
        %5578 = vmatpush2.bf16.msra.mxu0 0
        %5579 = vmatprep.subr.bf16.mxu0 0
        %5580 = vmatpush2.bf16.msra.mxu0 0
        %5581 = vmatprep.subr.bf16.mxu0 0
        %5582 = vmatpush2.bf16.msra.mxu0 0
        %5583 = vmatprep.subr.bf16.mxu0 0
        %5584 = vmatpush2.bf16.msra.mxu0 0
        %5585 = vmatprep.subr.bf16.mxu0 0
        %5586 = vmatpush2.bf16.msra.mxu0 0
        %5587 = vmatprep.subr.bf16.mxu0 0
        %5588 = vmatpush2.bf16.msra.mxu0 0
        %5589 = vmatprep.mubr.bf16.mxu0 0
        %5590 = vmatmul.mubr.bf16.gmra.mxu0 %v5534
        %v5591 = vpop.f32.mrf.mxu0
        %v5592 = vadd.f32 0.0, %v5591
        %v5593 = vpop.f32.mrf.mxu0
        %v5594 = vpop.f32.mrf.mxu0
        %v5595 = vadd.f32 0.0, %v5594
        %v5596 = vpop.f32.mrf.mxu0
        %5597 = vmatprep.mubr.bf16.mxu0 0
        %5598 = vmatmul.mubr.bf16.gmra.mxu0 %v5537
        %v5599 = vpop.f32.mrf.mxu0
        %v5600 = vadd.f32 0.0, %v5599
        %v5601 = vpop.f32.mrf.mxu0
        %v5602 = vpop.f32.mrf.mxu0
        %v5603 = vadd.f32 0.0, %v5602
        %v5604 = vpop.f32.mrf.mxu0
        %5605 = vmatprep.mubr.bf16.mxu0 0
        %5606 = vmatmul.mubr.bf16.gmra.mxu0 %v5540
        %v5607 = vpop.f32.mrf.mxu0
        %v5608 = vadd.f32 0.0, %v5607
        %v5609 = vpop.f32.mrf.mxu0
        %v5610 = vpop.f32.mrf.mxu0
        %v5611 = vadd.f32 0.0, %v5610
        %v5612 = vpop.f32.mrf.mxu0
        %5613 = vmatprep.mubr.bf16.mxu0 0
        %5614 = vmatmul.mubr.bf16.gmra.mxu0 %v5543
        %v5615 = vpop.f32.mrf.mxu0
        %v5616 = vadd.f32 0.0, %v5615
        %v5617 = vpop.f32.mrf.mxu0
        %v5618 = vpop.f32.mrf.mxu0
        %v5619 = vadd.f32 0.0, %v5618
        %v5620 = vpop.f32.mrf.mxu0
        %5621 = vmatprep.mubr.bf16.mxu0 0
        %5622 = vmatmul.mubr.bf16.gmra.mxu0 %v5546
        %v5623 = vpop.f32.mrf.mxu0
        %v5624 = vadd.f32 0.0, %v5623
        %v5625 = vpop.f32.mrf.mxu0
        %v5626 = vpop.f32.mrf.mxu0
        %v5627 = vadd.f32 0.0, %v5626
        %v5628 = vpop.f32.mrf.mxu0
        %5629 = vmatprep.mubr.bf16.mxu0 0
        %5630 = vmatmul.mubr.bf16.gmra.mxu0 %v5549
        %v5631 = vpop.f32.mrf.mxu0
        %v5632 = vadd.f32 0.0, %v5631
        %v5633 = vpop.f32.mrf.mxu0
        %v5634 = vpop.f32.mrf.mxu0
        %v5635 = vadd.f32 0.0, %v5634
        %v5636 = vpop.f32.mrf.mxu0
        %5637 = vmatprep.mubr.bf16.mxu0 0
        %5638 = vmatmul.mubr.bf16.gmra.mxu0 %v5552
        %v5639 = vpop.f32.mrf.mxu0
        %v5640 = vadd.f32 0.0, %v5639
        %v5641 = vpop.f32.mrf.mxu0
        %v5642 = vpop.f32.mrf.mxu0
        %v5643 = vadd.f32 0.0, %v5642
        %v5644 = vpop.f32.mrf.mxu0
        %5645 = vmatprep.mubr.bf16.mxu0 0
        %5646 = vmatmul.mubr.bf16.gmra.mxu0 %v5555
        %v5647 = vpop.f32.mrf.mxu0
        %v5648 = vadd.f32 0.0, %v5647
        %v5649 = vpop.f32.mrf.mxu0
        %v5650 = vpop.f32.mrf.mxu0
        %v5651 = vadd.f32 0.0, %v5650
        %v5652 = vpop.f32.mrf.mxu0
        %5653 = vdwg.mxu0
        %v5654 = vadd.f32 %v5477, %v5592
        %v5655 = vadd.f32 %v5478, %v5595
        %v5656 = vadd.f32 %v5479, %v5600
        %v5657 = vadd.f32 %v5480, %v5603
        %v5658 = vadd.f32 %v5481, %v5608
        %v5659 = vadd.f32 %v5482, %v5611
        %v5660 = vadd.f32 %v5483, %v5616
        %v5661 = vadd.f32 %v5484, %v5619
        %v5662 = vadd.f32 %v5485, %v5624
        %v5663 = vadd.f32 %v5486, %v5627
        %v5664 = vadd.f32 %v5487, %v5632
        %v5665 = vadd.f32 %v5488, %v5635
        %v5666 = vadd.f32 %v5489, %v5640
        %v5667 = vadd.f32 %v5490, %v5643
        %v5668 = vadd.f32 %v5491, %v5648
        %v5669 = vadd.f32 %v5492, %v5651
        %v5670 = vld [vmem:[%s4] sm:$0x1]
        %v5672 = vlaneseq
        %v5673 = vshrl.u32 %v5672, 7
        %v5674 = vsub.s32 0, %v5673
        %v5675 = vrot.slane %v5670, %v5674
        %v5677 = vadd.f32 %v5654, %v5675
        %v5678 = vadd.f32 %v5655, %v5675
        %v5679 = vadd.f32 %v5656, %v5675
        %v5680 = vadd.f32 %v5657, %v5675
        %v5681 = vadd.f32 %v5658, %v5675
        %v5682 = vadd.f32 %v5659, %v5675
        %v5683 = vadd.f32 %v5660, %v5675
        %v5684 = vadd.f32 %v5661, %v5675
        %v5685 = vadd.f32 %v5662, %v5675
        %v5686 = vadd.f32 %v5663, %v5675
        %v5687 = vadd.f32 %v5664, %v5675
        %v5688 = vadd.f32 %v5665, %v5675
        %v5689 = vadd.f32 %v5666, %v5675
        %v5690 = vadd.f32 %v5667, %v5675
        %v5691 = vadd.f32 %v5668, %v5675
        %v5692 = vadd.f32 %v5669, %v5675
        %v5693 = vmax.f32 %v5677, 0.0
        %v5694 = vmax.f32 %v5678, 0.0
        %v5695 = vmax.f32 %v5679, 0.0
        %v5696 = vmax.f32 %v5680, 0.0
        %v5697 = vmax.f32 %v5681, 0.0
        %v5698 = vmax.f32 %v5682, 0.0
        %v5699 = vmax.f32 %v5683, 0.0
        %v5700 = vmax.f32 %v5684, 0.0
        %v5701 = vmax.f32 %v5685, 0.0
        %v5702 = vmax.f32 %v5686, 0.0
        %v5703 = vmax.f32 %v5687, 0.0
        %v5704 = vmax.f32 %v5688, 0.0
        %v5705 = vmax.f32 %v5689, 0.0
        %v5706 = vmax.f32 %v5690, 0.0
        %v5707 = vmax.f32 %v5691, 0.0
        %v5708 = vmax.f32 %v5692, 0.0
        %5709 = vst.msk [vmem:[#allocation4 + $0x80] sm:$0xff] %vm4089, %v5693
        %5710 = vst.msk [vmem:[#allocation4 + $0x88] sm:$0xff] %vm4089, %v5694
        %5711 = vst.msk [vmem:[#allocation4 + $0x90] sm:$0xff] %vm4089, %v5695
        %5712 = vst.msk [vmem:[#allocation4 + $0x98] sm:$0xff] %vm4089, %v5696
        %5713 = vst.msk [vmem:[#allocation4 + $0xa0] sm:$0xff] %vm4089, %v5697
        %5714 = vst.msk [vmem:[#allocation4 + $0xa8] sm:$0xff] %vm4089, %v5698
        %5715 = vst.msk [vmem:[#allocation4 + $0xb0] sm:$0xff] %vm4089, %v5699
        %5716 = vst.msk [vmem:[#allocation4 + $0xb8] sm:$0xff] %vm4089, %v5700
        %5717 = vst.msk [vmem:[#allocation4 + $0xc0] sm:$0xff] %vm4089, %v5701
        %5718 = vst.msk [vmem:[#allocation4 + $0xc8] sm:$0xff] %vm4089, %v5702
        %5719 = vst.msk [vmem:[#allocation4 + $0xd0] sm:$0xff] %vm4089, %v5703
        %5720 = vst.msk [vmem:[#allocation4 + $0xd8] sm:$0xff] %vm4089, %v5704
        %5721 = vst.msk [vmem:[#allocation4 + $0xe0] sm:$0xff] %vm4089, %v5705
        %5722 = vst.msk [vmem:[#allocation4 + $0xe8] sm:$0xff] %vm4089, %v5706
        %5723 = vst.msk [vmem:[#allocation4 + $0xf0] sm:$0xff] %vm4089, %v5707
        %5724 = vst.msk [vmem:[#allocation4 + $0xf8] sm:$0xff] %vm4089, %v5708
        %v5725 = vld [vmem:[#allocation4] ss:$2 sm:$0xff]
        %s5726 = scalar_lea.vmem [#allocation4], 16
        %v5727 = vld [vmem:[%s5726] ss:$2 sm:$0xff]
        %s5728 = scalar_lea.vmem [#allocation4], 32
        %v5729 = vld [vmem:[%s5728] ss:$2 sm:$0xff]
        %s5730 = scalar_lea.vmem [#allocation4], 48
        %v5731 = vld [vmem:[%s5730] ss:$2 sm:$0xff]
        %s5732 = scalar_lea.vmem [#allocation4], 64
        %v5733 = vld [vmem:[%s5732] ss:$2 sm:$0xff]
        %s5734 = scalar_lea.vmem [#allocation4], 80
        %v5735 = vld [vmem:[%s5734] ss:$2 sm:$0xff]
        %s5736 = scalar_lea.vmem [#allocation4], 96
        %v5737 = vld [vmem:[%s5736] ss:$2 sm:$0xff]
        %s5738 = scalar_lea.vmem [#allocation4], 112
        %v5739 = vld [vmem:[%s5738] ss:$2 sm:$0xff]
        %s5740 = scalar_lea.vmem [#allocation4], 128
        %v5741 = vld [vmem:[%s5740] ss:$2 sm:$0xff]
        %s5742 = scalar_lea.vmem [#allocation4], 144
        %v5743 = vld [vmem:[%s5742] ss:$2 sm:$0xff]
        %s5744 = scalar_lea.vmem [#allocation4], 160
        %v5745 = vld [vmem:[%s5744] ss:$2 sm:$0xff]
        %s5746 = scalar_lea.vmem [#allocation4], 176
        %v5747 = vld [vmem:[%s5746] ss:$2 sm:$0xff]
        %s5748 = scalar_lea.vmem [#allocation4], 192
        %v5749 = vld [vmem:[%s5748] ss:$2 sm:$0xff]
        %s5750 = scalar_lea.vmem [#allocation4], 208
        %v5751 = vld [vmem:[%s5750] ss:$2 sm:$0xff]
        %s5752 = scalar_lea.vmem [#allocation4], 224
        %v5753 = vld [vmem:[%s5752] ss:$2 sm:$0xff]
        %s5754 = scalar_lea.vmem [#allocation4], 240
        %v5755 = vld [vmem:[%s5754] ss:$2 sm:$0xff]
        %s5756 = scalar_lea.vmem [#allocation4], 1
        %v5757 = vld [vmem:[%s5756] ss:$2 sm:$0xff]
        %s5758 = scalar_lea.vmem [#allocation4], 17
        %v5759 = vld [vmem:[%s5758] ss:$2 sm:$0xff]
        %s5760 = scalar_lea.vmem [#allocation4], 33
        %v5761 = vld [vmem:[%s5760] ss:$2 sm:$0xff]
        %s5762 = scalar_lea.vmem [#allocation4], 49
        %v5763 = vld [vmem:[%s5762] ss:$2 sm:$0xff]
        %s5764 = scalar_lea.vmem [#allocation4], 65
        %v5765 = vld [vmem:[%s5764] ss:$2 sm:$0xff]
        %s5766 = scalar_lea.vmem [#allocation4], 81
        %v5767 = vld [vmem:[%s5766] ss:$2 sm:$0xff]
        %s5768 = scalar_lea.vmem [#allocation4], 97
        %v5769 = vld [vmem:[%s5768] ss:$2 sm:$0xff]
        %s5770 = scalar_lea.vmem [#allocation4], 113
        %v5771 = vld [vmem:[%s5770] ss:$2 sm:$0xff]
        %s5772 = scalar_lea.vmem [#allocation4], 129
        %v5773 = vld [vmem:[%s5772] ss:$2 sm:$0xff]
        %s5774 = scalar_lea.vmem [#allocation4], 145
        %v5775 = vld [vmem:[%s5774] ss:$2 sm:$0xff]
        %s5776 = scalar_lea.vmem [#allocation4], 161
        %v5777 = vld [vmem:[%s5776] ss:$2 sm:$0xff]
        %s5778 = scalar_lea.vmem [#allocation4], 177
        %v5779 = vld [vmem:[%s5778] ss:$2 sm:$0xff]
        %s5780 = scalar_lea.vmem [#allocation4], 193
        %v5781 = vld [vmem:[%s5780] ss:$2 sm:$0xff]
        %s5782 = scalar_lea.vmem [#allocation4], 209
        %v5783 = vld [vmem:[%s5782] ss:$2 sm:$0xff]
        %s5784 = scalar_lea.vmem [#allocation4], 225
        %v5785 = vld [vmem:[%s5784] ss:$2 sm:$0xff]
        %s5786 = scalar_lea.vmem [#allocation4], 241
        %v5787 = vld [vmem:[%s5786] ss:$2 sm:$0xff]
        %v5788 = vmax.f32 %v5725, %v5757
        %v5789 = vmax.f32 %v5727, %v5759
        %v5790 = vmax.f32 %v5729, %v5761
        %v5791 = vmax.f32 %v5731, %v5763
        %v5792 = vmax.f32 %v5733, %v5765
        %v5793 = vmax.f32 %v5735, %v5767
        %v5794 = vmax.f32 %v5737, %v5769
        %v5795 = vmax.f32 %v5739, %v5771
        %v5796 = vmax.f32 %v5741, %v5773
        %v5797 = vmax.f32 %v5743, %v5775
        %v5798 = vmax.f32 %v5745, %v5777
        %v5799 = vmax.f32 %v5747, %v5779
        %v5800 = vmax.f32 %v5749, %v5781
        %v5801 = vmax.f32 %v5751, %v5783
        %v5802 = vmax.f32 %v5753, %v5785
        %v5803 = vmax.f32 %v5755, %v5787
        %v5804 = vsel %vm4089, %v5788, -inf
        %v5805 = vsel %vm4089, %v5789, -inf
        %v5806 = vmax.f32 %v5804, %v5805
        %v5807 = vsel %vm4089, %v5790, -inf
        %v5808 = vsel %vm4089, %v5791, -inf
        %v5809 = vmax.f32 %v5807, %v5808
        %v5810 = vsel %vm4089, %v5792, -inf
        %v5811 = vsel %vm4089, %v5793, -inf
        %v5812 = vmax.f32 %v5810, %v5811
        %v5813 = vsel %vm4089, %v5794, -inf
        %v5814 = vsel %vm4089, %v5795, -inf
        %v5815 = vmax.f32 %v5813, %v5814
        %v5816 = vsel %vm4089, %v5796, -inf
        %v5817 = vsel %vm4089, %v5797, -inf
        %v5818 = vmax.f32 %v5816, %v5817
        %v5819 = vsel %vm4089, %v5798, -inf
        %v5820 = vsel %vm4089, %v5799, -inf
        %v5821 = vmax.f32 %v5819, %v5820
        %v5822 = vsel %vm4089, %v5800, -inf
        %v5823 = vsel %vm4089, %v5801, -inf
        %v5824 = vmax.f32 %v5822, %v5823
        %v5825 = vsel %vm4089, %v5802, -inf
        %v5826 = vsel %vm4089, %v5803, -inf
        %v5827 = vmax.f32 %v5825, %v5826
        %v5828 = vlaneseq
        %vm5829 = vcmp.ge.s32.totalorder %v5828, 0
        %vm5830 = vcmp.lt.s32.totalorder %v5828, 64
        %vm5831 = vmand %vm5829, %vm5830
        %5832 = vst.msk [vmem:[#allocation5] sm:$0x1] %vm5831, %v5806
        %v5835 = vunpack.c.l.s4 1966171168
        %v5836 = vunpack.c.0.s8 %v5835
        %v5837 = vlaneseq
        %v5838 = vshrl.u32 %v5837, 7
        %v5839 = vsub.s32 %v5836, %v5838
        %v5840 = vrot.slane %v5806, %v5839
        %v5841 = vcombine.high %v5840, %v5840
        %v5843 = vunpack.c.l.s4 1966171168
        %v5844 = vunpack.c.0.s8 %v5843
        %v5845 = vlaneseq
        %v5846 = vshrl.u32 %v5845, 7
        %v5847 = vsub.s32 %v5844, %v5846
        %v5848 = vrot.slane %v5840, %v5847
        %v5850 = vunpack.c.l.s4 1966171168
        %v5851 = vunpack.c.0.s8 %v5850
        %v5852 = vlaneseq
        %v5853 = vshrl.u32 %v5852, 7
        %v5854 = vsub.s32 %v5851, %v5853
        %v5855 = vrot.slane %v5841, %v5854
        %5856 = vrot.lane.b32.xlu0 %v5855, 64
        %v5857 = vpop.permute.xlu0 %5856
        %vm5859 = vcmp.ge.s32.totalorder %v5828, 64
        %vm5860 = vcmp.lt.s32.totalorder %v5828, 128
        %vm5861 = vmand %vm5859, %vm5860
        %5862 = vst.msk [vmem:[#allocation5] sm:$0x1] %vm5861, %v5857
        %v5863 = vcombine.high %v5848, %v5848
        %5865 = vst.msk [vmem:[#allocation5 + $0x1] sm:$0x1] %vm5831, %v5863
        %v5866 = vcombine.high %v5855, %v5855
        %5867 = vrot.lane.b32.xlu0 %v5866, 64
        %v5868 = vpop.permute.xlu0 %5867
        %5870 = vst.msk [vmem:[#allocation5 + $0x1] sm:$0x1] %vm5861, %v5868
        %v5871 = vcombine.high %v5806, %v5806
        %v5873 = vunpack.c.l.s4 1966171168
        %v5874 = vunpack.c.0.s8 %v5873
        %v5875 = vlaneseq
        %v5876 = vshrl.u32 %v5875, 7
        %v5877 = vsub.s32 %v5874, %v5876
        %v5878 = vrot.slane %v5871, %v5877
        %v5880 = vunpack.c.l.s4 1966171168
        %v5881 = vunpack.c.0.s8 %v5880
        %v5882 = vlaneseq
        %v5883 = vshrl.u32 %v5882, 7
        %v5884 = vsub.s32 %v5881, %v5883
        %v5885 = vrot.slane %v5878, %v5884
        %5887 = vst.msk [vmem:[#allocation5 + $0x2] sm:$0x1] %vm5831, %v5885
        %v5888 = vcombine.high %v5878, %v5878
        %v5890 = vunpack.c.l.s4 1966171168
        %v5891 = vunpack.c.0.s8 %v5890
        %v5892 = vlaneseq
        %v5893 = vshrl.u32 %v5892, 7
        %v5894 = vsub.s32 %v5891, %v5893
        %v5895 = vrot.slane %v5888, %v5894
        %5896 = vrot.lane.b32.xlu0 %v5895, 64
        %v5897 = vpop.permute.xlu0 %5896
        %5899 = vst.msk [vmem:[#allocation5 + $0x2] sm:$0x1] %vm5861, %v5897
        %v5900 = vcombine.high %v5885, %v5885
        %5902 = vst.msk [vmem:[#allocation5 + $0x3] sm:$0x1] %vm5831, %v5900
        %v5903 = vcombine.high %v5895, %v5895
        %5904 = vrot.lane.b32.xlu0 %v5903, 64
        %v5905 = vpop.permute.xlu0 %5904
        %5907 = vst.msk [vmem:[#allocation5 + $0x3] sm:$0x1] %vm5861, %v5905
        %5908 = vst.msk [vmem:[#allocation5 + $0x4] sm:$0x1] %vm5831, %v5809
        %v5911 = vunpack.c.l.s4 1966171168
        %v5912 = vunpack.c.0.s8 %v5911
        %v5913 = vlaneseq
        %v5914 = vshrl.u32 %v5913, 7
        %v5915 = vsub.s32 %v5912, %v5914
        %v5916 = vrot.slane %v5809, %v5915
        %v5917 = vcombine.high %v5916, %v5916
        %v5919 = vunpack.c.l.s4 1966171168
        %v5920 = vunpack.c.0.s8 %v5919
        %v5921 = vlaneseq
        %v5922 = vshrl.u32 %v5921, 7
        %v5923 = vsub.s32 %v5920, %v5922
        %v5924 = vrot.slane %v5916, %v5923
        %v5926 = vunpack.c.l.s4 1966171168
        %v5927 = vunpack.c.0.s8 %v5926
        %v5928 = vlaneseq
        %v5929 = vshrl.u32 %v5928, 7
        %v5930 = vsub.s32 %v5927, %v5929
        %v5931 = vrot.slane %v5917, %v5930
        %5932 = vrot.lane.b32.xlu0 %v5931, 64
        %v5933 = vpop.permute.xlu0 %5932
        %5935 = vst.msk [vmem:[#allocation5 + $0x4] sm:$0x1] %vm5861, %v5933
        %v5936 = vcombine.high %v5924, %v5924
        %5938 = vst.msk [vmem:[#allocation5 + $0x5] sm:$0x1] %vm5831, %v5936
        %v5939 = vcombine.high %v5931, %v5931
        %5940 = vrot.lane.b32.xlu0 %v5939, 64
        %v5941 = vpop.permute.xlu0 %5940
        %5943 = vst.msk [vmem:[#allocation5 + $0x5] sm:$0x1] %vm5861, %v5941
        %v5944 = vcombine.high %v5809, %v5809
        %v5946 = vunpack.c.l.s4 1966171168
        %v5947 = vunpack.c.0.s8 %v5946
        %v5948 = vlaneseq
        %v5949 = vshrl.u32 %v5948, 7
        %v5950 = vsub.s32 %v5947, %v5949
        %v5951 = vrot.slane %v5944, %v5950
        %v5953 = vunpack.c.l.s4 1966171168
        %v5954 = vunpack.c.0.s8 %v5953
        %v5955 = vlaneseq
        %v5956 = vshrl.u32 %v5955, 7
        %v5957 = vsub.s32 %v5954, %v5956
        %v5958 = vrot.slane %v5951, %v5957
        %5960 = vst.msk [vmem:[#allocation5 + $0x6] sm:$0x1] %vm5831, %v5958
        %v5961 = vcombine.high %v5951, %v5951
        %v5963 = vunpack.c.l.s4 1966171168
        %v5964 = vunpack.c.0.s8 %v5963
        %v5965 = vlaneseq
        %v5966 = vshrl.u32 %v5965, 7
        %v5967 = vsub.s32 %v5964, %v5966
        %v5968 = vrot.slane %v5961, %v5967
        %5969 = vrot.lane.b32.xlu0 %v5968, 64
        %v5970 = vpop.permute.xlu0 %5969
        %5972 = vst.msk [vmem:[#allocation5 + $0x6] sm:$0x1] %vm5861, %v5970
        %v5973 = vcombine.high %v5958, %v5958
        %5975 = vst.msk [vmem:[#allocation5 + $0x7] sm:$0x1] %vm5831, %v5973
        %v5976 = vcombine.high %v5968, %v5968
        %5977 = vrot.lane.b32.xlu0 %v5976, 64
        %v5978 = vpop.permute.xlu0 %5977
        %5980 = vst.msk [vmem:[#allocation5 + $0x7] sm:$0x1] %vm5861, %v5978
        %5981 = vst.msk [vmem:[#allocation5 + $0x8] sm:$0x1] %vm5831, %v5812
        %v5984 = vunpack.c.l.s4 1966171168
        %v5985 = vunpack.c.0.s8 %v5984
        %v5986 = vlaneseq
        %v5987 = vshrl.u32 %v5986, 7
        %v5988 = vsub.s32 %v5985, %v5987
        %v5989 = vrot.slane %v5812, %v5988
        %v5990 = vcombine.high %v5989, %v5989
        %v5992 = vunpack.c.l.s4 1966171168
        %v5993 = vunpack.c.0.s8 %v5992
        %v5994 = vlaneseq
        %v5995 = vshrl.u32 %v5994, 7
        %v5996 = vsub.s32 %v5993, %v5995
        %v5997 = vrot.slane %v5989, %v5996
        %v5999 = vunpack.c.l.s4 1966171168
        %v6000 = vunpack.c.0.s8 %v5999
        %v6001 = vlaneseq
        %v6002 = vshrl.u32 %v6001, 7
        %v6003 = vsub.s32 %v6000, %v6002
        %v6004 = vrot.slane %v5990, %v6003
        %6005 = vrot.lane.b32.xlu0 %v6004, 64
        %v6006 = vpop.permute.xlu0 %6005
        %6008 = vst.msk [vmem:[#allocation5 + $0x8] sm:$0x1] %vm5861, %v6006
        %v6009 = vcombine.high %v5997, %v5997
        %6011 = vst.msk [vmem:[#allocation5 + $0x9] sm:$0x1] %vm5831, %v6009
        %v6012 = vcombine.high %v6004, %v6004
        %6013 = vrot.lane.b32.xlu0 %v6012, 64
        %v6014 = vpop.permute.xlu0 %6013
        %6016 = vst.msk [vmem:[#allocation5 + $0x9] sm:$0x1] %vm5861, %v6014
        %v6017 = vcombine.high %v5812, %v5812
        %v6019 = vunpack.c.l.s4 1966171168
        %v6020 = vunpack.c.0.s8 %v6019
        %v6021 = vlaneseq
        %v6022 = vshrl.u32 %v6021, 7
        %v6023 = vsub.s32 %v6020, %v6022
        %v6024 = vrot.slane %v6017, %v6023
        %v6026 = vunpack.c.l.s4 1966171168
        %v6027 = vunpack.c.0.s8 %v6026
        %v6028 = vlaneseq
        %v6029 = vshrl.u32 %v6028, 7
        %v6030 = vsub.s32 %v6027, %v6029
        %v6031 = vrot.slane %v6024, %v6030
        %6033 = vst.msk [vmem:[#allocation5 + $0xa] sm:$0x1] %vm5831, %v6031
        %v6034 = vcombine.high %v6024, %v6024
        %v6036 = vunpack.c.l.s4 1966171168
        %v6037 = vunpack.c.0.s8 %v6036
        %v6038 = vlaneseq
        %v6039 = vshrl.u32 %v6038, 7
        %v6040 = vsub.s32 %v6037, %v6039
        %v6041 = vrot.slane %v6034, %v6040
        %6042 = vrot.lane.b32.xlu0 %v6041, 64
        %v6043 = vpop.permute.xlu0 %6042
        %6045 = vst.msk [vmem:[#allocation5 + $0xa] sm:$0x1] %vm5861, %v6043
        %v6046 = vcombine.high %v6031, %v6031
        %6048 = vst.msk [vmem:[#allocation5 + $0xb] sm:$0x1] %vm5831, %v6046
        %v6049 = vcombine.high %v6041, %v6041
        %6050 = vrot.lane.b32.xlu0 %v6049, 64
        %v6051 = vpop.permute.xlu0 %6050
        %6053 = vst.msk [vmem:[#allocation5 + $0xb] sm:$0x1] %vm5861, %v6051
        %6054 = vst.msk [vmem:[#allocation5 + $0xc] sm:$0x1] %vm5831, %v5815
        %v6057 = vunpack.c.l.s4 1966171168
        %v6058 = vunpack.c.0.s8 %v6057
        %v6059 = vlaneseq
        %v6060 = vshrl.u32 %v6059, 7
        %v6061 = vsub.s32 %v6058, %v6060
        %v6062 = vrot.slane %v5815, %v6061
        %v6063 = vcombine.high %v6062, %v6062
        %v6065 = vunpack.c.l.s4 1966171168
        %v6066 = vunpack.c.0.s8 %v6065
        %v6067 = vlaneseq
        %v6068 = vshrl.u32 %v6067, 7
        %v6069 = vsub.s32 %v6066, %v6068
        %v6070 = vrot.slane %v6062, %v6069
        %v6072 = vunpack.c.l.s4 1966171168
        %v6073 = vunpack.c.0.s8 %v6072
        %v6074 = vlaneseq
        %v6075 = vshrl.u32 %v6074, 7
        %v6076 = vsub.s32 %v6073, %v6075
        %v6077 = vrot.slane %v6063, %v6076
        %6078 = vrot.lane.b32.xlu0 %v6077, 64
        %v6079 = vpop.permute.xlu0 %6078
        %6081 = vst.msk [vmem:[#allocation5 + $0xc] sm:$0x1] %vm5861, %v6079
        %v6082 = vcombine.high %v6070, %v6070
        %6084 = vst.msk [vmem:[#allocation5 + $0xd] sm:$0x1] %vm5831, %v6082
        %v6085 = vcombine.high %v6077, %v6077
        %6086 = vrot.lane.b32.xlu0 %v6085, 64
        %v6087 = vpop.permute.xlu0 %6086
        %6089 = vst.msk [vmem:[#allocation5 + $0xd] sm:$0x1] %vm5861, %v6087
        %v6090 = vcombine.high %v5815, %v5815
        %v6092 = vunpack.c.l.s4 1966171168
        %v6093 = vunpack.c.0.s8 %v6092
        %v6094 = vlaneseq
        %v6095 = vshrl.u32 %v6094, 7
        %v6096 = vsub.s32 %v6093, %v6095
        %v6097 = vrot.slane %v6090, %v6096
        %v6099 = vunpack.c.l.s4 1966171168
        %v6100 = vunpack.c.0.s8 %v6099
        %v6101 = vlaneseq
        %v6102 = vshrl.u32 %v6101, 7
        %v6103 = vsub.s32 %v6100, %v6102
        %v6104 = vrot.slane %v6097, %v6103
        %6106 = vst.msk [vmem:[#allocation5 + $0xe] sm:$0x1] %vm5831, %v6104
        %v6107 = vcombine.high %v6097, %v6097
        %v6109 = vunpack.c.l.s4 1966171168
        %v6110 = vunpack.c.0.s8 %v6109
        %v6111 = vlaneseq
        %v6112 = vshrl.u32 %v6111, 7
        %v6113 = vsub.s32 %v6110, %v6112
        %v6114 = vrot.slane %v6107, %v6113
        %6115 = vrot.lane.b32.xlu0 %v6114, 64
        %v6116 = vpop.permute.xlu0 %6115
        %6118 = vst.msk [vmem:[#allocation5 + $0xe] sm:$0x1] %vm5861, %v6116
        %v6119 = vcombine.high %v6104, %v6104
        %6121 = vst.msk [vmem:[#allocation5 + $0xf] sm:$0x1] %vm5831, %v6119
        %v6122 = vcombine.high %v6114, %v6114
        %6123 = vrot.lane.b32.xlu0 %v6122, 64
        %v6124 = vpop.permute.xlu0 %6123
        %6126 = vst.msk [vmem:[#allocation5 + $0xf] sm:$0x1] %vm5861, %v6124
        %6127 = vst.msk [vmem:[#allocation5 + $0x10] sm:$0x1] %vm5831, %v5818
        %v6130 = vunpack.c.l.s4 1966171168
        %v6131 = vunpack.c.0.s8 %v6130
        %v6132 = vlaneseq
        %v6133 = vshrl.u32 %v6132, 7
        %v6134 = vsub.s32 %v6131, %v6133
        %v6135 = vrot.slane %v5818, %v6134
        %v6136 = vcombine.high %v6135, %v6135
        %v6138 = vunpack.c.l.s4 1966171168
        %v6139 = vunpack.c.0.s8 %v6138
        %v6140 = vlaneseq
        %v6141 = vshrl.u32 %v6140, 7
        %v6142 = vsub.s32 %v6139, %v6141
        %v6143 = vrot.slane %v6135, %v6142
        %v6145 = vunpack.c.l.s4 1966171168
        %v6146 = vunpack.c.0.s8 %v6145
        %v6147 = vlaneseq
        %v6148 = vshrl.u32 %v6147, 7
        %v6149 = vsub.s32 %v6146, %v6148
        %v6150 = vrot.slane %v6136, %v6149
        %6151 = vrot.lane.b32.xlu0 %v6150, 64
        %v6152 = vpop.permute.xlu0 %6151
        %6154 = vst.msk [vmem:[#allocation5 + $0x10] sm:$0x1] %vm5861, %v6152
        %v6155 = vcombine.high %v6143, %v6143
        %6157 = vst.msk [vmem:[#allocation5 + $0x11] sm:$0x1] %vm5831, %v6155
        %v6158 = vcombine.high %v6150, %v6150
        %6159 = vrot.lane.b32.xlu0 %v6158, 64
        %v6160 = vpop.permute.xlu0 %6159
        %6162 = vst.msk [vmem:[#allocation5 + $0x11] sm:$0x1] %vm5861, %v6160
        %v6163 = vcombine.high %v5818, %v5818
        %v6165 = vunpack.c.l.s4 1966171168
        %v6166 = vunpack.c.0.s8 %v6165
        %v6167 = vlaneseq
        %v6168 = vshrl.u32 %v6167, 7
        %v6169 = vsub.s32 %v6166, %v6168
        %v6170 = vrot.slane %v6163, %v6169
        %v6172 = vunpack.c.l.s4 1966171168
        %v6173 = vunpack.c.0.s8 %v6172
        %v6174 = vlaneseq
        %v6175 = vshrl.u32 %v6174, 7
        %v6176 = vsub.s32 %v6173, %v6175
        %v6177 = vrot.slane %v6170, %v6176
        %6179 = vst.msk [vmem:[#allocation5 + $0x12] sm:$0x1] %vm5831, %v6177
        %v6180 = vcombine.high %v6170, %v6170
        %v6182 = vunpack.c.l.s4 1966171168
        %v6183 = vunpack.c.0.s8 %v6182
        %v6184 = vlaneseq
        %v6185 = vshrl.u32 %v6184, 7
        %v6186 = vsub.s32 %v6183, %v6185
        %v6187 = vrot.slane %v6180, %v6186
        %6188 = vrot.lane.b32.xlu0 %v6187, 64
        %v6189 = vpop.permute.xlu0 %6188
        %6191 = vst.msk [vmem:[#allocation5 + $0x12] sm:$0x1] %vm5861, %v6189
        %v6192 = vcombine.high %v6177, %v6177
        %6194 = vst.msk [vmem:[#allocation5 + $0x13] sm:$0x1] %vm5831, %v6192
        %v6195 = vcombine.high %v6187, %v6187
        %6196 = vrot.lane.b32.xlu0 %v6195, 64
        %v6197 = vpop.permute.xlu0 %6196
        %6199 = vst.msk [vmem:[#allocation5 + $0x13] sm:$0x1] %vm5861, %v6197
        %6200 = vst.msk [vmem:[#allocation5 + $0x14] sm:$0x1] %vm5831, %v5821
        %v6203 = vunpack.c.l.s4 1966171168
        %v6204 = vunpack.c.0.s8 %v6203
        %v6205 = vlaneseq
        %v6206 = vshrl.u32 %v6205, 7
        %v6207 = vsub.s32 %v6204, %v6206
        %v6208 = vrot.slane %v5821, %v6207
        %v6209 = vcombine.high %v6208, %v6208
        %v6211 = vunpack.c.l.s4 1966171168
        %v6212 = vunpack.c.0.s8 %v6211
        %v6213 = vlaneseq
        %v6214 = vshrl.u32 %v6213, 7
        %v6215 = vsub.s32 %v6212, %v6214
        %v6216 = vrot.slane %v6208, %v6215
        %v6218 = vunpack.c.l.s4 1966171168
        %v6219 = vunpack.c.0.s8 %v6218
        %v6220 = vlaneseq
        %v6221 = vshrl.u32 %v6220, 7
        %v6222 = vsub.s32 %v6219, %v6221
        %v6223 = vrot.slane %v6209, %v6222
        %6224 = vrot.lane.b32.xlu0 %v6223, 64
        %v6225 = vpop.permute.xlu0 %6224
        %6227 = vst.msk [vmem:[#allocation5 + $0x14] sm:$0x1] %vm5861, %v6225
        %v6228 = vcombine.high %v6216, %v6216
        %6230 = vst.msk [vmem:[#allocation5 + $0x15] sm:$0x1] %vm5831, %v6228
        %v6231 = vcombine.high %v6223, %v6223
        %6232 = vrot.lane.b32.xlu0 %v6231, 64
        %v6233 = vpop.permute.xlu0 %6232
        %6235 = vst.msk [vmem:[#allocation5 + $0x15] sm:$0x1] %vm5861, %v6233
        %v6236 = vcombine.high %v5821, %v5821
        %v6238 = vunpack.c.l.s4 1966171168
        %v6239 = vunpack.c.0.s8 %v6238
        %v6240 = vlaneseq
        %v6241 = vshrl.u32 %v6240, 7
        %v6242 = vsub.s32 %v6239, %v6241
        %v6243 = vrot.slane %v6236, %v6242
        %v6245 = vunpack.c.l.s4 1966171168
        %v6246 = vunpack.c.0.s8 %v6245
        %v6247 = vlaneseq
        %v6248 = vshrl.u32 %v6247, 7
        %v6249 = vsub.s32 %v6246, %v6248
        %v6250 = vrot.slane %v6243, %v6249
        %6252 = vst.msk [vmem:[#allocation5 + $0x16] sm:$0x1] %vm5831, %v6250
        %v6253 = vcombine.high %v6243, %v6243
        %v6255 = vunpack.c.l.s4 1966171168
        %v6256 = vunpack.c.0.s8 %v6255
        %v6257 = vlaneseq
        %v6258 = vshrl.u32 %v6257, 7
        %v6259 = vsub.s32 %v6256, %v6258
        %v6260 = vrot.slane %v6253, %v6259
        %6261 = vrot.lane.b32.xlu0 %v6260, 64
        %v6262 = vpop.permute.xlu0 %6261
        %6264 = vst.msk [vmem:[#allocation5 + $0x16] sm:$0x1] %vm5861, %v6262
        %v6265 = vcombine.high %v6250, %v6250
        %6267 = vst.msk [vmem:[#allocation5 + $0x17] sm:$0x1] %vm5831, %v6265
        %v6268 = vcombine.high %v6260, %v6260
        %6269 = vrot.lane.b32.xlu0 %v6268, 64
        %v6270 = vpop.permute.xlu0 %6269
        %6272 = vst.msk [vmem:[#allocation5 + $0x17] sm:$0x1] %vm5861, %v6270
        %6273 = vst.msk [vmem:[#allocation5 + $0x18] sm:$0x1] %vm5831, %v5824
        %v6276 = vunpack.c.l.s4 1966171168
        %v6277 = vunpack.c.0.s8 %v6276
        %v6278 = vlaneseq
        %v6279 = vshrl.u32 %v6278, 7
        %v6280 = vsub.s32 %v6277, %v6279
        %v6281 = vrot.slane %v5824, %v6280
        %v6282 = vcombine.high %v6281, %v6281
        %v6284 = vunpack.c.l.s4 1966171168
        %v6285 = vunpack.c.0.s8 %v6284
        %v6286 = vlaneseq
        %v6287 = vshrl.u32 %v6286, 7
        %v6288 = vsub.s32 %v6285, %v6287
        %v6289 = vrot.slane %v6281, %v6288
        %v6291 = vunpack.c.l.s4 1966171168
        %v6292 = vunpack.c.0.s8 %v6291
        %v6293 = vlaneseq
        %v6294 = vshrl.u32 %v6293, 7
        %v6295 = vsub.s32 %v6292, %v6294
        %v6296 = vrot.slane %v6282, %v6295
        %6297 = vrot.lane.b32.xlu0 %v6296, 64
        %v6298 = vpop.permute.xlu0 %6297
        %6300 = vst.msk [vmem:[#allocation5 + $0x18] sm:$0x1] %vm5861, %v6298
        %v6301 = vcombine.high %v6289, %v6289
        %6303 = vst.msk [vmem:[#allocation5 + $0x19] sm:$0x1] %vm5831, %v6301
        %v6304 = vcombine.high %v6296, %v6296
        %6305 = vrot.lane.b32.xlu0 %v6304, 64
        %v6306 = vpop.permute.xlu0 %6305
        %6308 = vst.msk [vmem:[#allocation5 + $0x19] sm:$0x1] %vm5861, %v6306
        %v6309 = vcombine.high %v5824, %v5824
        %v6311 = vunpack.c.l.s4 1966171168
        %v6312 = vunpack.c.0.s8 %v6311
        %v6313 = vlaneseq
        %v6314 = vshrl.u32 %v6313, 7
        %v6315 = vsub.s32 %v6312, %v6314
        %v6316 = vrot.slane %v6309, %v6315
        %v6318 = vunpack.c.l.s4 1966171168
        %v6319 = vunpack.c.0.s8 %v6318
        %v6320 = vlaneseq
        %v6321 = vshrl.u32 %v6320, 7
        %v6322 = vsub.s32 %v6319, %v6321
        %v6323 = vrot.slane %v6316, %v6322
        %6325 = vst.msk [vmem:[#allocation5 + $0x1a] sm:$0x1] %vm5831, %v6323
        %v6326 = vcombine.high %v6316, %v6316
        %v6328 = vunpack.c.l.s4 1966171168
        %v6329 = vunpack.c.0.s8 %v6328
        %v6330 = vlaneseq
        %v6331 = vshrl.u32 %v6330, 7
        %v6332 = vsub.s32 %v6329, %v6331
        %v6333 = vrot.slane %v6326, %v6332
        %6334 = vrot.lane.b32.xlu0 %v6333, 64
        %v6335 = vpop.permute.xlu0 %6334
        %6337 = vst.msk [vmem:[#allocation5 + $0x1a] sm:$0x1] %vm5861, %v6335
        %v6338 = vcombine.high %v6323, %v6323
        %6340 = vst.msk [vmem:[#allocation5 + $0x1b] sm:$0x1] %vm5831, %v6338
        %v6341 = vcombine.high %v6333, %v6333
        %6342 = vrot.lane.b32.xlu0 %v6341, 64
        %v6343 = vpop.permute.xlu0 %6342
        %6345 = vst.msk [vmem:[#allocation5 + $0x1b] sm:$0x1] %vm5861, %v6343
        %6346 = vst.msk [vmem:[#allocation5 + $0x1c] sm:$0x1] %vm5831, %v5827
        %v6349 = vunpack.c.l.s4 1966171168
        %v6350 = vunpack.c.0.s8 %v6349
        %v6351 = vlaneseq
        %v6352 = vshrl.u32 %v6351, 7
        %v6353 = vsub.s32 %v6350, %v6352
        %v6354 = vrot.slane %v5827, %v6353
        %v6355 = vcombine.high %v6354, %v6354
        %v6357 = vunpack.c.l.s4 1966171168
        %v6358 = vunpack.c.0.s8 %v6357
        %v6359 = vlaneseq
        %v6360 = vshrl.u32 %v6359, 7
        %v6361 = vsub.s32 %v6358, %v6360
        %v6362 = vrot.slane %v6354, %v6361
        %v6364 = vunpack.c.l.s4 1966171168
        %v6365 = vunpack.c.0.s8 %v6364
        %v6366 = vlaneseq
        %v6367 = vshrl.u32 %v6366, 7
        %v6368 = vsub.s32 %v6365, %v6367
        %v6369 = vrot.slane %v6355, %v6368
        %6370 = vrot.lane.b32.xlu0 %v6369, 64
        %v6371 = vpop.permute.xlu0 %6370
        %6373 = vst.msk [vmem:[#allocation5 + $0x1c] sm:$0x1] %vm5861, %v6371
        %v6374 = vcombine.high %v6362, %v6362
        %6376 = vst.msk [vmem:[#allocation5 + $0x1d] sm:$0x1] %vm5831, %v6374
        %v6377 = vcombine.high %v6369, %v6369
        %6378 = vrot.lane.b32.xlu0 %v6377, 64
        %v6379 = vpop.permute.xlu0 %6378
        %6381 = vst.msk [vmem:[#allocation5 + $0x1d] sm:$0x1] %vm5861, %v6379
        %v6382 = vcombine.high %v5827, %v5827
        %v6384 = vunpack.c.l.s4 1966171168
        %v6385 = vunpack.c.0.s8 %v6384
        %v6386 = vlaneseq
        %v6387 = vshrl.u32 %v6386, 7
        %v6388 = vsub.s32 %v6385, %v6387
        %v6389 = vrot.slane %v6382, %v6388
        %v6391 = vunpack.c.l.s4 1966171168
        %v6392 = vunpack.c.0.s8 %v6391
        %v6393 = vlaneseq
        %v6394 = vshrl.u32 %v6393, 7
        %v6395 = vsub.s32 %v6392, %v6394
        %v6396 = vrot.slane %v6389, %v6395
        %6398 = vst.msk [vmem:[#allocation5 + $0x1e] sm:$0x1] %vm5831, %v6396
        %v6399 = vcombine.high %v6389, %v6389
        %v6401 = vunpack.c.l.s4 1966171168
        %v6402 = vunpack.c.0.s8 %v6401
        %v6403 = vlaneseq
        %v6404 = vshrl.u32 %v6403, 7
        %v6405 = vsub.s32 %v6402, %v6404
        %v6406 = vrot.slane %v6399, %v6405
        %6407 = vrot.lane.b32.xlu0 %v6406, 64
        %v6408 = vpop.permute.xlu0 %6407
        %6410 = vst.msk [vmem:[#allocation5 + $0x1e] sm:$0x1] %vm5861, %v6408
        %v6411 = vcombine.high %v6396, %v6396
        %6413 = vst.msk [vmem:[#allocation5 + $0x1f] sm:$0x1] %vm5831, %v6411
        %v6414 = vcombine.high %v6406, %v6406
        %6415 = vrot.lane.b32.xlu0 %v6414, 64
        %v6416 = vpop.permute.xlu0 %6415
        %6418 = vst.msk [vmem:[#allocation5 + $0x1f] sm:$0x1] %vm5861, %v6416
        %v6419 = vld [vmem:[#allocation5] sm:$0xff]
        %v6420 = vld [vmem:[#allocation5 + $0x8] sm:$0xff]
        %v6421 = vld [vmem:[#allocation5 + $0x10] sm:$0xff]
        %v6422 = vld [vmem:[#allocation5 + $0x18] sm:$0xff]
        %v6427 = vlaneseq
        %v6428 = vshrl.u32 %v6427, 7
        %v6429 = vsub.s32 0, %v6428
        %v6430 = vrot.slane %v6419, %v6429
        %v6431 = vlaneseq
        %v6432 = vshrl.u32 %v6431, 7
        %v6433 = vsub.s32 1, %v6432
        %v6434 = vrot.slane %v6419, %v6433
        %v6435 = vlaneseq
        %v6436 = vshrl.u32 %v6435, 7
        %v6437 = vsub.s32 2, %v6436
        %v6438 = vrot.slane %v6419, %v6437
        %v6439 = vlaneseq
        %v6440 = vshrl.u32 %v6439, 7
        %v6441 = vsub.s32 3, %v6440
        %v6442 = vrot.slane %v6419, %v6441
        %v6443 = vlaneseq
        %v6444 = vshrl.u32 %v6443, 7
        %v6445 = vsub.s32 4, %v6444
        %v6446 = vrot.slane %v6419, %v6445
        %v6447 = vlaneseq
        %v6448 = vshrl.u32 %v6447, 7
        %v6449 = vsub.s32 5, %v6448
        %v6450 = vrot.slane %v6419, %v6449
        %v6451 = vlaneseq
        %v6452 = vshrl.u32 %v6451, 7
        %v6453 = vsub.s32 6, %v6452
        %v6454 = vrot.slane %v6419, %v6453
        %v6455 = vlaneseq
        %v6456 = vshrl.u32 %v6455, 7
        %v6457 = vsub.s32 7, %v6456
        %v6458 = vrot.slane %v6419, %v6457
        %v6459 = vlaneseq
        %v6460 = vshrl.u32 %v6459, 7
        %v6461 = vsub.s32 0, %v6460
        %v6462 = vrot.slane %v6420, %v6461
        %v6463 = vlaneseq
        %v6464 = vshrl.u32 %v6463, 7
        %v6465 = vsub.s32 1, %v6464
        %v6466 = vrot.slane %v6420, %v6465
        %v6467 = vlaneseq
        %v6468 = vshrl.u32 %v6467, 7
        %v6469 = vsub.s32 2, %v6468
        %v6470 = vrot.slane %v6420, %v6469
        %v6471 = vlaneseq
        %v6472 = vshrl.u32 %v6471, 7
        %v6473 = vsub.s32 3, %v6472
        %v6474 = vrot.slane %v6420, %v6473
        %v6475 = vlaneseq
        %v6476 = vshrl.u32 %v6475, 7
        %v6477 = vsub.s32 4, %v6476
        %v6478 = vrot.slane %v6420, %v6477
        %v6479 = vlaneseq
        %v6480 = vshrl.u32 %v6479, 7
        %v6481 = vsub.s32 5, %v6480
        %v6482 = vrot.slane %v6420, %v6481
        %v6483 = vlaneseq
        %v6484 = vshrl.u32 %v6483, 7
        %v6485 = vsub.s32 6, %v6484
        %v6486 = vrot.slane %v6420, %v6485
        %v6487 = vlaneseq
        %v6488 = vshrl.u32 %v6487, 7
        %v6489 = vsub.s32 7, %v6488
        %v6490 = vrot.slane %v6420, %v6489
        %v6491 = vlaneseq
        %v6492 = vshrl.u32 %v6491, 7
        %v6493 = vsub.s32 0, %v6492
        %v6494 = vrot.slane %v6421, %v6493
        %v6495 = vlaneseq
        %v6496 = vshrl.u32 %v6495, 7
        %v6497 = vsub.s32 1, %v6496
        %v6498 = vrot.slane %v6421, %v6497
        %v6499 = vlaneseq
        %v6500 = vshrl.u32 %v6499, 7
        %v6501 = vsub.s32 2, %v6500
        %v6502 = vrot.slane %v6421, %v6501
        %v6503 = vlaneseq
        %v6504 = vshrl.u32 %v6503, 7
        %v6505 = vsub.s32 3, %v6504
        %v6506 = vrot.slane %v6421, %v6505
        %v6507 = vlaneseq
        %v6508 = vshrl.u32 %v6507, 7
        %v6509 = vsub.s32 4, %v6508
        %v6510 = vrot.slane %v6421, %v6509
        %v6511 = vlaneseq
        %v6512 = vshrl.u32 %v6511, 7
        %v6513 = vsub.s32 5, %v6512
        %v6514 = vrot.slane %v6421, %v6513
        %v6515 = vlaneseq
        %v6516 = vshrl.u32 %v6515, 7
        %v6517 = vsub.s32 6, %v6516
        %v6518 = vrot.slane %v6421, %v6517
        %v6519 = vlaneseq
        %v6520 = vshrl.u32 %v6519, 7
        %v6521 = vsub.s32 7, %v6520
        %v6522 = vrot.slane %v6421, %v6521
        %v6523 = vlaneseq
        %v6524 = vshrl.u32 %v6523, 7
        %v6525 = vsub.s32 0, %v6524
        %v6526 = vrot.slane %v6422, %v6525
        %v6527 = vlaneseq
        %v6528 = vshrl.u32 %v6527, 7
        %v6529 = vsub.s32 1, %v6528
        %v6530 = vrot.slane %v6422, %v6529
        %v6531 = vlaneseq
        %v6532 = vshrl.u32 %v6531, 7
        %v6533 = vsub.s32 2, %v6532
        %v6534 = vrot.slane %v6422, %v6533
        %v6535 = vlaneseq
        %v6536 = vshrl.u32 %v6535, 7
        %v6537 = vsub.s32 3, %v6536
        %v6538 = vrot.slane %v6422, %v6537
        %v6539 = vlaneseq
        %v6540 = vshrl.u32 %v6539, 7
        %v6541 = vsub.s32 4, %v6540
        %v6542 = vrot.slane %v6422, %v6541
        %v6543 = vlaneseq
        %v6544 = vshrl.u32 %v6543, 7
        %v6545 = vsub.s32 5, %v6544
        %v6546 = vrot.slane %v6422, %v6545
        %v6547 = vlaneseq
        %v6548 = vshrl.u32 %v6547, 7
        %v6549 = vsub.s32 6, %v6548
        %v6550 = vrot.slane %v6422, %v6549
        %v6551 = vlaneseq
        %v6552 = vshrl.u32 %v6551, 7
        %v6553 = vsub.s32 7, %v6552
        %v6554 = vrot.slane %v6422, %v6553
        %v6587 = vpack.c.bf16 %v6430, %v6430
        %v6588 = vpack.c.bf16 %v6434, %v6434
        %v6589 = vpack.c.bf16 %v6438, %v6438
        %v6590 = vpack.c.bf16 %v6442, %v6442
        %v6591 = vpack.c.bf16 %v6446, %v6446
        %v6592 = vpack.c.bf16 %v6450, %v6450
        %v6593 = vpack.c.bf16 %v6454, %v6454
        %v6594 = vpack.c.bf16 %v6458, %v6458
        %v6595 = vpack.c.bf16 %v6462, %v6462
        %v6596 = vpack.c.bf16 %v6466, %v6466
        %v6597 = vpack.c.bf16 %v6470, %v6470
        %v6598 = vpack.c.bf16 %v6474, %v6474
        %v6599 = vpack.c.bf16 %v6478, %v6478
        %v6600 = vpack.c.bf16 %v6482, %v6482
        %v6601 = vpack.c.bf16 %v6486, %v6486
        %v6602 = vpack.c.bf16 %v6490, %v6490
        %v6603 = vpack.c.bf16 %v6494, %v6494
        %v6604 = vpack.c.bf16 %v6498, %v6498
        %v6605 = vpack.c.bf16 %v6502, %v6502
        %v6606 = vpack.c.bf16 %v6506, %v6506
        %v6607 = vpack.c.bf16 %v6510, %v6510
        %v6608 = vpack.c.bf16 %v6514, %v6514
        %v6609 = vpack.c.bf16 %v6518, %v6518
        %v6610 = vpack.c.bf16 %v6522, %v6522
        %v6611 = vpack.c.bf16 %v6526, %v6526
        %v6612 = vpack.c.bf16 %v6530, %v6530
        %v6613 = vpack.c.bf16 %v6534, %v6534
        %v6614 = vpack.c.bf16 %v6538, %v6538
        %v6615 = vpack.c.bf16 %v6542, %v6542
        %v6616 = vpack.c.bf16 %v6546, %v6546
        %v6617 = vpack.c.bf16 %v6550, %v6550
        %v6618 = vpack.c.bf16 %v6554, %v6554
        %v6619 = vld [vmem:[%s5] sm:$0xf]
        %v6620 = vld [vmem:[%s5 + $0x4] sm:$0xf]
        %v6621 = vld [vmem:[%s5 + $0x8] sm:$0xf]
        %v6622 = vld [vmem:[%s5 + $0xc] sm:$0xf]
        %v6623 = vld [vmem:[%s5 + $0x10] sm:$0xf]
        %v6624 = vld [vmem:[%s5 + $0x14] sm:$0xf]
        %v6625 = vld [vmem:[%s5 + $0x18] sm:$0xf]
        %v6626 = vld [vmem:[%s5 + $0x1c] sm:$0xf]
        %v6627 = vld [vmem:[%s5 + $0x20] sm:$0xf]
        %v6628 = vld [vmem:[%s5 + $0x24] sm:$0xf]
        %v6629 = vld [vmem:[%s5 + $0x28] sm:$0xf]
        %v6630 = vld [vmem:[%s5 + $0x2c] sm:$0xf]
        %v6631 = vld [vmem:[%s5 + $0x30] sm:$0xf]
        %v6632 = vld [vmem:[%s5 + $0x34] sm:$0xf]
        %v6633 = vld [vmem:[%s5 + $0x38] sm:$0xf]
        %v6634 = vld [vmem:[%s5 + $0x3c] sm:$0xf]
        %v6635 = vld [vmem:[%s5 + $0x40] sm:$0xf]
        %v6636 = vld [vmem:[%s5 + $0x44] sm:$0xf]
        %v6637 = vld [vmem:[%s5 + $0x48] sm:$0xf]
        %v6638 = vld [vmem:[%s5 + $0x4c] sm:$0xf]
        %v6639 = vld [vmem:[%s5 + $0x50] sm:$0xf]
        %v6640 = vld [vmem:[%s5 + $0x54] sm:$0xf]
        %v6641 = vld [vmem:[%s5 + $0x58] sm:$0xf]
        %v6642 = vld [vmem:[%s5 + $0x5c] sm:$0xf]
        %v6643 = vld [vmem:[%s5 + $0x60] sm:$0xf]
        %v6644 = vld [vmem:[%s5 + $0x64] sm:$0xf]
        %v6645 = vld [vmem:[%s5 + $0x68] sm:$0xf]
        %v6646 = vld [vmem:[%s5 + $0x6c] sm:$0xf]
        %v6647 = vld [vmem:[%s5 + $0x70] sm:$0xf]
        %v6648 = vld [vmem:[%s5 + $0x74] sm:$0xf]
        %v6649 = vld [vmem:[%s5 + $0x78] sm:$0xf]
        %v6650 = vld [vmem:[%s5 + $0x7c] sm:$0xf]
        %v6651 = vld [vmem:[%s5 + $0x80] sm:$0xf]
        %v6652 = vld [vmem:[%s5 + $0x84] sm:$0xf]
        %v6653 = vld [vmem:[%s5 + $0x88] sm:$0xf]
        %v6654 = vld [vmem:[%s5 + $0x8c] sm:$0xf]
        %v6655 = vld [vmem:[%s5 + $0x90] sm:$0xf]
        %v6656 = vld [vmem:[%s5 + $0x94] sm:$0xf]
        %v6657 = vld [vmem:[%s5 + $0x98] sm:$0xf]
        %v6658 = vld [vmem:[%s5 + $0x9c] sm:$0xf]
        %v6659 = vld [vmem:[%s5 + $0xa0] sm:$0xf]
        %v6660 = vld [vmem:[%s5 + $0xa4] sm:$0xf]
        %v6661 = vld [vmem:[%s5 + $0xa8] sm:$0xf]
        %v6662 = vld [vmem:[%s5 + $0xac] sm:$0xf]
        %v6663 = vld [vmem:[%s5 + $0xb0] sm:$0xf]
        %v6664 = vld [vmem:[%s5 + $0xb4] sm:$0xf]
        %v6665 = vld [vmem:[%s5 + $0xb8] sm:$0xf]
        %v6666 = vld [vmem:[%s5 + $0xbc] sm:$0xf]
        %v6667 = vld [vmem:[%s5 + $0xc0] sm:$0xf]
        %v6668 = vld [vmem:[%s5 + $0xc4] sm:$0xf]
        %v6669 = vld [vmem:[%s5 + $0xc8] sm:$0xf]
        %v6670 = vld [vmem:[%s5 + $0xcc] sm:$0xf]
        %v6671 = vld [vmem:[%s5 + $0xd0] sm:$0xf]
        %v6672 = vld [vmem:[%s5 + $0xd4] sm:$0xf]
        %v6673 = vld [vmem:[%s5 + $0xd8] sm:$0xf]
        %v6674 = vld [vmem:[%s5 + $0xdc] sm:$0xf]
        %v6675 = vld [vmem:[%s5 + $0xe0] sm:$0xf]
        %v6676 = vld [vmem:[%s5 + $0xe4] sm:$0xf]
        %v6677 = vld [vmem:[%s5 + $0xe8] sm:$0xf]
        %v6678 = vld [vmem:[%s5 + $0xec] sm:$0xf]
        %v6679 = vld [vmem:[%s5 + $0xf0] sm:$0xf]
        %v6680 = vld [vmem:[%s5 + $0xf4] sm:$0xf]
        %v6681 = vld [vmem:[%s5 + $0xf8] sm:$0xf]
        %v6682 = vld [vmem:[%s5 + $0xfc] sm:$0xf]
        %v6683 = vld [vmem:[%s5 + $0x100] sm:$0xf]
        %v6684 = vld [vmem:[%s5 + $0x104] sm:$0xf]
        %v6685 = vld [vmem:[%s5 + $0x108] sm:$0xf]
        %v6686 = vld [vmem:[%s5 + $0x10c] sm:$0xf]
        %v6687 = vld [vmem:[%s5 + $0x110] sm:$0xf]
        %v6688 = vld [vmem:[%s5 + $0x114] sm:$0xf]
        %v6689 = vld [vmem:[%s5 + $0x118] sm:$0xf]
        %v6690 = vld [vmem:[%s5 + $0x11c] sm:$0xf]
        %v6691 = vld [vmem:[%s5 + $0x120] sm:$0xf]
        %v6692 = vld [vmem:[%s5 + $0x124] sm:$0xf]
        %v6693 = vld [vmem:[%s5 + $0x128] sm:$0xf]
        %v6694 = vld [vmem:[%s5 + $0x12c] sm:$0xf]
        %v6695 = vld [vmem:[%s5 + $0x130] sm:$0xf]
        %v6696 = vld [vmem:[%s5 + $0x134] sm:$0xf]
        %v6697 = vld [vmem:[%s5 + $0x138] sm:$0xf]
        %v6698 = vld [vmem:[%s5 + $0x13c] sm:$0xf]
        %v6699 = vld [vmem:[%s5 + $0x140] sm:$0xf]
        %v6700 = vld [vmem:[%s5 + $0x144] sm:$0xf]
        %v6701 = vld [vmem:[%s5 + $0x148] sm:$0xf]
        %v6702 = vld [vmem:[%s5 + $0x14c] sm:$0xf]
        %v6703 = vld [vmem:[%s5 + $0x150] sm:$0xf]
        %v6704 = vld [vmem:[%s5 + $0x154] sm:$0xf]
        %v6705 = vld [vmem:[%s5 + $0x158] sm:$0xf]
        %v6706 = vld [vmem:[%s5 + $0x15c] sm:$0xf]
        %v6707 = vld [vmem:[%s5 + $0x160] sm:$0xf]
        %v6708 = vld [vmem:[%s5 + $0x164] sm:$0xf]
        %v6709 = vld [vmem:[%s5 + $0x168] sm:$0xf]
        %v6710 = vld [vmem:[%s5 + $0x16c] sm:$0xf]
        %v6711 = vld [vmem:[%s5 + $0x170] sm:$0xf]
        %v6712 = vld [vmem:[%s5 + $0x174] sm:$0xf]
        %v6713 = vld [vmem:[%s5 + $0x178] sm:$0xf]
        %v6714 = vld [vmem:[%s5 + $0x17c] sm:$0xf]
        %v6715 = vld [vmem:[%s5 + $0x180] sm:$0xf]
        %v6716 = vld [vmem:[%s5 + $0x184] sm:$0xf]
        %v6717 = vld [vmem:[%s5 + $0x188] sm:$0xf]
        %v6718 = vld [vmem:[%s5 + $0x18c] sm:$0xf]
        %v6719 = vld [vmem:[%s5 + $0x190] sm:$0xf]
        %v6720 = vld [vmem:[%s5 + $0x194] sm:$0xf]
        %v6721 = vld [vmem:[%s5 + $0x198] sm:$0xf]
        %v6722 = vld [vmem:[%s5 + $0x19c] sm:$0xf]
        %v6723 = vld [vmem:[%s5 + $0x1a0] sm:$0xf]
        %v6724 = vld [vmem:[%s5 + $0x1a4] sm:$0xf]
        %v6725 = vld [vmem:[%s5 + $0x1a8] sm:$0xf]
        %v6726 = vld [vmem:[%s5 + $0x1ac] sm:$0xf]
        %v6727 = vld [vmem:[%s5 + $0x1b0] sm:$0xf]
        %v6728 = vld [vmem:[%s5 + $0x1b4] sm:$0xf]
        %v6729 = vld [vmem:[%s5 + $0x1b8] sm:$0xf]
        %v6730 = vld [vmem:[%s5 + $0x1bc] sm:$0xf]
        %v6731 = vld [vmem:[%s5 + $0x1c0] sm:$0xf]
        %v6732 = vld [vmem:[%s5 + $0x1c4] sm:$0xf]
        %v6733 = vld [vmem:[%s5 + $0x1c8] sm:$0xf]
        %v6734 = vld [vmem:[%s5 + $0x1cc] sm:$0xf]
        %v6735 = vld [vmem:[%s5 + $0x1d0] sm:$0xf]
        %v6736 = vld [vmem:[%s5 + $0x1d4] sm:$0xf]
        %v6737 = vld [vmem:[%s5 + $0x1d8] sm:$0xf]
        %v6738 = vld [vmem:[%s5 + $0x1dc] sm:$0xf]
        %v6739 = vld [vmem:[%s5 + $0x1e0] sm:$0xf]
        %v6740 = vld [vmem:[%s5 + $0x1e4] sm:$0xf]
        %v6741 = vld [vmem:[%s5 + $0x1e8] sm:$0xf]
        %v6742 = vld [vmem:[%s5 + $0x1ec] sm:$0xf]
        %v6743 = vld [vmem:[%s5 + $0x1f0] sm:$0xf]
        %v6744 = vld [vmem:[%s5 + $0x1f4] sm:$0xf]
        %v6745 = vld [vmem:[%s5 + $0x1f8] sm:$0xf]
        %v6746 = vld [vmem:[%s5 + $0x1fc] sm:$0xf]
        %v6747 = vld [vmem:[%s5 + $0x200] sm:$0xf]
        %v6748 = vld [vmem:[%s5 + $0x204] sm:$0xf]
        %v6749 = vld [vmem:[%s5 + $0x208] sm:$0xf]
        %v6750 = vld [vmem:[%s5 + $0x20c] sm:$0xf]
        %v6751 = vld [vmem:[%s5 + $0x210] sm:$0xf]
        %v6752 = vld [vmem:[%s5 + $0x214] sm:$0xf]
        %v6753 = vld [vmem:[%s5 + $0x218] sm:$0xf]
        %v6754 = vld [vmem:[%s5 + $0x21c] sm:$0xf]
        %v6755 = vld [vmem:[%s5 + $0x220] sm:$0xf]
        %v6756 = vld [vmem:[%s5 + $0x224] sm:$0xf]
        %v6757 = vld [vmem:[%s5 + $0x228] sm:$0xf]
        %v6758 = vld [vmem:[%s5 + $0x22c] sm:$0xf]
        %v6759 = vld [vmem:[%s5 + $0x230] sm:$0xf]
        %v6760 = vld [vmem:[%s5 + $0x234] sm:$0xf]
        %v6761 = vld [vmem:[%s5 + $0x238] sm:$0xf]
        %v6762 = vld [vmem:[%s5 + $0x23c] sm:$0xf]
        %v6763 = vld [vmem:[%s5 + $0x240] sm:$0xf]
        %v6764 = vld [vmem:[%s5 + $0x244] sm:$0xf]
        %v6765 = vld [vmem:[%s5 + $0x248] sm:$0xf]
        %v6766 = vld [vmem:[%s5 + $0x24c] sm:$0xf]
        %v6767 = vld [vmem:[%s5 + $0x250] sm:$0xf]
        %v6768 = vld [vmem:[%s5 + $0x254] sm:$0xf]
        %v6769 = vld [vmem:[%s5 + $0x258] sm:$0xf]
        %v6770 = vld [vmem:[%s5 + $0x25c] sm:$0xf]
        %v6771 = vld [vmem:[%s5 + $0x260] sm:$0xf]
        %v6772 = vld [vmem:[%s5 + $0x264] sm:$0xf]
        %v6773 = vld [vmem:[%s5 + $0x268] sm:$0xf]
        %v6774 = vld [vmem:[%s5 + $0x26c] sm:$0xf]
        %v6775 = vld [vmem:[%s5 + $0x270] sm:$0xf]
        %v6776 = vld [vmem:[%s5 + $0x274] sm:$0xf]
        %v6777 = vld [vmem:[%s5 + $0x278] sm:$0xf]
        %v6778 = vld [vmem:[%s5 + $0x27c] sm:$0xf]
        %v6779 = vld [vmem:[%s5 + $0x280] sm:$0xf]
        %v6780 = vld [vmem:[%s5 + $0x284] sm:$0xf]
        %v6781 = vld [vmem:[%s5 + $0x288] sm:$0xf]
        %v6782 = vld [vmem:[%s5 + $0x28c] sm:$0xf]
        %v6783 = vld [vmem:[%s5 + $0x290] sm:$0xf]
        %v6784 = vld [vmem:[%s5 + $0x294] sm:$0xf]
        %v6785 = vld [vmem:[%s5 + $0x298] sm:$0xf]
        %v6786 = vld [vmem:[%s5 + $0x29c] sm:$0xf]
        %v6787 = vld [vmem:[%s5 + $0x2a0] sm:$0xf]
        %v6788 = vld [vmem:[%s5 + $0x2a4] sm:$0xf]
        %v6789 = vld [vmem:[%s5 + $0x2a8] sm:$0xf]
        %v6790 = vld [vmem:[%s5 + $0x2ac] sm:$0xf]
        %v6791 = vld [vmem:[%s5 + $0x2b0] sm:$0xf]
        %v6792 = vld [vmem:[%s5 + $0x2b4] sm:$0xf]
        %v6793 = vld [vmem:[%s5 + $0x2b8] sm:$0xf]
        %v6794 = vld [vmem:[%s5 + $0x2bc] sm:$0xf]
        %v6795 = vld [vmem:[%s5 + $0x2c0] sm:$0xf]
        %v6796 = vld [vmem:[%s5 + $0x2c4] sm:$0xf]
        %v6797 = vld [vmem:[%s5 + $0x2c8] sm:$0xf]
        %v6798 = vld [vmem:[%s5 + $0x2cc] sm:$0xf]
        %v6799 = vld [vmem:[%s5 + $0x2d0] sm:$0xf]
        %v6800 = vld [vmem:[%s5 + $0x2d4] sm:$0xf]
        %v6801 = vld [vmem:[%s5 + $0x2d8] sm:$0xf]
        %v6802 = vld [vmem:[%s5 + $0x2dc] sm:$0xf]
        %v6803 = vld [vmem:[%s5 + $0x2e0] sm:$0xf]
        %v6804 = vld [vmem:[%s5 + $0x2e4] sm:$0xf]
        %v6805 = vld [vmem:[%s5 + $0x2e8] sm:$0xf]
        %v6806 = vld [vmem:[%s5 + $0x2ec] sm:$0xf]
        %v6807 = vld [vmem:[%s5 + $0x2f0] sm:$0xf]
        %v6808 = vld [vmem:[%s5 + $0x2f4] sm:$0xf]
        %v6809 = vld [vmem:[%s5 + $0x2f8] sm:$0xf]
        %v6810 = vld [vmem:[%s5 + $0x2fc] sm:$0xf]
        %v6811 = vld [vmem:[%s5 + $0x300] sm:$0xf]
        %v6812 = vld [vmem:[%s5 + $0x304] sm:$0xf]
        %v6813 = vld [vmem:[%s5 + $0x308] sm:$0xf]
        %v6814 = vld [vmem:[%s5 + $0x30c] sm:$0xf]
        %v6815 = vld [vmem:[%s5 + $0x310] sm:$0xf]
        %v6816 = vld [vmem:[%s5 + $0x314] sm:$0xf]
        %v6817 = vld [vmem:[%s5 + $0x318] sm:$0xf]
        %v6818 = vld [vmem:[%s5 + $0x31c] sm:$0xf]
        %v6819 = vld [vmem:[%s5 + $0x320] sm:$0xf]
        %v6820 = vld [vmem:[%s5 + $0x324] sm:$0xf]
        %v6821 = vld [vmem:[%s5 + $0x328] sm:$0xf]
        %v6822 = vld [vmem:[%s5 + $0x32c] sm:$0xf]
        %v6823 = vld [vmem:[%s5 + $0x330] sm:$0xf]
        %v6824 = vld [vmem:[%s5 + $0x334] sm:$0xf]
        %v6825 = vld [vmem:[%s5 + $0x338] sm:$0xf]
        %v6826 = vld [vmem:[%s5 + $0x33c] sm:$0xf]
        %v6827 = vld [vmem:[%s5 + $0x340] sm:$0xf]
        %v6828 = vld [vmem:[%s5 + $0x344] sm:$0xf]
        %v6829 = vld [vmem:[%s5 + $0x348] sm:$0xf]
        %v6830 = vld [vmem:[%s5 + $0x34c] sm:$0xf]
        %v6831 = vld [vmem:[%s5 + $0x350] sm:$0xf]
        %v6832 = vld [vmem:[%s5 + $0x354] sm:$0xf]
        %v6833 = vld [vmem:[%s5 + $0x358] sm:$0xf]
        %v6834 = vld [vmem:[%s5 + $0x35c] sm:$0xf]
        %v6835 = vld [vmem:[%s5 + $0x360] sm:$0xf]
        %v6836 = vld [vmem:[%s5 + $0x364] sm:$0xf]
        %v6837 = vld [vmem:[%s5 + $0x368] sm:$0xf]
        %v6838 = vld [vmem:[%s5 + $0x36c] sm:$0xf]
        %v6839 = vld [vmem:[%s5 + $0x370] sm:$0xf]
        %v6840 = vld [vmem:[%s5 + $0x374] sm:$0xf]
        %v6841 = vld [vmem:[%s5 + $0x378] sm:$0xf]
        %v6842 = vld [vmem:[%s5 + $0x37c] sm:$0xf]
        %v6843 = vld [vmem:[%s5 + $0x380] sm:$0xf]
        %v6844 = vld [vmem:[%s5 + $0x384] sm:$0xf]
        %v6845 = vld [vmem:[%s5 + $0x388] sm:$0xf]
        %v6846 = vld [vmem:[%s5 + $0x38c] sm:$0xf]
        %v6847 = vld [vmem:[%s5 + $0x390] sm:$0xf]
        %v6848 = vld [vmem:[%s5 + $0x394] sm:$0xf]
        %v6849 = vld [vmem:[%s5 + $0x398] sm:$0xf]
        %v6850 = vld [vmem:[%s5 + $0x39c] sm:$0xf]
        %v6851 = vld [vmem:[%s5 + $0x3a0] sm:$0xf]
        %v6852 = vld [vmem:[%s5 + $0x3a4] sm:$0xf]
        %v6853 = vld [vmem:[%s5 + $0x3a8] sm:$0xf]
        %v6854 = vld [vmem:[%s5 + $0x3ac] sm:$0xf]
        %v6855 = vld [vmem:[%s5 + $0x3b0] sm:$0xf]
        %v6856 = vld [vmem:[%s5 + $0x3b4] sm:$0xf]
        %v6857 = vld [vmem:[%s5 + $0x3b8] sm:$0xf]
        %v6858 = vld [vmem:[%s5 + $0x3bc] sm:$0xf]
        %v6859 = vld [vmem:[%s5 + $0x3c0] sm:$0xf]
        %v6860 = vld [vmem:[%s5 + $0x3c4] sm:$0xf]
        %v6861 = vld [vmem:[%s5 + $0x3c8] sm:$0xf]
        %v6862 = vld [vmem:[%s5 + $0x3cc] sm:$0xf]
        %v6863 = vld [vmem:[%s5 + $0x3d0] sm:$0xf]
        %v6864 = vld [vmem:[%s5 + $0x3d4] sm:$0xf]
        %v6865 = vld [vmem:[%s5 + $0x3d8] sm:$0xf]
        %v6866 = vld [vmem:[%s5 + $0x3dc] sm:$0xf]
        %v6867 = vld [vmem:[%s5 + $0x3e0] sm:$0xf]
        %v6868 = vld [vmem:[%s5 + $0x3e4] sm:$0xf]
        %v6869 = vld [vmem:[%s5 + $0x3e8] sm:$0xf]
        %v6870 = vld [vmem:[%s5 + $0x3ec] sm:$0xf]
        %v6871 = vld [vmem:[%s5 + $0x3f0] sm:$0xf]
        %v6872 = vld [vmem:[%s5 + $0x3f4] sm:$0xf]
        %v6873 = vld [vmem:[%s5 + $0x3f8] sm:$0xf]
        %v6874 = vld [vmem:[%s5 + $0x3fc] sm:$0xf]
        %v6875 = vld [vmem:[%s5 + $0x400] sm:$0xf]
        %v6876 = vld [vmem:[%s5 + $0x404] sm:$0xf]
        %v6877 = vld [vmem:[%s5 + $0x408] sm:$0xf]
        %v6878 = vld [vmem:[%s5 + $0x40c] sm:$0xf]
        %v6879 = vld [vmem:[%s5 + $0x410] sm:$0xf]
        %v6880 = vld [vmem:[%s5 + $0x414] sm:$0xf]
        %v6881 = vld [vmem:[%s5 + $0x418] sm:$0xf]
        %v6882 = vld [vmem:[%s5 + $0x41c] sm:$0xf]
        %v6883 = vld [vmem:[%s5 + $0x420] sm:$0xf]
        %v6884 = vld [vmem:[%s5 + $0x424] sm:$0xf]
        %v6885 = vld [vmem:[%s5 + $0x428] sm:$0xf]
        %v6886 = vld [vmem:[%s5 + $0x42c] sm:$0xf]
        %v6887 = vld [vmem:[%s5 + $0x430] sm:$0xf]
        %v6888 = vld [vmem:[%s5 + $0x434] sm:$0xf]
        %v6889 = vld [vmem:[%s5 + $0x438] sm:$0xf]
        %v6890 = vld [vmem:[%s5 + $0x43c] sm:$0xf]
        %v6891 = vld [vmem:[%s5 + $0x440] sm:$0xf]
        %v6892 = vld [vmem:[%s5 + $0x444] sm:$0xf]
        %v6893 = vld [vmem:[%s5 + $0x448] sm:$0xf]
        %v6894 = vld [vmem:[%s5 + $0x44c] sm:$0xf]
        %v6895 = vld [vmem:[%s5 + $0x450] sm:$0xf]
        %v6896 = vld [vmem:[%s5 + $0x454] sm:$0xf]
        %v6897 = vld [vmem:[%s5 + $0x458] sm:$0xf]
        %v6898 = vld [vmem:[%s5 + $0x45c] sm:$0xf]
        %v6899 = vld [vmem:[%s5 + $0x460] sm:$0xf]
        %v6900 = vld [vmem:[%s5 + $0x464] sm:$0xf]
        %v6901 = vld [vmem:[%s5 + $0x468] sm:$0xf]
        %v6902 = vld [vmem:[%s5 + $0x46c] sm:$0xf]
        %v6903 = vld [vmem:[%s5 + $0x470] sm:$0xf]
        %v6904 = vld [vmem:[%s5 + $0x474] sm:$0xf]
        %v6905 = vld [vmem:[%s5 + $0x478] sm:$0xf]
        %v6906 = vld [vmem:[%s5 + $0x47c] sm:$0xf]
        %v6907 = vld [vmem:[%s5 + $0x480] sm:$0xf]
        %v6908 = vld [vmem:[%s5 + $0x484] sm:$0xf]
        %v6909 = vld [vmem:[%s5 + $0x488] sm:$0xf]
        %v6910 = vld [vmem:[%s5 + $0x48c] sm:$0xf]
        %v6911 = vld [vmem:[%s5 + $0x490] sm:$0xf]
        %v6912 = vld [vmem:[%s5 + $0x494] sm:$0xf]
        %v6913 = vld [vmem:[%s5 + $0x498] sm:$0xf]
        %v6914 = vld [vmem:[%s5 + $0x49c] sm:$0xf]
        %v6915 = vld [vmem:[%s5 + $0x4a0] sm:$0xf]
        %v6916 = vld [vmem:[%s5 + $0x4a4] sm:$0xf]
        %v6917 = vld [vmem:[%s5 + $0x4a8] sm:$0xf]
        %v6918 = vld [vmem:[%s5 + $0x4ac] sm:$0xf]
        %v6919 = vld [vmem:[%s5 + $0x4b0] sm:$0xf]
        %v6920 = vld [vmem:[%s5 + $0x4b4] sm:$0xf]
        %v6921 = vld [vmem:[%s5 + $0x4b8] sm:$0xf]
        %v6922 = vld [vmem:[%s5 + $0x4bc] sm:$0xf]
        %v6923 = vld [vmem:[%s5 + $0x4c0] sm:$0xf]
        %v6924 = vld [vmem:[%s5 + $0x4c4] sm:$0xf]
        %v6925 = vld [vmem:[%s5 + $0x4c8] sm:$0xf]
        %v6926 = vld [vmem:[%s5 + $0x4cc] sm:$0xf]
        %v6927 = vld [vmem:[%s5 + $0x4d0] sm:$0xf]
        %v6928 = vld [vmem:[%s5 + $0x4d4] sm:$0xf]
        %v6929 = vld [vmem:[%s5 + $0x4d8] sm:$0xf]
        %v6930 = vld [vmem:[%s5 + $0x4dc] sm:$0xf]
        %v6931 = vld [vmem:[%s5 + $0x4e0] sm:$0xf]
        %v6932 = vld [vmem:[%s5 + $0x4e4] sm:$0xf]
        %v6933 = vld [vmem:[%s5 + $0x4e8] sm:$0xf]
        %v6934 = vld [vmem:[%s5 + $0x4ec] sm:$0xf]
        %v6935 = vld [vmem:[%s5 + $0x4f0] sm:$0xf]
        %v6936 = vld [vmem:[%s5 + $0x4f4] sm:$0xf]
        %v6937 = vld [vmem:[%s5 + $0x4f8] sm:$0xf]
        %v6938 = vld [vmem:[%s5 + $0x4fc] sm:$0xf]
        %v6939 = vld [vmem:[%s5 + $0x500] sm:$0xf]
        %v6940 = vld [vmem:[%s5 + $0x504] sm:$0xf]
        %v6941 = vld [vmem:[%s5 + $0x508] sm:$0xf]
        %v6942 = vld [vmem:[%s5 + $0x50c] sm:$0xf]
        %v6943 = vld [vmem:[%s5 + $0x510] sm:$0xf]
        %v6944 = vld [vmem:[%s5 + $0x514] sm:$0xf]
        %v6945 = vld [vmem:[%s5 + $0x518] sm:$0xf]
        %v6946 = vld [vmem:[%s5 + $0x51c] sm:$0xf]
        %v6947 = vld [vmem:[%s5 + $0x520] sm:$0xf]
        %v6948 = vld [vmem:[%s5 + $0x524] sm:$0xf]
        %v6949 = vld [vmem:[%s5 + $0x528] sm:$0xf]
        %v6950 = vld [vmem:[%s5 + $0x52c] sm:$0xf]
        %v6951 = vld [vmem:[%s5 + $0x530] sm:$0xf]
        %v6952 = vld [vmem:[%s5 + $0x534] sm:$0xf]
        %v6953 = vld [vmem:[%s5 + $0x538] sm:$0xf]
        %v6954 = vld [vmem:[%s5 + $0x53c] sm:$0xf]
        %v6955 = vld [vmem:[%s5 + $0x540] sm:$0xf]
        %v6956 = vld [vmem:[%s5 + $0x544] sm:$0xf]
        %v6957 = vld [vmem:[%s5 + $0x548] sm:$0xf]
        %v6958 = vld [vmem:[%s5 + $0x54c] sm:$0xf]
        %v6959 = vld [vmem:[%s5 + $0x550] sm:$0xf]
        %v6960 = vld [vmem:[%s5 + $0x554] sm:$0xf]
        %v6961 = vld [vmem:[%s5 + $0x558] sm:$0xf]
        %v6962 = vld [vmem:[%s5 + $0x55c] sm:$0xf]
        %v6963 = vld [vmem:[%s5 + $0x560] sm:$0xf]
        %v6964 = vld [vmem:[%s5 + $0x564] sm:$0xf]
        %v6965 = vld [vmem:[%s5 + $0x568] sm:$0xf]
        %v6966 = vld [vmem:[%s5 + $0x56c] sm:$0xf]
        %v6967 = vld [vmem:[%s5 + $0x570] sm:$0xf]
        %v6968 = vld [vmem:[%s5 + $0x574] sm:$0xf]
        %v6969 = vld [vmem:[%s5 + $0x578] sm:$0xf]
        %v6970 = vld [vmem:[%s5 + $0x57c] sm:$0xf]
        %v6971 = vld [vmem:[%s5 + $0x580] sm:$0xf]
        %v6972 = vld [vmem:[%s5 + $0x584] sm:$0xf]
        %v6973 = vld [vmem:[%s5 + $0x588] sm:$0xf]
        %v6974 = vld [vmem:[%s5 + $0x58c] sm:$0xf]
        %v6975 = vld [vmem:[%s5 + $0x590] sm:$0xf]
        %v6976 = vld [vmem:[%s5 + $0x594] sm:$0xf]
        %v6977 = vld [vmem:[%s5 + $0x598] sm:$0xf]
        %v6978 = vld [vmem:[%s5 + $0x59c] sm:$0xf]
        %v6979 = vld [vmem:[%s5 + $0x5a0] sm:$0xf]
        %v6980 = vld [vmem:[%s5 + $0x5a4] sm:$0xf]
        %v6981 = vld [vmem:[%s5 + $0x5a8] sm:$0xf]
        %v6982 = vld [vmem:[%s5 + $0x5ac] sm:$0xf]
        %v6983 = vld [vmem:[%s5 + $0x5b0] sm:$0xf]
        %v6984 = vld [vmem:[%s5 + $0x5b4] sm:$0xf]
        %v6985 = vld [vmem:[%s5 + $0x5b8] sm:$0xf]
        %v6986 = vld [vmem:[%s5 + $0x5bc] sm:$0xf]
        %v6987 = vld [vmem:[%s5 + $0x5c0] sm:$0xf]
        %v6988 = vld [vmem:[%s5 + $0x5c4] sm:$0xf]
        %v6989 = vld [vmem:[%s5 + $0x5c8] sm:$0xf]
        %v6990 = vld [vmem:[%s5 + $0x5cc] sm:$0xf]
        %v6991 = vld [vmem:[%s5 + $0x5d0] sm:$0xf]
        %v6992 = vld [vmem:[%s5 + $0x5d4] sm:$0xf]
        %v6993 = vld [vmem:[%s5 + $0x5d8] sm:$0xf]
        %v6994 = vld [vmem:[%s5 + $0x5dc] sm:$0xf]
        %v6995 = vld [vmem:[%s5 + $0x5e0] sm:$0xf]
        %v6996 = vld [vmem:[%s5 + $0x5e4] sm:$0xf]
        %v6997 = vld [vmem:[%s5 + $0x5e8] sm:$0xf]
        %v6998 = vld [vmem:[%s5 + $0x5ec] sm:$0xf]
        %v6999 = vld [vmem:[%s5 + $0x5f0] sm:$0xf]
        %v7000 = vld [vmem:[%s5 + $0x5f4] sm:$0xf]
        %v7001 = vld [vmem:[%s5 + $0x5f8] sm:$0xf]
        %v7002 = vld [vmem:[%s5 + $0x5fc] sm:$0xf]
        %v7003 = vld [vmem:[%s5 + $0x600] sm:$0xf]
        %v7004 = vld [vmem:[%s5 + $0x604] sm:$0xf]
        %v7005 = vld [vmem:[%s5 + $0x608] sm:$0xf]
        %v7006 = vld [vmem:[%s5 + $0x60c] sm:$0xf]
        %v7007 = vld [vmem:[%s5 + $0x610] sm:$0xf]
        %v7008 = vld [vmem:[%s5 + $0x614] sm:$0xf]
        %v7009 = vld [vmem:[%s5 + $0x618] sm:$0xf]
        %v7010 = vld [vmem:[%s5 + $0x61c] sm:$0xf]
        %v7011 = vld [vmem:[%s5 + $0x620] sm:$0xf]
        %v7012 = vld [vmem:[%s5 + $0x624] sm:$0xf]
        %v7013 = vld [vmem:[%s5 + $0x628] sm:$0xf]
        %v7014 = vld [vmem:[%s5 + $0x62c] sm:$0xf]
        %v7015 = vld [vmem:[%s5 + $0x630] sm:$0xf]
        %v7016 = vld [vmem:[%s5 + $0x634] sm:$0xf]
        %v7017 = vld [vmem:[%s5 + $0x638] sm:$0xf]
        %v7018 = vld [vmem:[%s5 + $0x63c] sm:$0xf]
        %v7019 = vld [vmem:[%s5 + $0x640] sm:$0xf]
        %v7020 = vld [vmem:[%s5 + $0x644] sm:$0xf]
        %v7021 = vld [vmem:[%s5 + $0x648] sm:$0xf]
        %v7022 = vld [vmem:[%s5 + $0x64c] sm:$0xf]
        %v7023 = vld [vmem:[%s5 + $0x650] sm:$0xf]
        %v7024 = vld [vmem:[%s5 + $0x654] sm:$0xf]
        %v7025 = vld [vmem:[%s5 + $0x658] sm:$0xf]
        %v7026 = vld [vmem:[%s5 + $0x65c] sm:$0xf]
        %v7027 = vld [vmem:[%s5 + $0x660] sm:$0xf]
        %v7028 = vld [vmem:[%s5 + $0x664] sm:$0xf]
        %v7029 = vld [vmem:[%s5 + $0x668] sm:$0xf]
        %v7030 = vld [vmem:[%s5 + $0x66c] sm:$0xf]
        %v7031 = vld [vmem:[%s5 + $0x670] sm:$0xf]
        %v7032 = vld [vmem:[%s5 + $0x674] sm:$0xf]
        %v7033 = vld [vmem:[%s5 + $0x678] sm:$0xf]
        %v7034 = vld [vmem:[%s5 + $0x67c] sm:$0xf]
        %v7035 = vld [vmem:[%s5 + $0x680] sm:$0xf]
        %v7036 = vld [vmem:[%s5 + $0x684] sm:$0xf]
        %v7037 = vld [vmem:[%s5 + $0x688] sm:$0xf]
        %v7038 = vld [vmem:[%s5 + $0x68c] sm:$0xf]
        %v7039 = vld [vmem:[%s5 + $0x690] sm:$0xf]
        %v7040 = vld [vmem:[%s5 + $0x694] sm:$0xf]
        %v7041 = vld [vmem:[%s5 + $0x698] sm:$0xf]
        %v7042 = vld [vmem:[%s5 + $0x69c] sm:$0xf]
        %v7043 = vld [vmem:[%s5 + $0x6a0] sm:$0xf]
        %v7044 = vld [vmem:[%s5 + $0x6a4] sm:$0xf]
        %v7045 = vld [vmem:[%s5 + $0x6a8] sm:$0xf]
        %v7046 = vld [vmem:[%s5 + $0x6ac] sm:$0xf]
        %v7047 = vld [vmem:[%s5 + $0x6b0] sm:$0xf]
        %v7048 = vld [vmem:[%s5 + $0x6b4] sm:$0xf]
        %v7049 = vld [vmem:[%s5 + $0x6b8] sm:$0xf]
        %v7050 = vld [vmem:[%s5 + $0x6bc] sm:$0xf]
        %v7051 = vld [vmem:[%s5 + $0x6c0] sm:$0xf]
        %v7052 = vld [vmem:[%s5 + $0x6c4] sm:$0xf]
        %v7053 = vld [vmem:[%s5 + $0x6c8] sm:$0xf]
        %v7054 = vld [vmem:[%s5 + $0x6cc] sm:$0xf]
        %v7055 = vld [vmem:[%s5 + $0x6d0] sm:$0xf]
        %v7056 = vld [vmem:[%s5 + $0x6d4] sm:$0xf]
        %v7057 = vld [vmem:[%s5 + $0x6d8] sm:$0xf]
        %v7058 = vld [vmem:[%s5 + $0x6dc] sm:$0xf]
        %v7059 = vld [vmem:[%s5 + $0x6e0] sm:$0xf]
        %v7060 = vld [vmem:[%s5 + $0x6e4] sm:$0xf]
        %v7061 = vld [vmem:[%s5 + $0x6e8] sm:$0xf]
        %v7062 = vld [vmem:[%s5 + $0x6ec] sm:$0xf]
        %v7063 = vld [vmem:[%s5 + $0x6f0] sm:$0xf]
        %v7064 = vld [vmem:[%s5 + $0x6f4] sm:$0xf]
        %v7065 = vld [vmem:[%s5 + $0x6f8] sm:$0xf]
        %v7066 = vld [vmem:[%s5 + $0x6fc] sm:$0xf]
        %v7067 = vld [vmem:[%s5 + $0x700] sm:$0xf]
        %v7068 = vld [vmem:[%s5 + $0x704] sm:$0xf]
        %v7069 = vld [vmem:[%s5 + $0x708] sm:$0xf]
        %v7070 = vld [vmem:[%s5 + $0x70c] sm:$0xf]
        %v7071 = vld [vmem:[%s5 + $0x710] sm:$0xf]
        %v7072 = vld [vmem:[%s5 + $0x714] sm:$0xf]
        %v7073 = vld [vmem:[%s5 + $0x718] sm:$0xf]
        %v7074 = vld [vmem:[%s5 + $0x71c] sm:$0xf]
        %v7075 = vld [vmem:[%s5 + $0x720] sm:$0xf]
        %v7076 = vld [vmem:[%s5 + $0x724] sm:$0xf]
        %v7077 = vld [vmem:[%s5 + $0x728] sm:$0xf]
        %v7078 = vld [vmem:[%s5 + $0x72c] sm:$0xf]
        %v7079 = vld [vmem:[%s5 + $0x730] sm:$0xf]
        %v7080 = vld [vmem:[%s5 + $0x734] sm:$0xf]
        %v7081 = vld [vmem:[%s5 + $0x738] sm:$0xf]
        %v7082 = vld [vmem:[%s5 + $0x73c] sm:$0xf]
        %v7083 = vld [vmem:[%s5 + $0x740] sm:$0xf]
        %v7084 = vld [vmem:[%s5 + $0x744] sm:$0xf]
        %v7085 = vld [vmem:[%s5 + $0x748] sm:$0xf]
        %v7086 = vld [vmem:[%s5 + $0x74c] sm:$0xf]
        %v7087 = vld [vmem:[%s5 + $0x750] sm:$0xf]
        %v7088 = vld [vmem:[%s5 + $0x754] sm:$0xf]
        %v7089 = vld [vmem:[%s5 + $0x758] sm:$0xf]
        %v7090 = vld [vmem:[%s5 + $0x75c] sm:$0xf]
        %v7091 = vld [vmem:[%s5 + $0x760] sm:$0xf]
        %v7092 = vld [vmem:[%s5 + $0x764] sm:$0xf]
        %v7093 = vld [vmem:[%s5 + $0x768] sm:$0xf]
        %v7094 = vld [vmem:[%s5 + $0x76c] sm:$0xf]
        %v7095 = vld [vmem:[%s5 + $0x770] sm:$0xf]
        %v7096 = vld [vmem:[%s5 + $0x774] sm:$0xf]
        %v7097 = vld [vmem:[%s5 + $0x778] sm:$0xf]
        %v7098 = vld [vmem:[%s5 + $0x77c] sm:$0xf]
        %v7099 = vld [vmem:[%s5 + $0x780] sm:$0xf]
        %v7100 = vld [vmem:[%s5 + $0x784] sm:$0xf]
        %v7101 = vld [vmem:[%s5 + $0x788] sm:$0xf]
        %v7102 = vld [vmem:[%s5 + $0x78c] sm:$0xf]
        %v7103 = vld [vmem:[%s5 + $0x790] sm:$0xf]
        %v7104 = vld [vmem:[%s5 + $0x794] sm:$0xf]
        %v7105 = vld [vmem:[%s5 + $0x798] sm:$0xf]
        %v7106 = vld [vmem:[%s5 + $0x79c] sm:$0xf]
        %v7107 = vld [vmem:[%s5 + $0x7a0] sm:$0xf]
        %v7108 = vld [vmem:[%s5 + $0x7a4] sm:$0xf]
        %v7109 = vld [vmem:[%s5 + $0x7a8] sm:$0xf]
        %v7110 = vld [vmem:[%s5 + $0x7ac] sm:$0xf]
        %v7111 = vld [vmem:[%s5 + $0x7b0] sm:$0xf]
        %v7112 = vld [vmem:[%s5 + $0x7b4] sm:$0xf]
        %v7113 = vld [vmem:[%s5 + $0x7b8] sm:$0xf]
        %v7114 = vld [vmem:[%s5 + $0x7bc] sm:$0xf]
        %v7115 = vld [vmem:[%s5 + $0x7c0] sm:$0xf]
        %v7116 = vld [vmem:[%s5 + $0x7c4] sm:$0xf]
        %v7117 = vld [vmem:[%s5 + $0x7c8] sm:$0xf]
        %v7118 = vld [vmem:[%s5 + $0x7cc] sm:$0xf]
        %v7119 = vld [vmem:[%s5 + $0x7d0] sm:$0xf]
        %v7120 = vld [vmem:[%s5 + $0x7d4] sm:$0xf]
        %v7121 = vld [vmem:[%s5 + $0x7d8] sm:$0xf]
        %v7122 = vld [vmem:[%s5 + $0x7dc] sm:$0xf]
        %v7123 = vld [vmem:[%s5 + $0x7e0] sm:$0xf]
        %v7124 = vld [vmem:[%s5 + $0x7e4] sm:$0xf]
        %v7125 = vld [vmem:[%s5 + $0x7e8] sm:$0xf]
        %v7126 = vld [vmem:[%s5 + $0x7ec] sm:$0xf]
        %v7127 = vld [vmem:[%s5 + $0x7f0] sm:$0xf]
        %v7128 = vld [vmem:[%s5 + $0x7f4] sm:$0xf]
        %v7129 = vld [vmem:[%s5 + $0x7f8] sm:$0xf]
        %v7130 = vld [vmem:[%s5 + $0x7fc] sm:$0xf]
        %v7131 = vld [vmem:[%s6] sm:$0x1]
        %v7644 = vunpack.c.l.b16 %v6619
        %v7645 = vunpack.c.l.b16 %v6620
        %v7646 = vunpack.c.l.b16 %v6621
        %v7647 = vunpack.c.l.b16 %v6622
        %v7648 = vunpack.c.l.b16 %v6623
        %v7649 = vunpack.c.l.b16 %v6624
        %v7650 = vunpack.c.l.b16 %v6625
        %v7651 = vunpack.c.l.b16 %v6626
        %v7652 = vunpack.c.l.b16 %v6627
        %v7653 = vunpack.c.l.b16 %v6628
        %v7654 = vunpack.c.l.b16 %v6629
        %v7655 = vunpack.c.l.b16 %v6630
        %v7656 = vunpack.c.l.b16 %v6631
        %v7657 = vunpack.c.l.b16 %v6632
        %v7658 = vunpack.c.l.b16 %v6633
        %v7659 = vunpack.c.l.b16 %v6634
        %v7660 = vunpack.c.l.b16 %v6635
        %v7661 = vunpack.c.l.b16 %v6636
        %v7662 = vunpack.c.l.b16 %v6637
        %v7663 = vunpack.c.l.b16 %v6638
        %v7664 = vunpack.c.l.b16 %v6639
        %v7665 = vunpack.c.l.b16 %v6640
        %v7666 = vunpack.c.l.b16 %v6641
        %v7667 = vunpack.c.l.b16 %v6642
        %v7668 = vunpack.c.l.b16 %v6643
        %v7669 = vunpack.c.l.b16 %v6644
        %v7670 = vunpack.c.l.b16 %v6645
        %v7671 = vunpack.c.l.b16 %v6646
        %v7672 = vunpack.c.l.b16 %v6647
        %v7673 = vunpack.c.l.b16 %v6648
        %v7674 = vunpack.c.l.b16 %v6649
        %v7675 = vunpack.c.l.b16 %v6650
        %v7676 = vunpack.c.l.b16 %v6651
        %v7677 = vunpack.c.l.b16 %v6652
        %v7678 = vunpack.c.l.b16 %v6653
        %v7679 = vunpack.c.l.b16 %v6654
        %v7680 = vunpack.c.l.b16 %v6655
        %v7681 = vunpack.c.l.b16 %v6656
        %v7682 = vunpack.c.l.b16 %v6657
        %v7683 = vunpack.c.l.b16 %v6658
        %v7684 = vunpack.c.l.b16 %v6659
        %v7685 = vunpack.c.l.b16 %v6660
        %v7686 = vunpack.c.l.b16 %v6661
        %v7687 = vunpack.c.l.b16 %v6662
        %v7688 = vunpack.c.l.b16 %v6663
        %v7689 = vunpack.c.l.b16 %v6664
        %v7690 = vunpack.c.l.b16 %v6665
        %v7691 = vunpack.c.l.b16 %v6666
        %v7692 = vunpack.c.l.b16 %v6667
        %v7693 = vunpack.c.l.b16 %v6668
        %v7694 = vunpack.c.l.b16 %v6669
        %v7695 = vunpack.c.l.b16 %v6670
        %v7696 = vunpack.c.l.b16 %v6671
        %v7697 = vunpack.c.l.b16 %v6672
        %v7698 = vunpack.c.l.b16 %v6673
        %v7699 = vunpack.c.l.b16 %v6674
        %v7700 = vunpack.c.l.b16 %v6675
        %v7701 = vunpack.c.l.b16 %v6676
        %v7702 = vunpack.c.l.b16 %v6677
        %v7703 = vunpack.c.l.b16 %v6678
        %v7704 = vunpack.c.l.b16 %v6679
        %v7705 = vunpack.c.l.b16 %v6680
        %v7706 = vunpack.c.l.b16 %v6681
        %v7707 = vunpack.c.l.b16 %v6682
        %v7708 = vunpack.c.l.b16 %v6683
        %v7709 = vunpack.c.l.b16 %v6684
        %v7710 = vunpack.c.l.b16 %v6685
        %v7711 = vunpack.c.l.b16 %v6686
        %v7712 = vunpack.c.l.b16 %v6687
        %v7713 = vunpack.c.l.b16 %v6688
        %v7714 = vunpack.c.l.b16 %v6689
        %v7715 = vunpack.c.l.b16 %v6690
        %v7716 = vunpack.c.l.b16 %v6691
        %v7717 = vunpack.c.l.b16 %v6692
        %v7718 = vunpack.c.l.b16 %v6693
        %v7719 = vunpack.c.l.b16 %v6694
        %v7720 = vunpack.c.l.b16 %v6695
        %v7721 = vunpack.c.l.b16 %v6696
        %v7722 = vunpack.c.l.b16 %v6697
        %v7723 = vunpack.c.l.b16 %v6698
        %v7724 = vunpack.c.l.b16 %v6699
        %v7725 = vunpack.c.l.b16 %v6700
        %v7726 = vunpack.c.l.b16 %v6701
        %v7727 = vunpack.c.l.b16 %v6702
        %v7728 = vunpack.c.l.b16 %v6703
        %v7729 = vunpack.c.l.b16 %v6704
        %v7730 = vunpack.c.l.b16 %v6705
        %v7731 = vunpack.c.l.b16 %v6706
        %v7732 = vunpack.c.l.b16 %v6707
        %v7733 = vunpack.c.l.b16 %v6708
        %v7734 = vunpack.c.l.b16 %v6709
        %v7735 = vunpack.c.l.b16 %v6710
        %v7736 = vunpack.c.l.b16 %v6711
        %v7737 = vunpack.c.l.b16 %v6712
        %v7738 = vunpack.c.l.b16 %v6713
        %v7739 = vunpack.c.l.b16 %v6714
        %v7740 = vunpack.c.l.b16 %v6715
        %v7741 = vunpack.c.l.b16 %v6716
        %v7742 = vunpack.c.l.b16 %v6717
        %v7743 = vunpack.c.l.b16 %v6718
        %v7744 = vunpack.c.l.b16 %v6719
        %v7745 = vunpack.c.l.b16 %v6720
        %v7746 = vunpack.c.l.b16 %v6721
        %v7747 = vunpack.c.l.b16 %v6722
        %v7748 = vunpack.c.l.b16 %v6723
        %v7749 = vunpack.c.l.b16 %v6724
        %v7750 = vunpack.c.l.b16 %v6725
        %v7751 = vunpack.c.l.b16 %v6726
        %v7752 = vunpack.c.l.b16 %v6727
        %v7753 = vunpack.c.l.b16 %v6728
        %v7754 = vunpack.c.l.b16 %v6729
        %v7755 = vunpack.c.l.b16 %v6730
        %v7756 = vunpack.c.l.b16 %v6731
        %v7757 = vunpack.c.l.b16 %v6732
        %v7758 = vunpack.c.l.b16 %v6733
        %v7759 = vunpack.c.l.b16 %v6734
        %v7760 = vunpack.c.l.b16 %v6735
        %v7761 = vunpack.c.l.b16 %v6736
        %v7762 = vunpack.c.l.b16 %v6737
        %v7763 = vunpack.c.l.b16 %v6738
        %v7764 = vunpack.c.l.b16 %v6739
        %v7765 = vunpack.c.l.b16 %v6740
        %v7766 = vunpack.c.l.b16 %v6741
        %v7767 = vunpack.c.l.b16 %v6742
        %v7768 = vunpack.c.l.b16 %v6743
        %v7769 = vunpack.c.l.b16 %v6744
        %v7770 = vunpack.c.l.b16 %v6745
        %v7771 = vunpack.c.l.b16 %v6746
        %v7772 = vunpack.c.l.b16 %v6747
        %v7773 = vunpack.c.l.b16 %v6748
        %v7774 = vunpack.c.l.b16 %v6749
        %v7775 = vunpack.c.l.b16 %v6750
        %v7776 = vunpack.c.l.b16 %v6751
        %v7777 = vunpack.c.l.b16 %v6752
        %v7778 = vunpack.c.l.b16 %v6753
        %v7779 = vunpack.c.l.b16 %v6754
        %v7780 = vunpack.c.l.b16 %v6755
        %v7781 = vunpack.c.l.b16 %v6756
        %v7782 = vunpack.c.l.b16 %v6757
        %v7783 = vunpack.c.l.b16 %v6758
        %v7784 = vunpack.c.l.b16 %v6759
        %v7785 = vunpack.c.l.b16 %v6760
        %v7786 = vunpack.c.l.b16 %v6761
        %v7787 = vunpack.c.l.b16 %v6762
        %v7788 = vunpack.c.l.b16 %v6763
        %v7789 = vunpack.c.l.b16 %v6764
        %v7790 = vunpack.c.l.b16 %v6765
        %v7791 = vunpack.c.l.b16 %v6766
        %v7792 = vunpack.c.l.b16 %v6767
        %v7793 = vunpack.c.l.b16 %v6768
        %v7794 = vunpack.c.l.b16 %v6769
        %v7795 = vunpack.c.l.b16 %v6770
        %v7796 = vunpack.c.l.b16 %v6771
        %v7797 = vunpack.c.l.b16 %v6772
        %v7798 = vunpack.c.l.b16 %v6773
        %v7799 = vunpack.c.l.b16 %v6774
        %v7800 = vunpack.c.l.b16 %v6775
        %v7801 = vunpack.c.l.b16 %v6776
        %v7802 = vunpack.c.l.b16 %v6777
        %v7803 = vunpack.c.l.b16 %v6778
        %v7804 = vunpack.c.l.b16 %v6779
        %v7805 = vunpack.c.l.b16 %v6780
        %v7806 = vunpack.c.l.b16 %v6781
        %v7807 = vunpack.c.l.b16 %v6782
        %v7808 = vunpack.c.l.b16 %v6783
        %v7809 = vunpack.c.l.b16 %v6784
        %v7810 = vunpack.c.l.b16 %v6785
        %v7811 = vunpack.c.l.b16 %v6786
        %v7812 = vunpack.c.l.b16 %v6787
        %v7813 = vunpack.c.l.b16 %v6788
        %v7814 = vunpack.c.l.b16 %v6789
        %v7815 = vunpack.c.l.b16 %v6790
        %v7816 = vunpack.c.l.b16 %v6791
        %v7817 = vunpack.c.l.b16 %v6792
        %v7818 = vunpack.c.l.b16 %v6793
        %v7819 = vunpack.c.l.b16 %v6794
        %v7820 = vunpack.c.l.b16 %v6795
        %v7821 = vunpack.c.l.b16 %v6796
        %v7822 = vunpack.c.l.b16 %v6797
        %v7823 = vunpack.c.l.b16 %v6798
        %v7824 = vunpack.c.l.b16 %v6799
        %v7825 = vunpack.c.l.b16 %v6800
        %v7826 = vunpack.c.l.b16 %v6801
        %v7827 = vunpack.c.l.b16 %v6802
        %v7828 = vunpack.c.l.b16 %v6803
        %v7829 = vunpack.c.l.b16 %v6804
        %v7830 = vunpack.c.l.b16 %v6805
        %v7831 = vunpack.c.l.b16 %v6806
        %v7832 = vunpack.c.l.b16 %v6807
        %v7833 = vunpack.c.l.b16 %v6808
        %v7834 = vunpack.c.l.b16 %v6809
        %v7835 = vunpack.c.l.b16 %v6810
        %v7836 = vunpack.c.l.b16 %v6811
        %v7837 = vunpack.c.l.b16 %v6812
        %v7838 = vunpack.c.l.b16 %v6813
        %v7839 = vunpack.c.l.b16 %v6814
        %v7840 = vunpack.c.l.b16 %v6815
        %v7841 = vunpack.c.l.b16 %v6816
        %v7842 = vunpack.c.l.b16 %v6817
        %v7843 = vunpack.c.l.b16 %v6818
        %v7844 = vunpack.c.l.b16 %v6819
        %v7845 = vunpack.c.l.b16 %v6820
        %v7846 = vunpack.c.l.b16 %v6821
        %v7847 = vunpack.c.l.b16 %v6822
        %v7848 = vunpack.c.l.b16 %v6823
        %v7849 = vunpack.c.l.b16 %v6824
        %v7850 = vunpack.c.l.b16 %v6825
        %v7851 = vunpack.c.l.b16 %v6826
        %v7852 = vunpack.c.l.b16 %v6827
        %v7853 = vunpack.c.l.b16 %v6828
        %v7854 = vunpack.c.l.b16 %v6829
        %v7855 = vunpack.c.l.b16 %v6830
        %v7856 = vunpack.c.l.b16 %v6831
        %v7857 = vunpack.c.l.b16 %v6832
        %v7858 = vunpack.c.l.b16 %v6833
        %v7859 = vunpack.c.l.b16 %v6834
        %v7860 = vunpack.c.l.b16 %v6835
        %v7861 = vunpack.c.l.b16 %v6836
        %v7862 = vunpack.c.l.b16 %v6837
        %v7863 = vunpack.c.l.b16 %v6838
        %v7864 = vunpack.c.l.b16 %v6839
        %v7865 = vunpack.c.l.b16 %v6840
        %v7866 = vunpack.c.l.b16 %v6841
        %v7867 = vunpack.c.l.b16 %v6842
        %v7868 = vunpack.c.l.b16 %v6843
        %v7869 = vunpack.c.l.b16 %v6844
        %v7870 = vunpack.c.l.b16 %v6845
        %v7871 = vunpack.c.l.b16 %v6846
        %v7872 = vunpack.c.l.b16 %v6847
        %v7873 = vunpack.c.l.b16 %v6848
        %v7874 = vunpack.c.l.b16 %v6849
        %v7875 = vunpack.c.l.b16 %v6850
        %v7876 = vunpack.c.l.b16 %v6851
        %v7877 = vunpack.c.l.b16 %v6852
        %v7878 = vunpack.c.l.b16 %v6853
        %v7879 = vunpack.c.l.b16 %v6854
        %v7880 = vunpack.c.l.b16 %v6855
        %v7881 = vunpack.c.l.b16 %v6856
        %v7882 = vunpack.c.l.b16 %v6857
        %v7883 = vunpack.c.l.b16 %v6858
        %v7884 = vunpack.c.l.b16 %v6859
        %v7885 = vunpack.c.l.b16 %v6860
        %v7886 = vunpack.c.l.b16 %v6861
        %v7887 = vunpack.c.l.b16 %v6862
        %v7888 = vunpack.c.l.b16 %v6863
        %v7889 = vunpack.c.l.b16 %v6864
        %v7890 = vunpack.c.l.b16 %v6865
        %v7891 = vunpack.c.l.b16 %v6866
        %v7892 = vunpack.c.l.b16 %v6867
        %v7893 = vunpack.c.l.b16 %v6868
        %v7894 = vunpack.c.l.b16 %v6869
        %v7895 = vunpack.c.l.b16 %v6870
        %v7896 = vunpack.c.l.b16 %v6871
        %v7897 = vunpack.c.l.b16 %v6872
        %v7898 = vunpack.c.l.b16 %v6873
        %v7899 = vunpack.c.l.b16 %v6874
        %v7900 = vunpack.c.l.b16 %v6875
        %v7901 = vunpack.c.l.b16 %v6876
        %v7902 = vunpack.c.l.b16 %v6877
        %v7903 = vunpack.c.l.b16 %v6878
        %v7904 = vunpack.c.l.b16 %v6879
        %v7905 = vunpack.c.l.b16 %v6880
        %v7906 = vunpack.c.l.b16 %v6881
        %v7907 = vunpack.c.l.b16 %v6882
        %v7908 = vunpack.c.l.b16 %v6883
        %v7909 = vunpack.c.l.b16 %v6884
        %v7910 = vunpack.c.l.b16 %v6885
        %v7911 = vunpack.c.l.b16 %v6886
        %v7912 = vunpack.c.l.b16 %v6887
        %v7913 = vunpack.c.l.b16 %v6888
        %v7914 = vunpack.c.l.b16 %v6889
        %v7915 = vunpack.c.l.b16 %v6890
        %v7916 = vunpack.c.l.b16 %v6891
        %v7917 = vunpack.c.l.b16 %v6892
        %v7918 = vunpack.c.l.b16 %v6893
        %v7919 = vunpack.c.l.b16 %v6894
        %v7920 = vunpack.c.l.b16 %v6895
        %v7921 = vunpack.c.l.b16 %v6896
        %v7922 = vunpack.c.l.b16 %v6897
        %v7923 = vunpack.c.l.b16 %v6898
        %v7924 = vunpack.c.l.b16 %v6899
        %v7925 = vunpack.c.l.b16 %v6900
        %v7926 = vunpack.c.l.b16 %v6901
        %v7927 = vunpack.c.l.b16 %v6902
        %v7928 = vunpack.c.l.b16 %v6903
        %v7929 = vunpack.c.l.b16 %v6904
        %v7930 = vunpack.c.l.b16 %v6905
        %v7931 = vunpack.c.l.b16 %v6906
        %v7932 = vunpack.c.l.b16 %v6907
        %v7933 = vunpack.c.l.b16 %v6908
        %v7934 = vunpack.c.l.b16 %v6909
        %v7935 = vunpack.c.l.b16 %v6910
        %v7936 = vunpack.c.l.b16 %v6911
        %v7937 = vunpack.c.l.b16 %v6912
        %v7938 = vunpack.c.l.b16 %v6913
        %v7939 = vunpack.c.l.b16 %v6914
        %v7940 = vunpack.c.l.b16 %v6915
        %v7941 = vunpack.c.l.b16 %v6916
        %v7942 = vunpack.c.l.b16 %v6917
        %v7943 = vunpack.c.l.b16 %v6918
        %v7944 = vunpack.c.l.b16 %v6919
        %v7945 = vunpack.c.l.b16 %v6920
        %v7946 = vunpack.c.l.b16 %v6921
        %v7947 = vunpack.c.l.b16 %v6922
        %v7948 = vunpack.c.l.b16 %v6923
        %v7949 = vunpack.c.l.b16 %v6924
        %v7950 = vunpack.c.l.b16 %v6925
        %v7951 = vunpack.c.l.b16 %v6926
        %v7952 = vunpack.c.l.b16 %v6927
        %v7953 = vunpack.c.l.b16 %v6928
        %v7954 = vunpack.c.l.b16 %v6929
        %v7955 = vunpack.c.l.b16 %v6930
        %v7956 = vunpack.c.l.b16 %v6931
        %v7957 = vunpack.c.l.b16 %v6932
        %v7958 = vunpack.c.l.b16 %v6933
        %v7959 = vunpack.c.l.b16 %v6934
        %v7960 = vunpack.c.l.b16 %v6935
        %v7961 = vunpack.c.l.b16 %v6936
        %v7962 = vunpack.c.l.b16 %v6937
        %v7963 = vunpack.c.l.b16 %v6938
        %v7964 = vunpack.c.l.b16 %v6939
        %v7965 = vunpack.c.l.b16 %v6940
        %v7966 = vunpack.c.l.b16 %v6941
        %v7967 = vunpack.c.l.b16 %v6942
        %v7968 = vunpack.c.l.b16 %v6943
        %v7969 = vunpack.c.l.b16 %v6944
        %v7970 = vunpack.c.l.b16 %v6945
        %v7971 = vunpack.c.l.b16 %v6946
        %v7972 = vunpack.c.l.b16 %v6947
        %v7973 = vunpack.c.l.b16 %v6948
        %v7974 = vunpack.c.l.b16 %v6949
        %v7975 = vunpack.c.l.b16 %v6950
        %v7976 = vunpack.c.l.b16 %v6951
        %v7977 = vunpack.c.l.b16 %v6952
        %v7978 = vunpack.c.l.b16 %v6953
        %v7979 = vunpack.c.l.b16 %v6954
        %v7980 = vunpack.c.l.b16 %v6955
        %v7981 = vunpack.c.l.b16 %v6956
        %v7982 = vunpack.c.l.b16 %v6957
        %v7983 = vunpack.c.l.b16 %v6958
        %v7984 = vunpack.c.l.b16 %v6959
        %v7985 = vunpack.c.l.b16 %v6960
        %v7986 = vunpack.c.l.b16 %v6961
        %v7987 = vunpack.c.l.b16 %v6962
        %v7988 = vunpack.c.l.b16 %v6963
        %v7989 = vunpack.c.l.b16 %v6964
        %v7990 = vunpack.c.l.b16 %v6965
        %v7991 = vunpack.c.l.b16 %v6966
        %v7992 = vunpack.c.l.b16 %v6967
        %v7993 = vunpack.c.l.b16 %v6968
        %v7994 = vunpack.c.l.b16 %v6969
        %v7995 = vunpack.c.l.b16 %v6970
        %v7996 = vunpack.c.l.b16 %v6971
        %v7997 = vunpack.c.l.b16 %v6972
        %v7998 = vunpack.c.l.b16 %v6973
        %v7999 = vunpack.c.l.b16 %v6974
        %v8000 = vunpack.c.l.b16 %v6975
        %v8001 = vunpack.c.l.b16 %v6976
        %v8002 = vunpack.c.l.b16 %v6977
        %v8003 = vunpack.c.l.b16 %v6978
        %v8004 = vunpack.c.l.b16 %v6979
        %v8005 = vunpack.c.l.b16 %v6980
        %v8006 = vunpack.c.l.b16 %v6981
        %v8007 = vunpack.c.l.b16 %v6982
        %v8008 = vunpack.c.l.b16 %v6983
        %v8009 = vunpack.c.l.b16 %v6984
        %v8010 = vunpack.c.l.b16 %v6985
        %v8011 = vunpack.c.l.b16 %v6986
        %v8012 = vunpack.c.l.b16 %v6987
        %v8013 = vunpack.c.l.b16 %v6988
        %v8014 = vunpack.c.l.b16 %v6989
        %v8015 = vunpack.c.l.b16 %v6990
        %v8016 = vunpack.c.l.b16 %v6991
        %v8017 = vunpack.c.l.b16 %v6992
        %v8018 = vunpack.c.l.b16 %v6993
        %v8019 = vunpack.c.l.b16 %v6994
        %v8020 = vunpack.c.l.b16 %v6995
        %v8021 = vunpack.c.l.b16 %v6996
        %v8022 = vunpack.c.l.b16 %v6997
        %v8023 = vunpack.c.l.b16 %v6998
        %v8024 = vunpack.c.l.b16 %v6999
        %v8025 = vunpack.c.l.b16 %v7000
        %v8026 = vunpack.c.l.b16 %v7001
        %v8027 = vunpack.c.l.b16 %v7002
        %v8028 = vunpack.c.l.b16 %v7003
        %v8029 = vunpack.c.l.b16 %v7004
        %v8030 = vunpack.c.l.b16 %v7005
        %v8031 = vunpack.c.l.b16 %v7006
        %v8032 = vunpack.c.l.b16 %v7007
        %v8033 = vunpack.c.l.b16 %v7008
        %v8034 = vunpack.c.l.b16 %v7009
        %v8035 = vunpack.c.l.b16 %v7010
        %v8036 = vunpack.c.l.b16 %v7011
        %v8037 = vunpack.c.l.b16 %v7012
        %v8038 = vunpack.c.l.b16 %v7013
        %v8039 = vunpack.c.l.b16 %v7014
        %v8040 = vunpack.c.l.b16 %v7015
        %v8041 = vunpack.c.l.b16 %v7016
        %v8042 = vunpack.c.l.b16 %v7017
        %v8043 = vunpack.c.l.b16 %v7018
        %v8044 = vunpack.c.l.b16 %v7019
        %v8045 = vunpack.c.l.b16 %v7020
        %v8046 = vunpack.c.l.b16 %v7021
        %v8047 = vunpack.c.l.b16 %v7022
        %v8048 = vunpack.c.l.b16 %v7023
        %v8049 = vunpack.c.l.b16 %v7024
        %v8050 = vunpack.c.l.b16 %v7025
        %v8051 = vunpack.c.l.b16 %v7026
        %v8052 = vunpack.c.l.b16 %v7027
        %v8053 = vunpack.c.l.b16 %v7028
        %v8054 = vunpack.c.l.b16 %v7029
        %v8055 = vunpack.c.l.b16 %v7030
        %v8056 = vunpack.c.l.b16 %v7031
        %v8057 = vunpack.c.l.b16 %v7032
        %v8058 = vunpack.c.l.b16 %v7033
        %v8059 = vunpack.c.l.b16 %v7034
        %v8060 = vunpack.c.l.b16 %v7035
        %v8061 = vunpack.c.l.b16 %v7036
        %v8062 = vunpack.c.l.b16 %v7037
        %v8063 = vunpack.c.l.b16 %v7038
        %v8064 = vunpack.c.l.b16 %v7039
        %v8065 = vunpack.c.l.b16 %v7040
        %v8066 = vunpack.c.l.b16 %v7041
        %v8067 = vunpack.c.l.b16 %v7042
        %v8068 = vunpack.c.l.b16 %v7043
        %v8069 = vunpack.c.l.b16 %v7044
        %v8070 = vunpack.c.l.b16 %v7045
        %v8071 = vunpack.c.l.b16 %v7046
        %v8072 = vunpack.c.l.b16 %v7047
        %v8073 = vunpack.c.l.b16 %v7048
        %v8074 = vunpack.c.l.b16 %v7049
        %v8075 = vunpack.c.l.b16 %v7050
        %v8076 = vunpack.c.l.b16 %v7051
        %v8077 = vunpack.c.l.b16 %v7052
        %v8078 = vunpack.c.l.b16 %v7053
        %v8079 = vunpack.c.l.b16 %v7054
        %v8080 = vunpack.c.l.b16 %v7055
        %v8081 = vunpack.c.l.b16 %v7056
        %v8082 = vunpack.c.l.b16 %v7057
        %v8083 = vunpack.c.l.b16 %v7058
        %v8084 = vunpack.c.l.b16 %v7059
        %v8085 = vunpack.c.l.b16 %v7060
        %v8086 = vunpack.c.l.b16 %v7061
        %v8087 = vunpack.c.l.b16 %v7062
        %v8088 = vunpack.c.l.b16 %v7063
        %v8089 = vunpack.c.l.b16 %v7064
        %v8090 = vunpack.c.l.b16 %v7065
        %v8091 = vunpack.c.l.b16 %v7066
        %v8092 = vunpack.c.l.b16 %v7067
        %v8093 = vunpack.c.l.b16 %v7068
        %v8094 = vunpack.c.l.b16 %v7069
        %v8095 = vunpack.c.l.b16 %v7070
        %v8096 = vunpack.c.l.b16 %v7071
        %v8097 = vunpack.c.l.b16 %v7072
        %v8098 = vunpack.c.l.b16 %v7073
        %v8099 = vunpack.c.l.b16 %v7074
        %v8100 = vunpack.c.l.b16 %v7075
        %v8101 = vunpack.c.l.b16 %v7076
        %v8102 = vunpack.c.l.b16 %v7077
        %v8103 = vunpack.c.l.b16 %v7078
        %v8104 = vunpack.c.l.b16 %v7079
        %v8105 = vunpack.c.l.b16 %v7080
        %v8106 = vunpack.c.l.b16 %v7081
        %v8107 = vunpack.c.l.b16 %v7082
        %v8108 = vunpack.c.l.b16 %v7083
        %v8109 = vunpack.c.l.b16 %v7084
        %v8110 = vunpack.c.l.b16 %v7085
        %v8111 = vunpack.c.l.b16 %v7086
        %v8112 = vunpack.c.l.b16 %v7087
        %v8113 = vunpack.c.l.b16 %v7088
        %v8114 = vunpack.c.l.b16 %v7089
        %v8115 = vunpack.c.l.b16 %v7090
        %v8116 = vunpack.c.l.b16 %v7091
        %v8117 = vunpack.c.l.b16 %v7092
        %v8118 = vunpack.c.l.b16 %v7093
        %v8119 = vunpack.c.l.b16 %v7094
        %v8120 = vunpack.c.l.b16 %v7095
        %v8121 = vunpack.c.l.b16 %v7096
        %v8122 = vunpack.c.l.b16 %v7097
        %v8123 = vunpack.c.l.b16 %v7098
        %v8124 = vunpack.c.l.b16 %v7099
        %v8125 = vunpack.c.l.b16 %v7100
        %v8126 = vunpack.c.l.b16 %v7101
        %v8127 = vunpack.c.l.b16 %v7102
        %v8128 = vunpack.c.l.b16 %v7103
        %v8129 = vunpack.c.l.b16 %v7104
        %v8130 = vunpack.c.l.b16 %v7105
        %v8131 = vunpack.c.l.b16 %v7106
        %v8132 = vunpack.c.l.b16 %v7107
        %v8133 = vunpack.c.l.b16 %v7108
        %v8134 = vunpack.c.l.b16 %v7109
        %v8135 = vunpack.c.l.b16 %v7110
        %v8136 = vunpack.c.l.b16 %v7111
        %v8137 = vunpack.c.l.b16 %v7112
        %v8138 = vunpack.c.l.b16 %v7113
        %v8139 = vunpack.c.l.b16 %v7114
        %v8140 = vunpack.c.l.b16 %v7115
        %v8141 = vunpack.c.l.b16 %v7116
        %v8142 = vunpack.c.l.b16 %v7117
        %v8143 = vunpack.c.l.b16 %v7118
        %v8144 = vunpack.c.l.b16 %v7119
        %v8145 = vunpack.c.l.b16 %v7120
        %v8146 = vunpack.c.l.b16 %v7121
        %v8147 = vunpack.c.l.b16 %v7122
        %v8148 = vunpack.c.l.b16 %v7123
        %v8149 = vunpack.c.l.b16 %v7124
        %v8150 = vunpack.c.l.b16 %v7125
        %v8151 = vunpack.c.l.b16 %v7126
        %v8152 = vunpack.c.l.b16 %v7127
        %v8153 = vunpack.c.l.b16 %v7128
        %v8154 = vunpack.c.l.b16 %v7129
        %v8155 = vunpack.c.l.b16 %v7130
        %v8156 = vpack.c.b16 %v7645, %v7644
        %v8157 = vpack.c.b16 %v7647, %v7646
        %v8158 = vpack.c.b16 %v7649, %v7648
        %v8159 = vpack.c.b16 %v7651, %v7650
        %v8160 = vpack.c.b16 %v7653, %v7652
        %v8161 = vpack.c.b16 %v7655, %v7654
        %v8162 = vpack.c.b16 %v7657, %v7656
        %v8163 = vpack.c.b16 %v7659, %v7658
        %v8164 = vpack.c.b16 %v7661, %v7660
        %v8165 = vpack.c.b16 %v7663, %v7662
        %v8166 = vpack.c.b16 %v7665, %v7664
        %v8167 = vpack.c.b16 %v7667, %v7666
        %v8168 = vpack.c.b16 %v7669, %v7668
        %v8169 = vpack.c.b16 %v7671, %v7670
        %v8170 = vpack.c.b16 %v7673, %v7672
        %v8171 = vpack.c.b16 %v7675, %v7674
        %v8172 = vpack.c.b16 %v7677, %v7676
        %v8173 = vpack.c.b16 %v7679, %v7678
        %v8174 = vpack.c.b16 %v7681, %v7680
        %v8175 = vpack.c.b16 %v7683, %v7682
        %v8176 = vpack.c.b16 %v7685, %v7684
        %v8177 = vpack.c.b16 %v7687, %v7686
        %v8178 = vpack.c.b16 %v7689, %v7688
        %v8179 = vpack.c.b16 %v7691, %v7690
        %v8180 = vpack.c.b16 %v7693, %v7692
        %v8181 = vpack.c.b16 %v7695, %v7694
        %v8182 = vpack.c.b16 %v7697, %v7696
        %v8183 = vpack.c.b16 %v7699, %v7698
        %v8184 = vpack.c.b16 %v7701, %v7700
        %v8185 = vpack.c.b16 %v7703, %v7702
        %v8186 = vpack.c.b16 %v7705, %v7704
        %v8187 = vpack.c.b16 %v7707, %v7706
        %v8188 = vpack.c.b16 %v7709, %v7708
        %v8189 = vpack.c.b16 %v7711, %v7710
        %v8190 = vpack.c.b16 %v7713, %v7712
        %v8191 = vpack.c.b16 %v7715, %v7714
        %v8192 = vpack.c.b16 %v7717, %v7716
        %v8193 = vpack.c.b16 %v7719, %v7718
        %v8194 = vpack.c.b16 %v7721, %v7720
        %v8195 = vpack.c.b16 %v7723, %v7722
        %v8196 = vpack.c.b16 %v7725, %v7724
        %v8197 = vpack.c.b16 %v7727, %v7726
        %v8198 = vpack.c.b16 %v7729, %v7728
        %v8199 = vpack.c.b16 %v7731, %v7730
        %v8200 = vpack.c.b16 %v7733, %v7732
        %v8201 = vpack.c.b16 %v7735, %v7734
        %v8202 = vpack.c.b16 %v7737, %v7736
        %v8203 = vpack.c.b16 %v7739, %v7738
        %v8204 = vpack.c.b16 %v7741, %v7740
        %v8205 = vpack.c.b16 %v7743, %v7742
        %v8206 = vpack.c.b16 %v7745, %v7744
        %v8207 = vpack.c.b16 %v7747, %v7746
        %v8208 = vpack.c.b16 %v7749, %v7748
        %v8209 = vpack.c.b16 %v7751, %v7750
        %v8210 = vpack.c.b16 %v7753, %v7752
        %v8211 = vpack.c.b16 %v7755, %v7754
        %v8212 = vpack.c.b16 %v7757, %v7756
        %v8213 = vpack.c.b16 %v7759, %v7758
        %v8214 = vpack.c.b16 %v7761, %v7760
        %v8215 = vpack.c.b16 %v7763, %v7762
        %v8216 = vpack.c.b16 %v7765, %v7764
        %v8217 = vpack.c.b16 %v7767, %v7766
        %v8218 = vpack.c.b16 %v7769, %v7768
        %v8219 = vpack.c.b16 %v7771, %v7770
        %v8220 = vpack.c.b16 %v7773, %v7772
        %v8221 = vpack.c.b16 %v7775, %v7774
        %v8222 = vpack.c.b16 %v7777, %v7776
        %v8223 = vpack.c.b16 %v7779, %v7778
        %v8224 = vpack.c.b16 %v7781, %v7780
        %v8225 = vpack.c.b16 %v7783, %v7782
        %v8226 = vpack.c.b16 %v7785, %v7784
        %v8227 = vpack.c.b16 %v7787, %v7786
        %v8228 = vpack.c.b16 %v7789, %v7788
        %v8229 = vpack.c.b16 %v7791, %v7790
        %v8230 = vpack.c.b16 %v7793, %v7792
        %v8231 = vpack.c.b16 %v7795, %v7794
        %v8232 = vpack.c.b16 %v7797, %v7796
        %v8233 = vpack.c.b16 %v7799, %v7798
        %v8234 = vpack.c.b16 %v7801, %v7800
        %v8235 = vpack.c.b16 %v7803, %v7802
        %v8236 = vpack.c.b16 %v7805, %v7804
        %v8237 = vpack.c.b16 %v7807, %v7806
        %v8238 = vpack.c.b16 %v7809, %v7808
        %v8239 = vpack.c.b16 %v7811, %v7810
        %v8240 = vpack.c.b16 %v7813, %v7812
        %v8241 = vpack.c.b16 %v7815, %v7814
        %v8242 = vpack.c.b16 %v7817, %v7816
        %v8243 = vpack.c.b16 %v7819, %v7818
        %v8244 = vpack.c.b16 %v7821, %v7820
        %v8245 = vpack.c.b16 %v7823, %v7822
        %v8246 = vpack.c.b16 %v7825, %v7824
        %v8247 = vpack.c.b16 %v7827, %v7826
        %v8248 = vpack.c.b16 %v7829, %v7828
        %v8249 = vpack.c.b16 %v7831, %v7830
        %v8250 = vpack.c.b16 %v7833, %v7832
        %v8251 = vpack.c.b16 %v7835, %v7834
        %v8252 = vpack.c.b16 %v7837, %v7836
        %v8253 = vpack.c.b16 %v7839, %v7838
        %v8254 = vpack.c.b16 %v7841, %v7840
        %v8255 = vpack.c.b16 %v7843, %v7842
        %v8256 = vpack.c.b16 %v7845, %v7844
        %v8257 = vpack.c.b16 %v7847, %v7846
        %v8258 = vpack.c.b16 %v7849, %v7848
        %v8259 = vpack.c.b16 %v7851, %v7850
        %v8260 = vpack.c.b16 %v7853, %v7852
        %v8261 = vpack.c.b16 %v7855, %v7854
        %v8262 = vpack.c.b16 %v7857, %v7856
        %v8263 = vpack.c.b16 %v7859, %v7858
        %v8264 = vpack.c.b16 %v7861, %v7860
        %v8265 = vpack.c.b16 %v7863, %v7862
        %v8266 = vpack.c.b16 %v7865, %v7864
        %v8267 = vpack.c.b16 %v7867, %v7866
        %v8268 = vpack.c.b16 %v7869, %v7868
        %v8269 = vpack.c.b16 %v7871, %v7870
        %v8270 = vpack.c.b16 %v7873, %v7872
        %v8271 = vpack.c.b16 %v7875, %v7874
        %v8272 = vpack.c.b16 %v7877, %v7876
        %v8273 = vpack.c.b16 %v7879, %v7878
        %v8274 = vpack.c.b16 %v7881, %v7880
        %v8275 = vpack.c.b16 %v7883, %v7882
        %v8276 = vpack.c.b16 %v7885, %v7884
        %v8277 = vpack.c.b16 %v7887, %v7886
        %v8278 = vpack.c.b16 %v7889, %v7888
        %v8279 = vpack.c.b16 %v7891, %v7890
        %v8280 = vpack.c.b16 %v7893, %v7892
        %v8281 = vpack.c.b16 %v7895, %v7894
        %v8282 = vpack.c.b16 %v7897, %v7896
        %v8283 = vpack.c.b16 %v7899, %v7898
        %v8284 = vpack.c.b16 %v7901, %v7900
        %v8285 = vpack.c.b16 %v7903, %v7902
        %v8286 = vpack.c.b16 %v7905, %v7904
        %v8287 = vpack.c.b16 %v7907, %v7906
        %v8288 = vpack.c.b16 %v7909, %v7908
        %v8289 = vpack.c.b16 %v7911, %v7910
        %v8290 = vpack.c.b16 %v7913, %v7912
        %v8291 = vpack.c.b16 %v7915, %v7914
        %v8292 = vpack.c.b16 %v7917, %v7916
        %v8293 = vpack.c.b16 %v7919, %v7918
        %v8294 = vpack.c.b16 %v7921, %v7920
        %v8295 = vpack.c.b16 %v7923, %v7922
        %v8296 = vpack.c.b16 %v7925, %v7924
        %v8297 = vpack.c.b16 %v7927, %v7926
        %v8298 = vpack.c.b16 %v7929, %v7928
        %v8299 = vpack.c.b16 %v7931, %v7930
        %v8300 = vpack.c.b16 %v7933, %v7932
        %v8301 = vpack.c.b16 %v7935, %v7934
        %v8302 = vpack.c.b16 %v7937, %v7936
        %v8303 = vpack.c.b16 %v7939, %v7938
        %v8304 = vpack.c.b16 %v7941, %v7940
        %v8305 = vpack.c.b16 %v7943, %v7942
        %v8306 = vpack.c.b16 %v7945, %v7944
        %v8307 = vpack.c.b16 %v7947, %v7946
        %v8308 = vpack.c.b16 %v7949, %v7948
        %v8309 = vpack.c.b16 %v7951, %v7950
        %v8310 = vpack.c.b16 %v7953, %v7952
        %v8311 = vpack.c.b16 %v7955, %v7954
        %v8312 = vpack.c.b16 %v7957, %v7956
        %v8313 = vpack.c.b16 %v7959, %v7958
        %v8314 = vpack.c.b16 %v7961, %v7960
        %v8315 = vpack.c.b16 %v7963, %v7962
        %v8316 = vpack.c.b16 %v7965, %v7964
        %v8317 = vpack.c.b16 %v7967, %v7966
        %v8318 = vpack.c.b16 %v7969, %v7968
        %v8319 = vpack.c.b16 %v7971, %v7970
        %v8320 = vpack.c.b16 %v7973, %v7972
        %v8321 = vpack.c.b16 %v7975, %v7974
        %v8322 = vpack.c.b16 %v7977, %v7976
        %v8323 = vpack.c.b16 %v7979, %v7978
        %v8324 = vpack.c.b16 %v7981, %v7980
        %v8325 = vpack.c.b16 %v7983, %v7982
        %v8326 = vpack.c.b16 %v7985, %v7984
        %v8327 = vpack.c.b16 %v7987, %v7986
        %v8328 = vpack.c.b16 %v7989, %v7988
        %v8329 = vpack.c.b16 %v7991, %v7990
        %v8330 = vpack.c.b16 %v7993, %v7992
        %v8331 = vpack.c.b16 %v7995, %v7994
        %v8332 = vpack.c.b16 %v7997, %v7996
        %v8333 = vpack.c.b16 %v7999, %v7998
        %v8334 = vpack.c.b16 %v8001, %v8000
        %v8335 = vpack.c.b16 %v8003, %v8002
        %v8336 = vpack.c.b16 %v8005, %v8004
        %v8337 = vpack.c.b16 %v8007, %v8006
        %v8338 = vpack.c.b16 %v8009, %v8008
        %v8339 = vpack.c.b16 %v8011, %v8010
        %v8340 = vpack.c.b16 %v8013, %v8012
        %v8341 = vpack.c.b16 %v8015, %v8014
        %v8342 = vpack.c.b16 %v8017, %v8016
        %v8343 = vpack.c.b16 %v8019, %v8018
        %v8344 = vpack.c.b16 %v8021, %v8020
        %v8345 = vpack.c.b16 %v8023, %v8022
        %v8346 = vpack.c.b16 %v8025, %v8024
        %v8347 = vpack.c.b16 %v8027, %v8026
        %v8348 = vpack.c.b16 %v8029, %v8028
        %v8349 = vpack.c.b16 %v8031, %v8030
        %v8350 = vpack.c.b16 %v8033, %v8032
        %v8351 = vpack.c.b16 %v8035, %v8034
        %v8352 = vpack.c.b16 %v8037, %v8036
        %v8353 = vpack.c.b16 %v8039, %v8038
        %v8354 = vpack.c.b16 %v8041, %v8040
        %v8355 = vpack.c.b16 %v8043, %v8042
        %v8356 = vpack.c.b16 %v8045, %v8044
        %v8357 = vpack.c.b16 %v8047, %v8046
        %v8358 = vpack.c.b16 %v8049, %v8048
        %v8359 = vpack.c.b16 %v8051, %v8050
        %v8360 = vpack.c.b16 %v8053, %v8052
        %v8361 = vpack.c.b16 %v8055, %v8054
        %v8362 = vpack.c.b16 %v8057, %v8056
        %v8363 = vpack.c.b16 %v8059, %v8058
        %v8364 = vpack.c.b16 %v8061, %v8060
        %v8365 = vpack.c.b16 %v8063, %v8062
        %v8366 = vpack.c.b16 %v8065, %v8064
        %v8367 = vpack.c.b16 %v8067, %v8066
        %v8368 = vpack.c.b16 %v8069, %v8068
        %v8369 = vpack.c.b16 %v8071, %v8070
        %v8370 = vpack.c.b16 %v8073, %v8072
        %v8371 = vpack.c.b16 %v8075, %v8074
        %v8372 = vpack.c.b16 %v8077, %v8076
        %v8373 = vpack.c.b16 %v8079, %v8078
        %v8374 = vpack.c.b16 %v8081, %v8080
        %v8375 = vpack.c.b16 %v8083, %v8082
        %v8376 = vpack.c.b16 %v8085, %v8084
        %v8377 = vpack.c.b16 %v8087, %v8086
        %v8378 = vpack.c.b16 %v8089, %v8088
        %v8379 = vpack.c.b16 %v8091, %v8090
        %v8380 = vpack.c.b16 %v8093, %v8092
        %v8381 = vpack.c.b16 %v8095, %v8094
        %v8382 = vpack.c.b16 %v8097, %v8096
        %v8383 = vpack.c.b16 %v8099, %v8098
        %v8384 = vpack.c.b16 %v8101, %v8100
        %v8385 = vpack.c.b16 %v8103, %v8102
        %v8386 = vpack.c.b16 %v8105, %v8104
        %v8387 = vpack.c.b16 %v8107, %v8106
        %v8388 = vpack.c.b16 %v8109, %v8108
        %v8389 = vpack.c.b16 %v8111, %v8110
        %v8390 = vpack.c.b16 %v8113, %v8112
        %v8391 = vpack.c.b16 %v8115, %v8114
        %v8392 = vpack.c.b16 %v8117, %v8116
        %v8393 = vpack.c.b16 %v8119, %v8118
        %v8394 = vpack.c.b16 %v8121, %v8120
        %v8395 = vpack.c.b16 %v8123, %v8122
        %v8396 = vpack.c.b16 %v8125, %v8124
        %v8397 = vpack.c.b16 %v8127, %v8126
        %v8398 = vpack.c.b16 %v8129, %v8128
        %v8399 = vpack.c.b16 %v8131, %v8130
        %v8400 = vpack.c.b16 %v8133, %v8132
        %v8401 = vpack.c.b16 %v8135, %v8134
        %v8402 = vpack.c.b16 %v8137, %v8136
        %v8403 = vpack.c.b16 %v8139, %v8138
        %v8404 = vpack.c.b16 %v8141, %v8140
        %v8405 = vpack.c.b16 %v8143, %v8142
        %v8406 = vpack.c.b16 %v8145, %v8144
        %v8407 = vpack.c.b16 %v8147, %v8146
        %v8408 = vpack.c.b16 %v8149, %v8148
        %v8409 = vpack.c.b16 %v8151, %v8150
        %v8410 = vpack.c.b16 %v8153, %v8152
        %v8411 = vpack.c.b16 %v8155, %v8154
        %8668 = vmatprep.subr.bf16.mxu0 0
        %8669 = vmatpush1.bf16.msra.mxu0 %v8163
        %8670 = vmatprep.subr.bf16.mxu0 0
        %8671 = vmatpush1.bf16.msra.mxu0 %v8162
        %8672 = vmatprep.subr.bf16.mxu0 0
        %8673 = vmatpush1.bf16.msra.mxu0 %v8161
        %8674 = vmatprep.subr.bf16.mxu0 0
        %8675 = vmatpush1.bf16.msra.mxu0 %v8160
        %8676 = vmatprep.subr.bf16.mxu0 0
        %8677 = vmatpush1.bf16.msra.mxu0 %v8159
        %8678 = vmatprep.subr.bf16.mxu0 0
        %8679 = vmatpush1.bf16.msra.mxu0 %v8158
        %8680 = vmatprep.subr.bf16.mxu0 0
        %8681 = vmatpush1.bf16.msra.mxu0 %v8157
        %8682 = vmatprep.subr.bf16.mxu0 0
        %8683 = vmatpush1.bf16.msra.mxu0 %v8156
        %8684 = vmatprep.subr.bf16.mxu0 0
        %8685 = vmatpush2.bf16.msra.mxu0 %v8171
        %8686 = vmatprep.subr.bf16.mxu0 0
        %8687 = vmatpush2.bf16.msra.mxu0 %v8170
        %8688 = vmatprep.subr.bf16.mxu0 0
        %8689 = vmatpush2.bf16.msra.mxu0 %v8169
        %8690 = vmatprep.subr.bf16.mxu0 0
        %8691 = vmatpush2.bf16.msra.mxu0 %v8168
        %8692 = vmatprep.subr.bf16.mxu0 0
        %8693 = vmatpush2.bf16.msra.mxu0 %v8167
        %8694 = vmatprep.subr.bf16.mxu0 0
        %8695 = vmatpush2.bf16.msra.mxu0 %v8166
        %8696 = vmatprep.subr.bf16.mxu0 0
        %8697 = vmatpush2.bf16.msra.mxu0 %v8165
        %8698 = vmatprep.subr.bf16.mxu0 0
        %8699 = vmatpush2.bf16.msra.mxu0 %v8164
        %8700 = vmatprep.mubr.bf16.mxu0 %v6588
        %8701 = vmatmul.mubr.bf16.gmra.mxu0 %v6587
        %v8702 = vpop.f32.mrf.mxu0
        %v8703 = vadd.f32 %v7131, %v8702
        %v8704 = vpop.f32.mrf.mxu0
        %v8705 = vpop.f32.mrf.mxu0
        %v8706 = vpop.f32.mrf.mxu0
        %8707 = vdwg.mxu0
        %8708 = vmatprep.subr.bf16.mxu0 0
        %8709 = vmatpush1.bf16.msra.mxu0 %v8179
        %8710 = vmatprep.subr.bf16.mxu0 0
        %8711 = vmatpush1.bf16.msra.mxu0 %v8178
        %8712 = vmatprep.subr.bf16.mxu0 0
        %8713 = vmatpush1.bf16.msra.mxu0 %v8177
        %8714 = vmatprep.subr.bf16.mxu0 0
        %8715 = vmatpush1.bf16.msra.mxu0 %v8176
        %8716 = vmatprep.subr.bf16.mxu0 0
        %8717 = vmatpush1.bf16.msra.mxu0 %v8175
        %8718 = vmatprep.subr.bf16.mxu0 0
        %8719 = vmatpush1.bf16.msra.mxu0 %v8174
        %8720 = vmatprep.subr.bf16.mxu0 0
        %8721 = vmatpush1.bf16.msra.mxu0 %v8173
        %8722 = vmatprep.subr.bf16.mxu0 0
        %8723 = vmatpush1.bf16.msra.mxu0 %v8172
        %8724 = vmatprep.subr.bf16.mxu0 0
        %8725 = vmatpush2.bf16.msra.mxu0 %v8187
        %8726 = vmatprep.subr.bf16.mxu0 0
        %8727 = vmatpush2.bf16.msra.mxu0 %v8186
        %8728 = vmatprep.subr.bf16.mxu0 0
        %8729 = vmatpush2.bf16.msra.mxu0 %v8185
        %8730 = vmatprep.subr.bf16.mxu0 0
        %8731 = vmatpush2.bf16.msra.mxu0 %v8184
        %8732 = vmatprep.subr.bf16.mxu0 0
        %8733 = vmatpush2.bf16.msra.mxu0 %v8183
        %8734 = vmatprep.subr.bf16.mxu0 0
        %8735 = vmatpush2.bf16.msra.mxu0 %v8182
        %8736 = vmatprep.subr.bf16.mxu0 0
        %8737 = vmatpush2.bf16.msra.mxu0 %v8181
        %8738 = vmatprep.subr.bf16.mxu0 0
        %8739 = vmatpush2.bf16.msra.mxu0 %v8180
        %8740 = vmatprep.mubr.bf16.mxu0 %v6590
        %8741 = vmatmul.mubr.bf16.gmra.mxu0 %v6589
        %v8742 = vpop.f32.mrf.mxu0
        %v8743 = vadd.f32 %v8703, %v8742
        %v8744 = vpop.f32.mrf.mxu0
        %v8745 = vpop.f32.mrf.mxu0
        %v8746 = vpop.f32.mrf.mxu0
        %8747 = vdwg.mxu0
        %8748 = vmatprep.subr.bf16.mxu0 0
        %8749 = vmatpush1.bf16.msra.mxu0 %v8195
        %8750 = vmatprep.subr.bf16.mxu0 0
        %8751 = vmatpush1.bf16.msra.mxu0 %v8194
        %8752 = vmatprep.subr.bf16.mxu0 0
        %8753 = vmatpush1.bf16.msra.mxu0 %v8193
        %8754 = vmatprep.subr.bf16.mxu0 0
        %8755 = vmatpush1.bf16.msra.mxu0 %v8192
        %8756 = vmatprep.subr.bf16.mxu0 0
        %8757 = vmatpush1.bf16.msra.mxu0 %v8191
        %8758 = vmatprep.subr.bf16.mxu0 0
        %8759 = vmatpush1.bf16.msra.mxu0 %v8190
        %8760 = vmatprep.subr.bf16.mxu0 0
        %8761 = vmatpush1.bf16.msra.mxu0 %v8189
        %8762 = vmatprep.subr.bf16.mxu0 0
        %8763 = vmatpush1.bf16.msra.mxu0 %v8188
        %8764 = vmatprep.subr.bf16.mxu0 0
        %8765 = vmatpush2.bf16.msra.mxu0 %v8203
        %8766 = vmatprep.subr.bf16.mxu0 0
        %8767 = vmatpush2.bf16.msra.mxu0 %v8202
        %8768 = vmatprep.subr.bf16.mxu0 0
        %8769 = vmatpush2.bf16.msra.mxu0 %v8201
        %8770 = vmatprep.subr.bf16.mxu0 0
        %8771 = vmatpush2.bf16.msra.mxu0 %v8200
        %8772 = vmatprep.subr.bf16.mxu0 0
        %8773 = vmatpush2.bf16.msra.mxu0 %v8199
        %8774 = vmatprep.subr.bf16.mxu0 0
        %8775 = vmatpush2.bf16.msra.mxu0 %v8198
        %8776 = vmatprep.subr.bf16.mxu0 0
        %8777 = vmatpush2.bf16.msra.mxu0 %v8197
        %8778 = vmatprep.subr.bf16.mxu0 0
        %8779 = vmatpush2.bf16.msra.mxu0 %v8196
        %8780 = vmatprep.mubr.bf16.mxu0 %v6592
        %8781 = vmatmul.mubr.bf16.gmra.mxu0 %v6591
        %v8782 = vpop.f32.mrf.mxu0
        %v8783 = vadd.f32 %v8743, %v8782
        %v8784 = vpop.f32.mrf.mxu0
        %v8785 = vpop.f32.mrf.mxu0
        %v8786 = vpop.f32.mrf.mxu0
        %8787 = vdwg.mxu0
        %8788 = vmatprep.subr.bf16.mxu0 0
        %8789 = vmatpush1.bf16.msra.mxu0 %v8211
        %8790 = vmatprep.subr.bf16.mxu0 0
        %8791 = vmatpush1.bf16.msra.mxu0 %v8210
        %8792 = vmatprep.subr.bf16.mxu0 0
        %8793 = vmatpush1.bf16.msra.mxu0 %v8209
        %8794 = vmatprep.subr.bf16.mxu0 0
        %8795 = vmatpush1.bf16.msra.mxu0 %v8208
        %8796 = vmatprep.subr.bf16.mxu0 0
        %8797 = vmatpush1.bf16.msra.mxu0 %v8207
        %8798 = vmatprep.subr.bf16.mxu0 0
        %8799 = vmatpush1.bf16.msra.mxu0 %v8206
        %8800 = vmatprep.subr.bf16.mxu0 0
        %8801 = vmatpush1.bf16.msra.mxu0 %v8205
        %8802 = vmatprep.subr.bf16.mxu0 0
        %8803 = vmatpush1.bf16.msra.mxu0 %v8204
        %8804 = vmatprep.subr.bf16.mxu0 0
        %8805 = vmatpush2.bf16.msra.mxu0 %v8219
        %8806 = vmatprep.subr.bf16.mxu0 0
        %8807 = vmatpush2.bf16.msra.mxu0 %v8218
        %8808 = vmatprep.subr.bf16.mxu0 0
        %8809 = vmatpush2.bf16.msra.mxu0 %v8217
        %8810 = vmatprep.subr.bf16.mxu0 0
        %8811 = vmatpush2.bf16.msra.mxu0 %v8216
        %8812 = vmatprep.subr.bf16.mxu0 0
        %8813 = vmatpush2.bf16.msra.mxu0 %v8215
        %8814 = vmatprep.subr.bf16.mxu0 0
        %8815 = vmatpush2.bf16.msra.mxu0 %v8214
        %8816 = vmatprep.subr.bf16.mxu0 0
        %8817 = vmatpush2.bf16.msra.mxu0 %v8213
        %8818 = vmatprep.subr.bf16.mxu0 0
        %8819 = vmatpush2.bf16.msra.mxu0 %v8212
        %8820 = vmatprep.mubr.bf16.mxu0 %v6594
        %8821 = vmatmul.mubr.bf16.gmra.mxu0 %v6593
        %v8822 = vpop.f32.mrf.mxu0
        %v8823 = vadd.f32 %v8783, %v8822
        %v8824 = vpop.f32.mrf.mxu0
        %v8825 = vpop.f32.mrf.mxu0
        %v8826 = vpop.f32.mrf.mxu0
        %8827 = vdwg.mxu0
        %8828 = vmatprep.subr.bf16.mxu0 0
        %8829 = vmatpush1.bf16.msra.mxu0 %v8227
        %8830 = vmatprep.subr.bf16.mxu0 0
        %8831 = vmatpush1.bf16.msra.mxu0 %v8226
        %8832 = vmatprep.subr.bf16.mxu0 0
        %8833 = vmatpush1.bf16.msra.mxu0 %v8225
        %8834 = vmatprep.subr.bf16.mxu0 0
        %8835 = vmatpush1.bf16.msra.mxu0 %v8224
        %8836 = vmatprep.subr.bf16.mxu0 0
        %8837 = vmatpush1.bf16.msra.mxu0 %v8223
        %8838 = vmatprep.subr.bf16.mxu0 0
        %8839 = vmatpush1.bf16.msra.mxu0 %v8222
        %8840 = vmatprep.subr.bf16.mxu0 0
        %8841 = vmatpush1.bf16.msra.mxu0 %v8221
        %8842 = vmatprep.subr.bf16.mxu0 0
        %8843 = vmatpush1.bf16.msra.mxu0 %v8220
        %8844 = vmatprep.subr.bf16.mxu0 0
        %8845 = vmatpush2.bf16.msra.mxu0 %v8235
        %8846 = vmatprep.subr.bf16.mxu0 0
        %8847 = vmatpush2.bf16.msra.mxu0 %v8234
        %8848 = vmatprep.subr.bf16.mxu0 0
        %8849 = vmatpush2.bf16.msra.mxu0 %v8233
        %8850 = vmatprep.subr.bf16.mxu0 0
        %8851 = vmatpush2.bf16.msra.mxu0 %v8232
        %8852 = vmatprep.subr.bf16.mxu0 0
        %8853 = vmatpush2.bf16.msra.mxu0 %v8231
        %8854 = vmatprep.subr.bf16.mxu0 0
        %8855 = vmatpush2.bf16.msra.mxu0 %v8230
        %8856 = vmatprep.subr.bf16.mxu0 0
        %8857 = vmatpush2.bf16.msra.mxu0 %v8229
        %8858 = vmatprep.subr.bf16.mxu0 0
        %8859 = vmatpush2.bf16.msra.mxu0 %v8228
        %8860 = vmatprep.mubr.bf16.mxu0 %v6596
        %8861 = vmatmul.mubr.bf16.gmra.mxu0 %v6595
        %v8862 = vpop.f32.mrf.mxu0
        %v8863 = vadd.f32 %v8823, %v8862
        %v8864 = vpop.f32.mrf.mxu0
        %v8865 = vpop.f32.mrf.mxu0
        %v8866 = vpop.f32.mrf.mxu0
        %8867 = vdwg.mxu0
        %8868 = vmatprep.subr.bf16.mxu0 0
        %8869 = vmatpush1.bf16.msra.mxu0 %v8243
        %8870 = vmatprep.subr.bf16.mxu0 0
        %8871 = vmatpush1.bf16.msra.mxu0 %v8242
        %8872 = vmatprep.subr.bf16.mxu0 0
        %8873 = vmatpush1.bf16.msra.mxu0 %v8241
        %8874 = vmatprep.subr.bf16.mxu0 0
        %8875 = vmatpush1.bf16.msra.mxu0 %v8240
        %8876 = vmatprep.subr.bf16.mxu0 0
        %8877 = vmatpush1.bf16.msra.mxu0 %v8239
        %8878 = vmatprep.subr.bf16.mxu0 0
        %8879 = vmatpush1.bf16.msra.mxu0 %v8238
        %8880 = vmatprep.subr.bf16.mxu0 0
        %8881 = vmatpush1.bf16.msra.mxu0 %v8237
        %8882 = vmatprep.subr.bf16.mxu0 0
        %8883 = vmatpush1.bf16.msra.mxu0 %v8236
        %8884 = vmatprep.subr.bf16.mxu0 0
        %8885 = vmatpush2.bf16.msra.mxu0 %v8251
        %8886 = vmatprep.subr.bf16.mxu0 0
        %8887 = vmatpush2.bf16.msra.mxu0 %v8250
        %8888 = vmatprep.subr.bf16.mxu0 0
        %8889 = vmatpush2.bf16.msra.mxu0 %v8249
        %8890 = vmatprep.subr.bf16.mxu0 0
        %8891 = vmatpush2.bf16.msra.mxu0 %v8248
        %8892 = vmatprep.subr.bf16.mxu0 0
        %8893 = vmatpush2.bf16.msra.mxu0 %v8247
        %8894 = vmatprep.subr.bf16.mxu0 0
        %8895 = vmatpush2.bf16.msra.mxu0 %v8246
        %8896 = vmatprep.subr.bf16.mxu0 0
        %8897 = vmatpush2.bf16.msra.mxu0 %v8245
        %8898 = vmatprep.subr.bf16.mxu0 0
        %8899 = vmatpush2.bf16.msra.mxu0 %v8244
        %8900 = vmatprep.mubr.bf16.mxu0 %v6598
        %8901 = vmatmul.mubr.bf16.gmra.mxu0 %v6597
        %v8902 = vpop.f32.mrf.mxu0
        %v8903 = vadd.f32 %v8863, %v8902
        %v8904 = vpop.f32.mrf.mxu0
        %v8905 = vpop.f32.mrf.mxu0
        %v8906 = vpop.f32.mrf.mxu0
        %8907 = vdwg.mxu0
        %8908 = vmatprep.subr.bf16.mxu0 0
        %8909 = vmatpush1.bf16.msra.mxu0 %v8259
        %8910 = vmatprep.subr.bf16.mxu0 0
        %8911 = vmatpush1.bf16.msra.mxu0 %v8258
        %8912 = vmatprep.subr.bf16.mxu0 0
        %8913 = vmatpush1.bf16.msra.mxu0 %v8257
        %8914 = vmatprep.subr.bf16.mxu0 0
        %8915 = vmatpush1.bf16.msra.mxu0 %v8256
        %8916 = vmatprep.subr.bf16.mxu0 0
        %8917 = vmatpush1.bf16.msra.mxu0 %v8255
        %8918 = vmatprep.subr.bf16.mxu0 0
        %8919 = vmatpush1.bf16.msra.mxu0 %v8254
        %8920 = vmatprep.subr.bf16.mxu0 0
        %8921 = vmatpush1.bf16.msra.mxu0 %v8253
        %8922 = vmatprep.subr.bf16.mxu0 0
        %8923 = vmatpush1.bf16.msra.mxu0 %v8252
        %8924 = vmatprep.subr.bf16.mxu0 0
        %8925 = vmatpush2.bf16.msra.mxu0 %v8267
        %8926 = vmatprep.subr.bf16.mxu0 0
        %8927 = vmatpush2.bf16.msra.mxu0 %v8266
        %8928 = vmatprep.subr.bf16.mxu0 0
        %8929 = vmatpush2.bf16.msra.mxu0 %v8265
        %8930 = vmatprep.subr.bf16.mxu0 0
        %8931 = vmatpush2.bf16.msra.mxu0 %v8264
        %8932 = vmatprep.subr.bf16.mxu0 0
        %8933 = vmatpush2.bf16.msra.mxu0 %v8263
        %8934 = vmatprep.subr.bf16.mxu0 0
        %8935 = vmatpush2.bf16.msra.mxu0 %v8262
        %8936 = vmatprep.subr.bf16.mxu0 0
        %8937 = vmatpush2.bf16.msra.mxu0 %v8261
        %8938 = vmatprep.subr.bf16.mxu0 0
        %8939 = vmatpush2.bf16.msra.mxu0 %v8260
        %8940 = vmatprep.mubr.bf16.mxu0 %v6600
        %8941 = vmatmul.mubr.bf16.gmra.mxu0 %v6599
        %v8942 = vpop.f32.mrf.mxu0
        %v8943 = vadd.f32 %v8903, %v8942
        %v8944 = vpop.f32.mrf.mxu0
        %v8945 = vpop.f32.mrf.mxu0
        %v8946 = vpop.f32.mrf.mxu0
        %8947 = vdwg.mxu0
        %8948 = vmatprep.subr.bf16.mxu0 0
        %8949 = vmatpush1.bf16.msra.mxu0 %v8275
        %8950 = vmatprep.subr.bf16.mxu0 0
        %8951 = vmatpush1.bf16.msra.mxu0 %v8274
        %8952 = vmatprep.subr.bf16.mxu0 0
        %8953 = vmatpush1.bf16.msra.mxu0 %v8273
        %8954 = vmatprep.subr.bf16.mxu0 0
        %8955 = vmatpush1.bf16.msra.mxu0 %v8272
        %8956 = vmatprep.subr.bf16.mxu0 0
        %8957 = vmatpush1.bf16.msra.mxu0 %v8271
        %8958 = vmatprep.subr.bf16.mxu0 0
        %8959 = vmatpush1.bf16.msra.mxu0 %v8270
        %8960 = vmatprep.subr.bf16.mxu0 0
        %8961 = vmatpush1.bf16.msra.mxu0 %v8269
        %8962 = vmatprep.subr.bf16.mxu0 0
        %8963 = vmatpush1.bf16.msra.mxu0 %v8268
        %8964 = vmatprep.subr.bf16.mxu0 0
        %8965 = vmatpush2.bf16.msra.mxu0 %v8283
        %8966 = vmatprep.subr.bf16.mxu0 0
        %8967 = vmatpush2.bf16.msra.mxu0 %v8282
        %8968 = vmatprep.subr.bf16.mxu0 0
        %8969 = vmatpush2.bf16.msra.mxu0 %v8281
        %8970 = vmatprep.subr.bf16.mxu0 0
        %8971 = vmatpush2.bf16.msra.mxu0 %v8280
        %8972 = vmatprep.subr.bf16.mxu0 0
        %8973 = vmatpush2.bf16.msra.mxu0 %v8279
        %8974 = vmatprep.subr.bf16.mxu0 0
        %8975 = vmatpush2.bf16.msra.mxu0 %v8278
        %8976 = vmatprep.subr.bf16.mxu0 0
        %8977 = vmatpush2.bf16.msra.mxu0 %v8277
        %8978 = vmatprep.subr.bf16.mxu0 0
        %8979 = vmatpush2.bf16.msra.mxu0 %v8276
        %8980 = vmatprep.mubr.bf16.mxu0 %v6602
        %8981 = vmatmul.mubr.bf16.gmra.mxu0 %v6601
        %v8982 = vpop.f32.mrf.mxu0
        %v8983 = vadd.f32 %v8943, %v8982
        %v8984 = vpop.f32.mrf.mxu0
        %v8985 = vpop.f32.mrf.mxu0
        %v8986 = vpop.f32.mrf.mxu0
        %8987 = vdwg.mxu0
        %8988 = vmatprep.subr.bf16.mxu0 0
        %8989 = vmatpush1.bf16.msra.mxu0 %v8291
        %8990 = vmatprep.subr.bf16.mxu0 0
        %8991 = vmatpush1.bf16.msra.mxu0 %v8290
        %8992 = vmatprep.subr.bf16.mxu0 0
        %8993 = vmatpush1.bf16.msra.mxu0 %v8289
        %8994 = vmatprep.subr.bf16.mxu0 0
        %8995 = vmatpush1.bf16.msra.mxu0 %v8288
        %8996 = vmatprep.subr.bf16.mxu0 0
        %8997 = vmatpush1.bf16.msra.mxu0 %v8287
        %8998 = vmatprep.subr.bf16.mxu0 0
        %8999 = vmatpush1.bf16.msra.mxu0 %v8286
        %9000 = vmatprep.subr.bf16.mxu0 0
        %9001 = vmatpush1.bf16.msra.mxu0 %v8285
        %9002 = vmatprep.subr.bf16.mxu0 0
        %9003 = vmatpush1.bf16.msra.mxu0 %v8284
        %9004 = vmatprep.subr.bf16.mxu0 0
        %9005 = vmatpush2.bf16.msra.mxu0 %v8299
        %9006 = vmatprep.subr.bf16.mxu0 0
        %9007 = vmatpush2.bf16.msra.mxu0 %v8298
        %9008 = vmatprep.subr.bf16.mxu0 0
        %9009 = vmatpush2.bf16.msra.mxu0 %v8297
        %9010 = vmatprep.subr.bf16.mxu0 0
        %9011 = vmatpush2.bf16.msra.mxu0 %v8296
        %9012 = vmatprep.subr.bf16.mxu0 0
        %9013 = vmatpush2.bf16.msra.mxu0 %v8295
        %9014 = vmatprep.subr.bf16.mxu0 0
        %9015 = vmatpush2.bf16.msra.mxu0 %v8294
        %9016 = vmatprep.subr.bf16.mxu0 0
        %9017 = vmatpush2.bf16.msra.mxu0 %v8293
        %9018 = vmatprep.subr.bf16.mxu0 0
        %9019 = vmatpush2.bf16.msra.mxu0 %v8292
        %9020 = vmatprep.mubr.bf16.mxu0 %v6604
        %9021 = vmatmul.mubr.bf16.gmra.mxu0 %v6603
        %v9022 = vpop.f32.mrf.mxu0
        %v9023 = vadd.f32 %v8983, %v9022
        %v9024 = vpop.f32.mrf.mxu0
        %v9025 = vpop.f32.mrf.mxu0
        %v9026 = vpop.f32.mrf.mxu0
        %9027 = vdwg.mxu0
        %9028 = vmatprep.subr.bf16.mxu0 0
        %9029 = vmatpush1.bf16.msra.mxu0 %v8307
        %9030 = vmatprep.subr.bf16.mxu0 0
        %9031 = vmatpush1.bf16.msra.mxu0 %v8306
        %9032 = vmatprep.subr.bf16.mxu0 0
        %9033 = vmatpush1.bf16.msra.mxu0 %v8305
        %9034 = vmatprep.subr.bf16.mxu0 0
        %9035 = vmatpush1.bf16.msra.mxu0 %v8304
        %9036 = vmatprep.subr.bf16.mxu0 0
        %9037 = vmatpush1.bf16.msra.mxu0 %v8303
        %9038 = vmatprep.subr.bf16.mxu0 0
        %9039 = vmatpush1.bf16.msra.mxu0 %v8302
        %9040 = vmatprep.subr.bf16.mxu0 0
        %9041 = vmatpush1.bf16.msra.mxu0 %v8301
        %9042 = vmatprep.subr.bf16.mxu0 0
        %9043 = vmatpush1.bf16.msra.mxu0 %v8300
        %9044 = vmatprep.subr.bf16.mxu0 0
        %9045 = vmatpush2.bf16.msra.mxu0 %v8315
        %9046 = vmatprep.subr.bf16.mxu0 0
        %9047 = vmatpush2.bf16.msra.mxu0 %v8314
        %9048 = vmatprep.subr.bf16.mxu0 0
        %9049 = vmatpush2.bf16.msra.mxu0 %v8313
        %9050 = vmatprep.subr.bf16.mxu0 0
        %9051 = vmatpush2.bf16.msra.mxu0 %v8312
        %9052 = vmatprep.subr.bf16.mxu0 0
        %9053 = vmatpush2.bf16.msra.mxu0 %v8311
        %9054 = vmatprep.subr.bf16.mxu0 0
        %9055 = vmatpush2.bf16.msra.mxu0 %v8310
        %9056 = vmatprep.subr.bf16.mxu0 0
        %9057 = vmatpush2.bf16.msra.mxu0 %v8309
        %9058 = vmatprep.subr.bf16.mxu0 0
        %9059 = vmatpush2.bf16.msra.mxu0 %v8308
        %9060 = vmatprep.mubr.bf16.mxu0 %v6606
        %9061 = vmatmul.mubr.bf16.gmra.mxu0 %v6605
        %v9062 = vpop.f32.mrf.mxu0
        %v9063 = vadd.f32 %v9023, %v9062
        %v9064 = vpop.f32.mrf.mxu0
        %v9065 = vpop.f32.mrf.mxu0
        %v9066 = vpop.f32.mrf.mxu0
        %9067 = vdwg.mxu0
        %9068 = vmatprep.subr.bf16.mxu0 0
        %9069 = vmatpush1.bf16.msra.mxu0 %v8323
        %9070 = vmatprep.subr.bf16.mxu0 0
        %9071 = vmatpush1.bf16.msra.mxu0 %v8322
        %9072 = vmatprep.subr.bf16.mxu0 0
        %9073 = vmatpush1.bf16.msra.mxu0 %v8321
        %9074 = vmatprep.subr.bf16.mxu0 0
        %9075 = vmatpush1.bf16.msra.mxu0 %v8320
        %9076 = vmatprep.subr.bf16.mxu0 0
        %9077 = vmatpush1.bf16.msra.mxu0 %v8319
        %9078 = vmatprep.subr.bf16.mxu0 0
        %9079 = vmatpush1.bf16.msra.mxu0 %v8318
        %9080 = vmatprep.subr.bf16.mxu0 0
        %9081 = vmatpush1.bf16.msra.mxu0 %v8317
        %9082 = vmatprep.subr.bf16.mxu0 0
        %9083 = vmatpush1.bf16.msra.mxu0 %v8316
        %9084 = vmatprep.subr.bf16.mxu0 0
        %9085 = vmatpush2.bf16.msra.mxu0 %v8331
        %9086 = vmatprep.subr.bf16.mxu0 0
        %9087 = vmatpush2.bf16.msra.mxu0 %v8330
        %9088 = vmatprep.subr.bf16.mxu0 0
        %9089 = vmatpush2.bf16.msra.mxu0 %v8329
        %9090 = vmatprep.subr.bf16.mxu0 0
        %9091 = vmatpush2.bf16.msra.mxu0 %v8328
        %9092 = vmatprep.subr.bf16.mxu0 0
        %9093 = vmatpush2.bf16.msra.mxu0 %v8327
        %9094 = vmatprep.subr.bf16.mxu0 0
        %9095 = vmatpush2.bf16.msra.mxu0 %v8326
        %9096 = vmatprep.subr.bf16.mxu0 0
        %9097 = vmatpush2.bf16.msra.mxu0 %v8325
        %9098 = vmatprep.subr.bf16.mxu0 0
        %9099 = vmatpush2.bf16.msra.mxu0 %v8324
        %9100 = vmatprep.mubr.bf16.mxu0 %v6608
        %9101 = vmatmul.mubr.bf16.gmra.mxu0 %v6607
        %v9102 = vpop.f32.mrf.mxu0
        %v9103 = vadd.f32 %v9063, %v9102
        %v9104 = vpop.f32.mrf.mxu0
        %v9105 = vpop.f32.mrf.mxu0
        %v9106 = vpop.f32.mrf.mxu0
        %9107 = vdwg.mxu0
        %9108 = vmatprep.subr.bf16.mxu0 0
        %9109 = vmatpush1.bf16.msra.mxu0 %v8339
        %9110 = vmatprep.subr.bf16.mxu0 0
        %9111 = vmatpush1.bf16.msra.mxu0 %v8338
        %9112 = vmatprep.subr.bf16.mxu0 0
        %9113 = vmatpush1.bf16.msra.mxu0 %v8337
        %9114 = vmatprep.subr.bf16.mxu0 0
        %9115 = vmatpush1.bf16.msra.mxu0 %v8336
        %9116 = vmatprep.subr.bf16.mxu0 0
        %9117 = vmatpush1.bf16.msra.mxu0 %v8335
        %9118 = vmatprep.subr.bf16.mxu0 0
        %9119 = vmatpush1.bf16.msra.mxu0 %v8334
        %9120 = vmatprep.subr.bf16.mxu0 0
        %9121 = vmatpush1.bf16.msra.mxu0 %v8333
        %9122 = vmatprep.subr.bf16.mxu0 0
        %9123 = vmatpush1.bf16.msra.mxu0 %v8332
        %9124 = vmatprep.subr.bf16.mxu0 0
        %9125 = vmatpush2.bf16.msra.mxu0 %v8347
        %9126 = vmatprep.subr.bf16.mxu0 0
        %9127 = vmatpush2.bf16.msra.mxu0 %v8346
        %9128 = vmatprep.subr.bf16.mxu0 0
        %9129 = vmatpush2.bf16.msra.mxu0 %v8345
        %9130 = vmatprep.subr.bf16.mxu0 0
        %9131 = vmatpush2.bf16.msra.mxu0 %v8344
        %9132 = vmatprep.subr.bf16.mxu0 0
        %9133 = vmatpush2.bf16.msra.mxu0 %v8343
        %9134 = vmatprep.subr.bf16.mxu0 0
        %9135 = vmatpush2.bf16.msra.mxu0 %v8342
        %9136 = vmatprep.subr.bf16.mxu0 0
        %9137 = vmatpush2.bf16.msra.mxu0 %v8341
        %9138 = vmatprep.subr.bf16.mxu0 0
        %9139 = vmatpush2.bf16.msra.mxu0 %v8340
        %9140 = vmatprep.mubr.bf16.mxu0 %v6610
        %9141 = vmatmul.mubr.bf16.gmra.mxu0 %v6609
        %v9142 = vpop.f32.mrf.mxu0
        %v9143 = vadd.f32 %v9103, %v9142
        %v9144 = vpop.f32.mrf.mxu0
        %v9145 = vpop.f32.mrf.mxu0
        %v9146 = vpop.f32.mrf.mxu0
        %9147 = vdwg.mxu0
        %9148 = vmatprep.subr.bf16.mxu0 0
        %9149 = vmatpush1.bf16.msra.mxu0 %v8355
        %9150 = vmatprep.subr.bf16.mxu0 0
        %9151 = vmatpush1.bf16.msra.mxu0 %v8354
        %9152 = vmatprep.subr.bf16.mxu0 0
        %9153 = vmatpush1.bf16.msra.mxu0 %v8353
        %9154 = vmatprep.subr.bf16.mxu0 0
        %9155 = vmatpush1.bf16.msra.mxu0 %v8352
        %9156 = vmatprep.subr.bf16.mxu0 0
        %9157 = vmatpush1.bf16.msra.mxu0 %v8351
        %9158 = vmatprep.subr.bf16.mxu0 0
        %9159 = vmatpush1.bf16.msra.mxu0 %v8350
        %9160 = vmatprep.subr.bf16.mxu0 0
        %9161 = vmatpush1.bf16.msra.mxu0 %v8349
        %9162 = vmatprep.subr.bf16.mxu0 0
        %9163 = vmatpush1.bf16.msra.mxu0 %v8348
        %9164 = vmatprep.subr.bf16.mxu0 0
        %9165 = vmatpush2.bf16.msra.mxu0 %v8363
        %9166 = vmatprep.subr.bf16.mxu0 0
        %9167 = vmatpush2.bf16.msra.mxu0 %v8362
        %9168 = vmatprep.subr.bf16.mxu0 0
        %9169 = vmatpush2.bf16.msra.mxu0 %v8361
        %9170 = vmatprep.subr.bf16.mxu0 0
        %9171 = vmatpush2.bf16.msra.mxu0 %v8360
        %9172 = vmatprep.subr.bf16.mxu0 0
        %9173 = vmatpush2.bf16.msra.mxu0 %v8359
        %9174 = vmatprep.subr.bf16.mxu0 0
        %9175 = vmatpush2.bf16.msra.mxu0 %v8358
        %9176 = vmatprep.subr.bf16.mxu0 0
        %9177 = vmatpush2.bf16.msra.mxu0 %v8357
        %9178 = vmatprep.subr.bf16.mxu0 0
        %9179 = vmatpush2.bf16.msra.mxu0 %v8356
        %9180 = vmatprep.mubr.bf16.mxu0 %v6612
        %9181 = vmatmul.mubr.bf16.gmra.mxu0 %v6611
        %v9182 = vpop.f32.mrf.mxu0
        %v9183 = vadd.f32 %v9143, %v9182
        %v9184 = vpop.f32.mrf.mxu0
        %v9185 = vpop.f32.mrf.mxu0
        %v9186 = vpop.f32.mrf.mxu0
        %9187 = vdwg.mxu0
        %9188 = vmatprep.subr.bf16.mxu0 0
        %9189 = vmatpush1.bf16.msra.mxu0 %v8371
        %9190 = vmatprep.subr.bf16.mxu0 0
        %9191 = vmatpush1.bf16.msra.mxu0 %v8370
        %9192 = vmatprep.subr.bf16.mxu0 0
        %9193 = vmatpush1.bf16.msra.mxu0 %v8369
        %9194 = vmatprep.subr.bf16.mxu0 0
        %9195 = vmatpush1.bf16.msra.mxu0 %v8368
        %9196 = vmatprep.subr.bf16.mxu0 0
        %9197 = vmatpush1.bf16.msra.mxu0 %v8367
        %9198 = vmatprep.subr.bf16.mxu0 0
        %9199 = vmatpush1.bf16.msra.mxu0 %v8366
        %9200 = vmatprep.subr.bf16.mxu0 0
        %9201 = vmatpush1.bf16.msra.mxu0 %v8365
        %9202 = vmatprep.subr.bf16.mxu0 0
        %9203 = vmatpush1.bf16.msra.mxu0 %v8364
        %9204 = vmatprep.subr.bf16.mxu0 0
        %9205 = vmatpush2.bf16.msra.mxu0 %v8379
        %9206 = vmatprep.subr.bf16.mxu0 0
        %9207 = vmatpush2.bf16.msra.mxu0 %v8378
        %9208 = vmatprep.subr.bf16.mxu0 0
        %9209 = vmatpush2.bf16.msra.mxu0 %v8377
        %9210 = vmatprep.subr.bf16.mxu0 0
        %9211 = vmatpush2.bf16.msra.mxu0 %v8376
        %9212 = vmatprep.subr.bf16.mxu0 0
        %9213 = vmatpush2.bf16.msra.mxu0 %v8375
        %9214 = vmatprep.subr.bf16.mxu0 0
        %9215 = vmatpush2.bf16.msra.mxu0 %v8374
        %9216 = vmatprep.subr.bf16.mxu0 0
        %9217 = vmatpush2.bf16.msra.mxu0 %v8373
        %9218 = vmatprep.subr.bf16.mxu0 0
        %9219 = vmatpush2.bf16.msra.mxu0 %v8372
        %9220 = vmatprep.mubr.bf16.mxu0 %v6614
        %9221 = vmatmul.mubr.bf16.gmra.mxu0 %v6613
        %v9222 = vpop.f32.mrf.mxu0
        %v9223 = vadd.f32 %v9183, %v9222
        %v9224 = vpop.f32.mrf.mxu0
        %v9225 = vpop.f32.mrf.mxu0
        %v9226 = vpop.f32.mrf.mxu0
        %9227 = vdwg.mxu0
        %9228 = vmatprep.subr.bf16.mxu0 0
        %9229 = vmatpush1.bf16.msra.mxu0 %v8387
        %9230 = vmatprep.subr.bf16.mxu0 0
        %9231 = vmatpush1.bf16.msra.mxu0 %v8386
        %9232 = vmatprep.subr.bf16.mxu0 0
        %9233 = vmatpush1.bf16.msra.mxu0 %v8385
        %9234 = vmatprep.subr.bf16.mxu0 0
        %9235 = vmatpush1.bf16.msra.mxu0 %v8384
        %9236 = vmatprep.subr.bf16.mxu0 0
        %9237 = vmatpush1.bf16.msra.mxu0 %v8383
        %9238 = vmatprep.subr.bf16.mxu0 0
        %9239 = vmatpush1.bf16.msra.mxu0 %v8382
        %9240 = vmatprep.subr.bf16.mxu0 0
        %9241 = vmatpush1.bf16.msra.mxu0 %v8381
        %9242 = vmatprep.subr.bf16.mxu0 0
        %9243 = vmatpush1.bf16.msra.mxu0 %v8380
        %9244 = vmatprep.subr.bf16.mxu0 0
        %9245 = vmatpush2.bf16.msra.mxu0 %v8395
        %9246 = vmatprep.subr.bf16.mxu0 0
        %9247 = vmatpush2.bf16.msra.mxu0 %v8394
        %9248 = vmatprep.subr.bf16.mxu0 0
        %9249 = vmatpush2.bf16.msra.mxu0 %v8393
        %9250 = vmatprep.subr.bf16.mxu0 0
        %9251 = vmatpush2.bf16.msra.mxu0 %v8392
        %9252 = vmatprep.subr.bf16.mxu0 0
        %9253 = vmatpush2.bf16.msra.mxu0 %v8391
        %9254 = vmatprep.subr.bf16.mxu0 0
        %9255 = vmatpush2.bf16.msra.mxu0 %v8390
        %9256 = vmatprep.subr.bf16.mxu0 0
        %9257 = vmatpush2.bf16.msra.mxu0 %v8389
        %9258 = vmatprep.subr.bf16.mxu0 0
        %9259 = vmatpush2.bf16.msra.mxu0 %v8388
        %9260 = vmatprep.mubr.bf16.mxu0 %v6616
        %9261 = vmatmul.mubr.bf16.gmra.mxu0 %v6615
        %v9262 = vpop.f32.mrf.mxu0
        %v9263 = vadd.f32 %v9223, %v9262
        %v9264 = vpop.f32.mrf.mxu0
        %v9265 = vpop.f32.mrf.mxu0
        %v9266 = vpop.f32.mrf.mxu0
        %9267 = vdwg.mxu0
        %9268 = vmatprep.subr.bf16.mxu0 0
        %9269 = vmatpush1.bf16.msra.mxu0 %v8403
        %9270 = vmatprep.subr.bf16.mxu0 0
        %9271 = vmatpush1.bf16.msra.mxu0 %v8402
        %9272 = vmatprep.subr.bf16.mxu0 0
        %9273 = vmatpush1.bf16.msra.mxu0 %v8401
        %9274 = vmatprep.subr.bf16.mxu0 0
        %9275 = vmatpush1.bf16.msra.mxu0 %v8400
        %9276 = vmatprep.subr.bf16.mxu0 0
        %9277 = vmatpush1.bf16.msra.mxu0 %v8399
        %9278 = vmatprep.subr.bf16.mxu0 0
        %9279 = vmatpush1.bf16.msra.mxu0 %v8398
        %9280 = vmatprep.subr.bf16.mxu0 0
        %9281 = vmatpush1.bf16.msra.mxu0 %v8397
        %9282 = vmatprep.subr.bf16.mxu0 0
        %9283 = vmatpush1.bf16.msra.mxu0 %v8396
        %9284 = vmatprep.subr.bf16.mxu0 0
        %9285 = vmatpush2.bf16.msra.mxu0 %v8411
        %9286 = vmatprep.subr.bf16.mxu0 0
        %9287 = vmatpush2.bf16.msra.mxu0 %v8410
        %9288 = vmatprep.subr.bf16.mxu0 0
        %9289 = vmatpush2.bf16.msra.mxu0 %v8409
        %9290 = vmatprep.subr.bf16.mxu0 0
        %9291 = vmatpush2.bf16.msra.mxu0 %v8408
        %9292 = vmatprep.subr.bf16.mxu0 0
        %9293 = vmatpush2.bf16.msra.mxu0 %v8407
        %9294 = vmatprep.subr.bf16.mxu0 0
        %9295 = vmatpush2.bf16.msra.mxu0 %v8406
        %9296 = vmatprep.subr.bf16.mxu0 0
        %9297 = vmatpush2.bf16.msra.mxu0 %v8405
        %9298 = vmatprep.subr.bf16.mxu0 0
        %9299 = vmatpush2.bf16.msra.mxu0 %v8404
        %9300 = vmatprep.mubr.bf16.mxu0 %v6618
        %9301 = vmatmul.mubr.bf16.gmra.mxu0 %v6617
        %v9302 = vpop.f32.mrf.mxu0
        %v9303 = vadd.f32 %v9263, %v9302
        %v9304 = vpop.f32.mrf.mxu0
        %v9305 = vpop.f32.mrf.mxu0
        %v9306 = vpop.f32.mrf.mxu0
        %9307 = vdwg.mxu0
        %v9308 = vmax.f32 %v9303, 0.0
        %v9309 = vpack.c.bf16 %v9308, %v9308
        %v9310 = vld [vmem:[%s7] sm:$0xf]
        %v9311 = vld [vmem:[%s7 + $0x4] sm:$0xf]
        %v9312 = vld [vmem:[%s7 + $0x8] sm:$0xf]
        %v9313 = vld [vmem:[%s7 + $0xc] sm:$0xf]
        %v9314 = vld [vmem:[%s7 + $0x10] sm:$0xf]
        %v9315 = vld [vmem:[%s7 + $0x14] sm:$0xf]
        %v9316 = vld [vmem:[%s7 + $0x18] sm:$0xf]
        %v9317 = vld [vmem:[%s7 + $0x1c] sm:$0xf]
        %v9318 = vld [vmem:[%s7 + $0x20] sm:$0xf]
        %v9319 = vld [vmem:[%s7 + $0x24] sm:$0xf]
        %v9320 = vld [vmem:[%s7 + $0x28] sm:$0xf]
        %v9321 = vld [vmem:[%s7 + $0x2c] sm:$0xf]
        %v9322 = vld [vmem:[%s7 + $0x30] sm:$0xf]
        %v9323 = vld [vmem:[%s7 + $0x34] sm:$0xf]
        %v9324 = vld [vmem:[%s7 + $0x38] sm:$0xf]
        %v9325 = vld [vmem:[%s7 + $0x3c] sm:$0xf]
        %v9326 = vld [vmem:[%s8] sm:$0x1]
        %v9343 = vunpack.c.l.b16 %v9310
        %v9344 = vunpack.c.l.b16 %v9311
        %v9345 = vunpack.c.l.b16 %v9312
        %v9346 = vunpack.c.l.b16 %v9313
        %v9347 = vunpack.c.l.b16 %v9314
        %v9348 = vunpack.c.l.b16 %v9315
        %v9349 = vunpack.c.l.b16 %v9316
        %v9350 = vunpack.c.l.b16 %v9317
        %v9351 = vunpack.c.l.b16 %v9318
        %v9352 = vunpack.c.l.b16 %v9319
        %v9353 = vunpack.c.l.b16 %v9320
        %v9354 = vunpack.c.l.b16 %v9321
        %v9355 = vunpack.c.l.b16 %v9322
        %v9356 = vunpack.c.l.b16 %v9323
        %v9357 = vunpack.c.l.b16 %v9324
        %v9358 = vunpack.c.l.b16 %v9325
        %v9359 = vpack.c.b16 %v9344, %v9343
        %v9360 = vpack.c.b16 %v9346, %v9345
        %v9361 = vpack.c.b16 %v9348, %v9347
        %v9362 = vpack.c.b16 %v9350, %v9349
        %v9363 = vpack.c.b16 %v9352, %v9351
        %v9364 = vpack.c.b16 %v9354, %v9353
        %v9365 = vpack.c.b16 %v9356, %v9355
        %v9366 = vpack.c.b16 %v9358, %v9357
        %9375 = vmatprep.subr.bf16.mxu0 0
        %9376 = vmatpush1.bf16.msra.mxu0 %v9366
        %9377 = vmatprep.subr.bf16.mxu0 0
        %9378 = vmatpush1.bf16.msra.mxu0 %v9365
        %9379 = vmatprep.subr.bf16.mxu0 0
        %9380 = vmatpush1.bf16.msra.mxu0 %v9364
        %9381 = vmatprep.subr.bf16.mxu0 0
        %9382 = vmatpush1.bf16.msra.mxu0 %v9363
        %9383 = vmatprep.subr.bf16.mxu0 0
        %9384 = vmatpush1.bf16.msra.mxu0 %v9362
        %9385 = vmatprep.subr.bf16.mxu0 0
        %9386 = vmatpush1.bf16.msra.mxu0 %v9361
        %9387 = vmatprep.subr.bf16.mxu0 0
        %9388 = vmatpush1.bf16.msra.mxu0 %v9360
        %9389 = vmatprep.subr.bf16.mxu0 0
        %9390 = vmatpush1.bf16.msra.mxu0 %v9359
        %9391 = vmatprep.subr.bf16.mxu0 0
        %9392 = vmatpush2.bf16.msra.mxu0 0
        %9393 = vmatprep.subr.bf16.mxu0 0
        %9394 = vmatpush2.bf16.msra.mxu0 0
        %9395 = vmatprep.subr.bf16.mxu0 0
        %9396 = vmatpush2.bf16.msra.mxu0 0
        %9397 = vmatprep.subr.bf16.mxu0 0
        %9398 = vmatpush2.bf16.msra.mxu0 0
        %9399 = vmatprep.subr.bf16.mxu0 0
        %9400 = vmatpush2.bf16.msra.mxu0 0
        %9401 = vmatprep.subr.bf16.mxu0 0
        %9402 = vmatpush2.bf16.msra.mxu0 0
        %9403 = vmatprep.subr.bf16.mxu0 0
        %9404 = vmatpush2.bf16.msra.mxu0 0
        %9405 = vmatprep.subr.bf16.mxu0 0
        %9406 = vmatpush2.bf16.msra.mxu0 0
        %9407 = vmatprep.mubr.bf16.mxu0 0
        %9408 = vmatmul.mubr.bf16.gmra.mxu0 %v9309
        %v9409 = vpop.f32.mrf.mxu0
        %v9410 = vadd.f32 %v9326, %v9409
        %v9411 = vpop.f32.mrf.mxu0
        %v9412 = vpop.f32.mrf.mxu0
        %v9413 = vpop.f32.mrf.mxu0
        %9414 = vdwg.mxu0
        %9415 = vst [vmem:[%s324] sm:$0x1] %v9410
        %s9416 = sand.u32 %s225, 1
        %s9417 = scalar_lea.sflag [#allocation7], %s9416
        %s9418 = sand.u32 %s225, 1
        %s9419 = scalar_lea.vmem [#allocation6], %s9418
        // Predicated region
        $region57: #{simple_cnn_forward.1} parent=55 // pred_check
          %p9420 = pneg %p235
        $region58: #{simple_cnn_forward.1} parent=55 // pred_check_branch
          %9422 = sbr.rel (%p9420) target = $region60
        $region59: #{simple_cnn_forward.1} parent=55 // pred_region
          %s9424 = ssub.s32 16, 16
          %9425 = vsyncadd %s9417, %s9424
          %s9426 = smul.addr %s23, 16
          %s9427 = scalar_lea.hbm %s9, %s9426
          %s9429 = sshll.u32 %s9419, 4
          %s9430 = int_to_ptr.vmem [resolvable:$true] %s9429
          %9432 = dma.vmem_to_hbm [thread:$0]  %s9430, 16, %s9427, %s9417
        $region60: #{simple_cnn_forward.1} parent=55 // pred_fallthru
          _
      $region56: #{simple_cnn_forward.1} parent=5 // pred_fallthru
        _
      %p9433 = scmp.le.s32.totalorder 2, %s18
      // Predicated region
      $region61: #{simple_cnn_forward.1} parent=5 // pred_check
        %p9434 = pneg %p9433
      $region62: #{simple_cnn_forward.1} parent=5 // pred_check_branch
        %9436 = sbr.rel (%p9434) target = $region64
      $region63: #{simple_cnn_forward.1} parent=5 // pred_region
        %s9437 = ssub.s32 %s18, 2
        // Predicated region
        $region65: #{simple_cnn_forward.1} parent=63 // pred_check
          %p9438 = pneg %p241
        $region66: #{simple_cnn_forward.1} parent=63 // pred_check_branch
          %9440 = sbr.rel (%p9438) target = $region68
        $region67: #{simple_cnn_forward.1} parent=63 // pred_region
          %s9441 = sand.u32 %s226, 1
          %s9442 = scalar_lea.sflag [#allocation7], %s9441
          %s9443 = sand.u32 %s226, 1
          %s9444 = scalar_lea.vmem [#allocation6], %s9443
          %9445 = dma.done %s9442, 16
        $region68: #{simple_cnn_forward.1} parent=63 // pred_fallthru
          _
      $region64: #{simple_cnn_forward.1} parent=5 // pred_fallthru
        _
    $region6: #{simple_cnn_forward.1} parent=1 // loop_footer
      %s22 = sadd.s32 1, %s18
    $region7: #{simple_cnn_forward.1} parent=1 // loop_footer_branch
      %17 = sbr.rel target = $region3
    $region8: #{simple_cnn_forward.1} parent=1 // loop_exit
      _
    %9446 = vsyncpa [#allocation7], 1
    %s9447 = scalar_lea.sflag [#allocation7], 1
    %9448 = vsyncpa %s9447, 1

</llo_original>
